<compile_context>
chip_gen: v7x
topology: tpu7x:2x2x1
jax: 0.10.0
libtpu: 0.0.40
codegen_flags: <defaults>
</compile_context>

<pallas_src>
import numpy as np
import jax
import jax.numpy as jnp
from jax.experimental import pallas as pl
from jax.experimental.pallas import tpu as pltpu


def _pick_tile_h(H, target=8):
    """Largest divisor of H that is <= target and a multiple of 8 (or H itself)."""
    if H <= target:
        return H
    for t in range(min(target, H), 0, -1):
        if H % t == 0 and (t % 8 == 0 or t == H):
            return t
    return H


# ---------------------------------------------------------------------------
# Fused kernel: ResBlock + up-conv + PixelShuffle + 1x1 fs conv.
# One grid step == one (image, TILE_H-row) tile.
# ---------------------------------------------------------------------------
def _make_fused_kernel(H, W, C, C1, Cout, T, n_tiles, res_scale):
    Wp = W + 2                      # width of the zero-halo h/out0 VMEM buffers
    bf16 = jnp.bfloat16
    f32 = jnp.float32

    def kernel(x0p_ref, x1_ref, w1_ref, b1_ref, w2_ref, b2_ref,
               wu_ref, bu_ref, wa_ref, wb_ref, bfs_ref,
               o0_ref, o1_ref,
               patch_ref, hbuf_ref, obuf_ref):
        t = pl.program_id(1)
        a = pl.multiple_of(t * T, T)               # first out0 / u row of this tile
        is_first = t == 0
        is_last = t == n_tiles - 1

        def conv3x3(tap, rows, w_ref, b_ref):
            # Build the (rows*W, 9*C) im2col patch with one slab store per tap into the
            # shared bf16 scratch, then one K-stacked MXU dot with f32 accumulation.
            k = 0
            for dh in range(3):
                for dw in range(3):
                    patch_ref[0:rows, :, k * C:(k + 1) * C] = tap(dh, dw)
                    k += 1
            p = patch_ref[0:rows].reshape(rows * W, 9 * C)
            return jnp.dot(p, w_ref[...], preferred_element_type=f32) + b_ref[...]

        # ---- ResBlock conv1 + ReLU : h rows [a-2, a+T+2) ------------------------------
        h = conv3x3(lambda dh, dw: x0p_ref[pl.ds(a + dh, T + 4), dw:dw + W, :].astype(bf16),
                    T + 4, w1_ref, b1_ref)
        h = jnp.maximum(h, 0.0)

        hbuf_ref[:, 1:W + 1, :] = h.reshape(T + 4, W, C).astype(bf16)
        hbuf_ref[:, 0:1, :] = jnp.zeros((T + 4, 1, C), bf16)            # width halo
        hbuf_ref[:, W + 1:W + 2, :] = jnp.zeros((T + 4, 1, C), bf16)

        @pl.when(is_first)
        def _():                                                         # h rows -2, -1
            hbuf_ref[0:2, :, :] = jnp.zeros((2, Wp, C), bf16)

        @pl.when(is_last)
        def _():                                                         # h rows H, H+1
            hbuf_ref[T + 2:T + 4, :, :] = jnp.zeros((2, Wp, C), bf16)

        # ---- ResBlock conv2 + res_scale + residual : out0 rows [a-1, a+T+1) -----------
        r = conv3x3(lambda dh, dw: hbuf_ref[dh:dh + T + 2, dw:dw + W, :],
                    T + 2, w2_ref, b2_ref)
        if res_scale != 1.0:
            r = r * res_scale
        x_res = x0p_ref[pl.ds(a + 2, T + 2), 1:W + 1, :]                 # f32 exact residual
        out0 = r.reshape(T + 2, W, C) + x_res

        # lane-dense HBM store of this tile's T "real" rows
        o0_ref[...] = out0[1:T + 1].reshape(T, W * C).astype(o0_ref.dtype)

        obuf_ref[:, 1:W + 1, :] = out0.astype(bf16)
        obuf_ref[:, 0:1, :] = jnp.zeros((T + 2, 1, C), bf16)
        obuf_ref[:, W + 1:W + 2, :] = jnp.zeros((T + 2, 1, C), bf16)

        @pl.when(is_first)
        def _():                                                         # out0 row -1
            obuf_ref[0:1, :, :] = jnp.zeros((1, Wp, C), bf16)

        @pl.when(is_last)
        def _():                                                         # out0 row H
            obuf_ref[T + 1:T + 2, :, :] = jnp.zeros((1, Wp, C), bf16)

        # ---- Upsampler conv (C -> 4C) : u rows [a, a+T), kept entirely in VMEM --------
        u = conv3x3(lambda dh, dw: obuf_ref[dh:dh + T, dw:dw + W, :], T, wu_ref, bu_ref)
        u = u.astype(bf16).reshape(T, W, 4 * C)

        # ---- PixelShuffle(2) on the VMEM tile (channel groups pre-permuted) -----------
        rows2 = []
        for i in range(2):
            g0 = u[:, :, (2 * i) * C:(2 * i + 1) * C][:, :, None, :]     # sub-pixel (i, 0)
            g1 = u[:, :, (2 * i + 1) * C:(2 * i + 2) * C][:, :, None, :]  # sub-pixel (i, 1)
            rows2.append(jnp.concatenate([g0, g1], axis=2).reshape(T, 2 * W, C))
        U = jnp.concatenate([rows2[0][:, None], rows2[1][:, None]],
                            axis=1).reshape(4 * T * W, C)                # (2T*2W, C) bf16

        # ---- fused 1x1 "fs" conv on [x1 ; shuffled up] ---------------------------------
        xin = x1_ref[...].reshape(4 * T * W, C1).astype(bf16)
        acc = jnp.dot(xin, wa_ref[...], preferred_element_type=f32)
        acc = acc + jnp.dot(U, wb_ref[...], preferred_element_type=f32)
        acc = acc + bfs_ref[...]
        o1_ref[...] = acc.reshape(2 * T, 2 * W, Cout).astype(o1_ref.dtype)

    return kernel


# ---------------------------------------------------------------------------
# Parameter prep (PyTorch OIHW weights -> kernel layouts, bf16 matmul operands).
# ---------------------------------------------------------------------------
def prepare_params(W1, b1, W2, b2, Wu, bu, Wf, bf, n_feats):
    def to_k9(w_oihw):     # (Cout, Cin, 3, 3) -> (9*Cin, Cout), taps (dh, dw) row-major
        co, ci = w_oihw.shape[0], w_oihw.shape[1]
        return jnp.transpose(w_oihw, (2, 3, 1, 0)).reshape(9 * ci, co).astype(jnp.bfloat16)

    # Permute up-conv output channels so PixelShuffle's 4 sub-pixel groups become
    # contiguous n_feats-channel slabs:  new channel g*nf + c  <-  old channel c*4 + g.
    perm = np.asarray([c * 4 + g for g in range(4) for c in range(n_feats)])
    Wu_p, bu_p = Wu[perm], bu[perm]

    c1 = Wf.shape[1] - n_feats                 # channels coming from x[1]
    wf2d = Wf[:, :, 0, 0]                      # (256, 320)
    return dict(
        w_res1=to_k9(W1), b_res1=b1.reshape(1, -1),
        w_res2=to_k9(W2), b_res2=b2.reshape(1, -1),
        w_up=to_k9(Wu_p), b_up=bu_p.reshape(1, -1),
        w_fs_a=jnp.transpose(wf2d[:, :c1]).astype(jnp.bfloat16),   # (c1, 256)  for x[1]
        w_fs_b=jnp.transpose(wf2d[:, c1:]).astype(jnp.bfloat16),   # (nf, 256)  for shuffled up
        b_fs=bf.reshape(1, -1),
    )


# ---------------------------------------------------------------------------
# Full forward, matching lastMultiBlock_2.forward (inputs/outputs NCHW).
# ---------------------------------------------------------------------------
def last_multi_block_2_forward(x0_nchw, x1_nchw, p, res_scale=1.0, tile_h=None):
    x0 = jnp.transpose(x0_nchw, (0, 2, 3, 1))            # NCHW -> NHWC (glue)
    x1 = jnp.transpose(x1_nchw, (0, 2, 3, 1))
    N, H, W, C = x0.shape
    C1 = x1.shape[-1]
    Cout = p['w_fs_a'].shape[-1]

    T = tile_h if tile_h is not None else _pick_tile_h(H)
    assert H % T == 0, "TILE_H must divide H"
    n_tiles = H // T

    # Tiny one-time zero pad of the 64-ch input (3-row / 1-col halo for the three chained
    # 3x3 convs).  The padded image stays VMEM-resident per image; intermediates never
    # touch HBM.
    x0p = jnp.pad(x0, ((0, 0), (3, 3), (1, 1), (0, 0)))

    kernel = _make_fused_kernel(H, W, C, C1, Cout, T, n_tiles, float(res_scale))

    def wspec(shape):                                    # resident weights: single buffer
        return pl.BlockSpec(shape, lambda n, t: (0,) * len(shape),
                            pipeline_mode=pl.Buffered(1))

    out0_flat, out1 = pl.pallas_call(
        kernel,
        out_shape=(jax.ShapeDtypeStruct((N, H, W * C), x0.dtype),     # lane-dense out0
                   jax.ShapeDtypeStruct((N, 2 * H, 2 * W, Cout), x0.dtype)),
        grid=(N, n_tiles),
        in_specs=[
            pl.BlockSpec((None, H + 6, W + 2, C), lambda n, t: (n, 0, 0, 0)),   # x0 resident
            pl.BlockSpec((None, 2 * T, 2 * W, C1), lambda n, t: (n, t, 0, 0)),  # x1 row tile
            wspec((9 * C, C)), wspec((1, C)),            # conv1
            wspec((9 * C, C)), wspec((1, C)),            # conv2
            wspec((9 * C, 4 * C)), wspec((1, 4 * C)),    # up-conv
            wspec((C1, Cout)), wspec((C, Cout)), wspec((1, Cout)),     # fs
        ],
        out_specs=[
            pl.BlockSpec((None, T, W * C), lambda n, t: (n, t, 0)),
            pl.BlockSpec((None, 2 * T, 2 * W, Cout), lambda n, t: (n, t, 0, 0)),
        ],
        scratch_shapes=[
            pltpu.VMEM((T + 4, W, 9 * C), jnp.bfloat16),   # shared im2col patch
            pltpu.VMEM((T + 4, W + 2, C), jnp.bfloat16),   # zero-halo conv1 activation
            pltpu.VMEM((T + 2, W + 2, C), jnp.bfloat16),   # zero-halo out0
        ],
        compiler_params=pltpu.CompilerParams(
            dimension_semantics=("parallel", "parallel")),
    )(x0p, x1, p['w_res1'], p['b_res1'], p['w_res2'], p['b_res2'],
      p['w_up'], p['b_up'], p['w_fs_a'], p['w_fs_b'], p['b_fs'])

    out0 = out0_flat.reshape(N, H, W, C)
    return (jnp.transpose(out0, (0, 3, 1, 2)),
            jnp.transpose(out1, (0, 3, 1, 2)))


# ---------------------------------------------------------------------------
# Pure-JAX (lax.conv, f32) NCHW reference for correctness checking.
# ---------------------------------------------------------------------------
def _reference_forward(x0, x1, W1, b1, W2, b2, Wu, bu, Wf, bf, res_scale=1.0):
    def conv(x, w, b, pad):
        y = jax.lax.conv_general_dilated(
            x, w, (1, 1), [(pad, pad), (pad, pad)],
            dimension_numbers=('NCHW', 'OIHW', 'NCHW'))
        return y + b[None, :, None, None]
    h = jax.nn.relu(conv(x0, W1, b1, 1))
    out0 = conv(h, W2, b2, 1) * res_scale + x0
    u = conv(out0, Wu, bu, 1)
    N, Crr, H, W = u.shape
    C = Crr // 4
    u = u.reshape(N, C, 2, 2, H, W).transpose(0, 1, 4, 2, 5, 3).reshape(N, C, 2 * H, 2 * W)
    cat = jnp.concatenate([x1, u], axis=1)
    out1 = conv(cat, Wf, bf, 0)
    return out0, out1


if __name__ == "__main__":
    n_feats = 64
    # H=24 with TILE_H=8 -> 3 row tiles per image, exercising the first / interior / last
    # halo code paths; grid = (2, 3) = 6 parallel programs.
    N, H, W = 2, 24, 8
    keys = jax.random.split(jax.random.PRNGKey(0), 10)

    # inputs (NCHW like PyTorch): x[0] feeds the ResBlock, x[1] feeds the concat
    x0 = jax.random.normal(keys[0], (N, n_feats, H, W), jnp.float32)
    x1 = jax.random.normal(keys[1], (N, 320 - n_feats, 2 * H, 2 * W), jnp.float32)

    # deterministic synthetic parameters (PyTorch OIHW shapes)
    W1 = jax.random.normal(keys[2], (n_feats, n_feats, 3, 3), jnp.float32) * 0.05
    b1 = jax.random.normal(keys[3], (n_feats,), jnp.float32) * 0.05
    W2 = jax.random.normal(keys[4], (n_feats, n_feats, 3, 3), jnp.float32) * 0.05
    b2 = jax.random.normal(keys[5], (n_feats,), jnp.float32) * 0.05
    Wu = jax.random.normal(keys[6], (4 * n_feats, n_feats, 3, 3), jnp.float32) * 0.05
    bu = jax.random.normal(keys[7], (4 * n_feats,), jnp.float32) * 0.05
    Wf = jax.random.normal(keys[8], (256, 320, 1, 1), jnp.float32) * 0.05
    bf = jax.random.normal(keys[9], (256,), jnp.float32) * 0.05

    params = prepare_params(W1, b1, W2, b2, Wu, bu, Wf, bf, n_feats)

    fwd = jax.jit(lambda a, b: last_multi_block_2_forward(a, b, params, res_scale=1.0))
    out0, out1 = fwd(x0, x1)
    jax.block_until_ready(out0)
    jax.block_until_ready(out1)

    ref0, ref1 = _reference_forward(x0, x1, W1, b1, W2, b2, Wu, bu, Wf, bf, 1.0)
    # bf16 MXU operands with f32 accumulation vs. the pure-f32 lax.conv reference:
    # rounding error stays ~1e-2 at these magnitudes, while structural bugs (wrong tap,
    # wrong shuffle, wrong halo) show up as O(1) errors.
    np.testing.assert_allclose(np.asarray(out0), np.asarray(ref0), rtol=5e-2, atol=5e-2)
    np.testing.assert_allclose(np.asarray(out1), np.asarray(ref1), rtol=5e-2, atol=5e-2)
    assert out0.shape == (N, n_feats, H, W)
    assert out1.shape == (N, 256, 2 * H, 2 * W)

    print("KERNEL_OK")
</pallas_src>

<mosaic_0001>
module attributes {stable_mosaic.version = 11 : i64} {
  func.func @kernel(%arg0: i32, %arg1: i32, %arg2: memref<1x30x10x64xf32, #tpu.memory_space<vmem>>, %arg3: memref<1x16x16x256xf32, #tpu.memory_space<vmem>>, %arg4: memref<576x64xbf16, #tpu.memory_space<vmem>>, %arg5: memref<1x64xf32, #tpu.memory_space<vmem>>, %arg6: memref<576x64xbf16, #tpu.memory_space<vmem>>, %arg7: memref<1x64xf32, #tpu.memory_space<vmem>>, %arg8: memref<576x256xbf16, #tpu.memory_space<vmem>>, %arg9: memref<1x256xf32, #tpu.memory_space<vmem>>, %arg10: memref<256x256xbf16, #tpu.memory_space<vmem>>, %arg11: memref<64x256xbf16, #tpu.memory_space<vmem>>, %arg12: memref<1x256xf32, #tpu.memory_space<vmem>>, %arg13: memref<1x8x512xf32, #tpu.memory_space<vmem>>, %arg14: memref<1x16x16x256xf32, #tpu.memory_space<vmem>>, %arg15: memref<12x8x576xbf16, #tpu.memory_space<vmem>>, %arg16: memref<12x10x64xbf16, #tpu.memory_space<vmem>>, %arg17: memref<10x10x64xbf16, #tpu.memory_space<vmem>>) attributes {dimension_semantics = [#tpu.dimension_semantics<parallel>, #tpu.dimension_semantics<parallel>], iteration_bounds = array<i64: 2, 3>, scalar_prefetch = 0 : i64, scratch_operands = 3 : i64, tpu.core_type = #tpu.core_type<tc>, window_params = [{transform_indices = @transform_0, window_bounds = array<i64: 1, 30, 10, 64>}, {transform_indices = @transform_1, window_bounds = array<i64: 1, 16, 16, 256>}, {pipeline_mode = #tpu.pipeline_mode<synchronous>, transform_indices = @transform_2, window_bounds = array<i64: 576, 64>}, {pipeline_mode = #tpu.pipeline_mode<synchronous>, transform_indices = @transform_3, window_bounds = array<i64: 1, 64>}, {pipeline_mode = #tpu.pipeline_mode<synchronous>, transform_indices = @transform_4, window_bounds = array<i64: 576, 64>}, {pipeline_mode = #tpu.pipeline_mode<synchronous>, transform_indices = @transform_5, window_bounds = array<i64: 1, 64>}, {pipeline_mode = #tpu.pipeline_mode<synchronous>, transform_indices = @transform_6, window_bounds = array<i64: 576, 256>}, {pipeline_mode = #tpu.pipeline_mode<synchronous>, transform_indices = @transform_7, window_bounds = array<i64: 1, 256>}, {pipeline_mode = #tpu.pipeline_mode<synchronous>, transform_indices = @transform_8, window_bounds = array<i64: 256, 256>}, {pipeline_mode = #tpu.pipeline_mode<synchronous>, transform_indices = @transform_9, window_bounds = array<i64: 64, 256>}, {pipeline_mode = #tpu.pipeline_mode<synchronous>, transform_indices = @transform_10, window_bounds = array<i64: 1, 256>}, {transform_indices = @transform_11, window_bounds = array<i64: 1, 8, 512>}, {transform_indices = @transform_12, window_bounds = array<i64: 1, 16, 16, 256>}]} {
    %c8_i32 = arith.constant 8 : i32
    %0 = arith.muli %arg1, %c8_i32 : i32
    %1 = tpu.assume_multiple %0, 8 : i32
    %c0_i32 = arith.constant 0 : i32
    %2 = arith.cmpi eq, %arg1, %c0_i32 : i32
    %c2_i32 = arith.constant 2 : i32
    %3 = arith.cmpi eq, %arg1, %c2_i32 : i32
    %c0_i32_0 = arith.constant 0 : i32
    %4 = arith.addi %1, %c0_i32_0 : i32
    %c0 = arith.constant 0 : index
    %5 = arith.index_cast %4 : i32 to index
    %c0_1 = arith.constant 0 : index
    %c0_2 = arith.constant 0 : index
    %6 = vector.load %arg2[%c0, %5, %c0_1, %c0_2] : memref<1x30x10x64xf32, #tpu.memory_space<vmem>>, vector<1x12x8x64xf32>
    %7 = vector.shape_cast %6 : vector<1x12x8x64xf32> to vector<12x8x64xf32>
    %8 = arith.truncf %7 : vector<12x8x64xf32> to vector<12x8x64xbf16>
    %c0_3 = arith.constant 0 : index
    %c0_4 = arith.constant 0 : index
    %c0_5 = arith.constant 0 : index
    %9 = vector.load %arg15[%c0_3, %c0_4, %c0_5] : memref<12x8x576xbf16, #tpu.memory_space<vmem>>, vector<12x8x64xbf16>
    tpu.vector_store %arg15[%c0_3, %c0_4, %c0_5], %8 {strides = array<i32>} : memref<12x8x576xbf16, #tpu.memory_space<vmem>>, vector<12x8x64xbf16>,
    %c0_i32_6 = arith.constant 0 : i32
    %10 = arith.addi %1, %c0_i32_6 : i32
    %c0_7 = arith.constant 0 : index
    %11 = arith.index_cast %10 : i32 to index
    %c1 = arith.constant 1 : index
    %c0_8 = arith.constant 0 : index
    %12 = vector.load %arg2[%c0_7, %11, %c1, %c0_8] : memref<1x30x10x64xf32, #tpu.memory_space<vmem>>, vector<1x12x8x64xf32>
    %13 = vector.shape_cast %12 : vector<1x12x8x64xf32> to vector<12x8x64xf32>
    %14 = arith.truncf %13 : vector<12x8x64xf32> to vector<12x8x64xbf16>
    %c0_9 = arith.constant 0 : index
    %c0_10 = arith.constant 0 : index
    %c64 = arith.constant 64 : index
    %15 = vector.load %arg15[%c0_9, %c0_10, %c64] : memref<12x8x576xbf16, #tpu.memory_space<vmem>>, vector<12x8x64xbf16>
    tpu.vector_store %arg15[%c0_9, %c0_10, %c64], %14 {strides = array<i32>} : memref<12x8x576xbf16, #tpu.memory_space<vmem>>, vector<12x8x64xbf16>,
    %c0_i32_11 = arith.constant 0 : i32
    %16 = arith.addi %1, %c0_i32_11 : i32
    %c0_12 = arith.constant 0 : index
    %17 = arith.index_cast %16 : i32 to index
    %c2 = arith.constant 2 : index
    %c0_13 = arith.constant 0 : index
    %18 = vector.load %arg2[%c0_12, %17, %c2, %c0_13] : memref<1x30x10x64xf32, #tpu.memory_space<vmem>>, vector<1x12x8x64xf32>
    %19 = vector.shape_cast %18 : vector<1x12x8x64xf32> to vector<12x8x64xf32>
    %20 = arith.truncf %19 : vector<12x8x64xf32> to vector<12x8x64xbf16>
    %c0_14 = arith.constant 0 : index
    %c0_15 = arith.constant 0 : index
    %c128 = arith.constant 128 : index
    %21 = vector.load %arg15[%c0_14, %c0_15, %c128] : memref<12x8x576xbf16, #tpu.memory_space<vmem>>, vector<12x8x64xbf16>
    tpu.vector_store %arg15[%c0_14, %c0_15, %c128], %20 {strides = array<i32>} : memref<12x8x576xbf16, #tpu.memory_space<vmem>>, vector<12x8x64xbf16>,
    %c1_i32 = arith.constant 1 : i32
    %22 = arith.addi %1, %c1_i32 : i32
    %c0_16 = arith.constant 0 : index
    %23 = arith.index_cast %22 : i32 to index
    %c0_17 = arith.constant 0 : index
    %c0_18 = arith.constant 0 : index
    %24 = vector.load %arg2[%c0_16, %23, %c0_17, %c0_18] : memref<1x30x10x64xf32, #tpu.memory_space<vmem>>, vector<1x12x8x64xf32>
    %25 = vector.shape_cast %24 : vector<1x12x8x64xf32> to vector<12x8x64xf32>
    %26 = arith.truncf %25 : vector<12x8x64xf32> to vector<12x8x64xbf16>
    %c0_19 = arith.constant 0 : index
    %c0_20 = arith.constant 0 : index
    %c192 = arith.constant 192 : index
    %27 = vector.load %arg15[%c0_19, %c0_20, %c192] : memref<12x8x576xbf16, #tpu.memory_space<vmem>>, vector<12x8x64xbf16>
    tpu.vector_store %arg15[%c0_19, %c0_20, %c192], %26 {strides = array<i32>} : memref<12x8x576xbf16, #tpu.memory_space<vmem>>, vector<12x8x64xbf16>,
    %c1_i32_21 = arith.constant 1 : i32
    %28 = arith.addi %1, %c1_i32_21 : i32
    %c0_22 = arith.constant 0 : index
    %29 = arith.index_cast %28 : i32 to index
    %c1_23 = arith.constant 1 : index
    %c0_24 = arith.constant 0 : index
    %30 = vector.load %arg2[%c0_22, %29, %c1_23, %c0_24] : memref<1x30x10x64xf32, #tpu.memory_space<vmem>>, vector<1x12x8x64xf32>
    %31 = vector.shape_cast %30 : vector<1x12x8x64xf32> to vector<12x8x64xf32>
    %32 = arith.truncf %31 : vector<12x8x64xf32> to vector<12x8x64xbf16>
    %c0_25 = arith.constant 0 : index
    %c0_26 = arith.constant 0 : index
    %c256 = arith.constant 256 : index
    %33 = vector.load %arg15[%c0_25, %c0_26, %c256] : memref<12x8x576xbf16, #tpu.memory_space<vmem>>, vector<12x8x64xbf16>
    tpu.vector_store %arg15[%c0_25, %c0_26, %c256], %32 {strides = array<i32>} : memref<12x8x576xbf16, #tpu.memory_space<vmem>>, vector<12x8x64xbf16>,
    %c1_i32_27 = arith.constant 1 : i32
    %34 = arith.addi %1, %c1_i32_27 : i32
    %c0_28 = arith.constant 0 : index
    %35 = arith.index_cast %34 : i32 to index
    %c2_29 = arith.constant 2 : index
    %c0_30 = arith.constant 0 : index
    %36 = vector.load %arg2[%c0_28, %35, %c2_29, %c0_30] : memref<1x30x10x64xf32, #tpu.memory_space<vmem>>, vector<1x12x8x64xf32>
    %37 = vector.shape_cast %36 : vector<1x12x8x64xf32> to vector<12x8x64xf32>
    %38 = arith.truncf %37 : vector<12x8x64xf32> to vector<12x8x64xbf16>
    %c0_31 = arith.constant 0 : index
    %c0_32 = arith.constant 0 : index
    %c320 = arith.constant 320 : index
    %39 = vector.load %arg15[%c0_31, %c0_32, %c320] : memref<12x8x576xbf16, #tpu.memory_space<vmem>>, vector<12x8x64xbf16>
    tpu.vector_store %arg15[%c0_31, %c0_32, %c320], %38 {strides = array<i32>} : memref<12x8x576xbf16, #tpu.memory_space<vmem>>, vector<12x8x64xbf16>,
    %c2_i32_33 = arith.constant 2 : i32
    %40 = arith.addi %1, %c2_i32_33 : i32
    %c0_34 = arith.constant 0 : index
    %41 = arith.index_cast %40 : i32 to index
    %c0_35 = arith.constant 0 : index
    %c0_36 = arith.constant 0 : index
    %42 = vector.load %arg2[%c0_34, %41, %c0_35, %c0_36] : memref<1x30x10x64xf32, #tpu.memory_space<vmem>>, vector<1x12x8x64xf32>
    %43 = vector.shape_cast %42 : vector<1x12x8x64xf32> to vector<12x8x64xf32>
    %44 = arith.truncf %43 : vector<12x8x64xf32> to vector<12x8x64xbf16>
    %c0_37 = arith.constant 0 : index
    %c0_38 = arith.constant 0 : index
    %c384 = arith.constant 384 : index
    %45 = vector.load %arg15[%c0_37, %c0_38, %c384] : memref<12x8x576xbf16, #tpu.memory_space<vmem>>, vector<12x8x64xbf16>
    tpu.vector_store %arg15[%c0_37, %c0_38, %c384], %44 {strides = array<i32>} : memref<12x8x576xbf16, #tpu.memory_space<vmem>>, vector<12x8x64xbf16>,
    %c2_i32_39 = arith.constant 2 : i32
    %46 = arith.addi %1, %c2_i32_39 : i32
    %c0_40 = arith.constant 0 : index
    %47 = arith.index_cast %46 : i32 to index
    %c1_41 = arith.constant 1 : index
    %c0_42 = arith.constant 0 : index
    %48 = vector.load %arg2[%c0_40, %47, %c1_41, %c0_42] : memref<1x30x10x64xf32, #tpu.memory_space<vmem>>, vector<1x12x8x64xf32>
    %49 = vector.shape_cast %48 : vector<1x12x8x64xf32> to vector<12x8x64xf32>
    %50 = arith.truncf %49 : vector<12x8x64xf32> to vector<12x8x64xbf16>
    %c0_43 = arith.constant 0 : index
    %c0_44 = arith.constant 0 : index
    %c448 = arith.constant 448 : index
    %51 = vector.load %arg15[%c0_43, %c0_44, %c448] : memref<12x8x576xbf16, #tpu.memory_space<vmem>>, vector<12x8x64xbf16>
    tpu.vector_store %arg15[%c0_43, %c0_44, %c448], %50 {strides = array<i32>} : memref<12x8x576xbf16, #tpu.memory_space<vmem>>, vector<12x8x64xbf16>,
    %c2_i32_45 = arith.constant 2 : i32
    %52 = arith.addi %1, %c2_i32_45 : i32
    %c0_46 = arith.constant 0 : index
    %53 = arith.index_cast %52 : i32 to index
    %c2_47 = arith.constant 2 : index
    %c0_48 = arith.constant 0 : index
    %54 = vector.load %arg2[%c0_46, %53, %c2_47, %c0_48] : memref<1x30x10x64xf32, #tpu.memory_space<vmem>>, vector<1x12x8x64xf32>
    %55 = vector.shape_cast %54 : vector<1x12x8x64xf32> to vector<12x8x64xf32>
    %56 = arith.truncf %55 : vector<12x8x64xf32> to vector<12x8x64xbf16>
    %c0_49 = arith.constant 0 : index
    %c0_50 = arith.constant 0 : index
    %c512 = arith.constant 512 : index
    %57 = vector.load %arg15[%c0_49, %c0_50, %c512] : memref<12x8x576xbf16, #tpu.memory_space<vmem>>, vector<12x8x64xbf16>
    tpu.vector_store %arg15[%c0_49, %c0_50, %c512], %56 {strides = array<i32>} : memref<12x8x576xbf16, #tpu.memory_space<vmem>>, vector<12x8x64xbf16>,
    %c0_51 = arith.constant 0 : index
    %c0_52 = arith.constant 0 : index
    %c0_53 = arith.constant 0 : index
    %58 = vector.load %arg15[%c0_51, %c0_52, %c0_53] : memref<12x8x576xbf16, #tpu.memory_space<vmem>>, vector<12x8x576xbf16>
    %59 = vector.shape_cast %58 : vector<12x8x576xbf16> to vector<96x576xbf16>
    %c0_54 = arith.constant 0 : index
    %c0_55 = arith.constant 0 : index
    %60 = vector.load %arg4[%c0_54, %c0_55] : memref<576x64xbf16, #tpu.memory_space<vmem>>, vector<576x64xbf16>
    %cst = arith.constant dense<0.000000e+00> : vector<96x64xf32>
    %61 = tpu.matmul %59, %60, %cst {dimension_numbers = #tpu.dot_dimension_numbers<[1], [0], [0], [1], [0, 0, 1, 1], [], []>} : vector<96x576xbf16>, vector<576x64xbf16>, vector<96x64xf32> -> vector<96x64xf32>
    %c0_56 = arith.constant 0 : index
    %c0_57 = arith.constant 0 : index
    %62 = vector.load %arg5[%c0_56, %c0_57] : memref<1x64xf32, #tpu.memory_space<vmem>>, vector<1x64xf32>
    %63 = vector.broadcast %62 : vector<1x64xf32> to vector<96x64xf32>
    %64 = arith.addf %61, %63 : vector<96x64xf32>
    %cst_58 = arith.constant 0.000000e+00 : f32
    %65 = vector.broadcast %cst_58 : f32 to vector<96x64xf32>
    %66 = arith.maximumf %64, %65 : vector<96x64xf32>
    %67 = vector.shape_cast %66 : vector<96x64xf32> to vector<12x8x64xf32>
    %68 = arith.truncf %67 : vector<12x8x64xf32> to vector<12x8x64xbf16>
    %c0_59 = arith.constant 0 : index
    %c1_60 = arith.constant 1 : index
    %c0_61 = arith.constant 0 : index
    %69 = vector.load %arg16[%c0_59, %c1_60, %c0_61] : memref<12x10x64xbf16, #tpu.memory_space<vmem>>, vector<12x8x64xbf16>
    tpu.vector_store %arg16[%c0_59, %c1_60, %c0_61], %68 {strides = array<i32>} : memref<12x10x64xbf16, #tpu.memory_space<vmem>>, vector<12x8x64xbf16>,
    %cst_62 = arith.constant 0.000000e+00 : bf16
    %70 = vector.broadcast %cst_62 : bf16 to vector<12x1x64xbf16>
    %c0_63 = arith.constant 0 : index
    %c0_64 = arith.constant 0 : index
    %c0_65 = arith.constant 0 : index
    %71 = vector.load %arg16[%c0_63, %c0_64, %c0_65] : memref<12x10x64xbf16, #tpu.memory_space<vmem>>, vector<12x1x64xbf16>
    tpu.vector_store %arg16[%c0_63, %c0_64, %c0_65], %70 {strides = array<i32>} : memref<12x10x64xbf16, #tpu.memory_space<vmem>>, vector<12x1x64xbf16>,
    %cst_66 = arith.constant 0.000000e+00 : bf16
    %72 = vector.broadcast %cst_66 : bf16 to vector<12x1x64xbf16>
    %c0_67 = arith.constant 0 : index
    %c9 = arith.constant 9 : index
    %c0_68 = arith.constant 0 : index
    %73 = vector.load %arg16[%c0_67, %c9, %c0_68] : memref<12x10x64xbf16, #tpu.memory_space<vmem>>, vector<12x1x64xbf16>
    tpu.vector_store %arg16[%c0_67, %c9, %c0_68], %72 {strides = array<i32>} : memref<12x10x64xbf16, #tpu.memory_space<vmem>>, vector<12x1x64xbf16>,
    %74 = arith.extui %2 : i1 to i32
    %c0_i32_69 = arith.constant 0 : i32
    %75 = arith.cmpi ne, %74, %c0_i32_69 : i32
    scf.if %75 {
      %cst_231 = arith.constant 0.000000e+00 : bf16
      %183 = vector.broadcast %cst_231 : bf16 to vector<2x10x64xbf16>
      %c0_232 = arith.constant 0 : index
      %c0_233 = arith.constant 0 : index
      %c0_234 = arith.constant 0 : index
      %184 = vector.load %arg16[%c0_232, %c0_233, %c0_234] : memref<12x10x64xbf16, #tpu.memory_space<vmem>>, vector<2x10x64xbf16>
      tpu.vector_store %arg16[%c0_232, %c0_233, %c0_234], %183 {strides = array<i32>} : memref<12x10x64xbf16, #tpu.memory_space<vmem>>, vector<2x10x64xbf16>,
    } else {
    }
    %76 = arith.extui %3 : i1 to i32
    %c0_i32_70 = arith.constant 0 : i32
    %77 = arith.cmpi ne, %76, %c0_i32_70 : i32
    scf.if %77 {
      %cst_231 = arith.constant 0.000000e+00 : bf16
      %183 = vector.broadcast %cst_231 : bf16 to vector<2x10x64xbf16>
      %c10 = arith.constant 10 : index
      %c0_232 = arith.constant 0 : index
      %c0_233 = arith.constant 0 : index
      %184 = vector.load %arg16[%c10, %c0_232, %c0_233] : memref<12x10x64xbf16, #tpu.memory_space<vmem>>, vector<2x10x64xbf16>
      tpu.vector_store %arg16[%c10, %c0_232, %c0_233], %183 {strides = array<i32>} : memref<12x10x64xbf16, #tpu.memory_space<vmem>>, vector<2x10x64xbf16>,
    } else {
    }
    %c0_71 = arith.constant 0 : index
    %c0_72 = arith.constant 0 : index
    %c0_73 = arith.constant 0 : index
    %78 = vector.load %arg16[%c0_71, %c0_72, %c0_73] : memref<12x10x64xbf16, #tpu.memory_space<vmem>>, vector<10x8x64xbf16>
    %c0_74 = arith.constant 0 : index
    %c0_75 = arith.constant 0 : index
    %c0_76 = arith.constant 0 : index
    %79 = vector.load %arg15[%c0_74, %c0_75, %c0_76] : memref<12x8x576xbf16, #tpu.memory_space<vmem>>, vector<10x8x64xbf16>
    tpu.vector_store %arg15[%c0_74, %c0_75, %c0_76], %78 {strides = array<i32>} : memref<12x8x576xbf16, #tpu.memory_space<vmem>>, vector<10x8x64xbf16>,
    %c0_77 = arith.constant 0 : index
    %c1_78 = arith.constant 1 : index
    %c0_79 = arith.constant 0 : index
    %80 = vector.load %arg16[%c0_77, %c1_78, %c0_79] : memref<12x10x64xbf16, #tpu.memory_space<vmem>>, vector<10x8x64xbf16>
    %c0_80 = arith.constant 0 : index
    %c0_81 = arith.constant 0 : index
    %c64_82 = arith.constant 64 : index
    %81 = vector.load %arg15[%c0_80, %c0_81, %c64_82] : memref<12x8x576xbf16, #tpu.memory_space<vmem>>, vector<10x8x64xbf16>
    tpu.vector_store %arg15[%c0_80, %c0_81, %c64_82], %80 {strides = array<i32>} : memref<12x8x576xbf16, #tpu.memory_space<vmem>>, vector<10x8x64xbf16>,
    %c0_83 = arith.constant 0 : index
    %c2_84 = arith.constant 2 : index
    %c0_85 = arith.constant 0 : index
    %82 = vector.load %arg16[%c0_83, %c2_84, %c0_85] : memref<12x10x64xbf16, #tpu.memory_space<vmem>>, vector<10x8x64xbf16>
    %c0_86 = arith.constant 0 : index
    %c0_87 = arith.constant 0 : index
    %c128_88 = arith.constant 128 : index
    %83 = vector.load %arg15[%c0_86, %c0_87, %c128_88] : memref<12x8x576xbf16, #tpu.memory_space<vmem>>, vector<10x8x64xbf16>
    tpu.vector_store %arg15[%c0_86, %c0_87, %c128_88], %82 {strides = array<i32>} : memref<12x8x576xbf16, #tpu.memory_space<vmem>>, vector<10x8x64xbf16>,
    %c1_89 = arith.constant 1 : index
    %c0_90 = arith.constant 0 : index
    %c0_91 = arith.constant 0 : index
    %84 = vector.load %arg16[%c1_89, %c0_90, %c0_91] : memref<12x10x64xbf16, #tpu.memory_space<vmem>>, vector<10x8x64xbf16>
    %c0_92 = arith.constant 0 : index
    %c0_93 = arith.constant 0 : index
    %c192_94 = arith.constant 192 : index
    %85 = vector.load %arg15[%c0_92, %c0_93, %c192_94] : memref<12x8x576xbf16, #tpu.memory_space<vmem>>, vector<10x8x64xbf16>
    tpu.vector_store %arg15[%c0_92, %c0_93, %c192_94], %84 {strides = array<i32>} : memref<12x8x576xbf16, #tpu.memory_space<vmem>>, vector<10x8x64xbf16>,
    %c1_95 = arith.constant 1 : index
    %c1_96 = arith.constant 1 : index
    %c0_97 = arith.constant 0 : index
    %86 = vector.load %arg16[%c1_95, %c1_96, %c0_97] : memref<12x10x64xbf16, #tpu.memory_space<vmem>>, vector<10x8x64xbf16>
    %c0_98 = arith.constant 0 : index
    %c0_99 = arith.constant 0 : index
    %c256_100 = arith.constant 256 : index
    %87 = vector.load %arg15[%c0_98, %c0_99, %c256_100] : memref<12x8x576xbf16, #tpu.memory_space<vmem>>, vector<10x8x64xbf16>
    tpu.vector_store %arg15[%c0_98, %c0_99, %c256_100], %86 {strides = array<i32>} : memref<12x8x576xbf16, #tpu.memory_space<vmem>>, vector<10x8x64xbf16>,
    %c1_101 = arith.constant 1 : index
    %c2_102 = arith.constant 2 : index
    %c0_103 = arith.constant 0 : index
    %88 = vector.load %arg16[%c1_101, %c2_102, %c0_103] : memref<12x10x64xbf16, #tpu.memory_space<vmem>>, vector<10x8x64xbf16>
    %c0_104 = arith.constant 0 : index
    %c0_105 = arith.constant 0 : index
    %c320_106 = arith.constant 320 : index
    %89 = vector.load %arg15[%c0_104, %c0_105, %c320_106] : memref<12x8x576xbf16, #tpu.memory_space<vmem>>, vector<10x8x64xbf16>
    tpu.vector_store %arg15[%c0_104, %c0_105, %c320_106], %88 {strides = array<i32>} : memref<12x8x576xbf16, #tpu.memory_space<vmem>>, vector<10x8x64xbf16>,
    %c2_107 = arith.constant 2 : index
    %c0_108 = arith.constant 0 : index
    %c0_109 = arith.constant 0 : index
    %90 = vector.load %arg16[%c2_107, %c0_108, %c0_109] : memref<12x10x64xbf16, #tpu.memory_space<vmem>>, vector<10x8x64xbf16>
    %c0_110 = arith.constant 0 : index
    %c0_111 = arith.constant 0 : index
    %c384_112 = arith.constant 384 : index
    %91 = vector.load %arg15[%c0_110, %c0_111, %c384_112] : memref<12x8x576xbf16, #tpu.memory_space<vmem>>, vector<10x8x64xbf16>
    tpu.vector_store %arg15[%c0_110, %c0_111, %c384_112], %90 {strides = array<i32>} : memref<12x8x576xbf16, #tpu.memory_space<vmem>>, vector<10x8x64xbf16>,
    %c2_113 = arith.constant 2 : index
    %c1_114 = arith.constant 1 : index
    %c0_115 = arith.constant 0 : index
    %92 = vector.load %arg16[%c2_113, %c1_114, %c0_115] : memref<12x10x64xbf16, #tpu.memory_space<vmem>>, vector<10x8x64xbf16>
    %c0_116 = arith.constant 0 : index
    %c0_117 = arith.constant 0 : index
    %c448_118 = arith.constant 448 : index
    %93 = vector.load %arg15[%c0_116, %c0_117, %c448_118] : memref<12x8x576xbf16, #tpu.memory_space<vmem>>, vector<10x8x64xbf16>
    tpu.vector_store %arg15[%c0_116, %c0_117, %c448_118], %92 {strides = array<i32>} : memref<12x8x576xbf16, #tpu.memory_space<vmem>>, vector<10x8x64xbf16>,
    %c2_119 = arith.constant 2 : index
    %c2_120 = arith.constant 2 : index
    %c0_121 = arith.constant 0 : index
    %94 = vector.load %arg16[%c2_119, %c2_120, %c0_121] : memref<12x10x64xbf16, #tpu.memory_space<vmem>>, vector<10x8x64xbf16>
    %c0_122 = arith.constant 0 : index
    %c0_123 = arith.constant 0 : index
    %c512_124 = arith.constant 512 : index
    %95 = vector.load %arg15[%c0_122, %c0_123, %c512_124] : memref<12x8x576xbf16, #tpu.memory_space<vmem>>, vector<10x8x64xbf16>
    tpu.vector_store %arg15[%c0_122, %c0_123, %c512_124], %94 {strides = array<i32>} : memref<12x8x576xbf16, #tpu.memory_space<vmem>>, vector<10x8x64xbf16>,
    %c0_125 = arith.constant 0 : index
    %c0_126 = arith.constant 0 : index
    %c0_127 = arith.constant 0 : index
    %96 = vector.load %arg15[%c0_125, %c0_126, %c0_127] : memref<12x8x576xbf16, #tpu.memory_space<vmem>>, vector<10x8x576xbf16>
    %97 = vector.shape_cast %96 : vector<10x8x576xbf16> to vector<80x576xbf16>
    %c0_128 = arith.constant 0 : index
    %c0_129 = arith.constant 0 : index
    %98 = vector.load %arg6[%c0_128, %c0_129] : memref<576x64xbf16, #tpu.memory_space<vmem>>, vector<576x64xbf16>
    %cst_130 = arith.constant dense<0.000000e+00> : vector<80x64xf32>
    %99 = tpu.matmul %97, %98, %cst_130 {dimension_numbers = #tpu.dot_dimension_numbers<[1], [0], [0], [1], [0, 0, 1, 1], [], []>} : vector<80x576xbf16>, vector<576x64xbf16>, vector<80x64xf32> -> vector<80x64xf32>
    %c0_131 = arith.constant 0 : index
    %c0_132 = arith.constant 0 : index
    %100 = vector.load %arg7[%c0_131, %c0_132] : memref<1x64xf32, #tpu.memory_space<vmem>>, vector<1x64xf32>
    %101 = vector.broadcast %100 : vector<1x64xf32> to vector<80x64xf32>
    %102 = arith.addf %99, %101 : vector<80x64xf32>
    %c2_i32_133 = arith.constant 2 : i32
    %103 = arith.addi %1, %c2_i32_133 : i32
    %c0_134 = arith.constant 0 : index
    %104 = arith.index_cast %103 : i32 to index
    %c1_135 = arith.constant 1 : index
    %c0_136 = arith.constant 0 : index
    %105 = vector.load %arg2[%c0_134, %104, %c1_135, %c0_136] : memref<1x30x10x64xf32, #tpu.memory_space<vmem>>, vector<1x10x8x64xf32>
    %106 = vector.shape_cast %105 : vector<1x10x8x64xf32> to vector<10x8x64xf32>
    %107 = vector.shape_cast %102 : vector<80x64xf32> to vector<10x8x64xf32>
    %108 = arith.addf %107, %106 : vector<10x8x64xf32>
    %109 = vector.extract_strided_slice %108 {offsets = [1, 0, 0], sizes = [8, 8, 64], strides = [1, 1, 1]} : vector<10x8x64xf32> to vector<8x8x64xf32>
    %110 = vector.shape_cast %109 : vector<8x8x64xf32> to vector<8x512xf32>
    %c0_137 = arith.constant 0 : index
    %c0_138 = arith.constant 0 : index
    %c0_139 = arith.constant 0 : index
    %111 = vector.load %arg13[%c0_137, %c0_138, %c0_139] : memref<1x8x512xf32, #tpu.memory_space<vmem>>, vector<1x8x512xf32>
    %112 = vector.shape_cast %111 : vector<1x8x512xf32> to vector<8x512xf32>
    %113 = vector.shape_cast %110 : vector<8x512xf32> to vector<1x8x512xf32>
    tpu.vector_store %arg13[%c0_137, %c0_138, %c0_139], %113 {strides = array<i32>} : memref<1x8x512xf32, #tpu.memory_space<vmem>>, vector<1x8x512xf32>,
    %114 = arith.truncf %108 : vector<10x8x64xf32> to vector<10x8x64xbf16>
    %c0_140 = arith.constant 0 : index
    %c1_141 = arith.constant 1 : index
    %c0_142 = arith.constant 0 : index
    %115 = vector.load %arg17[%c0_140, %c1_141, %c0_142] : memref<10x10x64xbf16, #tpu.memory_space<vmem>>, vector<10x8x64xbf16>
    tpu.vector_store %arg17[%c0_140, %c1_141, %c0_142], %114 {strides = array<i32>} : memref<10x10x64xbf16, #tpu.memory_space<vmem>>, vector<10x8x64xbf16>,
    %cst_143 = arith.constant 0.000000e+00 : bf16
    %116 = vector.broadcast %cst_143 : bf16 to vector<10x1x64xbf16>
    %c0_144 = arith.constant 0 : index
    %c0_145 = arith.constant 0 : index
    %c0_146 = arith.constant 0 : index
    %117 = vector.load %arg17[%c0_144, %c0_145, %c0_146] : memref<10x10x64xbf16, #tpu.memory_space<vmem>>, vector<10x1x64xbf16>
    tpu.vector_store %arg17[%c0_144, %c0_145, %c0_146], %116 {strides = array<i32>} : memref<10x10x64xbf16, #tpu.memory_space<vmem>>, vector<10x1x64xbf16>,
    %cst_147 = arith.constant 0.000000e+00 : bf16
    %118 = vector.broadcast %cst_147 : bf16 to vector<10x1x64xbf16>
    %c0_148 = arith.constant 0 : index
    %c9_149 = arith.constant 9 : index
    %c0_150 = arith.constant 0 : index
    %119 = vector.load %arg17[%c0_148, %c9_149, %c0_150] : memref<10x10x64xbf16, #tpu.memory_space<vmem>>, vector<10x1x64xbf16>
    tpu.vector_store %arg17[%c0_148, %c9_149, %c0_150], %118 {strides = array<i32>} : memref<10x10x64xbf16, #tpu.memory_space<vmem>>, vector<10x1x64xbf16>,
    %120 = arith.extui %2 : i1 to i32
    %c0_i32_151 = arith.constant 0 : i32
    %121 = arith.cmpi ne, %120, %c0_i32_151 : i32
    scf.if %121 {
      %cst_231 = arith.constant 0.000000e+00 : bf16
      %183 = vector.broadcast %cst_231 : bf16 to vector<1x10x64xbf16>
      %c0_232 = arith.constant 0 : index
      %c0_233 = arith.constant 0 : index
      %c0_234 = arith.constant 0 : index
      %184 = vector.load %arg17[%c0_232, %c0_233, %c0_234] : memref<10x10x64xbf16, #tpu.memory_space<vmem>>, vector<1x10x64xbf16>
      tpu.vector_store %arg17[%c0_232, %c0_233, %c0_234], %183 {strides = array<i32>} : memref<10x10x64xbf16, #tpu.memory_space<vmem>>, vector<1x10x64xbf16>,
    } else {
    }
    %122 = arith.extui %3 : i1 to i32
    %c0_i32_152 = arith.constant 0 : i32
    %123 = arith.cmpi ne, %122, %c0_i32_152 : i32
    scf.if %123 {
      %cst_231 = arith.constant 0.000000e+00 : bf16
      %183 = vector.broadcast %cst_231 : bf16 to vector<1x10x64xbf16>
      %c9_232 = arith.constant 9 : index
      %c0_233 = arith.constant 0 : index
      %c0_234 = arith.constant 0 : index
      %184 = vector.load %arg17[%c9_232, %c0_233, %c0_234] : memref<10x10x64xbf16, #tpu.memory_space<vmem>>, vector<1x10x64xbf16>
      tpu.vector_store %arg17[%c9_232, %c0_233, %c0_234], %183 {strides = array<i32>} : memref<10x10x64xbf16, #tpu.memory_space<vmem>>, vector<1x10x64xbf16>,
    } else {
    }
    %c0_153 = arith.constant 0 : index
    %c0_154 = arith.constant 0 : index
    %c0_155 = arith.constant 0 : index
    %124 = vector.load %arg17[%c0_153, %c0_154, %c0_155] : memref<10x10x64xbf16, #tpu.memory_space<vmem>>, vector<8x8x64xbf16>
    %c0_156 = arith.constant 0 : index
    %c0_157 = arith.constant 0 : index
    %c0_158 = arith.constant 0 : index
    %125 = vector.load %arg15[%c0_156, %c0_157, %c0_158] : memref<12x8x576xbf16, #tpu.memory_space<vmem>>, vector<8x8x64xbf16>
    tpu.vector_store %arg15[%c0_156, %c0_157, %c0_158], %124 {strides = array<i32>} : memref<12x8x576xbf16, #tpu.memory_space<vmem>>, vector<8x8x64xbf16>,
    %c0_159 = arith.constant 0 : index
    %c1_160 = arith.constant 1 : index
    %c0_161 = arith.constant 0 : index
    %126 = vector.load %arg17[%c0_159, %c1_160, %c0_161] : memref<10x10x64xbf16, #tpu.memory_space<vmem>>, vector<8x8x64xbf16>
    %c0_162 = arith.constant 0 : index
    %c0_163 = arith.constant 0 : index
    %c64_164 = arith.constant 64 : index
    %127 = vector.load %arg15[%c0_162, %c0_163, %c64_164] : memref<12x8x576xbf16, #tpu.memory_space<vmem>>, vector<8x8x64xbf16>
    tpu.vector_store %arg15[%c0_162, %c0_163, %c64_164], %126 {strides = array<i32>} : memref<12x8x576xbf16, #tpu.memory_space<vmem>>, vector<8x8x64xbf16>,
    %c0_165 = arith.constant 0 : index
    %c2_166 = arith.constant 2 : index
    %c0_167 = arith.constant 0 : index
    %128 = vector.load %arg17[%c0_165, %c2_166, %c0_167] : memref<10x10x64xbf16, #tpu.memory_space<vmem>>, vector<8x8x64xbf16>
    %c0_168 = arith.constant 0 : index
    %c0_169 = arith.constant 0 : index
    %c128_170 = arith.constant 128 : index
    %129 = vector.load %arg15[%c0_168, %c0_169, %c128_170] : memref<12x8x576xbf16, #tpu.memory_space<vmem>>, vector<8x8x64xbf16>
    tpu.vector_store %arg15[%c0_168, %c0_169, %c128_170], %128 {strides = array<i32>} : memref<12x8x576xbf16, #tpu.memory_space<vmem>>, vector<8x8x64xbf16>,
    %c1_171 = arith.constant 1 : index
    %c0_172 = arith.constant 0 : index
    %c0_173 = arith.constant 0 : index
    %130 = vector.load %arg17[%c1_171, %c0_172, %c0_173] : memref<10x10x64xbf16, #tpu.memory_space<vmem>>, vector<8x8x64xbf16>
    %c0_174 = arith.constant 0 : index
    %c0_175 = arith.constant 0 : index
    %c192_176 = arith.constant 192 : index
    %131 = vector.load %arg15[%c0_174, %c0_175, %c192_176] : memref<12x8x576xbf16, #tpu.memory_space<vmem>>, vector<8x8x64xbf16>
    tpu.vector_store %arg15[%c0_174, %c0_175, %c192_176], %130 {strides = array<i32>} : memref<12x8x576xbf16, #tpu.memory_space<vmem>>, vector<8x8x64xbf16>,
    %c1_177 = arith.constant 1 : index
    %c1_178 = arith.constant 1 : index
    %c0_179 = arith.constant 0 : index
    %132 = vector.load %arg17[%c1_177, %c1_178, %c0_179] : memref<10x10x64xbf16, #tpu.memory_space<vmem>>, vector<8x8x64xbf16>
    %c0_180 = arith.constant 0 : index
    %c0_181 = arith.constant 0 : index
    %c256_182 = arith.constant 256 : index
    %133 = vector.load %arg15[%c0_180, %c0_181, %c256_182] : memref<12x8x576xbf16, #tpu.memory_space<vmem>>, vector<8x8x64xbf16>
    tpu.vector_store %arg15[%c0_180, %c0_181, %c256_182], %132 {strides = array<i32>} : memref<12x8x576xbf16, #tpu.memory_space<vmem>>, vector<8x8x64xbf16>,
    %c1_183 = arith.constant 1 : index
    %c2_184 = arith.constant 2 : index
    %c0_185 = arith.constant 0 : index
    %134 = vector.load %arg17[%c1_183, %c2_184, %c0_185] : memref<10x10x64xbf16, #tpu.memory_space<vmem>>, vector<8x8x64xbf16>
    %c0_186 = arith.constant 0 : index
    %c0_187 = arith.constant 0 : index
    %c320_188 = arith.constant 320 : index
    %135 = vector.load %arg15[%c0_186, %c0_187, %c320_188] : memref<12x8x576xbf16, #tpu.memory_space<vmem>>, vector<8x8x64xbf16>
    tpu.vector_store %arg15[%c0_186, %c0_187, %c320_188], %134 {strides = array<i32>} : memref<12x8x576xbf16, #tpu.memory_space<vmem>>, vector<8x8x64xbf16>,
    %c2_189 = arith.constant 2 : index
    %c0_190 = arith.constant 0 : index
    %c0_191 = arith.constant 0 : index
    %136 = vector.load %arg17[%c2_189, %c0_190, %c0_191] : memref<10x10x64xbf16, #tpu.memory_space<vmem>>, vector<8x8x64xbf16>
    %c0_192 = arith.constant 0 : index
    %c0_193 = arith.constant 0 : index
    %c384_194 = arith.constant 384 : index
    %137 = vector.load %arg15[%c0_192, %c0_193, %c384_194] : memref<12x8x576xbf16, #tpu.memory_space<vmem>>, vector<8x8x64xbf16>
    tpu.vector_store %arg15[%c0_192, %c0_193, %c384_194], %136 {strides = array<i32>} : memref<12x8x576xbf16, #tpu.memory_space<vmem>>, vector<8x8x64xbf16>,
    %c2_195 = arith.constant 2 : index
    %c1_196 = arith.constant 1 : index
    %c0_197 = arith.constant 0 : index
    %138 = vector.load %arg17[%c2_195, %c1_196, %c0_197] : memref<10x10x64xbf16, #tpu.memory_space<vmem>>, vector<8x8x64xbf16>
    %c0_198 = arith.constant 0 : index
    %c0_199 = arith.constant 0 : index
    %c448_200 = arith.constant 448 : index
    %139 = vector.load %arg15[%c0_198, %c0_199, %c448_200] : memref<12x8x576xbf16, #tpu.memory_space<vmem>>, vector<8x8x64xbf16>
    tpu.vector_store %arg15[%c0_198, %c0_199, %c448_200], %138 {strides = array<i32>} : memref<12x8x576xbf16, #tpu.memory_space<vmem>>, vector<8x8x64xbf16>,
    %c2_201 = arith.constant 2 : index
    %c2_202 = arith.constant 2 : index
    %c0_203 = arith.constant 0 : index
    %140 = vector.load %arg17[%c2_201, %c2_202, %c0_203] : memref<10x10x64xbf16, #tpu.memory_space<vmem>>, vector<8x8x64xbf16>
    %c0_204 = arith.constant 0 : index
    %c0_205 = arith.constant 0 : index
    %c512_206 = arith.constant 512 : index
    %141 = vector.load %arg15[%c0_204, %c0_205, %c512_206] : memref<12x8x576xbf16, #tpu.memory_space<vmem>>, vector<8x8x64xbf16>
    tpu.vector_store %arg15[%c0_204, %c0_205, %c512_206], %140 {strides = array<i32>} : memref<12x8x576xbf16, #tpu.memory_space<vmem>>, vector<8x8x64xbf16>,
    %c0_207 = arith.constant 0 : index
    %c0_208 = arith.constant 0 : index
    %c0_209 = arith.constant 0 : index
    %142 = vector.load %arg15[%c0_207, %c0_208, %c0_209] : memref<12x8x576xbf16, #tpu.memory_space<vmem>>, vector<8x8x576xbf16>
    %143 = vector.shape_cast %142 : vector<8x8x576xbf16> to vector<64x576xbf16>
    %c0_210 = arith.constant 0 : index
    %c0_211 = arith.constant 0 : index
    %144 = vector.load %arg8[%c0_210, %c0_211] : memref<576x256xbf16, #tpu.memory_space<vmem>>, vector<576x256xbf16>
    %cst_212 = arith.constant dense<0.000000e+00> : vector<64x256xf32>
    %145 = tpu.matmul %143, %144, %cst_212 {dimension_numbers = #tpu.dot_dimension_numbers<[1], [0], [0], [1], [0, 0, 1, 1], [], []>} : vector<64x576xbf16>, vector<576x256xbf16>, vector<64x256xf32> -> vector<64x256xf32>
    %c0_213 = arith.constant 0 : index
    %c0_214 = arith.constant 0 : index
    %146 = vector.load %arg9[%c0_213, %c0_214] : memref<1x256xf32, #tpu.memory_space<vmem>>, vector<1x256xf32>
    %147 = vector.broadcast %146 : vector<1x256xf32> to vector<64x256xf32>
    %148 = arith.addf %145, %147 : vector<64x256xf32>
    %149 = arith.truncf %148 : vector<64x256xf32> to vector<64x256xbf16>
    %150 = vector.shape_cast %149 : vector<64x256xbf16> to vector<8x8x256xbf16>
    %151 = vector.extract_strided_slice %150 {offsets = [0, 0, 0], sizes = [8, 8, 64], strides = [1, 1, 1]} : vector<8x8x256xbf16> to vector<8x8x64xbf16>
    %152 = vector.shape_cast %151 : vector<8x8x64xbf16> to vector<8x8x1x64xbf16>
    %153 = vector.extract_strided_slice %150 {offsets = [0, 0, 64], sizes = [8, 8, 64], strides = [1, 1, 1]} : vector<8x8x256xbf16> to vector<8x8x64xbf16>
    %154 = vector.shape_cast %153 : vector<8x8x64xbf16> to vector<8x8x1x64xbf16>
    %155 = tpu.concatenate %152, %154 in 2 : vector<8x8x1x64xbf16>, vector<8x8x1x64xbf16> -> vector<8x8x2x64xbf16>
    %156 = vector.shape_cast %155 : vector<8x8x2x64xbf16> to vector<8x16x64xbf16>
    %157 = vector.extract_strided_slice %150 {offsets = [0, 0, 128], sizes = [8, 8, 64], strides = [1, 1, 1]} : vector<8x8x256xbf16> to vector<8x8x64xbf16>
    %158 = vector.shape_cast %157 : vector<8x8x64xbf16> to vector<8x8x1x64xbf16>
    %159 = vector.extract_strided_slice %150 {offsets = [0, 0, 192], sizes = [8, 8, 64], strides = [1, 1, 1]} : vector<8x8x256xbf16> to vector<8x8x64xbf16>
    %160 = vector.shape_cast %159 : vector<8x8x64xbf16> to vector<8x8x1x64xbf16>
    %161 = tpu.concatenate %158, %160 in 2 : vector<8x8x1x64xbf16>, vector<8x8x1x64xbf16> -> vector<8x8x2x64xbf16>
    %162 = vector.shape_cast %161 : vector<8x8x2x64xbf16> to vector<8x16x64xbf16>
    %163 = vector.shape_cast %156 : vector<8x16x64xbf16> to vector<8x1x16x64xbf16>
    %164 = vector.shape_cast %162 : vector<8x16x64xbf16> to vector<8x1x16x64xbf16>
    %165 = tpu.concatenate %163, %164 in 1 : vector<8x1x16x64xbf16>, vector<8x1x16x64xbf16> -> vector<8x2x16x64xbf16>
    %166 = vector.shape_cast %165 : vector<8x2x16x64xbf16> to vector<256x64xbf16>
    %c0_215 = arith.constant 0 : index
    %c0_216 = arith.constant 0 : index
    %c0_217 = arith.constant 0 : index
    %c0_218 = arith.constant 0 : index
    %167 = vector.load %arg3[%c0_215, %c0_216, %c0_217, %c0_218] : memref<1x16x16x256xf32, #tpu.memory_space<vmem>>, vector<1x16x16x256xf32>
    %168 = vector.shape_cast %167 : vector<1x16x16x256xf32> to vector<16x16x256xf32>
    %169 = vector.shape_cast %168 : vector<16x16x256xf32> to vector<256x256xf32>
    %170 = arith.truncf %169 : vector<256x256xf32> to vector<256x256xbf16>
    %c0_219 = arith.constant 0 : index
    %c0_220 = arith.constant 0 : index
    %171 = vector.load %arg10[%c0_219, %c0_220] : memref<256x256xbf16, #tpu.memory_space<vmem>>, vector<256x256xbf16>
    %cst_221 = arith.constant dense<0.000000e+00> : vector<256x256xf32>
    %172 = tpu.matmul %170, %171, %cst_221 {dimension_numbers = #tpu.dot_dimension_numbers<[1], [0], [0], [1], [0, 0, 1, 1], [], []>} : vector<256x256xbf16>, vector<256x256xbf16>, vector<256x256xf32> -> vector<256x256xf32>
    %c0_222 = arith.constant 0 : index
    %c0_223 = arith.constant 0 : index
    %173 = vector.load %arg11[%c0_222, %c0_223] : memref<64x256xbf16, #tpu.memory_space<vmem>>, vector<64x256xbf16>
    %cst_224 = arith.constant dense<0.000000e+00> : vector<256x256xf32>
    %174 = tpu.matmul %166, %173, %cst_224 {dimension_numbers = #tpu.dot_dimension_numbers<[1], [0], [0], [1], [0, 0, 1, 1], [], []>} : vector<256x64xbf16>, vector<64x256xbf16>, vector<256x256xf32> -> vector<256x256xf32>
    %175 = arith.addf %172, %174 : vector<256x256xf32>
    %c0_225 = arith.constant 0 : index
    %c0_226 = arith.constant 0 : index
    %176 = vector.load %arg12[%c0_225, %c0_226] : memref<1x256xf32, #tpu.memory_space<vmem>>, vector<1x256xf32>
    %177 = vector.broadcast %176 : vector<1x256xf32> to vector<256x256xf32>
    %178 = arith.addf %175, %177 : vector<256x256xf32>
    %179 = vector.shape_cast %178 : vector<256x256xf32> to vector<16x16x256xf32>
    %c0_227 = arith.constant 0 : index
    %c0_228 = arith.constant 0 : index
    %c0_229 = arith.constant 0 : index
    %c0_230 = arith.constant 0 : index
    %180 = vector.load %arg14[%c0_227, %c0_228, %c0_229, %c0_230] : memref<1x16x16x256xf32, #tpu.memory_space<vmem>>, vector<1x16x16x256xf32>
    %181 = vector.shape_cast %180 : vector<1x16x16x256xf32> to vector<16x16x256xf32>
    %182 = vector.shape_cast %179 : vector<16x16x256xf32> to vector<1x16x16x256xf32>
    tpu.vector_store %arg14[%c0_227, %c0_228, %c0_229, %c0_230], %182 {strides = array<i32>} : memref<1x16x16x256xf32, #tpu.memory_space<vmem>>, vector<1x16x16x256xf32>,
    return
  }
  func.func @transform_0(%arg0: i32, %arg1: i32) -> (i32, i32, i32, i32) {
    %c0_i32 = arith.constant 0 : i32
    %c0_i32_0 = arith.constant 0 : i32
    %c0_i32_1 = arith.constant 0 : i32
    %c0_i32_2 = arith.constant 0 : i32
    return %arg0, %c0_i32, %c0_i32_0, %c0_i32_1 : i32, i32, i32, i32
  }
  func.func @transform_1(%arg0: i32, %arg1: i32) -> (i32, i32, i32, i32) {
    %c0_i32 = arith.constant 0 : i32
    %c0_i32_0 = arith.constant 0 : i32
    %c0_i32_1 = arith.constant 0 : i32
    return %arg0, %arg1, %c0_i32, %c0_i32_0 : i32, i32, i32, i32
  }
  func.func @transform_2(%arg0: i32, %arg1: i32) -> (i32, i32) {
    %c0_i32 = arith.constant 0 : i32
    %c0_i32_0 = arith.constant 0 : i32
    %c0_i32_1 = arith.constant 0 : i32
    return %c0_i32, %c0_i32_0 : i32, i32
  }
  func.func @transform_3(%arg0: i32, %arg1: i32) -> (i32, i32) {
    %c0_i32 = arith.constant 0 : i32
    %c0_i32_0 = arith.constant 0 : i32
    %c0_i32_1 = arith.constant 0 : i32
    return %c0_i32, %c0_i32_0 : i32, i32
  }
  func.func @transform_4(%arg0: i32, %arg1: i32) -> (i32, i32) {
    %c0_i32 = arith.constant 0 : i32
    %c0_i32_0 = arith.constant 0 : i32
    %c0_i32_1 = arith.constant 0 : i32
    return %c0_i32, %c0_i32_0 : i32, i32
  }
  func.func @transform_5(%arg0: i32, %arg1: i32) -> (i32, i32) {
    %c0_i32 = arith.constant 0 : i32
    %c0_i32_0 = arith.constant 0 : i32
    %c0_i32_1 = arith.constant 0 : i32
    return %c0_i32, %c0_i32_0 : i32, i32
  }
  func.func @transform_6(%arg0: i32, %arg1: i32) -> (i32, i32) {
    %c0_i32 = arith.constant 0 : i32
    %c0_i32_0 = arith.constant 0 : i32
    %c0_i32_1 = arith.constant 0 : i32
    return %c0_i32, %c0_i32_0 : i32, i32
  }
  func.func @transform_7(%arg0: i32, %arg1: i32) -> (i32, i32) {
    %c0_i32 = arith.constant 0 : i32
    %c0_i32_0 = arith.constant 0 : i32
    %c0_i32_1 = arith.constant 0 : i32
    return %c0_i32, %c0_i32_0 : i32, i32
  }
  func.func @transform_8(%arg0: i32, %arg1: i32) -> (i32, i32) {
    %c0_i32 = arith.constant 0 : i32
    %c0_i32_0 = arith.constant 0 : i32
    %c0_i32_1 = arith.constant 0 : i32
    return %c0_i32, %c0_i32_0 : i32, i32
  }
  func.func @transform_9(%arg0: i32, %arg1: i32) -> (i32, i32) {
    %c0_i32 = arith.constant 0 : i32
    %c0_i32_0 = arith.constant 0 : i32
    %c0_i32_1 = arith.constant 0 : i32
    return %c0_i32, %c0_i32_0 : i32, i32
  }
  func.func @transform_10(%arg0: i32, %arg1: i32) -> (i32, i32) {
    %c0_i32 = arith.constant 0 : i32
    %c0_i32_0 = arith.constant 0 : i32
    %c0_i32_1 = arith.constant 0 : i32
    return %c0_i32, %c0_i32_0 : i32, i32
  }
  func.func @transform_11(%arg0: i32, %arg1: i32) -> (i32, i32, i32) {
    %c0_i32 = arith.constant 0 : i32
    %c0_i32_0 = arith.constant 0 : i32
    return %arg0, %arg1, %c0_i32 : i32, i32, i32
  }
  func.func @transform_12(%arg0: i32, %arg1: i32) -> (i32, i32, i32, i32) {
    %c0_i32 = arith.constant 0 : i32
    %c0_i32_0 = arith.constant 0 : i32
    %c0_i32_1 = arith.constant 0 : i32
    return %arg0, %arg1, %c0_i32, %c0_i32_0 : i32, i32, i32, i32
  }
}

</mosaic_0001>

<llo_original>
// kernel: _lambda_.1
$region0: #{_lambda_.1}
  #allocation0 [shape = 'u32[]', space=smem, size = 0x4, offset = 0x4, fixed_abs, tag = 'smem constant byte address 0x4 - core index']
  #allocation1 [shape = 'u32[144,128]{1,0:T(1,128)}', space=vmem, size = 0x12000, scoped, tag = 'internal scratch']
  #allocation2 [shape = 'bf16[12,8,576]{2,1,0:T(8,128)(2,1)}', space=vmem, size = 0x1e000, scoped, tag = 'scratch operand']
  #allocation3 [shape = 'bf16[12,10,64]{2,1,0:T(8,128)(2,1)}', space=vmem, size = 0xc000, scoped, tag = 'scratch operand']
  #allocation4 [shape = 'bf16[10,10,64]{2,1,0:T(8,128)(2,1)}', space=vmem, size = 0xa000, scoped, tag = 'scratch operand']
  %s0 = inlined_call_operand.vmem [shape: f32[2,30,10,64], index: 0, kind: input, shape index: {}]
  %s1 = inlined_call_operand.vmem [shape: f32[2,48,16,256], index: 1, kind: input, shape index: {}]
  %s2 = inlined_call_operand.hbm [shape: bf16[576,64], index: 2, kind: input, shape index: {}]
  %s3 = inlined_call_operand.vmem [shape: f32[1,64], index: 3, kind: input, shape index: {}]
  %s4 = inlined_call_operand.hbm [shape: bf16[576,64], index: 4, kind: input, shape index: {}]
  %s5 = inlined_call_operand.vmem [shape: f32[1,64], index: 5, kind: input, shape index: {}]
  %s6 = inlined_call_operand.vmem [shape: bf16[576,256], index: 6, kind: input, shape index: {}]
  %s7 = inlined_call_operand.vmem [shape: f32[1,256], index: 7, kind: input, shape index: {}]
  %s8 = inlined_call_operand.vmem [shape: bf16[256,256], index: 8, kind: input, shape index: {}]
  %s9 = inlined_call_operand.vmem [shape: bf16[64,256], index: 9, kind: input, shape index: {}]
  %s10 = inlined_call_operand.vmem [shape: f32[1,256], index: 10, kind: input, shape index: {}]
  %s11 = inlined_call_operand.vmem [shape: f32[2,24,512], index: 11, kind: output, shape index: {0}]
  %s12 = inlined_call_operand.hbm [shape: f32[2,48,16,256], index: 12, kind: output, shape index: {1}]
  %13 = xla_tuple %s11, %s12
  %s14 = sld [smem:[#allocation0]]
  $region109: #{_lambda_.1} parent=0
    _
  %s16 = ssub.s32 1, %s14
  %s17 = scalar_select 0, %s16, %s14
  $region1: #{_lambda_.1} parent=0
    #allocation5 [shape = 'u8[147456]{0}', space=vmem, size = 0x24000, scoped, tag = 'input window, operand 2, single buffered']
    #allocation6 [shape = 's32[2]{0}', space=sflag, size = 0x8, scoped, tag = 'scoped memory for _lambda_.1']
    #allocation7 [shape = 's32[2]{0}', space=sflag, size = 0x8, scoped, tag = 'scoped memory for _lambda_.1']
    #allocation8 [shape = 'u8[147456]{0}', space=vmem, size = 0x24000, scoped, tag = 'input window, operand 4, single buffered']
    #allocation9 [shape = 's32[1]{0}', space=sflag, size = 0x4, scoped, tag = 'scoped memory for _lambda_.1']
    #allocation10 [shape = 'u8[524288]{0}', space=vmem, size = 0x80000, scoped, tag = 'output window, operand 1']
    %18 = vsyncpa [#allocation6], 0
    %19 = vsyncpa [#allocation9], 0
    %20 = vsyncpa [#allocation7], 0
    %s21 = scalar_lea.sflag [#allocation7], 1
    %22 = vsyncpa %s21, 0
    loop: start=0, step=1, limit=8
    $region2: #{_lambda_.1} parent=1 // loop_pre_header
      _
    $region3: #{_lambda_.1} parent=1 // loop_header
      %s24 = sphi 0, %s28
      %p25 = scmp.ge.s32.totalorder %s24, 8
      %s31 = sphi 0, %s43
      %s32 = sphi 0, %s39
      %s33 = sphi 0, %s31
      %s34 = sphi 0, %s32
      %s35 = sphi 0, %s33
      %s36 = sphi 0, %s34
      %s46 = sphi 0, %s48
      %s49 = sphi 0, %s46
      %s50 = sphi 0, %s49
      %s66 = sphi 0, %s50
      %s74 = sphi 0, %s76
      %s77 = sphi 0, %s74
      %s78 = sphi 0, %s77
      %s94 = sphi 0, %s78
      %s98 = sphi 0, %s98
      %s100 = sphi 0, %s98
      %s101 = sphi 0, %s100
      %s115 = sphi 0, %s101
      %s119 = sphi 0, %s119
      %s121 = sphi 0, %s119
      %s122 = sphi 0, %s121
      %s136 = sphi 0, %s122
      %s140 = sphi 0, %s140
      %s142 = sphi 0, %s140
      %s143 = sphi 0, %s142
      %s157 = sphi 0, %s143
      %s161 = sphi 0, %s161
      %s163 = sphi 0, %s161
      %s164 = sphi 0, %s163
      %s178 = sphi 0, %s164
      %s182 = sphi 0, %s182
      %s184 = sphi 0, %s182
      %s185 = sphi 0, %s184
      %s199 = sphi 0, %s185
      %s203 = sphi 0, %s203
      %s205 = sphi 0, %s203
      %s206 = sphi 0, %s205
      %s220 = sphi 0, %s206
      %s224 = sphi 0, %s224
      %s226 = sphi 0, %s224
      %s227 = sphi 0, %s226
      %s241 = sphi 0, %s227
      %s245 = sphi 0, %s245
      %s247 = sphi 0, %s245
      %s248 = sphi 0, %s247
      %s262 = sphi 0, %s248
      %s266 = sphi 0, %s266
      %s268 = sphi 0, %s266
      %s269 = sphi 0, %s268
      %s283 = sphi 0, %s269
      %s291 = sphi 0, %s293
      %s294 = sphi 0, %s291
      %s295 = sphi 0, %s294
      %s311 = sphi 0, %s295
      %s319 = sphi 0, %s321
      %s322 = sphi 0, %s319
      %s323 = sphi 0, %s322
      %s339 = sphi 0, %s323
    $region4: #{_lambda_.1} parent=1 // loop_header_branch
      %27 = sbr.rel (%p25) target = $region8
    $region5: #{_lambda_.1} parent=1 // loop_body
      %s29 = ssub.s32 %s24, 1
      %s30 = ssub.s32 %s24, 2
      %s37 = sadd.s32 1, %s32
      %p38 = scmp.ge.s32.totalorder %s37, 3
      %s39 = scalar_select %p38, 0, %s37
      %s40 = sadd.s32 1, %s31
      %s41 = scalar_select %p38, %s40, %s31
      %p42 = scmp.ge.s32.totalorder %s41, 2
      %s43 = scalar_select %p42, 0, %s41
      %s44 = ssub.s32 %s31, %s43
      %p45 = scmp.eq.s32.totalorder %s44, 0
      %s47 = sadd.s32 %s46, 1
      %s48 = scalar_select %p45, %s46, %s47
      %p51 = pneg %p45
      %p52 = scmp.eq.s32.totalorder %s24, 5
      %p53 = por %p51, %p52
      %p54 = scmp.ne.s32.totalorder %s46, %s49
      %p55 = scmp.eq.s32.totalorder %s24, 0
      %p56 = por %p54, %p55
      %p57 = scmp.ne.s32.totalorder %s46, %s49
      %p58 = scmp.eq.s32.totalorder %s29, 5
      %p59 = por %p57, %p58
      %p60 = scmp.ne.s32.totalorder %s49, %s50
      %p61 = scmp.eq.s32.totalorder %s29, 0
      %p62 = por %p60, %p61
      %p63 = scmp.ne.s32.totalorder %s49, %s50
      %p64 = scmp.eq.s32.totalorder %s30, 5
      %p65 = por %p63, %p64
      %p67 = scmp.ne.s32.totalorder %s50, %s66
      %p68 = scmp.eq.s32.totalorder %s30, 0
      %p69 = por %p67, %p68
      %s70 = ssub.s32 %s31, %s43
      %s71 = ssub.s32 %s32, %s39
      %s72 = sor.u32 %s70, %s71
      %p73 = scmp.eq.s32.totalorder %s72, 0
      %s75 = sadd.s32 %s74, 1
      %s76 = scalar_select %p73, %s74, %s75
      %p79 = pneg %p73
      %p80 = scmp.eq.s32.totalorder %s24, 5
      %p81 = por %p79, %p80
      %p82 = scmp.ne.s32.totalorder %s74, %s77
      %p83 = scmp.eq.s32.totalorder %s24, 0
      %p84 = por %p82, %p83
      %p85 = scmp.ne.s32.totalorder %s74, %s77
      %p86 = scmp.eq.s32.totalorder %s29, 5
      %p87 = por %p85, %p86
      %p88 = scmp.ne.s32.totalorder %s77, %s78
      %p89 = scmp.eq.s32.totalorder %s29, 0
      %p90 = por %p88, %p89
      %p91 = scmp.ne.s32.totalorder %s77, %s78
      %p92 = scmp.eq.s32.totalorder %s30, 5
      %p93 = por %p91, %p92
      %p95 = scmp.ne.s32.totalorder %s78, %s94
      %p96 = scmp.eq.s32.totalorder %s30, 0
      %p97 = por %p95, %p96
      %s99 = sadd.s32 %s98, 1
      %p102 = scmp.eq.s32.totalorder %s24, 5
      %p103 = scmp.ne.s32.totalorder %s98, %s100
      %p104 = scmp.eq.s32.totalorder %s24, 0
      %p105 = por %p103, %p104
      %p106 = scmp.ne.s32.totalorder %s98, %s100
      %p107 = scmp.eq.s32.totalorder %s29, 5
      %p108 = por %p106, %p107
      %p109 = scmp.ne.s32.totalorder %s100, %s101
      %p110 = scmp.eq.s32.totalorder %s29, 0
      %p111 = por %p109, %p110
      %p112 = scmp.ne.s32.totalorder %s100, %s101
      %p113 = scmp.eq.s32.totalorder %s30, 5
      %p114 = por %p112, %p113
      %p116 = scmp.ne.s32.totalorder %s101, %s115
      %p117 = scmp.eq.s32.totalorder %s30, 0
      %p118 = por %p116, %p117
      %s120 = sadd.s32 %s119, 1
      %p123 = scmp.eq.s32.totalorder %s24, 5
      %p124 = scmp.ne.s32.totalorder %s119, %s121
      %p125 = scmp.eq.s32.totalorder %s24, 0
      %p126 = por %p124, %p125
      %p127 = scmp.ne.s32.totalorder %s119, %s121
      %p128 = scmp.eq.s32.totalorder %s29, 5
      %p129 = por %p127, %p128
      %p130 = scmp.ne.s32.totalorder %s121, %s122
      %p131 = scmp.eq.s32.totalorder %s29, 0
      %p132 = por %p130, %p131
      %p133 = scmp.ne.s32.totalorder %s121, %s122
      %p134 = scmp.eq.s32.totalorder %s30, 5
      %p135 = por %p133, %p134
      %p137 = scmp.ne.s32.totalorder %s122, %s136
      %p138 = scmp.eq.s32.totalorder %s30, 0
      %p139 = por %p137, %p138
      %s141 = sadd.s32 %s140, 1
      %p144 = scmp.eq.s32.totalorder %s24, 5
      %p145 = scmp.ne.s32.totalorder %s140, %s142
      %p146 = scmp.eq.s32.totalorder %s24, 0
      %p147 = por %p145, %p146
      %p148 = scmp.ne.s32.totalorder %s140, %s142
      %p149 = scmp.eq.s32.totalorder %s29, 5
      %p150 = por %p148, %p149
      %p151 = scmp.ne.s32.totalorder %s142, %s143
      %p152 = scmp.eq.s32.totalorder %s29, 0
      %p153 = por %p151, %p152
      %p154 = scmp.ne.s32.totalorder %s142, %s143
      %p155 = scmp.eq.s32.totalorder %s30, 5
      %p156 = por %p154, %p155
      %p158 = scmp.ne.s32.totalorder %s143, %s157
      %p159 = scmp.eq.s32.totalorder %s30, 0
      %p160 = por %p158, %p159
      %s162 = sadd.s32 %s161, 1
      %p165 = scmp.eq.s32.totalorder %s24, 5
      %p166 = scmp.ne.s32.totalorder %s161, %s163
      %p167 = scmp.eq.s32.totalorder %s24, 0
      %p168 = por %p166, %p167
      %p169 = scmp.ne.s32.totalorder %s161, %s163
      %p170 = scmp.eq.s32.totalorder %s29, 5
      %p171 = por %p169, %p170
      %p172 = scmp.ne.s32.totalorder %s163, %s164
      %p173 = scmp.eq.s32.totalorder %s29, 0
      %p174 = por %p172, %p173
      %p175 = scmp.ne.s32.totalorder %s163, %s164
      %p176 = scmp.eq.s32.totalorder %s30, 5
      %p177 = por %p175, %p176
      %p179 = scmp.ne.s32.totalorder %s164, %s178
      %p180 = scmp.eq.s32.totalorder %s30, 0
      %p181 = por %p179, %p180
      %s183 = sadd.s32 %s182, 1
      %p186 = scmp.eq.s32.totalorder %s24, 5
      %p187 = scmp.ne.s32.totalorder %s182, %s184
      %p188 = scmp.eq.s32.totalorder %s24, 0
      %p189 = por %p187, %p188
      %p190 = scmp.ne.s32.totalorder %s182, %s184
      %p191 = scmp.eq.s32.totalorder %s29, 5
      %p192 = por %p190, %p191
      %p193 = scmp.ne.s32.totalorder %s184, %s185
      %p194 = scmp.eq.s32.totalorder %s29, 0
      %p195 = por %p193, %p194
      %p196 = scmp.ne.s32.totalorder %s184, %s185
      %p197 = scmp.eq.s32.totalorder %s30, 5
      %p198 = por %p196, %p197
      %p200 = scmp.ne.s32.totalorder %s185, %s199
      %p201 = scmp.eq.s32.totalorder %s30, 0
      %p202 = por %p200, %p201
      %s204 = sadd.s32 %s203, 1
      %p207 = scmp.eq.s32.totalorder %s24, 5
      %p208 = scmp.ne.s32.totalorder %s203, %s205
      %p209 = scmp.eq.s32.totalorder %s24, 0
      %p210 = por %p208, %p209
      %p211 = scmp.ne.s32.totalorder %s203, %s205
      %p212 = scmp.eq.s32.totalorder %s29, 5
      %p213 = por %p211, %p212
      %p214 = scmp.ne.s32.totalorder %s205, %s206
      %p215 = scmp.eq.s32.totalorder %s29, 0
      %p216 = por %p214, %p215
      %p217 = scmp.ne.s32.totalorder %s205, %s206
      %p218 = scmp.eq.s32.totalorder %s30, 5
      %p219 = por %p217, %p218
      %p221 = scmp.ne.s32.totalorder %s206, %s220
      %p222 = scmp.eq.s32.totalorder %s30, 0
      %p223 = por %p221, %p222
      %s225 = sadd.s32 %s224, 1
      %p228 = scmp.eq.s32.totalorder %s24, 5
      %p229 = scmp.ne.s32.totalorder %s224, %s226
      %p230 = scmp.eq.s32.totalorder %s24, 0
      %p231 = por %p229, %p230
      %p232 = scmp.ne.s32.totalorder %s224, %s226
      %p233 = scmp.eq.s32.totalorder %s29, 5
      %p234 = por %p232, %p233
      %p235 = scmp.ne.s32.totalorder %s226, %s227
      %p236 = scmp.eq.s32.totalorder %s29, 0
      %p237 = por %p235, %p236
      %p238 = scmp.ne.s32.totalorder %s226, %s227
      %p239 = scmp.eq.s32.totalorder %s30, 5
      %p240 = por %p238, %p239
      %p242 = scmp.ne.s32.totalorder %s227, %s241
      %p243 = scmp.eq.s32.totalorder %s30, 0
      %p244 = por %p242, %p243
      %s246 = sadd.s32 %s245, 1
      %p249 = scmp.eq.s32.totalorder %s24, 5
      %p250 = scmp.ne.s32.totalorder %s245, %s247
      %p251 = scmp.eq.s32.totalorder %s24, 0
      %p252 = por %p250, %p251
      %p253 = scmp.ne.s32.totalorder %s245, %s247
      %p254 = scmp.eq.s32.totalorder %s29, 5
      %p255 = por %p253, %p254
      %p256 = scmp.ne.s32.totalorder %s247, %s248
      %p257 = scmp.eq.s32.totalorder %s29, 0
      %p258 = por %p256, %p257
      %p259 = scmp.ne.s32.totalorder %s247, %s248
      %p260 = scmp.eq.s32.totalorder %s30, 5
      %p261 = por %p259, %p260
      %p263 = scmp.ne.s32.totalorder %s248, %s262
      %p264 = scmp.eq.s32.totalorder %s30, 0
      %p265 = por %p263, %p264
      %s267 = sadd.s32 %s266, 1
      %p270 = scmp.eq.s32.totalorder %s24, 5
      %p271 = scmp.ne.s32.totalorder %s266, %s268
      %p272 = scmp.eq.s32.totalorder %s24, 0
      %p273 = por %p271, %p272
      %p274 = scmp.ne.s32.totalorder %s266, %s268
      %p275 = scmp.eq.s32.totalorder %s29, 5
      %p276 = por %p274, %p275
      %p277 = scmp.ne.s32.totalorder %s268, %s269
      %p278 = scmp.eq.s32.totalorder %s29, 0
      %p279 = por %p277, %p278
      %p280 = scmp.ne.s32.totalorder %s268, %s269
      %p281 = scmp.eq.s32.totalorder %s30, 5
      %p282 = por %p280, %p281
      %p284 = scmp.ne.s32.totalorder %s269, %s283
      %p285 = scmp.eq.s32.totalorder %s30, 0
      %p286 = por %p284, %p285
      %s287 = ssub.s32 %s31, %s43
      %s288 = ssub.s32 %s32, %s39
      %s289 = sor.u32 %s287, %s288
      %p290 = scmp.eq.s32.totalorder %s289, 0
      %s292 = sadd.s32 %s291, 1
      %s293 = scalar_select %p290, %s291, %s292
      %p296 = pneg %p290
      %p297 = scmp.eq.s32.totalorder %s24, 5
      %p298 = por %p296, %p297
      %p299 = scmp.ne.s32.totalorder %s291, %s294
      %p300 = scmp.eq.s32.totalorder %s24, 0
      %p301 = por %p299, %p300
      %p302 = scmp.ne.s32.totalorder %s291, %s294
      %p303 = scmp.eq.s32.totalorder %s29, 5
      %p304 = por %p302, %p303
      %p305 = scmp.ne.s32.totalorder %s294, %s295
      %p306 = scmp.eq.s32.totalorder %s29, 0
      %p307 = por %p305, %p306
      %p308 = scmp.ne.s32.totalorder %s294, %s295
      %p309 = scmp.eq.s32.totalorder %s30, 5
      %p310 = por %p308, %p309
      %p312 = scmp.ne.s32.totalorder %s295, %s311
      %p313 = scmp.eq.s32.totalorder %s30, 0
      %p314 = por %p312, %p313
      %s315 = ssub.s32 %s31, %s43
      %s316 = ssub.s32 %s32, %s39
      %s317 = sor.u32 %s315, %s316
      %p318 = scmp.eq.s32.totalorder %s317, 0
      %s320 = sadd.s32 %s319, 1
      %s321 = scalar_select %p318, %s319, %s320
      %p324 = pneg %p318
      %p325 = scmp.eq.s32.totalorder %s24, 5
      %p326 = por %p324, %p325
      %p327 = scmp.ne.s32.totalorder %s319, %s322
      %p328 = scmp.eq.s32.totalorder %s24, 0
      %p329 = por %p327, %p328
      %p330 = scmp.ne.s32.totalorder %s319, %s322
      %p331 = scmp.eq.s32.totalorder %s29, 5
      %p332 = por %p330, %p331
      %p333 = scmp.ne.s32.totalorder %s322, %s323
      %p334 = scmp.eq.s32.totalorder %s29, 0
      %p335 = por %p333, %p334
      %p336 = scmp.ne.s32.totalorder %s322, %s323
      %p337 = scmp.eq.s32.totalorder %s30, 5
      %p338 = por %p336, %p337
      %p340 = scmp.ne.s32.totalorder %s323, %s339
      %p341 = scmp.eq.s32.totalorder %s30, 0
      %p342 = por %p340, %p341
      %p343 = scmp.le.s32.totalorder 1, %s24
      %p344 = scmp.lt.s32.totalorder %s24, 7
      %p345 = pnand %p343, %p344
      %p346 = pneg %p345
      // Predicated region
      $region9: #{_lambda_.1} parent=5 // pred_check
        _
      $region10: #{_lambda_.1} parent=5 // pred_check_branch
        %348 = sbr.rel (%p345) target = $region12
      $region11: #{_lambda_.1} parent=5 // pred_region
        %s349 = ssub.s32 %s24, 1
        // Predicated region
        $region13: #{_lambda_.1} parent=11 // pred_check
          %p350 = pneg %p111
        $region14: #{_lambda_.1} parent=11 // pred_check_branch
          %352 = sbr.rel (%p350) target = $region16
        $region15: #{_lambda_.1} parent=11 // pred_region
          %s354 = ssub.s32 4608, 4608
          %355 = vsyncadd [#allocation6], %s354
          %s356 = sshll.u32 [#allocation5], 4
          %s357 = int_to_ptr.vmem [resolvable:$true] %s356
          %362 = dma.hbm_to_vmem [thread:$0]  %s2, 4608, %s357, [#allocation6], 64, 64, 4
        $region16: #{_lambda_.1} parent=11 // pred_fallthru
          _
        // Predicated region
        $region17: #{_lambda_.1} parent=11 // pred_check
          %p363 = pneg %p132
        $region18: #{_lambda_.1} parent=11 // pred_check_branch
          %365 = sbr.rel (%p363) target = $region20
        $region19: #{_lambda_.1} parent=11 // pred_region
          _
        $region20: #{_lambda_.1} parent=11 // pred_fallthru
          _
        // Predicated region
        $region21: #{_lambda_.1} parent=11 // pred_check
          %p366 = pneg %p153
        $region22: #{_lambda_.1} parent=11 // pred_check_branch
          %368 = sbr.rel (%p366) target = $region24
        $region23: #{_lambda_.1} parent=11 // pred_region
          %s370 = ssub.s32 4608, 4608
          %371 = vsyncadd [#allocation9], %s370
          %s372 = sshll.u32 [#allocation8], 4
          %s373 = int_to_ptr.vmem [resolvable:$true] %s372
          %378 = dma.hbm_to_vmem [thread:$0]  %s4, 4608, %s373, [#allocation9], 64, 64, 4
        $region24: #{_lambda_.1} parent=11 // pred_fallthru
          _
        // Predicated region
        $region25: #{_lambda_.1} parent=11 // pred_check
          %p379 = pneg %p174
        $region26: #{_lambda_.1} parent=11 // pred_check_branch
          %381 = sbr.rel (%p379) target = $region28
        $region27: #{_lambda_.1} parent=11 // pred_region
          _
        $region28: #{_lambda_.1} parent=11 // pred_fallthru
          _
        // Predicated region
        $region29: #{_lambda_.1} parent=11 // pred_check
          %p382 = pneg %p195
        $region30: #{_lambda_.1} parent=11 // pred_check_branch
          %384 = sbr.rel (%p382) target = $region32
        $region31: #{_lambda_.1} parent=11 // pred_region
          _
        $region32: #{_lambda_.1} parent=11 // pred_fallthru
          _
        // Predicated region
        $region33: #{_lambda_.1} parent=11 // pred_check
          %p385 = pneg %p216
        $region34: #{_lambda_.1} parent=11 // pred_check_branch
          %387 = sbr.rel (%p385) target = $region36
        $region35: #{_lambda_.1} parent=11 // pred_region
          _
        $region36: #{_lambda_.1} parent=11 // pred_fallthru
          _
        // Predicated region
        $region37: #{_lambda_.1} parent=11 // pred_check
          %p388 = pneg %p237
        $region38: #{_lambda_.1} parent=11 // pred_check_branch
          %390 = sbr.rel (%p388) target = $region40
        $region39: #{_lambda_.1} parent=11 // pred_region
          _
        $region40: #{_lambda_.1} parent=11 // pred_fallthru
          _
        // Predicated region
        $region41: #{_lambda_.1} parent=11 // pred_check
          %p391 = pneg %p258
        $region42: #{_lambda_.1} parent=11 // pred_check_branch
          %393 = sbr.rel (%p391) target = $region44
        $region43: #{_lambda_.1} parent=11 // pred_region
          _
        $region44: #{_lambda_.1} parent=11 // pred_fallthru
          _
        // Predicated region
        $region45: #{_lambda_.1} parent=11 // pred_check
          %p394 = pneg %p279
        $region46: #{_lambda_.1} parent=11 // pred_check_branch
          %396 = sbr.rel (%p394) target = $region48
        $region47: #{_lambda_.1} parent=11 // pred_region
          _
        $region48: #{_lambda_.1} parent=11 // pred_fallthru
          _
      $region12: #{_lambda_.1} parent=5 // pred_fallthru
        _
      %p397 = scmp.lt.s32.totalorder %s24, 6
      // Predicated region
      $region49: #{_lambda_.1} parent=5 // pred_check
        %p398 = pneg %p397
      $region50: #{_lambda_.1} parent=5 // pred_check_branch
        %400 = sbr.rel (%p398) target = $region52
      $region51: #{_lambda_.1} parent=5 // pred_region
        // Predicated region
        $region53: #{_lambda_.1} parent=51 // pred_check
          %p401 = pneg %p56
        $region54: #{_lambda_.1} parent=51 // pred_check_branch
          %403 = sbr.rel (%p401) target = $region56
        $region55: #{_lambda_.1} parent=51 // pred_region
          %p404 = scmp.lt.s32.totalorder %s31, 1
          %s405 = scalar_select %p404, %s31, 1
          %s406 = smul.addr %s405, 60
          %s407 = smul.addr %s406, 8
          %s408 = scalar_lea.vmem %s0, %s407
        $region56: #{_lambda_.1} parent=51 // pred_fallthru
          _
        // Predicated region
        $region57: #{_lambda_.1} parent=51 // pred_check
          %p409 = pneg %p84
        $region58: #{_lambda_.1} parent=51 // pred_check_branch
          %411 = sbr.rel (%p409) target = $region60
        $region59: #{_lambda_.1} parent=51 // pred_region
          %s412 = smul.u32 16, %s32
          %p413 = scmp.lt.s32.totalorder %s31, 1
          %s414 = scalar_select %p413, %s31, 1
          %p415 = scmp.lt.s32.totalorder %s412, 47
          %s416 = scalar_select %p415, %s412, 47
          %s417 = smul.addr %s416, 4
          %s418 = smul.addr %s414, 192
          %s419 = sadd.s32 %s417, %s418
          %s420 = smul.addr %s419, 8
          %s421 = scalar_lea.vmem %s1, %s420
          %s422 = smul.u32 16, %s32
        $region60: #{_lambda_.1} parent=51 // pred_fallthru
          _
      $region52: #{_lambda_.1} parent=5 // pred_fallthru
        _
      %p423 = scmp.le.s32.totalorder 1, %s24
      %p424 = scmp.lt.s32.totalorder %s24, 7
      %p425 = pnand %p423, %p424
      %p426 = pneg %p425
      // Predicated region
      $region61: #{_lambda_.1} parent=5 // pred_check
        _
      $region62: #{_lambda_.1} parent=5 // pred_check_branch
        %428 = sbr.rel (%p425) target = $region64
      $region63: #{_lambda_.1} parent=5 // pred_region
        %s429 = ssub.s32 %s24, 1
        // Predicated region
        $region65: #{_lambda_.1} parent=63 // pred_check
          %p430 = pneg %p111
        $region66: #{_lambda_.1} parent=63 // pred_check_branch
          %432 = sbr.rel (%p430) target = $region68
        $region67: #{_lambda_.1} parent=63 // pred_region
          %433 = dma.done [#allocation6], 4608
        $region68: #{_lambda_.1} parent=63 // pred_fallthru
          _
        // Predicated region
        $region69: #{_lambda_.1} parent=63 // pred_check
          %p434 = pneg %p153
        $region70: #{_lambda_.1} parent=63 // pred_check_branch
          %436 = sbr.rel (%p434) target = $region72
        $region71: #{_lambda_.1} parent=63 // pred_region
          %437 = dma.done [#allocation9], 4608
        $region72: #{_lambda_.1} parent=63 // pred_fallthru
          _
        %p438 = scmp.lt.s32.totalorder %s33, 1
        %s439 = scalar_select %p438, %s33, 1
        %s440 = smul.addr %s439, 60
        %s441 = smul.addr %s440, 8
        %s442 = scalar_lea.vmem %s0, %s441
        %p443 = pneg %p62
        %p444 = pneg %p59
        %s445 = smul.u32 16, %s34
        %p446 = scmp.lt.s32.totalorder %s33, 1
        %s447 = scalar_select %p446, %s33, 1
        %p448 = scmp.lt.s32.totalorder %s445, 47
        %s449 = scalar_select %p448, %s445, 47
        %s450 = smul.addr %s449, 4
        %s451 = smul.addr %s447, 192
        %s452 = sadd.s32 %s450, %s451
        %s453 = smul.addr %s452, 8
        %s454 = scalar_lea.vmem %s1, %s453
        %p455 = pneg %p90
        %p456 = pneg %p87
        %p457 = pneg %p111
        %p458 = pneg %p108
        %p459 = pneg %p132
        %p460 = pneg %p129
        %p461 = pneg %p153
        %p462 = pneg %p150
        %p463 = pneg %p174
        %p464 = pneg %p171
        %p465 = pneg %p195
        %p466 = pneg %p192
        %p467 = pneg %p216
        %p468 = pneg %p213
        %p469 = pneg %p237
        %p470 = pneg %p234
        %p471 = pneg %p258
        %p472 = pneg %p255
        %p473 = pneg %p279
        %p474 = pneg %p276
        %p475 = pneg %p307
        %p476 = pneg %p304
        %p477 = scmp.lt.s32.totalorder %s33, 1
        %s478 = scalar_select %p477, %s33, 1
        %p479 = scmp.lt.s32.totalorder %s34, 2
        %s480 = scalar_select %p479, %s34, 2
        %s481 = smul.addr %s480, 4
        %s482 = smul.addr %s478, 12
        %s483 = sadd.s32 %s481, %s482
        %s484 = smul.addr %s483, 8
        %s485 = scalar_lea.vmem %s11, %s484
        %p486 = pneg %p335
        %p487 = pneg %p332
        %s488 = sand.u32 %s322, 1
        %s489 = scalar_lea.sflag [#allocation7], %s488
        %s490 = sand.u32 %s322, 1
        %s491 = smul.addr %s490, 512
        %s492 = scalar_lea.vmem [#allocation10], %s491
        %p493 = scmp.lt.s32.totalorder %s33, 1
        %s494 = scalar_select %p493, %s33, 1
        %s495 = smul.addr %s494, 60
        %s496 = smul.addr %s495, 8
        %s497 = scalar_lea.vmem %s0, %s496
        %s498 = smul.u32 16, %s34
        %p499 = scmp.lt.s32.totalorder %s33, 1
        %s500 = scalar_select %p499, %s33, 1
        %p501 = scmp.lt.s32.totalorder %s498, 47
        %s502 = scalar_select %p501, %s498, 47
        %s503 = smul.addr %s502, 4
        %s504 = smul.addr %s500, 192
        %s505 = sadd.s32 %s503, %s504
        %s506 = smul.addr %s505, 8
        %s507 = scalar_lea.vmem %s1, %s506
        %s508 = smul.u32 16, %s34
        %p509 = scmp.lt.s32.totalorder %s33, 1
        %s510 = scalar_select %p509, %s33, 1
        %p511 = scmp.lt.s32.totalorder %s34, 2
        %s512 = scalar_select %p511, %s34, 2
        %s513 = smul.addr %s512, 4
        %s514 = smul.addr %s510, 12
        %s515 = sadd.s32 %s513, %s514
        %s516 = smul.addr %s515, 8
        %s517 = scalar_lea.vmem %s11, %s516
        %s518 = smul.u32 16, %s34
        %s520 = smul.u32 %s34, 8
        %p521 = scmp.eq.s32.totalorder %s34, 0
        %p522 = scmp.eq.s32.totalorder %s34, 2
        %s523 = smul.u32 %s520, 16
        %s524 = scalar_lea.vmem %s497, %s523
        %v525 = vld [vmem:[%s524] sm:$0xff]
        %v526 = vld [vmem:[%s524 + $0x10] sm:$0xff]
        %v527 = vld [vmem:[%s524 + $0x20] sm:$0xff]
        %v528 = vld [vmem:[%s524 + $0x30] sm:$0xff]
        %v529 = vld [vmem:[%s524 + $0x40] sm:$0xff]
        %v530 = vld [vmem:[%s524 + $0x50] sm:$0xff]
        %v531 = vld [vmem:[%s524 + $0x60] sm:$0xff]
        %v532 = vld [vmem:[%s524 + $0x70] sm:$0xff]
        %v533 = vld [vmem:[%s524 + $0x80] sm:$0xff]
        %v534 = vld [vmem:[%s524 + $0x90] sm:$0xff]
        %v535 = vld [vmem:[%s524 + $0xa0] sm:$0xff]
        %v536 = vld [vmem:[%s524 + $0xb0] sm:$0xff]
        %v537 = vpack.c.bf16 %v525, %v525
        %v538 = vpack.c.bf16 %v526, %v526
        %v539 = vpack.c.bf16 %v527, %v527
        %v540 = vpack.c.bf16 %v528, %v528
        %v541 = vpack.c.bf16 %v529, %v529
        %v542 = vpack.c.bf16 %v530, %v530
        %v543 = vpack.c.bf16 %v531, %v531
        %v544 = vpack.c.bf16 %v532, %v532
        %v545 = vpack.c.bf16 %v533, %v533
        %v546 = vpack.c.bf16 %v534, %v534
        %v547 = vpack.c.bf16 %v535, %v535
        %v548 = vpack.c.bf16 %v536, %v536
        %vm549 = vcmask 519168
        %550 = vst.msk [vmem:[#allocation2] sm:$0xf] %vm549, %v537
        %551 = vst.msk [vmem:[#allocation2 + $0x14] sm:$0xf] %vm549, %v538
        %552 = vst.msk [vmem:[#allocation2 + $0x28] sm:$0xf] %vm549, %v539
        %553 = vst.msk [vmem:[#allocation2 + $0x3c] sm:$0xf] %vm549, %v540
        %554 = vst.msk [vmem:[#allocation2 + $0x50] sm:$0xf] %vm549, %v541
        %555 = vst.msk [vmem:[#allocation2 + $0x64] sm:$0xf] %vm549, %v542
        %556 = vst.msk [vmem:[#allocation2 + $0x78] sm:$0xf] %vm549, %v543
        %557 = vst.msk [vmem:[#allocation2 + $0x8c] sm:$0xf] %vm549, %v544
        %558 = vst.msk [vmem:[#allocation2 + $0xa0] sm:$0xf] %vm549, %v545
        %559 = vst.msk [vmem:[#allocation2 + $0xb4] sm:$0xf] %vm549, %v546
        %560 = vst.msk [vmem:[#allocation2 + $0xc8] sm:$0xf] %vm549, %v547
        %561 = vst.msk [vmem:[#allocation2 + $0xdc] sm:$0xf] %vm549, %v548
        %v562 = vld [vmem:[%s524 + $0x1] sm:$0xff]
        %v563 = vld [vmem:[%s524 + $0x11] sm:$0xff]
        %v564 = vld [vmem:[%s524 + $0x21] sm:$0xff]
        %v565 = vld [vmem:[%s524 + $0x31] sm:$0xff]
        %v566 = vld [vmem:[%s524 + $0x41] sm:$0xff]
        %v567 = vld [vmem:[%s524 + $0x51] sm:$0xff]
        %v568 = vld [vmem:[%s524 + $0x61] sm:$0xff]
        %v569 = vld [vmem:[%s524 + $0x71] sm:$0xff]
        %v570 = vld [vmem:[%s524 + $0x81] sm:$0xff]
        %v571 = vld [vmem:[%s524 + $0x91] sm:$0xff]
        %v572 = vld [vmem:[%s524 + $0xa1] sm:$0xff]
        %v573 = vld [vmem:[%s524 + $0xb1] sm:$0xff]
        %v574 = vpack.c.bf16 %v562, %v562
        %v575 = vpack.c.bf16 %v563, %v563
        %v576 = vpack.c.bf16 %v564, %v564
        %v577 = vpack.c.bf16 %v565, %v565
        %v578 = vpack.c.bf16 %v566, %v566
        %v579 = vpack.c.bf16 %v567, %v567
        %v580 = vpack.c.bf16 %v568, %v568
        %v581 = vpack.c.bf16 %v569, %v569
        %v582 = vpack.c.bf16 %v570, %v570
        %v583 = vpack.c.bf16 %v571, %v571
        %v584 = vpack.c.bf16 %v572, %v572
        %v585 = vpack.c.bf16 %v573, %v573
        %v598 = vunpack.c.l.b16 %v574
        %v599 = vunpack.c.l.b16 %v575
        %v600 = vunpack.c.l.b16 %v576
        %v601 = vunpack.c.l.b16 %v577
        %v602 = vunpack.c.l.b16 %v578
        %v603 = vunpack.c.l.b16 %v579
        %v604 = vunpack.c.l.b16 %v580
        %v605 = vunpack.c.l.b16 %v581
        %v606 = vunpack.c.l.b16 %v582
        %v607 = vunpack.c.l.b16 %v583
        %v608 = vunpack.c.l.b16 %v584
        %v609 = vunpack.c.l.b16 %v585
        %v610 = vpack.c.b16 %v598, %v598
        %v611 = vpack.c.b16 %v599, %v599
        %v612 = vpack.c.b16 %v600, %v600
        %v613 = vpack.c.b16 %v601, %v601
        %v614 = vpack.c.b16 %v602, %v602
        %v615 = vpack.c.b16 %v603, %v603
        %v616 = vpack.c.b16 %v604, %v604
        %v617 = vpack.c.b16 %v605, %v605
        %v618 = vpack.c.b16 %v606, %v606
        %v619 = vpack.c.b16 %v607, %v607
        %v620 = vpack.c.b16 %v608, %v608
        %v621 = vpack.c.b16 %v609, %v609
        %622 = vrot.lane.b32.xlu0 %v610, 64
        %v623 = vpop.permute.xlu0 %622
        %624 = vrot.lane.b32.xlu0 %v611, 64
        %v625 = vpop.permute.xlu0 %624
        %626 = vrot.lane.b32.xlu0 %v612, 64
        %v627 = vpop.permute.xlu0 %626
        %628 = vrot.lane.b32.xlu0 %v613, 64
        %v629 = vpop.permute.xlu0 %628
        %630 = vrot.lane.b32.xlu0 %v614, 64
        %v631 = vpop.permute.xlu0 %630
        %632 = vrot.lane.b32.xlu0 %v615, 64
        %v633 = vpop.permute.xlu0 %632
        %634 = vrot.lane.b32.xlu0 %v616, 64
        %v635 = vpop.permute.xlu0 %634
        %636 = vrot.lane.b32.xlu0 %v617, 64
        %v637 = vpop.permute.xlu0 %636
        %638 = vrot.lane.b32.xlu0 %v618, 64
        %v639 = vpop.permute.xlu0 %638
        %640 = vrot.lane.b32.xlu0 %v619, 64
        %v641 = vpop.permute.xlu0 %640
        %642 = vrot.lane.b32.xlu0 %v620, 64
        %v643 = vpop.permute.xlu0 %642
        %644 = vrot.lane.b32.xlu0 %v621, 64
        %v645 = vpop.permute.xlu0 %644
        %vm658 = vcmask 1043968
        %659 = vst.msk [vmem:[#allocation2] sm:$0xf] %vm658, %v623
        %660 = vst.msk [vmem:[#allocation2 + $0x14] sm:$0xf] %vm658, %v625
        %661 = vst.msk [vmem:[#allocation2 + $0x28] sm:$0xf] %vm658, %v627
        %662 = vst.msk [vmem:[#allocation2 + $0x3c] sm:$0xf] %vm658, %v629
        %663 = vst.msk [vmem:[#allocation2 + $0x50] sm:$0xf] %vm658, %v631
        %664 = vst.msk [vmem:[#allocation2 + $0x64] sm:$0xf] %vm658, %v633
        %665 = vst.msk [vmem:[#allocation2 + $0x78] sm:$0xf] %vm658, %v635
        %666 = vst.msk [vmem:[#allocation2 + $0x8c] sm:$0xf] %vm658, %v637
        %667 = vst.msk [vmem:[#allocation2 + $0xa0] sm:$0xf] %vm658, %v639
        %668 = vst.msk [vmem:[#allocation2 + $0xb4] sm:$0xf] %vm658, %v641
        %669 = vst.msk [vmem:[#allocation2 + $0xc8] sm:$0xf] %vm658, %v643
        %670 = vst.msk [vmem:[#allocation2 + $0xdc] sm:$0xf] %vm658, %v645
        %v671 = vld [vmem:[%s524 + $0x2] sm:$0xff]
        %v672 = vld [vmem:[%s524 + $0x12] sm:$0xff]
        %v673 = vld [vmem:[%s524 + $0x22] sm:$0xff]
        %v674 = vld [vmem:[%s524 + $0x32] sm:$0xff]
        %v675 = vld [vmem:[%s524 + $0x42] sm:$0xff]
        %v676 = vld [vmem:[%s524 + $0x52] sm:$0xff]
        %v677 = vld [vmem:[%s524 + $0x62] sm:$0xff]
        %v678 = vld [vmem:[%s524 + $0x72] sm:$0xff]
        %v679 = vld [vmem:[%s524 + $0x82] sm:$0xff]
        %v680 = vld [vmem:[%s524 + $0x92] sm:$0xff]
        %v681 = vld [vmem:[%s524 + $0xa2] sm:$0xff]
        %v682 = vld [vmem:[%s524 + $0xb2] sm:$0xff]
        %v683 = vpack.c.bf16 %v671, %v671
        %v684 = vpack.c.bf16 %v672, %v672
        %v685 = vpack.c.bf16 %v673, %v673
        %v686 = vpack.c.bf16 %v674, %v674
        %v687 = vpack.c.bf16 %v675, %v675
        %v688 = vpack.c.bf16 %v676, %v676
        %v689 = vpack.c.bf16 %v677, %v677
        %v690 = vpack.c.bf16 %v678, %v678
        %v691 = vpack.c.bf16 %v679, %v679
        %v692 = vpack.c.bf16 %v680, %v680
        %v693 = vpack.c.bf16 %v681, %v681
        %v694 = vpack.c.bf16 %v682, %v682
        %695 = vst.msk [vmem:[#allocation2 + $0x4] sm:$0xf] %vm549, %v683
        %696 = vst.msk [vmem:[#allocation2 + $0x18] sm:$0xf] %vm549, %v684
        %697 = vst.msk [vmem:[#allocation2 + $0x2c] sm:$0xf] %vm549, %v685
        %698 = vst.msk [vmem:[#allocation2 + $0x40] sm:$0xf] %vm549, %v686
        %699 = vst.msk [vmem:[#allocation2 + $0x54] sm:$0xf] %vm549, %v687
        %700 = vst.msk [vmem:[#allocation2 + $0x68] sm:$0xf] %vm549, %v688
        %701 = vst.msk [vmem:[#allocation2 + $0x7c] sm:$0xf] %vm549, %v689
        %702 = vst.msk [vmem:[#allocation2 + $0x90] sm:$0xf] %vm549, %v690
        %703 = vst.msk [vmem:[#allocation2 + $0xa4] sm:$0xf] %vm549, %v691
        %704 = vst.msk [vmem:[#allocation2 + $0xb8] sm:$0xf] %vm549, %v692
        %705 = vst.msk [vmem:[#allocation2 + $0xcc] sm:$0xf] %vm549, %v693
        %706 = vst.msk [vmem:[#allocation2 + $0xe0] sm:$0xf] %vm549, %v694
        %s707 = sadd.s32 %s520, 1
        %s708 = smul.u32 %s707, 16
        %s709 = scalar_lea.vmem %s497, %s708
        %v710 = vld [vmem:[%s709] sm:$0xff]
        %v711 = vld [vmem:[%s709 + $0x10] sm:$0xff]
        %v712 = vld [vmem:[%s709 + $0x20] sm:$0xff]
        %v713 = vld [vmem:[%s709 + $0x30] sm:$0xff]
        %v714 = vld [vmem:[%s709 + $0x40] sm:$0xff]
        %v715 = vld [vmem:[%s709 + $0x50] sm:$0xff]
        %v716 = vld [vmem:[%s709 + $0x60] sm:$0xff]
        %v717 = vld [vmem:[%s709 + $0x70] sm:$0xff]
        %v718 = vld [vmem:[%s709 + $0x80] sm:$0xff]
        %v719 = vld [vmem:[%s709 + $0x90] sm:$0xff]
        %v720 = vld [vmem:[%s709 + $0xa0] sm:$0xff]
        %v721 = vld [vmem:[%s709 + $0xb0] sm:$0xff]
        %v722 = vpack.c.bf16 %v710, %v710
        %v723 = vpack.c.bf16 %v711, %v711
        %v724 = vpack.c.bf16 %v712, %v712
        %v725 = vpack.c.bf16 %v713, %v713
        %v726 = vpack.c.bf16 %v714, %v714
        %v727 = vpack.c.bf16 %v715, %v715
        %v728 = vpack.c.bf16 %v716, %v716
        %v729 = vpack.c.bf16 %v717, %v717
        %v730 = vpack.c.bf16 %v718, %v718
        %v731 = vpack.c.bf16 %v719, %v719
        %v732 = vpack.c.bf16 %v720, %v720
        %v733 = vpack.c.bf16 %v721, %v721
        %v746 = vunpack.c.l.b16 %v722
        %v747 = vunpack.c.l.b16 %v723
        %v748 = vunpack.c.l.b16 %v724
        %v749 = vunpack.c.l.b16 %v725
        %v750 = vunpack.c.l.b16 %v726
        %v751 = vunpack.c.l.b16 %v727
        %v752 = vunpack.c.l.b16 %v728
        %v753 = vunpack.c.l.b16 %v729
        %v754 = vunpack.c.l.b16 %v730
        %v755 = vunpack.c.l.b16 %v731
        %v756 = vunpack.c.l.b16 %v732
        %v757 = vunpack.c.l.b16 %v733
        %v758 = vpack.c.b16 %v746, %v746
        %v759 = vpack.c.b16 %v747, %v747
        %v760 = vpack.c.b16 %v748, %v748
        %v761 = vpack.c.b16 %v749, %v749
        %v762 = vpack.c.b16 %v750, %v750
        %v763 = vpack.c.b16 %v751, %v751
        %v764 = vpack.c.b16 %v752, %v752
        %v765 = vpack.c.b16 %v753, %v753
        %v766 = vpack.c.b16 %v754, %v754
        %v767 = vpack.c.b16 %v755, %v755
        %v768 = vpack.c.b16 %v756, %v756
        %v769 = vpack.c.b16 %v757, %v757
        %770 = vrot.lane.b32.xlu0 %v758, 64
        %v771 = vpop.permute.xlu0 %770
        %772 = vrot.lane.b32.xlu0 %v759, 64
        %v773 = vpop.permute.xlu0 %772
        %774 = vrot.lane.b32.xlu0 %v760, 64
        %v775 = vpop.permute.xlu0 %774
        %776 = vrot.lane.b32.xlu0 %v761, 64
        %v777 = vpop.permute.xlu0 %776
        %778 = vrot.lane.b32.xlu0 %v762, 64
        %v779 = vpop.permute.xlu0 %778
        %780 = vrot.lane.b32.xlu0 %v763, 64
        %v781 = vpop.permute.xlu0 %780
        %782 = vrot.lane.b32.xlu0 %v764, 64
        %v783 = vpop.permute.xlu0 %782
        %784 = vrot.lane.b32.xlu0 %v765, 64
        %v785 = vpop.permute.xlu0 %784
        %786 = vrot.lane.b32.xlu0 %v766, 64
        %v787 = vpop.permute.xlu0 %786
        %788 = vrot.lane.b32.xlu0 %v767, 64
        %v789 = vpop.permute.xlu0 %788
        %790 = vrot.lane.b32.xlu0 %v768, 64
        %v791 = vpop.permute.xlu0 %790
        %792 = vrot.lane.b32.xlu0 %v769, 64
        %v793 = vpop.permute.xlu0 %792
        %806 = vst.msk [vmem:[#allocation2 + $0x4] sm:$0xf] %vm658, %v771
        %807 = vst.msk [vmem:[#allocation2 + $0x18] sm:$0xf] %vm658, %v773
        %808 = vst.msk [vmem:[#allocation2 + $0x2c] sm:$0xf] %vm658, %v775
        %809 = vst.msk [vmem:[#allocation2 + $0x40] sm:$0xf] %vm658, %v777
        %810 = vst.msk [vmem:[#allocation2 + $0x54] sm:$0xf] %vm658, %v779
        %811 = vst.msk [vmem:[#allocation2 + $0x68] sm:$0xf] %vm658, %v781
        %812 = vst.msk [vmem:[#allocation2 + $0x7c] sm:$0xf] %vm658, %v783
        %813 = vst.msk [vmem:[#allocation2 + $0x90] sm:$0xf] %vm658, %v785
        %814 = vst.msk [vmem:[#allocation2 + $0xa4] sm:$0xf] %vm658, %v787
        %815 = vst.msk [vmem:[#allocation2 + $0xb8] sm:$0xf] %vm658, %v789
        %816 = vst.msk [vmem:[#allocation2 + $0xcc] sm:$0xf] %vm658, %v791
        %817 = vst.msk [vmem:[#allocation2 + $0xe0] sm:$0xf] %vm658, %v793
        %v818 = vld [vmem:[%s709 + $0x1] sm:$0xff]
        %v819 = vld [vmem:[%s709 + $0x11] sm:$0xff]
        %v820 = vld [vmem:[%s709 + $0x21] sm:$0xff]
        %v821 = vld [vmem:[%s709 + $0x31] sm:$0xff]
        %v822 = vld [vmem:[%s709 + $0x41] sm:$0xff]
        %v823 = vld [vmem:[%s709 + $0x51] sm:$0xff]
        %v824 = vld [vmem:[%s709 + $0x61] sm:$0xff]
        %v825 = vld [vmem:[%s709 + $0x71] sm:$0xff]
        %v826 = vld [vmem:[%s709 + $0x81] sm:$0xff]
        %v827 = vld [vmem:[%s709 + $0x91] sm:$0xff]
        %v828 = vld [vmem:[%s709 + $0xa1] sm:$0xff]
        %v829 = vld [vmem:[%s709 + $0xb1] sm:$0xff]
        %v830 = vpack.c.bf16 %v818, %v818
        %v831 = vpack.c.bf16 %v819, %v819
        %v832 = vpack.c.bf16 %v820, %v820
        %v833 = vpack.c.bf16 %v821, %v821
        %v834 = vpack.c.bf16 %v822, %v822
        %v835 = vpack.c.bf16 %v823, %v823
        %v836 = vpack.c.bf16 %v824, %v824
        %v837 = vpack.c.bf16 %v825, %v825
        %v838 = vpack.c.bf16 %v826, %v826
        %v839 = vpack.c.bf16 %v827, %v827
        %v840 = vpack.c.bf16 %v828, %v828
        %v841 = vpack.c.bf16 %v829, %v829
        %842 = vst.msk [vmem:[#allocation2 + $0x8] sm:$0xf] %vm549, %v830
        %843 = vst.msk [vmem:[#allocation2 + $0x1c] sm:$0xf] %vm549, %v831
        %844 = vst.msk [vmem:[#allocation2 + $0x30] sm:$0xf] %vm549, %v832
        %845 = vst.msk [vmem:[#allocation2 + $0x44] sm:$0xf] %vm549, %v833
        %846 = vst.msk [vmem:[#allocation2 + $0x58] sm:$0xf] %vm549, %v834
        %847 = vst.msk [vmem:[#allocation2 + $0x6c] sm:$0xf] %vm549, %v835
        %848 = vst.msk [vmem:[#allocation2 + $0x80] sm:$0xf] %vm549, %v836
        %849 = vst.msk [vmem:[#allocation2 + $0x94] sm:$0xf] %vm549, %v837
        %850 = vst.msk [vmem:[#allocation2 + $0xa8] sm:$0xf] %vm549, %v838
        %851 = vst.msk [vmem:[#allocation2 + $0xbc] sm:$0xf] %vm549, %v839
        %852 = vst.msk [vmem:[#allocation2 + $0xd0] sm:$0xf] %vm549, %v840
        %853 = vst.msk [vmem:[#allocation2 + $0xe4] sm:$0xf] %vm549, %v841
        %v854 = vld [vmem:[%s709 + $0x2] sm:$0xff]
        %v855 = vld [vmem:[%s709 + $0x12] sm:$0xff]
        %v856 = vld [vmem:[%s709 + $0x22] sm:$0xff]
        %v857 = vld [vmem:[%s709 + $0x32] sm:$0xff]
        %v858 = vld [vmem:[%s709 + $0x42] sm:$0xff]
        %v859 = vld [vmem:[%s709 + $0x52] sm:$0xff]
        %v860 = vld [vmem:[%s709 + $0x62] sm:$0xff]
        %v861 = vld [vmem:[%s709 + $0x72] sm:$0xff]
        %v862 = vld [vmem:[%s709 + $0x82] sm:$0xff]
        %v863 = vld [vmem:[%s709 + $0x92] sm:$0xff]
        %v864 = vld [vmem:[%s709 + $0xa2] sm:$0xff]
        %v865 = vld [vmem:[%s709 + $0xb2] sm:$0xff]
        %v866 = vpack.c.bf16 %v854, %v854
        %v867 = vpack.c.bf16 %v855, %v855
        %v868 = vpack.c.bf16 %v856, %v856
        %v869 = vpack.c.bf16 %v857, %v857
        %v870 = vpack.c.bf16 %v858, %v858
        %v871 = vpack.c.bf16 %v859, %v859
        %v872 = vpack.c.bf16 %v860, %v860
        %v873 = vpack.c.bf16 %v861, %v861
        %v874 = vpack.c.bf16 %v862, %v862
        %v875 = vpack.c.bf16 %v863, %v863
        %v876 = vpack.c.bf16 %v864, %v864
        %v877 = vpack.c.bf16 %v865, %v865
        %v890 = vunpack.c.l.b16 %v866
        %v891 = vunpack.c.l.b16 %v867
        %v892 = vunpack.c.l.b16 %v868
        %v893 = vunpack.c.l.b16 %v869
        %v894 = vunpack.c.l.b16 %v870
        %v895 = vunpack.c.l.b16 %v871
        %v896 = vunpack.c.l.b16 %v872
        %v897 = vunpack.c.l.b16 %v873
        %v898 = vunpack.c.l.b16 %v874
        %v899 = vunpack.c.l.b16 %v875
        %v900 = vunpack.c.l.b16 %v876
        %v901 = vunpack.c.l.b16 %v877
        %v902 = vpack.c.b16 %v890, %v890
        %v903 = vpack.c.b16 %v891, %v891
        %v904 = vpack.c.b16 %v892, %v892
        %v905 = vpack.c.b16 %v893, %v893
        %v906 = vpack.c.b16 %v894, %v894
        %v907 = vpack.c.b16 %v895, %v895
        %v908 = vpack.c.b16 %v896, %v896
        %v909 = vpack.c.b16 %v897, %v897
        %v910 = vpack.c.b16 %v898, %v898
        %v911 = vpack.c.b16 %v899, %v899
        %v912 = vpack.c.b16 %v900, %v900
        %v913 = vpack.c.b16 %v901, %v901
        %914 = vrot.lane.b32.xlu0 %v902, 64
        %v915 = vpop.permute.xlu0 %914
        %916 = vrot.lane.b32.xlu0 %v903, 64
        %v917 = vpop.permute.xlu0 %916
        %918 = vrot.lane.b32.xlu0 %v904, 64
        %v919 = vpop.permute.xlu0 %918
        %920 = vrot.lane.b32.xlu0 %v905, 64
        %v921 = vpop.permute.xlu0 %920
        %922 = vrot.lane.b32.xlu0 %v906, 64
        %v923 = vpop.permute.xlu0 %922
        %924 = vrot.lane.b32.xlu0 %v907, 64
        %v925 = vpop.permute.xlu0 %924
        %926 = vrot.lane.b32.xlu0 %v908, 64
        %v927 = vpop.permute.xlu0 %926
        %928 = vrot.lane.b32.xlu0 %v909, 64
        %v929 = vpop.permute.xlu0 %928
        %930 = vrot.lane.b32.xlu0 %v910, 64
        %v931 = vpop.permute.xlu0 %930
        %932 = vrot.lane.b32.xlu0 %v911, 64
        %v933 = vpop.permute.xlu0 %932
        %934 = vrot.lane.b32.xlu0 %v912, 64
        %v935 = vpop.permute.xlu0 %934
        %936 = vrot.lane.b32.xlu0 %v913, 64
        %v937 = vpop.permute.xlu0 %936
        %950 = vst.msk [vmem:[#allocation2 + $0x8] sm:$0xf] %vm658, %v915
        %951 = vst.msk [vmem:[#allocation2 + $0x1c] sm:$0xf] %vm658, %v917
        %952 = vst.msk [vmem:[#allocation2 + $0x30] sm:$0xf] %vm658, %v919
        %953 = vst.msk [vmem:[#allocation2 + $0x44] sm:$0xf] %vm658, %v921
        %954 = vst.msk [vmem:[#allocation2 + $0x58] sm:$0xf] %vm658, %v923
        %955 = vst.msk [vmem:[#allocation2 + $0x6c] sm:$0xf] %vm658, %v925
        %956 = vst.msk [vmem:[#allocation2 + $0x80] sm:$0xf] %vm658, %v927
        %957 = vst.msk [vmem:[#allocation2 + $0x94] sm:$0xf] %vm658, %v929
        %958 = vst.msk [vmem:[#allocation2 + $0xa8] sm:$0xf] %vm658, %v931
        %959 = vst.msk [vmem:[#allocation2 + $0xbc] sm:$0xf] %vm658, %v933
        %960 = vst.msk [vmem:[#allocation2 + $0xd0] sm:$0xf] %vm658, %v935
        %961 = vst.msk [vmem:[#allocation2 + $0xe4] sm:$0xf] %vm658, %v937
        %s962 = sadd.s32 %s520, 2
        %s963 = smul.u32 %s962, 16
        %s964 = scalar_lea.vmem %s497, %s963
        %v965 = vld [vmem:[%s964] sm:$0xff]
        %v966 = vld [vmem:[%s964 + $0x10] sm:$0xff]
        %v967 = vld [vmem:[%s964 + $0x20] sm:$0xff]
        %v968 = vld [vmem:[%s964 + $0x30] sm:$0xff]
        %v969 = vld [vmem:[%s964 + $0x40] sm:$0xff]
        %v970 = vld [vmem:[%s964 + $0x50] sm:$0xff]
        %v971 = vld [vmem:[%s964 + $0x60] sm:$0xff]
        %v972 = vld [vmem:[%s964 + $0x70] sm:$0xff]
        %v973 = vld [vmem:[%s964 + $0x80] sm:$0xff]
        %v974 = vld [vmem:[%s964 + $0x90] sm:$0xff]
        %v975 = vld [vmem:[%s964 + $0xa0] sm:$0xff]
        %v976 = vld [vmem:[%s964 + $0xb0] sm:$0xff]
        %v977 = vpack.c.bf16 %v965, %v965
        %v978 = vpack.c.bf16 %v966, %v966
        %v979 = vpack.c.bf16 %v967, %v967
        %v980 = vpack.c.bf16 %v968, %v968
        %v981 = vpack.c.bf16 %v969, %v969
        %v982 = vpack.c.bf16 %v970, %v970
        %v983 = vpack.c.bf16 %v971, %v971
        %v984 = vpack.c.bf16 %v972, %v972
        %v985 = vpack.c.bf16 %v973, %v973
        %v986 = vpack.c.bf16 %v974, %v974
        %v987 = vpack.c.bf16 %v975, %v975
        %v988 = vpack.c.bf16 %v976, %v976
        %989 = vst.msk [vmem:[#allocation2 + $0xc] sm:$0xf] %vm549, %v977
        %990 = vst.msk [vmem:[#allocation2 + $0x20] sm:$0xf] %vm549, %v978
        %991 = vst.msk [vmem:[#allocation2 + $0x34] sm:$0xf] %vm549, %v979
        %992 = vst.msk [vmem:[#allocation2 + $0x48] sm:$0xf] %vm549, %v980
        %993 = vst.msk [vmem:[#allocation2 + $0x5c] sm:$0xf] %vm549, %v981
        %994 = vst.msk [vmem:[#allocation2 + $0x70] sm:$0xf] %vm549, %v982
        %995 = vst.msk [vmem:[#allocation2 + $0x84] sm:$0xf] %vm549, %v983
        %996 = vst.msk [vmem:[#allocation2 + $0x98] sm:$0xf] %vm549, %v984
        %997 = vst.msk [vmem:[#allocation2 + $0xac] sm:$0xf] %vm549, %v985
        %998 = vst.msk [vmem:[#allocation2 + $0xc0] sm:$0xf] %vm549, %v986
        %999 = vst.msk [vmem:[#allocation2 + $0xd4] sm:$0xf] %vm549, %v987
        %1000 = vst.msk [vmem:[#allocation2 + $0xe8] sm:$0xf] %vm549, %v988
        %v1001 = vld [vmem:[%s964 + $0x1] sm:$0xff]
        %v1002 = vld [vmem:[%s964 + $0x11] sm:$0xff]
        %v1003 = vld [vmem:[%s964 + $0x21] sm:$0xff]
        %v1004 = vld [vmem:[%s964 + $0x31] sm:$0xff]
        %v1005 = vld [vmem:[%s964 + $0x41] sm:$0xff]
        %v1006 = vld [vmem:[%s964 + $0x51] sm:$0xff]
        %v1007 = vld [vmem:[%s964 + $0x61] sm:$0xff]
        %v1008 = vld [vmem:[%s964 + $0x71] sm:$0xff]
        %v1009 = vld [vmem:[%s964 + $0x81] sm:$0xff]
        %v1010 = vld [vmem:[%s964 + $0x91] sm:$0xff]
        %v1011 = vld [vmem:[%s964 + $0xa1] sm:$0xff]
        %v1012 = vld [vmem:[%s964 + $0xb1] sm:$0xff]
        %v1013 = vpack.c.bf16 %v1001, %v1001
        %v1014 = vpack.c.bf16 %v1002, %v1002
        %v1015 = vpack.c.bf16 %v1003, %v1003
        %v1016 = vpack.c.bf16 %v1004, %v1004
        %v1017 = vpack.c.bf16 %v1005, %v1005
        %v1018 = vpack.c.bf16 %v1006, %v1006
        %v1019 = vpack.c.bf16 %v1007, %v1007
        %v1020 = vpack.c.bf16 %v1008, %v1008
        %v1021 = vpack.c.bf16 %v1009, %v1009
        %v1022 = vpack.c.bf16 %v1010, %v1010
        %v1023 = vpack.c.bf16 %v1011, %v1011
        %v1024 = vpack.c.bf16 %v1012, %v1012
        %v1037 = vunpack.c.l.b16 %v1013
        %v1038 = vunpack.c.l.b16 %v1014
        %v1039 = vunpack.c.l.b16 %v1015
        %v1040 = vunpack.c.l.b16 %v1016
        %v1041 = vunpack.c.l.b16 %v1017
        %v1042 = vunpack.c.l.b16 %v1018
        %v1043 = vunpack.c.l.b16 %v1019
        %v1044 = vunpack.c.l.b16 %v1020
        %v1045 = vunpack.c.l.b16 %v1021
        %v1046 = vunpack.c.l.b16 %v1022
        %v1047 = vunpack.c.l.b16 %v1023
        %v1048 = vunpack.c.l.b16 %v1024
        %v1049 = vpack.c.b16 %v1037, %v1037
        %v1050 = vpack.c.b16 %v1038, %v1038
        %v1051 = vpack.c.b16 %v1039, %v1039
        %v1052 = vpack.c.b16 %v1040, %v1040
        %v1053 = vpack.c.b16 %v1041, %v1041
        %v1054 = vpack.c.b16 %v1042, %v1042
        %v1055 = vpack.c.b16 %v1043, %v1043
        %v1056 = vpack.c.b16 %v1044, %v1044
        %v1057 = vpack.c.b16 %v1045, %v1045
        %v1058 = vpack.c.b16 %v1046, %v1046
        %v1059 = vpack.c.b16 %v1047, %v1047
        %v1060 = vpack.c.b16 %v1048, %v1048
        %1061 = vrot.lane.b32.xlu0 %v1049, 64
        %v1062 = vpop.permute.xlu0 %1061
        %1063 = vrot.lane.b32.xlu0 %v1050, 64
        %v1064 = vpop.permute.xlu0 %1063
        %1065 = vrot.lane.b32.xlu0 %v1051, 64
        %v1066 = vpop.permute.xlu0 %1065
        %1067 = vrot.lane.b32.xlu0 %v1052, 64
        %v1068 = vpop.permute.xlu0 %1067
        %1069 = vrot.lane.b32.xlu0 %v1053, 64
        %v1070 = vpop.permute.xlu0 %1069
        %1071 = vrot.lane.b32.xlu0 %v1054, 64
        %v1072 = vpop.permute.xlu0 %1071
        %1073 = vrot.lane.b32.xlu0 %v1055, 64
        %v1074 = vpop.permute.xlu0 %1073
        %1075 = vrot.lane.b32.xlu0 %v1056, 64
        %v1076 = vpop.permute.xlu0 %1075
        %1077 = vrot.lane.b32.xlu0 %v1057, 64
        %v1078 = vpop.permute.xlu0 %1077
        %1079 = vrot.lane.b32.xlu0 %v1058, 64
        %v1080 = vpop.permute.xlu0 %1079
        %1081 = vrot.lane.b32.xlu0 %v1059, 64
        %v1082 = vpop.permute.xlu0 %1081
        %1083 = vrot.lane.b32.xlu0 %v1060, 64
        %v1084 = vpop.permute.xlu0 %1083
        %1097 = vst.msk [vmem:[#allocation2 + $0xc] sm:$0xf] %vm658, %v1062
        %1098 = vst.msk [vmem:[#allocation2 + $0x20] sm:$0xf] %vm658, %v1064
        %1099 = vst.msk [vmem:[#allocation2 + $0x34] sm:$0xf] %vm658, %v1066
        %1100 = vst.msk [vmem:[#allocation2 + $0x48] sm:$0xf] %vm658, %v1068
        %1101 = vst.msk [vmem:[#allocation2 + $0x5c] sm:$0xf] %vm658, %v1070
        %1102 = vst.msk [vmem:[#allocation2 + $0x70] sm:$0xf] %vm658, %v1072
        %1103 = vst.msk [vmem:[#allocation2 + $0x84] sm:$0xf] %vm658, %v1074
        %1104 = vst.msk [vmem:[#allocation2 + $0x98] sm:$0xf] %vm658, %v1076
        %1105 = vst.msk [vmem:[#allocation2 + $0xac] sm:$0xf] %vm658, %v1078
        %1106 = vst.msk [vmem:[#allocation2 + $0xc0] sm:$0xf] %vm658, %v1080
        %1107 = vst.msk [vmem:[#allocation2 + $0xd4] sm:$0xf] %vm658, %v1082
        %1108 = vst.msk [vmem:[#allocation2 + $0xe8] sm:$0xf] %vm658, %v1084
        %v1109 = vld [vmem:[%s964 + $0x2] sm:$0xff]
        %v1110 = vld [vmem:[%s964 + $0x12] sm:$0xff]
        %v1111 = vld [vmem:[%s964 + $0x22] sm:$0xff]
        %v1112 = vld [vmem:[%s964 + $0x32] sm:$0xff]
        %v1113 = vld [vmem:[%s964 + $0x42] sm:$0xff]
        %v1114 = vld [vmem:[%s964 + $0x52] sm:$0xff]
        %v1115 = vld [vmem:[%s964 + $0x62] sm:$0xff]
        %v1116 = vld [vmem:[%s964 + $0x72] sm:$0xff]
        %v1117 = vld [vmem:[%s964 + $0x82] sm:$0xff]
        %v1118 = vld [vmem:[%s964 + $0x92] sm:$0xff]
        %v1119 = vld [vmem:[%s964 + $0xa2] sm:$0xff]
        %v1120 = vld [vmem:[%s964 + $0xb2] sm:$0xff]
        %v1121 = vpack.c.bf16 %v1109, %v1109
        %v1122 = vpack.c.bf16 %v1110, %v1110
        %v1123 = vpack.c.bf16 %v1111, %v1111
        %v1124 = vpack.c.bf16 %v1112, %v1112
        %v1125 = vpack.c.bf16 %v1113, %v1113
        %v1126 = vpack.c.bf16 %v1114, %v1114
        %v1127 = vpack.c.bf16 %v1115, %v1115
        %v1128 = vpack.c.bf16 %v1116, %v1116
        %v1129 = vpack.c.bf16 %v1117, %v1117
        %v1130 = vpack.c.bf16 %v1118, %v1118
        %v1131 = vpack.c.bf16 %v1119, %v1119
        %v1132 = vpack.c.bf16 %v1120, %v1120
        %1133 = vst.msk [vmem:[#allocation2 + $0x10] sm:$0xf] %vm549, %v1121
        %1134 = vst.msk [vmem:[#allocation2 + $0x24] sm:$0xf] %vm549, %v1122
        %1135 = vst.msk [vmem:[#allocation2 + $0x38] sm:$0xf] %vm549, %v1123
        %1136 = vst.msk [vmem:[#allocation2 + $0x4c] sm:$0xf] %vm549, %v1124
        %1137 = vst.msk [vmem:[#allocation2 + $0x60] sm:$0xf] %vm549, %v1125
        %1138 = vst.msk [vmem:[#allocation2 + $0x74] sm:$0xf] %vm549, %v1126
        %1139 = vst.msk [vmem:[#allocation2 + $0x88] sm:$0xf] %vm549, %v1127
        %1140 = vst.msk [vmem:[#allocation2 + $0x9c] sm:$0xf] %vm549, %v1128
        %1141 = vst.msk [vmem:[#allocation2 + $0xb0] sm:$0xf] %vm549, %v1129
        %1142 = vst.msk [vmem:[#allocation2 + $0xc4] sm:$0xf] %vm549, %v1130
        %1143 = vst.msk [vmem:[#allocation2 + $0xd8] sm:$0xf] %vm549, %v1131
        %1144 = vst.msk [vmem:[#allocation2 + $0xec] sm:$0xf] %vm549, %v1132
        %v1145 = vld [vmem:[#allocation2] sm:$0xff]
        %v1146 = vld [vmem:[#allocation2 + $0x8] sm:$0xff]
        %v1147 = vld [vmem:[#allocation2 + $0x10] sm:$0xf]
        %v1148 = vld [vmem:[#allocation2 + $0x14] sm:$0xff]
        %v1149 = vld [vmem:[#allocation2 + $0x1c] sm:$0xff]
        %v1150 = vld [vmem:[#allocation2 + $0x24] sm:$0xf]
        %v1151 = vld [vmem:[#allocation2 + $0x28] sm:$0xff]
        %v1152 = vld [vmem:[#allocation2 + $0x30] sm:$0xff]
        %v1153 = vld [vmem:[#allocation2 + $0x38] sm:$0xf]
        %v1154 = vld [vmem:[#allocation2 + $0x3c] sm:$0xff]
        %v1155 = vld [vmem:[#allocation2 + $0x44] sm:$0xff]
        %v1156 = vld [vmem:[#allocation2 + $0x4c] sm:$0xf]
        %v1157 = vld [vmem:[#allocation2 + $0x50] sm:$0xff]
        %v1158 = vld [vmem:[#allocation2 + $0x58] sm:$0xff]
        %v1159 = vld [vmem:[#allocation2 + $0x60] sm:$0xf]
        %v1160 = vld [vmem:[#allocation2 + $0x64] sm:$0xff]
        %v1161 = vld [vmem:[#allocation2 + $0x6c] sm:$0xff]
        %v1162 = vld [vmem:[#allocation2 + $0x74] sm:$0xf]
        %v1163 = vld [vmem:[#allocation2 + $0x78] sm:$0xff]
        %v1164 = vld [vmem:[#allocation2 + $0x80] sm:$0xff]
        %v1165 = vld [vmem:[#allocation2 + $0x88] sm:$0xf]
        %v1166 = vld [vmem:[#allocation2 + $0x8c] sm:$0xff]
        %v1167 = vld [vmem:[#allocation2 + $0x94] sm:$0xff]
        %v1168 = vld [vmem:[#allocation2 + $0x9c] sm:$0xf]
        %v1169 = vld [vmem:[#allocation2 + $0xa0] sm:$0xff]
        %v1170 = vld [vmem:[#allocation2 + $0xa8] sm:$0xff]
        %v1171 = vld [vmem:[#allocation2 + $0xb0] sm:$0xf]
        %v1172 = vld [vmem:[#allocation2 + $0xb4] sm:$0xff]
        %v1173 = vld [vmem:[#allocation2 + $0xbc] sm:$0xff]
        %v1174 = vld [vmem:[#allocation2 + $0xc4] sm:$0xf]
        %v1175 = vld [vmem:[#allocation2 + $0xc8] sm:$0xff]
        %v1176 = vld [vmem:[#allocation2 + $0xd0] sm:$0xff]
        %v1177 = vld [vmem:[#allocation2 + $0xd8] sm:$0xf]
        %v1178 = vld [vmem:[#allocation2 + $0xdc] sm:$0xff]
        %v1179 = vld [vmem:[#allocation2 + $0xe4] sm:$0xff]
        %v1180 = vld [vmem:[#allocation2 + $0xec] sm:$0xf]
        %v1181 = vld [vmem:[#allocation5] sm:$0xf]
        %v1182 = vld [vmem:[#allocation5 + $0x4] sm:$0xf]
        %v1183 = vld [vmem:[#allocation5 + $0x8] sm:$0xf]
        %v1184 = vld [vmem:[#allocation5 + $0xc] sm:$0xf]
        %v1185 = vld [vmem:[#allocation5 + $0x10] sm:$0xf]
        %v1186 = vld [vmem:[#allocation5 + $0x14] sm:$0xf]
        %v1187 = vld [vmem:[#allocation5 + $0x18] sm:$0xf]
        %v1188 = vld [vmem:[#allocation5 + $0x1c] sm:$0xf]
        %v1189 = vld [vmem:[#allocation5 + $0x20] sm:$0xf]
        %v1190 = vld [vmem:[#allocation5 + $0x24] sm:$0xf]
        %v1191 = vld [vmem:[#allocation5 + $0x28] sm:$0xf]
        %v1192 = vld [vmem:[#allocation5 + $0x2c] sm:$0xf]
        %v1193 = vld [vmem:[#allocation5 + $0x30] sm:$0xf]
        %v1194 = vld [vmem:[#allocation5 + $0x34] sm:$0xf]
        %v1195 = vld [vmem:[#allocation5 + $0x38] sm:$0xf]
        %v1196 = vld [vmem:[#allocation5 + $0x3c] sm:$0xf]
        %v1197 = vld [vmem:[#allocation5 + $0x40] sm:$0xf]
        %v1198 = vld [vmem:[#allocation5 + $0x44] sm:$0xf]
        %v1199 = vld [vmem:[#allocation5 + $0x48] sm:$0xf]
        %v1200 = vld [vmem:[#allocation5 + $0x4c] sm:$0xf]
        %v1201 = vld [vmem:[#allocation5 + $0x50] sm:$0xf]
        %v1202 = vld [vmem:[#allocation5 + $0x54] sm:$0xf]
        %v1203 = vld [vmem:[#allocation5 + $0x58] sm:$0xf]
        %v1204 = vld [vmem:[#allocation5 + $0x5c] sm:$0xf]
        %v1205 = vld [vmem:[#allocation5 + $0x60] sm:$0xf]
        %v1206 = vld [vmem:[#allocation5 + $0x64] sm:$0xf]
        %v1207 = vld [vmem:[#allocation5 + $0x68] sm:$0xf]
        %v1208 = vld [vmem:[#allocation5 + $0x6c] sm:$0xf]
        %v1209 = vld [vmem:[#allocation5 + $0x70] sm:$0xf]
        %v1210 = vld [vmem:[#allocation5 + $0x74] sm:$0xf]
        %v1211 = vld [vmem:[#allocation5 + $0x78] sm:$0xf]
        %v1212 = vld [vmem:[#allocation5 + $0x7c] sm:$0xf]
        %v1213 = vld [vmem:[#allocation5 + $0x80] sm:$0xf]
        %v1214 = vld [vmem:[#allocation5 + $0x84] sm:$0xf]
        %v1215 = vld [vmem:[#allocation5 + $0x88] sm:$0xf]
        %v1216 = vld [vmem:[#allocation5 + $0x8c] sm:$0xf]
        %v1217 = vld [vmem:[#allocation5 + $0x90] sm:$0xf]
        %v1218 = vld [vmem:[#allocation5 + $0x94] sm:$0xf]
        %v1219 = vld [vmem:[#allocation5 + $0x98] sm:$0xf]
        %v1220 = vld [vmem:[#allocation5 + $0x9c] sm:$0xf]
        %v1221 = vld [vmem:[#allocation5 + $0xa0] sm:$0xf]
        %v1222 = vld [vmem:[#allocation5 + $0xa4] sm:$0xf]
        %v1223 = vld [vmem:[#allocation5 + $0xa8] sm:$0xf]
        %v1224 = vld [vmem:[#allocation5 + $0xac] sm:$0xf]
        %v1225 = vld [vmem:[#allocation5 + $0xb0] sm:$0xf]
        %v1226 = vld [vmem:[#allocation5 + $0xb4] sm:$0xf]
        %v1227 = vld [vmem:[#allocation5 + $0xb8] sm:$0xf]
        %v1228 = vld [vmem:[#allocation5 + $0xbc] sm:$0xf]
        %v1229 = vld [vmem:[#allocation5 + $0xc0] sm:$0xf]
        %v1230 = vld [vmem:[#allocation5 + $0xc4] sm:$0xf]
        %v1231 = vld [vmem:[#allocation5 + $0xc8] sm:$0xf]
        %v1232 = vld [vmem:[#allocation5 + $0xcc] sm:$0xf]
        %v1233 = vld [vmem:[#allocation5 + $0xd0] sm:$0xf]
        %v1234 = vld [vmem:[#allocation5 + $0xd4] sm:$0xf]
        %v1235 = vld [vmem:[#allocation5 + $0xd8] sm:$0xf]
        %v1236 = vld [vmem:[#allocation5 + $0xdc] sm:$0xf]
        %v1237 = vld [vmem:[#allocation5 + $0xe0] sm:$0xf]
        %v1238 = vld [vmem:[#allocation5 + $0xe4] sm:$0xf]
        %v1239 = vld [vmem:[#allocation5 + $0xe8] sm:$0xf]
        %v1240 = vld [vmem:[#allocation5 + $0xec] sm:$0xf]
        %v1241 = vld [vmem:[#allocation5 + $0xf0] sm:$0xf]
        %v1242 = vld [vmem:[#allocation5 + $0xf4] sm:$0xf]
        %v1243 = vld [vmem:[#allocation5 + $0xf8] sm:$0xf]
        %v1244 = vld [vmem:[#allocation5 + $0xfc] sm:$0xf]
        %v1245 = vld [vmem:[#allocation5 + $0x100] sm:$0xf]
        %v1246 = vld [vmem:[#allocation5 + $0x104] sm:$0xf]
        %v1247 = vld [vmem:[#allocation5 + $0x108] sm:$0xf]
        %v1248 = vld [vmem:[#allocation5 + $0x10c] sm:$0xf]
        %v1249 = vld [vmem:[#allocation5 + $0x110] sm:$0xf]
        %v1250 = vld [vmem:[#allocation5 + $0x114] sm:$0xf]
        %v1251 = vld [vmem:[#allocation5 + $0x118] sm:$0xf]
        %v1252 = vld [vmem:[#allocation5 + $0x11c] sm:$0xf]
        %v1253 = vld [vmem:[%s3] sm:$0x1]
        %v1255 = vlaneseq
        %v1256 = vshrl.u32 %v1255, 7
        %v1257 = vsub.s32 0, %v1256
        %v1258 = vrot.slane %v1253, %v1257
        %v1296 = vunpack.c.l.b16 %v1145
        %v1297 = vunpack.c.h.b16 %v1145
        %v1298 = vunpack.c.l.b16 %v1146
        %v1299 = vunpack.c.h.b16 %v1146
        %v1300 = vunpack.c.l.b16 %v1147
        %v1301 = vunpack.c.l.b16 %v1148
        %v1302 = vunpack.c.h.b16 %v1148
        %v1303 = vunpack.c.l.b16 %v1149
        %v1304 = vunpack.c.h.b16 %v1149
        %v1305 = vunpack.c.l.b16 %v1150
        %v1306 = vunpack.c.l.b16 %v1151
        %v1307 = vunpack.c.h.b16 %v1151
        %v1308 = vunpack.c.l.b16 %v1152
        %v1309 = vunpack.c.h.b16 %v1152
        %v1310 = vunpack.c.l.b16 %v1153
        %v1311 = vunpack.c.l.b16 %v1154
        %v1312 = vunpack.c.h.b16 %v1154
        %v1313 = vunpack.c.l.b16 %v1155
        %v1314 = vunpack.c.h.b16 %v1155
        %v1315 = vunpack.c.l.b16 %v1156
        %v1316 = vunpack.c.l.b16 %v1157
        %v1317 = vunpack.c.h.b16 %v1157
        %v1318 = vunpack.c.l.b16 %v1158
        %v1319 = vunpack.c.h.b16 %v1158
        %v1320 = vunpack.c.l.b16 %v1159
        %v1321 = vunpack.c.l.b16 %v1160
        %v1322 = vunpack.c.h.b16 %v1160
        %v1323 = vunpack.c.l.b16 %v1161
        %v1324 = vunpack.c.h.b16 %v1161
        %v1325 = vunpack.c.l.b16 %v1162
        %v1326 = vunpack.c.l.b16 %v1163
        %v1327 = vunpack.c.h.b16 %v1163
        %v1328 = vunpack.c.l.b16 %v1164
        %v1329 = vunpack.c.h.b16 %v1164
        %v1330 = vunpack.c.l.b16 %v1165
        %v1331 = vunpack.c.l.b16 %v1166
        %v1332 = vunpack.c.h.b16 %v1166
        %v1333 = vunpack.c.l.b16 %v1167
        %v1334 = vunpack.c.h.b16 %v1167
        %v1335 = vunpack.c.l.b16 %v1168
        %v1336 = vunpack.c.l.b16 %v1169
        %v1337 = vunpack.c.h.b16 %v1169
        %v1338 = vunpack.c.l.b16 %v1170
        %v1339 = vunpack.c.h.b16 %v1170
        %v1340 = vunpack.c.l.b16 %v1171
        %v1341 = vunpack.c.l.b16 %v1172
        %v1342 = vunpack.c.h.b16 %v1172
        %v1343 = vunpack.c.l.b16 %v1173
        %v1344 = vunpack.c.h.b16 %v1173
        %v1345 = vunpack.c.l.b16 %v1174
        %v1346 = vunpack.c.l.b16 %v1175
        %v1347 = vunpack.c.h.b16 %v1175
        %v1348 = vunpack.c.l.b16 %v1176
        %v1349 = vunpack.c.h.b16 %v1176
        %v1350 = vunpack.c.l.b16 %v1177
        %v1351 = vunpack.c.l.b16 %v1178
        %v1352 = vunpack.c.h.b16 %v1178
        %v1353 = vunpack.c.l.b16 %v1179
        %v1354 = vunpack.c.h.b16 %v1179
        %v1355 = vunpack.c.l.b16 %v1180
        %v1356 = vpack.c.b16 %v1301, %v1296
        %v1357 = vpack.c.b16 %v1302, %v1297
        %v1358 = vpack.c.b16 %v1303, %v1298
        %v1359 = vpack.c.b16 %v1304, %v1299
        %v1360 = vpack.c.b16 %v1305, %v1300
        %v1361 = vpack.c.b16 %v1311, %v1306
        %v1362 = vpack.c.b16 %v1312, %v1307
        %v1363 = vpack.c.b16 %v1313, %v1308
        %v1364 = vpack.c.b16 %v1314, %v1309
        %v1365 = vpack.c.b16 %v1315, %v1310
        %v1366 = vpack.c.b16 %v1321, %v1316
        %v1367 = vpack.c.b16 %v1322, %v1317
        %v1368 = vpack.c.b16 %v1323, %v1318
        %v1369 = vpack.c.b16 %v1324, %v1319
        %v1370 = vpack.c.b16 %v1325, %v1320
        %v1371 = vpack.c.b16 %v1331, %v1326
        %v1372 = vpack.c.b16 %v1332, %v1327
        %v1373 = vpack.c.b16 %v1333, %v1328
        %v1374 = vpack.c.b16 %v1334, %v1329
        %v1375 = vpack.c.b16 %v1335, %v1330
        %v1376 = vpack.c.b16 %v1341, %v1336
        %v1377 = vpack.c.b16 %v1342, %v1337
        %v1378 = vpack.c.b16 %v1343, %v1338
        %v1379 = vpack.c.b16 %v1344, %v1339
        %v1380 = vpack.c.b16 %v1345, %v1340
        %v1381 = vpack.c.b16 %v1351, %v1346
        %v1382 = vpack.c.b16 %v1352, %v1347
        %v1383 = vpack.c.b16 %v1353, %v1348
        %v1384 = vpack.c.b16 %v1354, %v1349
        %v1385 = vpack.c.b16 %v1355, %v1350
        %v1482 = vunpack.c.l.b16 %v1181
        %v1483 = vunpack.c.l.b16 %v1182
        %v1484 = vunpack.c.l.b16 %v1183
        %v1485 = vunpack.c.l.b16 %v1184
        %v1486 = vunpack.c.l.b16 %v1185
        %v1487 = vunpack.c.l.b16 %v1186
        %v1488 = vunpack.c.l.b16 %v1187
        %v1489 = vunpack.c.l.b16 %v1188
        %v1490 = vunpack.c.l.b16 %v1189
        %v1491 = vunpack.c.l.b16 %v1190
        %v1492 = vunpack.c.l.b16 %v1191
        %v1493 = vunpack.c.l.b16 %v1192
        %v1494 = vunpack.c.l.b16 %v1193
        %v1495 = vunpack.c.l.b16 %v1194
        %v1496 = vunpack.c.l.b16 %v1195
        %v1497 = vunpack.c.l.b16 %v1196
        %v1498 = vunpack.c.l.b16 %v1197
        %v1499 = vunpack.c.l.b16 %v1198
        %v1500 = vunpack.c.l.b16 %v1199
        %v1501 = vunpack.c.l.b16 %v1200
        %v1502 = vunpack.c.l.b16 %v1201
        %v1503 = vunpack.c.l.b16 %v1202
        %v1504 = vunpack.c.l.b16 %v1203
        %v1505 = vunpack.c.l.b16 %v1204
        %v1506 = vunpack.c.l.b16 %v1205
        %v1507 = vunpack.c.l.b16 %v1206
        %v1508 = vunpack.c.l.b16 %v1207
        %v1509 = vunpack.c.l.b16 %v1208
        %v1510 = vunpack.c.l.b16 %v1209
        %v1511 = vunpack.c.l.b16 %v1210
        %v1512 = vunpack.c.l.b16 %v1211
        %v1513 = vunpack.c.l.b16 %v1212
        %v1514 = vunpack.c.l.b16 %v1213
        %v1515 = vunpack.c.l.b16 %v1214
        %v1516 = vunpack.c.l.b16 %v1215
        %v1517 = vunpack.c.l.b16 %v1216
        %v1518 = vunpack.c.l.b16 %v1217
        %v1519 = vunpack.c.l.b16 %v1218
        %v1520 = vunpack.c.l.b16 %v1219
        %v1521 = vunpack.c.l.b16 %v1220
        %v1522 = vunpack.c.l.b16 %v1221
        %v1523 = vunpack.c.l.b16 %v1222
        %v1524 = vunpack.c.l.b16 %v1223
        %v1525 = vunpack.c.l.b16 %v1224
        %v1526 = vunpack.c.l.b16 %v1225
        %v1527 = vunpack.c.l.b16 %v1226
        %v1528 = vunpack.c.l.b16 %v1227
        %v1529 = vunpack.c.l.b16 %v1228
        %v1530 = vunpack.c.l.b16 %v1229
        %v1531 = vunpack.c.l.b16 %v1230
        %v1532 = vunpack.c.l.b16 %v1231
        %v1533 = vunpack.c.l.b16 %v1232
        %v1534 = vunpack.c.l.b16 %v1233
        %v1535 = vunpack.c.l.b16 %v1234
        %v1536 = vunpack.c.l.b16 %v1235
        %v1537 = vunpack.c.l.b16 %v1236
        %v1538 = vunpack.c.l.b16 %v1237
        %v1539 = vunpack.c.l.b16 %v1238
        %v1540 = vunpack.c.l.b16 %v1239
        %v1541 = vunpack.c.l.b16 %v1240
        %v1542 = vunpack.c.l.b16 %v1241
        %v1543 = vunpack.c.l.b16 %v1242
        %v1544 = vunpack.c.l.b16 %v1243
        %v1545 = vunpack.c.l.b16 %v1244
        %v1546 = vunpack.c.l.b16 %v1245
        %v1547 = vunpack.c.l.b16 %v1246
        %v1548 = vunpack.c.l.b16 %v1247
        %v1549 = vunpack.c.l.b16 %v1248
        %v1550 = vunpack.c.l.b16 %v1249
        %v1551 = vunpack.c.l.b16 %v1250
        %v1552 = vunpack.c.l.b16 %v1251
        %v1553 = vunpack.c.l.b16 %v1252
        %v1554 = vpack.c.b16 %v1483, %v1482
        %v1555 = vpack.c.b16 %v1485, %v1484
        %v1556 = vpack.c.b16 %v1487, %v1486
        %v1557 = vpack.c.b16 %v1489, %v1488
        %v1558 = vpack.c.b16 %v1491, %v1490
        %v1559 = vpack.c.b16 %v1493, %v1492
        %v1560 = vpack.c.b16 %v1495, %v1494
        %v1561 = vpack.c.b16 %v1497, %v1496
        %v1562 = vpack.c.b16 %v1499, %v1498
        %v1563 = vpack.c.b16 %v1501, %v1500
        %v1564 = vpack.c.b16 %v1503, %v1502
        %v1565 = vpack.c.b16 %v1505, %v1504
        %v1566 = vpack.c.b16 %v1507, %v1506
        %v1567 = vpack.c.b16 %v1509, %v1508
        %v1568 = vpack.c.b16 %v1511, %v1510
        %v1569 = vpack.c.b16 %v1513, %v1512
        %v1570 = vpack.c.b16 %v1515, %v1514
        %v1571 = vpack.c.b16 %v1517, %v1516
        %v1572 = vpack.c.b16 %v1519, %v1518
        %v1573 = vpack.c.b16 %v1521, %v1520
        %v1574 = vpack.c.b16 %v1523, %v1522
        %v1575 = vpack.c.b16 %v1525, %v1524
        %v1576 = vpack.c.b16 %v1527, %v1526
        %v1577 = vpack.c.b16 %v1529, %v1528
        %v1578 = vpack.c.b16 %v1531, %v1530
        %v1579 = vpack.c.b16 %v1533, %v1532
        %v1580 = vpack.c.b16 %v1535, %v1534
        %v1581 = vpack.c.b16 %v1537, %v1536
        %v1582 = vpack.c.b16 %v1539, %v1538
        %v1583 = vpack.c.b16 %v1541, %v1540
        %v1584 = vpack.c.b16 %v1543, %v1542
        %v1585 = vpack.c.b16 %v1545, %v1544
        %v1586 = vpack.c.b16 %v1547, %v1546
        %v1587 = vpack.c.b16 %v1549, %v1548
        %v1588 = vpack.c.b16 %v1551, %v1550
        %v1589 = vpack.c.b16 %v1553, %v1552
        %vm1626 = vcmask 523264
        %v1628 = vsel %vm1626, %v1360, 0
        %v1631 = vsel %vm1626, %v1365, 0
        %v1634 = vsel %vm1626, %v1370, 0
        %v1637 = vsel %vm1626, %v1375, 0
        %v1640 = vsel %vm1626, %v1380, 0
        %v1643 = vsel %vm1626, %v1385, 0
        %1645 = vmatprep.subr.bf16.mxu0 0
        %1646 = vmatpush1.bf16.msra.mxu0 %v1554
        %1647 = vmatprep.subr.bf16.mxu0 0
        %1648 = vmatpush1.bf16.msra.mxu0 %v1555
        %1649 = vmatprep.subr.bf16.mxu0 0
        %1650 = vmatpush1.bf16.msra.mxu0 %v1556
        %1651 = vmatprep.subr.bf16.mxu0 0
        %1652 = vmatpush1.bf16.msra.mxu0 %v1557
        %1653 = vmatprep.subr.bf16.mxu0 0
        %1654 = vmatpush1.bf16.msra.mxu0 %v1558
        %1655 = vmatprep.subr.bf16.mxu0 0
        %1656 = vmatpush1.bf16.msra.mxu0 %v1559
        %1657 = vmatprep.subr.bf16.mxu0 0
        %1658 = vmatpush1.bf16.msra.mxu0 %v1560
        %1659 = vmatprep.subr.bf16.mxu0 0
        %1660 = vmatpush1.bf16.msra.mxu0 %v1561
        %1661 = vmatprep.subr.bf16.mxu0 0
        %1662 = vmatpush1.bf16.msra.mxu0 %v1562
        %1663 = vmatprep.subr.bf16.mxu0 0
        %1664 = vmatpush1.bf16.msra.mxu0 %v1563
        %1665 = vmatprep.subr.bf16.mxu0 0
        %1666 = vmatpush1.bf16.msra.mxu0 %v1564
        %1667 = vmatprep.subr.bf16.mxu0 0
        %1668 = vmatpush1.bf16.msra.mxu0 %v1565
        %1669 = vmatprep.subr.bf16.mxu0 0
        %1670 = vmatpush1.bf16.msra.mxu0 %v1566
        %1671 = vmatprep.subr.bf16.mxu0 0
        %1672 = vmatpush1.bf16.msra.mxu0 %v1567
        %1673 = vmatprep.subr.bf16.mxu0 0
        %1674 = vmatpush1.bf16.msra.mxu0 %v1568
        %1675 = vmatprep.subr.bf16.mxu0 0
        %1676 = vmatpush1.bf16.msra.mxu0 %v1569
        %1677 = vmatprep.mubr.bf16.mxu0 %v1357
        %1678 = vmatmul.mubr.bf16.gmra.mrb[0].mxu0 %v1356
        %v1679 = vpop.f32.mrb[0].mxu0
        %v1680 = vadd.f32 %v1258, %v1679
        %v1681 = vpop.f32.mrb[0].mxu0
        %v1682 = vpop.f32.mrb[0].mxu0
        %v1683 = vadd.f32 %v1258, %v1682
        %v1684 = vpop.f32.mrb[0].mxu0
        %1685 = vmatprep.mubr.bf16.mxu0 %v1362
        %1686 = vmatmul.mubr.bf16.gmra.mrb[0].mxu0 %v1361
        %v1687 = vpop.f32.mrb[0].mxu0
        %v1688 = vadd.f32 %v1258, %v1687
        %v1689 = vpop.f32.mrb[0].mxu0
        %v1690 = vpop.f32.mrb[0].mxu0
        %v1691 = vadd.f32 %v1258, %v1690
        %v1692 = vpop.f32.mrb[0].mxu0
        %1693 = vmatprep.mubr.bf16.mxu0 %v1367
        %1694 = vmatmul.mubr.bf16.gmra.mrb[0].mxu0 %v1366
        %v1695 = vpop.f32.mrb[0].mxu0
        %v1696 = vadd.f32 %v1258, %v1695
        %v1697 = vpop.f32.mrb[0].mxu0
        %v1698 = vpop.f32.mrb[0].mxu0
        %v1699 = vadd.f32 %v1258, %v1698
        %v1700 = vpop.f32.mrb[0].mxu0
        %1701 = vmatprep.mubr.bf16.mxu0 %v1372
        %1702 = vmatmul.mubr.bf16.gmra.mrb[0].mxu0 %v1371
        %v1703 = vpop.f32.mrb[0].mxu0
        %v1704 = vadd.f32 %v1258, %v1703
        %v1705 = vpop.f32.mrb[0].mxu0
        %v1706 = vpop.f32.mrb[0].mxu0
        %v1707 = vadd.f32 %v1258, %v1706
        %v1708 = vpop.f32.mrb[0].mxu0
        %1709 = vmatprep.mubr.bf16.mxu0 %v1377
        %1710 = vmatmul.mubr.bf16.gmra.mrb[0].mxu0 %v1376
        %v1711 = vpop.f32.mrb[0].mxu0
        %v1712 = vadd.f32 %v1258, %v1711
        %v1713 = vpop.f32.mrb[0].mxu0
        %v1714 = vpop.f32.mrb[0].mxu0
        %v1715 = vadd.f32 %v1258, %v1714
        %v1716 = vpop.f32.mrb[0].mxu0
        %1717 = vmatprep.mubr.bf16.mxu0 %v1382
        %1718 = vmatmul.mubr.bf16.gmra.mrb[0].mxu0 %v1381
        %v1719 = vpop.f32.mrb[0].mxu0
        %v1720 = vadd.f32 %v1258, %v1719
        %v1721 = vpop.f32.mrb[0].mxu0
        %v1722 = vpop.f32.mrb[0].mxu0
        %v1723 = vadd.f32 %v1258, %v1722
        %v1724 = vpop.f32.mrb[0].mxu0
        %1725 = vdwg.mxu0
        %1726 = vmatprep.subr.bf16.mxu0 0
        %1727 = vmatpush1.bf16.msra.mxu0 %v1570
        %1728 = vmatprep.subr.bf16.mxu0 0
        %1729 = vmatpush1.bf16.msra.mxu0 %v1571
        %1730 = vmatprep.subr.bf16.mxu0 0
        %1731 = vmatpush1.bf16.msra.mxu0 %v1572
        %1732 = vmatprep.subr.bf16.mxu0 0
        %1733 = vmatpush1.bf16.msra.mxu0 %v1573
        %1734 = vmatprep.subr.bf16.mxu0 0
        %1735 = vmatpush1.bf16.msra.mxu0 %v1574
        %1736 = vmatprep.subr.bf16.mxu0 0
        %1737 = vmatpush1.bf16.msra.mxu0 %v1575
        %1738 = vmatprep.subr.bf16.mxu0 0
        %1739 = vmatpush1.bf16.msra.mxu0 %v1576
        %1740 = vmatprep.subr.bf16.mxu0 0
        %1741 = vmatpush1.bf16.msra.mxu0 %v1577
        %1742 = vmatprep.subr.bf16.mxu0 0
        %1743 = vmatpush1.bf16.msra.mxu0 %v1578
        %1744 = vmatprep.subr.bf16.mxu0 0
        %1745 = vmatpush1.bf16.msra.mxu0 %v1579
        %1746 = vmatprep.subr.bf16.mxu0 0
        %1747 = vmatpush1.bf16.msra.mxu0 %v1580
        %1748 = vmatprep.subr.bf16.mxu0 0
        %1749 = vmatpush1.bf16.msra.mxu0 %v1581
        %1750 = vmatprep.subr.bf16.mxu0 0
        %1751 = vmatpush1.bf16.msra.mxu0 %v1582
        %1752 = vmatprep.subr.bf16.mxu0 0
        %1753 = vmatpush1.bf16.msra.mxu0 %v1583
        %1754 = vmatprep.subr.bf16.mxu0 0
        %1755 = vmatpush1.bf16.msra.mxu0 %v1584
        %1756 = vmatprep.subr.bf16.mxu0 0
        %1757 = vmatpush1.bf16.msra.mxu0 %v1585
        %1758 = vmatprep.mubr.bf16.mxu0 %v1359
        %1759 = vmatmul.mubr.bf16.gmra.mrb[0].mxu0 %v1358
        %v1760 = vpop.f32.mrb[0].mxu0
        %v1761 = vadd.f32 %v1680, %v1760
        %v1762 = vpop.f32.mrb[0].mxu0
        %v1763 = vpop.f32.mrb[0].mxu0
        %v1764 = vadd.f32 %v1683, %v1763
        %v1765 = vpop.f32.mrb[0].mxu0
        %1766 = vmatprep.mubr.bf16.mxu0 %v1364
        %1767 = vmatmul.mubr.bf16.gmra.mrb[0].mxu0 %v1363
        %v1768 = vpop.f32.mrb[0].mxu0
        %v1769 = vadd.f32 %v1688, %v1768
        %v1770 = vpop.f32.mrb[0].mxu0
        %v1771 = vpop.f32.mrb[0].mxu0
        %v1772 = vadd.f32 %v1691, %v1771
        %v1773 = vpop.f32.mrb[0].mxu0
        %1774 = vmatprep.mubr.bf16.mxu0 %v1369
        %1775 = vmatmul.mubr.bf16.gmra.mrb[0].mxu0 %v1368
        %v1776 = vpop.f32.mrb[0].mxu0
        %v1777 = vadd.f32 %v1696, %v1776
        %v1778 = vpop.f32.mrb[0].mxu0
        %v1779 = vpop.f32.mrb[0].mxu0
        %v1780 = vadd.f32 %v1699, %v1779
        %v1781 = vpop.f32.mrb[0].mxu0
        %1782 = vmatprep.mubr.bf16.mxu0 %v1374
        %1783 = vmatmul.mubr.bf16.gmra.mrb[0].mxu0 %v1373
        %v1784 = vpop.f32.mrb[0].mxu0
        %v1785 = vadd.f32 %v1704, %v1784
        %v1786 = vpop.f32.mrb[0].mxu0
        %v1787 = vpop.f32.mrb[0].mxu0
        %v1788 = vadd.f32 %v1707, %v1787
        %v1789 = vpop.f32.mrb[0].mxu0
        %1790 = vmatprep.mubr.bf16.mxu0 %v1379
        %1791 = vmatmul.mubr.bf16.gmra.mrb[0].mxu0 %v1378
        %v1792 = vpop.f32.mrb[0].mxu0
        %v1793 = vadd.f32 %v1712, %v1792
        %v1794 = vpop.f32.mrb[0].mxu0
        %v1795 = vpop.f32.mrb[0].mxu0
        %v1796 = vadd.f32 %v1715, %v1795
        %v1797 = vpop.f32.mrb[0].mxu0
        %1798 = vmatprep.mubr.bf16.mxu0 %v1384
        %1799 = vmatmul.mubr.bf16.gmra.mrb[0].mxu0 %v1383
        %v1800 = vpop.f32.mrb[0].mxu0
        %v1801 = vadd.f32 %v1720, %v1800
        %v1802 = vpop.f32.mrb[0].mxu0
        %v1803 = vpop.f32.mrb[0].mxu0
        %v1804 = vadd.f32 %v1723, %v1803
        %v1805 = vpop.f32.mrb[0].mxu0
        %1806 = vdwg.mxu0
        %1807 = vmatprep.subr.bf16.mxu0 0
        %1808 = vmatpush1.bf16.msra.mxu0 %v1586
        %1809 = vmatprep.subr.bf16.mxu0 0
        %1810 = vmatpush1.bf16.msra.mxu0 %v1587
        %1811 = vmatprep.subr.bf16.mxu0 0
        %1812 = vmatpush1.bf16.msra.mxu0 %v1588
        %1813 = vmatprep.subr.bf16.mxu0 0
        %1814 = vmatpush1.bf16.msra.mxu0 %v1589
        %1815 = vmatprep.subr.bf16.mxu0 0
        %1816 = vmatpush1.bf16.msra.mxu0 0
        %1817 = vmatprep.subr.bf16.mxu0 0
        %1818 = vmatpush1.bf16.msra.mxu0 0
        %1819 = vmatprep.subr.bf16.mxu0 0
        %1820 = vmatpush1.bf16.msra.mxu0 0
        %1821 = vmatprep.subr.bf16.mxu0 0
        %1822 = vmatpush1.bf16.msra.mxu0 0
        %1823 = vmatprep.subr.bf16.mxu0 0
        %1824 = vmatpush1.bf16.msra.mxu0 0
        %1825 = vmatprep.subr.bf16.mxu0 0
        %1826 = vmatpush1.bf16.msra.mxu0 0
        %1827 = vmatprep.subr.bf16.mxu0 0
        %1828 = vmatpush1.bf16.msra.mxu0 0
        %1829 = vmatprep.subr.bf16.mxu0 0
        %1830 = vmatpush1.bf16.msra.mxu0 0
        %1831 = vmatprep.subr.bf16.mxu0 0
        %1832 = vmatpush1.bf16.msra.mxu0 0
        %1833 = vmatprep.subr.bf16.mxu0 0
        %1834 = vmatpush1.bf16.msra.mxu0 0
        %1835 = vmatprep.subr.bf16.mxu0 0
        %1836 = vmatpush1.bf16.msra.mxu0 0
        %1837 = vmatprep.subr.bf16.mxu0 0
        %1838 = vmatpush1.bf16.msra.mxu0 0
        %1839 = vmatprep.mubr.bf16.mxu0 0
        %1840 = vmatmul.mubr.bf16.gmra.mrb[0].mxu0 %v1628
        %v1841 = vpop.f32.mrb[0].mxu0
        %v1842 = vadd.f32 %v1761, %v1841
        %v1843 = vpop.f32.mrb[0].mxu0
        %v1844 = vpop.f32.mrb[0].mxu0
        %v1845 = vadd.f32 %v1764, %v1844
        %v1846 = vpop.f32.mrb[0].mxu0
        %1847 = vmatprep.mubr.bf16.mxu0 0
        %1848 = vmatmul.mubr.bf16.gmra.mrb[0].mxu0 %v1631
        %v1849 = vpop.f32.mrb[0].mxu0
        %v1850 = vadd.f32 %v1769, %v1849
        %v1851 = vpop.f32.mrb[0].mxu0
        %v1852 = vpop.f32.mrb[0].mxu0
        %v1853 = vadd.f32 %v1772, %v1852
        %v1854 = vpop.f32.mrb[0].mxu0
        %1855 = vmatprep.mubr.bf16.mxu0 0
        %1856 = vmatmul.mubr.bf16.gmra.mrb[0].mxu0 %v1634
        %v1857 = vpop.f32.mrb[0].mxu0
        %v1858 = vadd.f32 %v1777, %v1857
        %v1859 = vpop.f32.mrb[0].mxu0
        %v1860 = vpop.f32.mrb[0].mxu0
        %v1861 = vadd.f32 %v1780, %v1860
        %v1862 = vpop.f32.mrb[0].mxu0
        %1863 = vmatprep.mubr.bf16.mxu0 0
        %1864 = vmatmul.mubr.bf16.gmra.mrb[0].mxu0 %v1637
        %v1865 = vpop.f32.mrb[0].mxu0
        %v1866 = vadd.f32 %v1785, %v1865
        %v1867 = vpop.f32.mrb[0].mxu0
        %v1868 = vpop.f32.mrb[0].mxu0
        %v1869 = vadd.f32 %v1788, %v1868
        %v1870 = vpop.f32.mrb[0].mxu0
        %1871 = vmatprep.mubr.bf16.mxu0 0
        %1872 = vmatmul.mubr.bf16.gmra.mrb[0].mxu0 %v1640
        %v1873 = vpop.f32.mrb[0].mxu0
        %v1874 = vadd.f32 %v1793, %v1873
        %v1875 = vpop.f32.mrb[0].mxu0
        %v1876 = vpop.f32.mrb[0].mxu0
        %v1877 = vadd.f32 %v1796, %v1876
        %v1878 = vpop.f32.mrb[0].mxu0
        %1879 = vmatprep.mubr.bf16.mxu0 0
        %1880 = vmatmul.mubr.bf16.gmra.mrb[0].mxu0 %v1643
        %v1881 = vpop.f32.mrb[0].mxu0
        %v1882 = vadd.f32 %v1801, %v1881
        %v1883 = vpop.f32.mrb[0].mxu0
        %v1884 = vpop.f32.mrb[0].mxu0
        %v1885 = vadd.f32 %v1804, %v1884
        %v1886 = vpop.f32.mrb[0].mxu0
        %1887 = vdwg.mxu0
        %v1888 = vmax.f32 %v1842, 0.0
        %v1889 = vmax.f32 %v1845, 0.0
        %v1890 = vmax.f32 %v1850, 0.0
        %v1891 = vmax.f32 %v1853, 0.0
        %v1892 = vmax.f32 %v1858, 0.0
        %v1893 = vmax.f32 %v1861, 0.0
        %v1894 = vmax.f32 %v1866, 0.0
        %v1895 = vmax.f32 %v1869, 0.0
        %v1896 = vmax.f32 %v1874, 0.0
        %v1897 = vmax.f32 %v1877, 0.0
        %v1898 = vmax.f32 %v1882, 0.0
        %v1899 = vmax.f32 %v1885, 0.0
        %v1900 = vpack.c.bf16 %v1888, %v1888
        %v1901 = vpack.c.bf16 %v1889, %v1889
        %v1902 = vpack.c.bf16 %v1890, %v1890
        %v1903 = vpack.c.bf16 %v1891, %v1891
        %v1904 = vpack.c.bf16 %v1892, %v1892
        %v1905 = vpack.c.bf16 %v1893, %v1893
        %v1906 = vpack.c.bf16 %v1894, %v1894
        %v1907 = vpack.c.bf16 %v1895, %v1895
        %v1908 = vpack.c.bf16 %v1896, %v1896
        %v1909 = vpack.c.bf16 %v1897, %v1897
        %v1910 = vpack.c.bf16 %v1898, %v1898
        %v1911 = vpack.c.bf16 %v1899, %v1899
        %v1924 = vunpack.c.l.b16 %v1900
        %v1925 = vunpack.c.l.b16 %v1901
        %v1926 = vunpack.c.l.b16 %v1902
        %v1927 = vunpack.c.l.b16 %v1903
        %v1928 = vunpack.c.l.b16 %v1904
        %v1929 = vunpack.c.l.b16 %v1905
        %v1930 = vunpack.c.l.b16 %v1906
        %v1931 = vunpack.c.l.b16 %v1907
        %v1932 = vunpack.c.l.b16 %v1908
        %v1933 = vunpack.c.l.b16 %v1909
        %v1934 = vunpack.c.l.b16 %v1910
        %v1935 = vunpack.c.l.b16 %v1911
        %v1936 = vpack.c.b16 %v1924, %v1924
        %v1937 = vpack.c.b16 %v1925, %v1925
        %v1938 = vpack.c.b16 %v1926, %v1926
        %v1939 = vpack.c.b16 %v1927, %v1927
        %v1940 = vpack.c.b16 %v1928, %v1928
        %v1941 = vpack.c.b16 %v1929, %v1929
        %v1942 = vpack.c.b16 %v1930, %v1930
        %v1943 = vpack.c.b16 %v1931, %v1931
        %v1944 = vpack.c.b16 %v1932, %v1932
        %v1945 = vpack.c.b16 %v1933, %v1933
        %v1946 = vpack.c.b16 %v1934, %v1934
        %v1947 = vpack.c.b16 %v1935, %v1935
        %v1949 = vshrl.u32 %v1936, 16
        %v1951 = vrot.slane %v1949, 7
        %v1952 = vshll.u32 %v1936, 16
        %v1954 = vor.u32 %v1951, %v1952
        %v1955 = vrot.slane %v1951, 4
        %v1957 = vshrl.u32 %v1937, 16
        %v1959 = vrot.slane %v1957, 7
        %v1960 = vshll.u32 %v1937, 16
        %v1962 = vor.u32 %v1959, %v1960
        %v1963 = vrot.slane %v1959, 4
        %v1965 = vshrl.u32 %v1938, 16
        %v1967 = vrot.slane %v1965, 7
        %v1968 = vshll.u32 %v1938, 16
        %v1970 = vor.u32 %v1967, %v1968
        %v1971 = vrot.slane %v1967, 4
        %v1973 = vshrl.u32 %v1939, 16
        %v1975 = vrot.slane %v1973, 7
        %v1976 = vshll.u32 %v1939, 16
        %v1978 = vor.u32 %v1975, %v1976
        %v1979 = vrot.slane %v1975, 4
        %v1981 = vshrl.u32 %v1940, 16
        %v1983 = vrot.slane %v1981, 7
        %v1984 = vshll.u32 %v1940, 16
        %v1986 = vor.u32 %v1983, %v1984
        %v1987 = vrot.slane %v1983, 4
        %v1989 = vshrl.u32 %v1941, 16
        %v1991 = vrot.slane %v1989, 7
        %v1992 = vshll.u32 %v1941, 16
        %v1994 = vor.u32 %v1991, %v1992
        %v1995 = vrot.slane %v1991, 4
        %v1997 = vshrl.u32 %v1942, 16
        %v1999 = vrot.slane %v1997, 7
        %v2000 = vshll.u32 %v1942, 16
        %v2002 = vor.u32 %v1999, %v2000
        %v2003 = vrot.slane %v1999, 4
        %v2005 = vshrl.u32 %v1943, 16
        %v2007 = vrot.slane %v2005, 7
        %v2008 = vshll.u32 %v1943, 16
        %v2010 = vor.u32 %v2007, %v2008
        %v2011 = vrot.slane %v2007, 4
        %v2013 = vshrl.u32 %v1944, 16
        %v2015 = vrot.slane %v2013, 7
        %v2016 = vshll.u32 %v1944, 16
        %v2018 = vor.u32 %v2015, %v2016
        %v2019 = vrot.slane %v2015, 4
        %v2021 = vshrl.u32 %v1945, 16
        %v2023 = vrot.slane %v2021, 7
        %v2024 = vshll.u32 %v1945, 16
        %v2026 = vor.u32 %v2023, %v2024
        %v2027 = vrot.slane %v2023, 4
        %v2029 = vshrl.u32 %v1946, 16
        %v2031 = vrot.slane %v2029, 7
        %v2032 = vshll.u32 %v1946, 16
        %v2034 = vor.u32 %v2031, %v2032
        %v2035 = vrot.slane %v2031, 4
        %v2037 = vshrl.u32 %v1947, 16
        %v2039 = vrot.slane %v2037, 7
        %v2040 = vshll.u32 %v1947, 16
        %v2042 = vor.u32 %v2039, %v2040
        %v2043 = vrot.slane %v2039, 4
        %vm2068 = vcmask 519168
        %vm2069 = vsmask.f32 7938
        %vm2070 = vmand %vm2068, %vm2069
        %v2071 = vld [vmem:[#allocation3] sm:$0xf]
        %v2072 = vsel %vm2070, %v1954, %v2071
        %2073 = vst [vmem:[#allocation3] sm:$0xf] %v2072
        %vm2074 = vcmask 516096
        %vm2075 = vsmask.f32 256
        %vm2076 = vmand %vm2074, %vm2075
        %v2077 = vld [vmem:[#allocation3 + $0x4] sm:$0x1]
        %v2078 = vsel %vm2076, %v1955, %v2077
        %2079 = vst [vmem:[#allocation3 + $0x4] sm:$0x1] %v2078
        %v2080 = vld [vmem:[#allocation3 + $0x8] sm:$0xf]
        %v2081 = vsel %vm2070, %v1962, %v2080
        %2082 = vst [vmem:[#allocation3 + $0x8] sm:$0xf] %v2081
        %v2083 = vld [vmem:[#allocation3 + $0xc] sm:$0x1]
        %v2084 = vsel %vm2076, %v1963, %v2083
        %2085 = vst [vmem:[#allocation3 + $0xc] sm:$0x1] %v2084
        %v2086 = vld [vmem:[#allocation3 + $0x10] sm:$0xf]
        %v2087 = vsel %vm2070, %v1970, %v2086
        %2088 = vst [vmem:[#allocation3 + $0x10] sm:$0xf] %v2087
        %v2089 = vld [vmem:[#allocation3 + $0x14] sm:$0x1]
        %v2090 = vsel %vm2076, %v1971, %v2089
        %2091 = vst [vmem:[#allocation3 + $0x14] sm:$0x1] %v2090
        %v2092 = vld [vmem:[#allocation3 + $0x18] sm:$0xf]
        %v2093 = vsel %vm2070, %v1978, %v2092
        %2094 = vst [vmem:[#allocation3 + $0x18] sm:$0xf] %v2093
        %v2095 = vld [vmem:[#allocation3 + $0x1c] sm:$0x1]
        %v2096 = vsel %vm2076, %v1979, %v2095
        %2097 = vst [vmem:[#allocation3 + $0x1c] sm:$0x1] %v2096
        %v2098 = vld [vmem:[#allocation3 + $0x20] sm:$0xf]
        %v2099 = vsel %vm2070, %v1986, %v2098
        %2100 = vst [vmem:[#allocation3 + $0x20] sm:$0xf] %v2099
        %v2101 = vld [vmem:[#allocation3 + $0x24] sm:$0x1]
        %v2102 = vsel %vm2076, %v1987, %v2101
        %2103 = vst [vmem:[#allocation3 + $0x24] sm:$0x1] %v2102
        %v2104 = vld [vmem:[#allocation3 + $0x28] sm:$0xf]
        %v2105 = vsel %vm2070, %v1994, %v2104
        %2106 = vst [vmem:[#allocation3 + $0x28] sm:$0xf] %v2105
        %v2107 = vld [vmem:[#allocation3 + $0x2c] sm:$0x1]
        %v2108 = vsel %vm2076, %v1995, %v2107
        %2109 = vst [vmem:[#allocation3 + $0x2c] sm:$0x1] %v2108
        %v2110 = vld [vmem:[#allocation3 + $0x30] sm:$0xf]
        %v2111 = vsel %vm2070, %v2002, %v2110
        %2112 = vst [vmem:[#allocation3 + $0x30] sm:$0xf] %v2111
        %v2113 = vld [vmem:[#allocation3 + $0x34] sm:$0x1]
        %v2114 = vsel %vm2076, %v2003, %v2113
        %2115 = vst [vmem:[#allocation3 + $0x34] sm:$0x1] %v2114
        %v2116 = vld [vmem:[#allocation3 + $0x38] sm:$0xf]
        %v2117 = vsel %vm2070, %v2010, %v2116
        %2118 = vst [vmem:[#allocation3 + $0x38] sm:$0xf] %v2117
        %v2119 = vld [vmem:[#allocation3 + $0x3c] sm:$0x1]
        %v2120 = vsel %vm2076, %v2011, %v2119
        %2121 = vst [vmem:[#allocation3 + $0x3c] sm:$0x1] %v2120
        %v2122 = vld [vmem:[#allocation3 + $0x40] sm:$0xf]
        %v2123 = vsel %vm2070, %v2018, %v2122
        %2124 = vst [vmem:[#allocation3 + $0x40] sm:$0xf] %v2123
        %v2125 = vld [vmem:[#allocation3 + $0x44] sm:$0x1]
        %v2126 = vsel %vm2076, %v2019, %v2125
        %2127 = vst [vmem:[#allocation3 + $0x44] sm:$0x1] %v2126
        %v2128 = vld [vmem:[#allocation3 + $0x48] sm:$0xf]
        %v2129 = vsel %vm2070, %v2026, %v2128
        %2130 = vst [vmem:[#allocation3 + $0x48] sm:$0xf] %v2129
        %v2131 = vld [vmem:[#allocation3 + $0x4c] sm:$0x1]
        %v2132 = vsel %vm2076, %v2027, %v2131
        %2133 = vst [vmem:[#allocation3 + $0x4c] sm:$0x1] %v2132
        %v2134 = vld [vmem:[#allocation3 + $0x50] sm:$0xf]
        %v2135 = vsel %vm2070, %v2034, %v2134
        %2136 = vst [vmem:[#allocation3 + $0x50] sm:$0xf] %v2135
        %v2137 = vld [vmem:[#allocation3 + $0x54] sm:$0x1]
        %v2138 = vsel %vm2076, %v2035, %v2137
        %2139 = vst [vmem:[#allocation3 + $0x54] sm:$0x1] %v2138
        %v2140 = vld [vmem:[#allocation3 + $0x58] sm:$0xf]
        %v2141 = vsel %vm2070, %v2042, %v2140
        %2142 = vst [vmem:[#allocation3 + $0x58] sm:$0xf] %v2141
        %v2143 = vld [vmem:[#allocation3 + $0x5c] sm:$0x1]
        %v2144 = vsel %vm2076, %v2043, %v2143
        %2145 = vst [vmem:[#allocation3 + $0x5c] sm:$0x1] %v2144
        %v2146 = vld [vmem:[#allocation3] sm:$0x1]
        %v2147 = vsel %vm2076, 0, %v2146
        %2148 = vst [vmem:[#allocation3] sm:$0x1] %v2147
        %v2149 = vld [vmem:[#allocation3 + $0x8] sm:$0x1]
        %v2150 = vsel %vm2076, 0, %v2149
        %2151 = vst [vmem:[#allocation3 + $0x8] sm:$0x1] %v2150
        %v2152 = vld [vmem:[#allocation3 + $0x10] sm:$0x1]
        %v2153 = vsel %vm2076, 0, %v2152
        %2154 = vst [vmem:[#allocation3 + $0x10] sm:$0x1] %v2153
        %v2155 = vld [vmem:[#allocation3 + $0x18] sm:$0x1]
        %v2156 = vsel %vm2076, 0, %v2155
        %2157 = vst [vmem:[#allocation3 + $0x18] sm:$0x1] %v2156
        %v2158 = vld [vmem:[#allocation3 + $0x20] sm:$0x1]
        %v2159 = vsel %vm2076, 0, %v2158
        %2160 = vst [vmem:[#allocation3 + $0x20] sm:$0x1] %v2159
        %v2161 = vld [vmem:[#allocation3 + $0x28] sm:$0x1]
        %v2162 = vsel %vm2076, 0, %v2161
        %2163 = vst [vmem:[#allocation3 + $0x28] sm:$0x1] %v2162
        %v2164 = vld [vmem:[#allocation3 + $0x30] sm:$0x1]
        %v2165 = vsel %vm2076, 0, %v2164
        %2166 = vst [vmem:[#allocation3 + $0x30] sm:$0x1] %v2165
        %v2167 = vld [vmem:[#allocation3 + $0x38] sm:$0x1]
        %v2168 = vsel %vm2076, 0, %v2167
        %2169 = vst [vmem:[#allocation3 + $0x38] sm:$0x1] %v2168
        %v2170 = vld [vmem:[#allocation3 + $0x40] sm:$0x1]
        %v2171 = vsel %vm2076, 0, %v2170
        %2172 = vst [vmem:[#allocation3 + $0x40] sm:$0x1] %v2171
        %v2173 = vld [vmem:[#allocation3 + $0x48] sm:$0x1]
        %v2174 = vsel %vm2076, 0, %v2173
        %2175 = vst [vmem:[#allocation3 + $0x48] sm:$0x1] %v2174
        %v2176 = vld [vmem:[#allocation3 + $0x50] sm:$0x1]
        %v2177 = vsel %vm2076, 0, %v2176
        %2178 = vst [vmem:[#allocation3 + $0x50] sm:$0x1] %v2177
        %v2179 = vld [vmem:[#allocation3 + $0x58] sm:$0x1]
        %v2180 = vsel %vm2076, 0, %v2179
        %2181 = vst [vmem:[#allocation3 + $0x58] sm:$0x1] %v2180
        %vm2182 = vmand %vm2074, %vm2069
        %v2183 = vld [vmem:[#allocation3 + $0x4] sm:$0x1]
        %v2184 = vsel %vm2182, 0, %v2183
        %2185 = vst [vmem:[#allocation3 + $0x4] sm:$0x1] %v2184
        %v2186 = vld [vmem:[#allocation3 + $0xc] sm:$0x1]
        %v2187 = vsel %vm2182, 0, %v2186
        %2188 = vst [vmem:[#allocation3 + $0xc] sm:$0x1] %v2187
        %v2189 = vld [vmem:[#allocation3 + $0x14] sm:$0x1]
        %v2190 = vsel %vm2182, 0, %v2189
        %2191 = vst [vmem:[#allocation3 + $0x14] sm:$0x1] %v2190
        %v2192 = vld [vmem:[#allocation3 + $0x1c] sm:$0x1]
        %v2193 = vsel %vm2182, 0, %v2192
        %2194 = vst [vmem:[#allocation3 + $0x1c] sm:$0x1] %v2193
        %v2195 = vld [vmem:[#allocation3 + $0x24] sm:$0x1]
        %v2196 = vsel %vm2182, 0, %v2195
        %2197 = vst [vmem:[#allocation3 + $0x24] sm:$0x1] %v2196
        %v2198 = vld [vmem:[#allocation3 + $0x2c] sm:$0x1]
        %v2199 = vsel %vm2182, 0, %v2198
        %2200 = vst [vmem:[#allocation3 + $0x2c] sm:$0x1] %v2199
        %v2201 = vld [vmem:[#allocation3 + $0x34] sm:$0x1]
        %v2202 = vsel %vm2182, 0, %v2201
        %2203 = vst [vmem:[#allocation3 + $0x34] sm:$0x1] %v2202
        %v2204 = vld [vmem:[#allocation3 + $0x3c] sm:$0x1]
        %v2205 = vsel %vm2182, 0, %v2204
        %2206 = vst [vmem:[#allocation3 + $0x3c] sm:$0x1] %v2205
        %v2207 = vld [vmem:[#allocation3 + $0x44] sm:$0x1]
        %v2208 = vsel %vm2182, 0, %v2207
        %2209 = vst [vmem:[#allocation3 + $0x44] sm:$0x1] %v2208
        %v2210 = vld [vmem:[#allocation3 + $0x4c] sm:$0x1]
        %v2211 = vsel %vm2182, 0, %v2210
        %2212 = vst [vmem:[#allocation3 + $0x4c] sm:$0x1] %v2211
        %v2213 = vld [vmem:[#allocation3 + $0x54] sm:$0x1]
        %v2214 = vsel %vm2182, 0, %v2213
        %2215 = vst [vmem:[#allocation3 + $0x54] sm:$0x1] %v2214
        %v2216 = vld [vmem:[#allocation3 + $0x5c] sm:$0x1]
        %v2217 = vsel %vm2182, 0, %v2216
        %2218 = vst [vmem:[#allocation3 + $0x5c] sm:$0x1] %v2217
        // Predicated region
        $region73: #{_lambda_.1} parent=63 // pred_check
          %p2219 = pneg %p521
        $region74: #{_lambda_.1} parent=63 // pred_check_branch
          %2221 = sbr.rel (%p2219) target = $region76
        $region75: #{_lambda_.1} parent=63 // pred_region
          %2222 = vst.msk [vmem:[#allocation3] sm:$0xf] %vm549, 0
          %vm2223 = vcmask 516096
          %2224 = vst.msk [vmem:[#allocation3 + $0x4] sm:$0x1] %vm2223, 0
          %2225 = vst.msk [vmem:[#allocation3 + $0x8] sm:$0xf] %vm549, 0
          %2226 = vst.msk [vmem:[#allocation3 + $0xc] sm:$0x1] %vm2223, 0
        $region76: #{_lambda_.1} parent=63 // pred_fallthru
          _
        // Predicated region
        $region77: #{_lambda_.1} parent=63 // pred_check
          %p2227 = pneg %p522
        $region78: #{_lambda_.1} parent=63 // pred_check_branch
          %2229 = sbr.rel (%p2227) target = $region80
        $region79: #{_lambda_.1} parent=63 // pred_region
          %s2230 = scalar_lea.vmem [#allocation3], 80
          %2231 = vst.msk [vmem:[%s2230] sm:$0xf] %vm549, 0
          %vm2232 = vcmask 516096
          %2233 = vst.msk [vmem:[%s2230 + $0x4] sm:$0x1] %vm2232, 0
          %2234 = vst.msk [vmem:[%s2230 + $0x8] sm:$0xf] %vm549, 0
          %2235 = vst.msk [vmem:[%s2230 + $0xc] sm:$0x1] %vm2232, 0
        $region80: #{_lambda_.1} parent=63 // pred_fallthru
          _
        %v2236 = vld [vmem:[#allocation3] sm:$0xf]
        %v2237 = vld [vmem:[#allocation3 + $0x8] sm:$0xf]
        %v2238 = vld [vmem:[#allocation3 + $0x10] sm:$0xf]
        %v2239 = vld [vmem:[#allocation3 + $0x18] sm:$0xf]
        %v2240 = vld [vmem:[#allocation3 + $0x20] sm:$0xf]
        %v2241 = vld [vmem:[#allocation3 + $0x28] sm:$0xf]
        %v2242 = vld [vmem:[#allocation3 + $0x30] sm:$0xf]
        %v2243 = vld [vmem:[#allocation3 + $0x38] sm:$0xf]
        %v2244 = vld [vmem:[#allocation3 + $0x40] sm:$0xf]
        %v2245 = vld [vmem:[#allocation3 + $0x48] sm:$0xf]
        %2246 = vst.msk [vmem:[#allocation2] sm:$0xf] %vm549, %v2236
        %2247 = vst.msk [vmem:[#allocation2 + $0x14] sm:$0xf] %vm549, %v2237
        %2248 = vst.msk [vmem:[#allocation2 + $0x28] sm:$0xf] %vm549, %v2238
        %2249 = vst.msk [vmem:[#allocation2 + $0x3c] sm:$0xf] %vm549, %v2239
        %2250 = vst.msk [vmem:[#allocation2 + $0x50] sm:$0xf] %vm549, %v2240
        %2251 = vst.msk [vmem:[#allocation2 + $0x64] sm:$0xf] %vm549, %v2241
        %2252 = vst.msk [vmem:[#allocation2 + $0x78] sm:$0xf] %vm549, %v2242
        %2253 = vst.msk [vmem:[#allocation2 + $0x8c] sm:$0xf] %vm549, %v2243
        %2254 = vst.msk [vmem:[#allocation2 + $0xa0] sm:$0xf] %vm549, %v2244
        %2255 = vst.msk [vmem:[#allocation2 + $0xb4] sm:$0xf] %vm549, %v2245
        %v2256 = vld [vmem:[#allocation3] sm:$0xf]
        %v2257 = vld [vmem:[#allocation3 + $0x4] sm:$0x1]
        %v2258 = vld [vmem:[#allocation3 + $0x8] sm:$0xf]
        %v2259 = vld [vmem:[#allocation3 + $0xc] sm:$0x1]
        %v2260 = vld [vmem:[#allocation3 + $0x10] sm:$0xf]
        %v2261 = vld [vmem:[#allocation3 + $0x14] sm:$0x1]
        %v2262 = vld [vmem:[#allocation3 + $0x18] sm:$0xf]
        %v2263 = vld [vmem:[#allocation3 + $0x1c] sm:$0x1]
        %v2264 = vld [vmem:[#allocation3 + $0x20] sm:$0xf]
        %v2265 = vld [vmem:[#allocation3 + $0x24] sm:$0x1]
        %v2266 = vld [vmem:[#allocation3 + $0x28] sm:$0xf]
        %v2267 = vld [vmem:[#allocation3 + $0x2c] sm:$0x1]
        %v2268 = vld [vmem:[#allocation3 + $0x30] sm:$0xf]
        %v2269 = vld [vmem:[#allocation3 + $0x34] sm:$0x1]
        %v2270 = vld [vmem:[#allocation3 + $0x38] sm:$0xf]
        %v2271 = vld [vmem:[#allocation3 + $0x3c] sm:$0x1]
        %v2272 = vld [vmem:[#allocation3 + $0x40] sm:$0xf]
        %v2273 = vld [vmem:[#allocation3 + $0x44] sm:$0x1]
        %v2274 = vld [vmem:[#allocation3 + $0x48] sm:$0xf]
        %v2275 = vld [vmem:[#allocation3 + $0x4c] sm:$0x1]
        %vm2276 = vsmask.f32 3328
        %vm2277 = vsmask.f32 7440
        %vm2278 = vmor %vm2276, %vm2277
        %v2280 = vshrl.u32 %v2256, 16
        %v2282 = vrot.slane %v2280, 4
        %v2283 = vshll.u32 %v2256, 16
        %v2285 = vrot.slane %v2283, 5
        %v2286 = vor.u32 %v2282, %v2285
        %v2287 = vrot.slane %v2286, 4
        %v2289 = vshll.u32 %v2257, 16
        %v2291 = vrot.slane %v2289, 5
        %v2292 = vsel %vm2278, %v2287, %v2291
        %v2294 = vshrl.u32 %v2258, 16
        %v2296 = vrot.slane %v2294, 4
        %v2297 = vshll.u32 %v2258, 16
        %v2299 = vrot.slane %v2297, 5
        %v2300 = vor.u32 %v2296, %v2299
        %v2301 = vrot.slane %v2300, 4
        %v2303 = vshll.u32 %v2259, 16
        %v2305 = vrot.slane %v2303, 5
        %v2306 = vsel %vm2278, %v2301, %v2305
        %v2308 = vshrl.u32 %v2260, 16
        %v2310 = vrot.slane %v2308, 4
        %v2311 = vshll.u32 %v2260, 16
        %v2313 = vrot.slane %v2311, 5
        %v2314 = vor.u32 %v2310, %v2313
        %v2315 = vrot.slane %v2314, 4
        %v2317 = vshll.u32 %v2261, 16
        %v2319 = vrot.slane %v2317, 5
        %v2320 = vsel %vm2278, %v2315, %v2319
        %v2322 = vshrl.u32 %v2262, 16
        %v2324 = vrot.slane %v2322, 4
        %v2325 = vshll.u32 %v2262, 16
        %v2327 = vrot.slane %v2325, 5
        %v2328 = vor.u32 %v2324, %v2327
        %v2329 = vrot.slane %v2328, 4
        %v2331 = vshll.u32 %v2263, 16
        %v2333 = vrot.slane %v2331, 5
        %v2334 = vsel %vm2278, %v2329, %v2333
        %v2336 = vshrl.u32 %v2264, 16
        %v2338 = vrot.slane %v2336, 4
        %v2339 = vshll.u32 %v2264, 16
        %v2341 = vrot.slane %v2339, 5
        %v2342 = vor.u32 %v2338, %v2341
        %v2343 = vrot.slane %v2342, 4
        %v2345 = vshll.u32 %v2265, 16
        %v2347 = vrot.slane %v2345, 5
        %v2348 = vsel %vm2278, %v2343, %v2347
        %v2350 = vshrl.u32 %v2266, 16
        %v2352 = vrot.slane %v2350, 4
        %v2353 = vshll.u32 %v2266, 16
        %v2355 = vrot.slane %v2353, 5
        %v2356 = vor.u32 %v2352, %v2355
        %v2357 = vrot.slane %v2356, 4
        %v2359 = vshll.u32 %v2267, 16
        %v2361 = vrot.slane %v2359, 5
        %v2362 = vsel %vm2278, %v2357, %v2361
        %v2364 = vshrl.u32 %v2268, 16
        %v2366 = vrot.slane %v2364, 4
        %v2367 = vshll.u32 %v2268, 16
        %v2369 = vrot.slane %v2367, 5
        %v2370 = vor.u32 %v2366, %v2369
        %v2371 = vrot.slane %v2370, 4
        %v2373 = vshll.u32 %v2269, 16
        %v2375 = vrot.slane %v2373, 5
        %v2376 = vsel %vm2278, %v2371, %v2375
        %v2378 = vshrl.u32 %v2270, 16
        %v2380 = vrot.slane %v2378, 4
        %v2381 = vshll.u32 %v2270, 16
        %v2383 = vrot.slane %v2381, 5
        %v2384 = vor.u32 %v2380, %v2383
        %v2385 = vrot.slane %v2384, 4
        %v2387 = vshll.u32 %v2271, 16
        %v2389 = vrot.slane %v2387, 5
        %v2390 = vsel %vm2278, %v2385, %v2389
        %v2392 = vshrl.u32 %v2272, 16
        %v2394 = vrot.slane %v2392, 4
        %v2395 = vshll.u32 %v2272, 16
        %v2397 = vrot.slane %v2395, 5
        %v2398 = vor.u32 %v2394, %v2397
        %v2399 = vrot.slane %v2398, 4
        %v2401 = vshll.u32 %v2273, 16
        %v2403 = vrot.slane %v2401, 5
        %v2404 = vsel %vm2278, %v2399, %v2403
        %v2406 = vshrl.u32 %v2274, 16
        %v2408 = vrot.slane %v2406, 4
        %v2409 = vshll.u32 %v2274, 16
        %v2411 = vrot.slane %v2409, 5
        %v2412 = vor.u32 %v2408, %v2411
        %v2413 = vrot.slane %v2412, 4
        %v2415 = vshll.u32 %v2275, 16
        %v2417 = vrot.slane %v2415, 5
        %v2418 = vsel %vm2278, %v2413, %v2417
        %2419 = vrot.lane.b32.xlu0 %v2292, 64
        %v2420 = vpop.permute.xlu0 %2419
        %2421 = vrot.lane.b32.xlu0 %v2306, 64
        %v2422 = vpop.permute.xlu0 %2421
        %2423 = vrot.lane.b32.xlu0 %v2320, 64
        %v2424 = vpop.permute.xlu0 %2423
        %2425 = vrot.lane.b32.xlu0 %v2334, 64
        %v2426 = vpop.permute.xlu0 %2425
        %2427 = vrot.lane.b32.xlu0 %v2348, 64
        %v2428 = vpop.permute.xlu0 %2427
        %2429 = vrot.lane.b32.xlu0 %v2362, 64
        %v2430 = vpop.permute.xlu0 %2429
        %2431 = vrot.lane.b32.xlu0 %v2376, 64
        %v2432 = vpop.permute.xlu0 %2431
        %2433 = vrot.lane.b32.xlu0 %v2390, 64
        %v2434 = vpop.permute.xlu0 %2433
        %2435 = vrot.lane.b32.xlu0 %v2404, 64
        %v2436 = vpop.permute.xlu0 %2435
        %2437 = vrot.lane.b32.xlu0 %v2418, 64
        %v2438 = vpop.permute.xlu0 %2437
        %2449 = vst.msk [vmem:[#allocation2] sm:$0xf] %vm658, %v2420
        %2450 = vst.msk [vmem:[#allocation2 + $0x14] sm:$0xf] %vm658, %v2422
        %2451 = vst.msk [vmem:[#allocation2 + $0x28] sm:$0xf] %vm658, %v2424
        %2452 = vst.msk [vmem:[#allocation2 + $0x3c] sm:$0xf] %vm658, %v2426
        %2453 = vst.msk [vmem:[#allocation2 + $0x50] sm:$0xf] %vm658, %v2428
        %2454 = vst.msk [vmem:[#allocation2 + $0x64] sm:$0xf] %vm658, %v2430
        %2455 = vst.msk [vmem:[#allocation2 + $0x78] sm:$0xf] %vm658, %v2432
        %2456 = vst.msk [vmem:[#allocation2 + $0x8c] sm:$0xf] %vm658, %v2434
        %2457 = vst.msk [vmem:[#allocation2 + $0xa0] sm:$0xf] %vm658, %v2436
        %2458 = vst.msk [vmem:[#allocation2 + $0xb4] sm:$0xf] %vm658, %v2438
        %v2459 = vld [vmem:[#allocation3] sm:$0xe]
        %v2460 = vld [vmem:[#allocation3 + $0x4] sm:$0x1]
        %v2461 = vld [vmem:[#allocation3 + $0x8] sm:$0xe]
        %v2462 = vld [vmem:[#allocation3 + $0xc] sm:$0x1]
        %v2463 = vld [vmem:[#allocation3 + $0x10] sm:$0xe]
        %v2464 = vld [vmem:[#allocation3 + $0x14] sm:$0x1]
        %v2465 = vld [vmem:[#allocation3 + $0x18] sm:$0xe]
        %v2466 = vld [vmem:[#allocation3 + $0x1c] sm:$0x1]
        %v2467 = vld [vmem:[#allocation3 + $0x20] sm:$0xe]
        %v2468 = vld [vmem:[#allocation3 + $0x24] sm:$0x1]
        %v2469 = vld [vmem:[#allocation3 + $0x28] sm:$0xe]
        %v2470 = vld [vmem:[#allocation3 + $0x2c] sm:$0x1]
        %v2471 = vld [vmem:[#allocation3 + $0x30] sm:$0xe]
        %v2472 = vld [vmem:[#allocation3 + $0x34] sm:$0x1]
        %v2473 = vld [vmem:[#allocation3 + $0x38] sm:$0xe]
        %v2474 = vld [vmem:[#allocation3 + $0x3c] sm:$0x1]
        %v2475 = vld [vmem:[#allocation3 + $0x40] sm:$0xe]
        %v2476 = vld [vmem:[#allocation3 + $0x44] sm:$0x1]
        %v2477 = vld [vmem:[#allocation3 + $0x48] sm:$0xe]
        %v2478 = vld [vmem:[#allocation3 + $0x4c] sm:$0x1]
        %vm2499 = vcmask 1042432
        %vm2500 = vcmask 1046532
        %vm2501 = vmor %vm2499, %vm2500
        %v2502 = vrot.slane %v2459, 5
        %v2503 = vrot.slane %v2502, 4
        %v2504 = vrot.slane %v2460, 5
        %v2505 = vsel %vm2501, %v2503, %v2504
        %v2506 = vrot.slane %v2461, 5
        %v2507 = vrot.slane %v2506, 4
        %v2508 = vrot.slane %v2462, 5
        %v2509 = vsel %vm2501, %v2507, %v2508
        %v2510 = vrot.slane %v2463, 5
        %v2511 = vrot.slane %v2510, 4
        %v2512 = vrot.slane %v2464, 5
        %v2513 = vsel %vm2501, %v2511, %v2512
        %v2514 = vrot.slane %v2465, 5
        %v2515 = vrot.slane %v2514, 4
        %v2516 = vrot.slane %v2466, 5
        %v2517 = vsel %vm2501, %v2515, %v2516
        %v2518 = vrot.slane %v2467, 5
        %v2519 = vrot.slane %v2518, 4
        %v2520 = vrot.slane %v2468, 5
        %v2521 = vsel %vm2501, %v2519, %v2520
        %v2522 = vrot.slane %v2469, 5
        %v2523 = vrot.slane %v2522, 4
        %v2524 = vrot.slane %v2470, 5
        %v2525 = vsel %vm2501, %v2523, %v2524
        %v2526 = vrot.slane %v2471, 5
        %v2527 = vrot.slane %v2526, 4
        %v2528 = vrot.slane %v2472, 5
        %v2529 = vsel %vm2501, %v2527, %v2528
        %v2530 = vrot.slane %v2473, 5
        %v2531 = vrot.slane %v2530, 4
        %v2532 = vrot.slane %v2474, 5
        %v2533 = vsel %vm2501, %v2531, %v2532
        %v2534 = vrot.slane %v2475, 5
        %v2535 = vrot.slane %v2534, 4
        %v2536 = vrot.slane %v2476, 5
        %v2537 = vsel %vm2501, %v2535, %v2536
        %v2538 = vrot.slane %v2477, 5
        %v2539 = vrot.slane %v2538, 4
        %v2540 = vrot.slane %v2478, 5
        %v2541 = vsel %vm2501, %v2539, %v2540
        %2552 = vst.msk [vmem:[#allocation2 + $0x4] sm:$0xf] %vm549, %v2505
        %2553 = vst.msk [vmem:[#allocation2 + $0x18] sm:$0xf] %vm549, %v2509
        %2554 = vst.msk [vmem:[#allocation2 + $0x2c] sm:$0xf] %vm549, %v2513
        %2555 = vst.msk [vmem:[#allocation2 + $0x40] sm:$0xf] %vm549, %v2517
        %2556 = vst.msk [vmem:[#allocation2 + $0x54] sm:$0xf] %vm549, %v2521
        %2557 = vst.msk [vmem:[#allocation2 + $0x68] sm:$0xf] %vm549, %v2525
        %2558 = vst.msk [vmem:[#allocation2 + $0x7c] sm:$0xf] %vm549, %v2529
        %2559 = vst.msk [vmem:[#allocation2 + $0x90] sm:$0xf] %vm549, %v2533
        %2560 = vst.msk [vmem:[#allocation2 + $0xa4] sm:$0xf] %vm549, %v2537
        %2561 = vst.msk [vmem:[#allocation2 + $0xb8] sm:$0xf] %vm549, %v2541
        %s2562 = scalar_lea.vmem [#allocation3], 8
        %v2563 = vld [vmem:[%s2562] sm:$0xf]
        %v2564 = vld [vmem:[%s2562 + $0x8] sm:$0xf]
        %v2565 = vld [vmem:[%s2562 + $0x10] sm:$0xf]
        %v2566 = vld [vmem:[%s2562 + $0x18] sm:$0xf]
        %v2567 = vld [vmem:[%s2562 + $0x20] sm:$0xf]
        %v2568 = vld [vmem:[%s2562 + $0x28] sm:$0xf]
        %v2569 = vld [vmem:[%s2562 + $0x30] sm:$0xf]
        %v2570 = vld [vmem:[%s2562 + $0x38] sm:$0xf]
        %v2571 = vld [vmem:[%s2562 + $0x40] sm:$0xf]
        %v2572 = vld [vmem:[%s2562 + $0x48] sm:$0xf]
        %2583 = vrot.lane.b32.xlu0 %v2563, 64
        %v2584 = vpop.permute.xlu0 %2583
        %2585 = vrot.lane.b32.xlu0 %v2564, 64
        %v2586 = vpop.permute.xlu0 %2585
        %2587 = vrot.lane.b32.xlu0 %v2565, 64
        %v2588 = vpop.permute.xlu0 %2587
        %2589 = vrot.lane.b32.xlu0 %v2566, 64
        %v2590 = vpop.permute.xlu0 %2589
        %2591 = vrot.lane.b32.xlu0 %v2567, 64
        %v2592 = vpop.permute.xlu0 %2591
        %2593 = vrot.lane.b32.xlu0 %v2568, 64
        %v2594 = vpop.permute.xlu0 %2593
        %2595 = vrot.lane.b32.xlu0 %v2569, 64
        %v2596 = vpop.permute.xlu0 %2595
        %2597 = vrot.lane.b32.xlu0 %v2570, 64
        %v2598 = vpop.permute.xlu0 %2597
        %2599 = vrot.lane.b32.xlu0 %v2571, 64
        %v2600 = vpop.permute.xlu0 %2599
        %2601 = vrot.lane.b32.xlu0 %v2572, 64
        %v2602 = vpop.permute.xlu0 %2601
        %2613 = vst.msk [vmem:[#allocation2 + $0x4] sm:$0xf] %vm658, %v2584
        %2614 = vst.msk [vmem:[#allocation2 + $0x18] sm:$0xf] %vm658, %v2586
        %2615 = vst.msk [vmem:[#allocation2 + $0x2c] sm:$0xf] %vm658, %v2588
        %2616 = vst.msk [vmem:[#allocation2 + $0x40] sm:$0xf] %vm658, %v2590
        %2617 = vst.msk [vmem:[#allocation2 + $0x54] sm:$0xf] %vm658, %v2592
        %2618 = vst.msk [vmem:[#allocation2 + $0x68] sm:$0xf] %vm658, %v2594
        %2619 = vst.msk [vmem:[#allocation2 + $0x7c] sm:$0xf] %vm658, %v2596
        %2620 = vst.msk [vmem:[#allocation2 + $0x90] sm:$0xf] %vm658, %v2598
        %2621 = vst.msk [vmem:[#allocation2 + $0xa4] sm:$0xf] %vm658, %v2600
        %2622 = vst.msk [vmem:[#allocation2 + $0xb8] sm:$0xf] %vm658, %v2602
        %v2623 = vld [vmem:[%s2562] sm:$0xf]
        %v2624 = vld [vmem:[%s2562 + $0x4] sm:$0x1]
        %v2625 = vld [vmem:[%s2562 + $0x8] sm:$0xf]
        %v2626 = vld [vmem:[%s2562 + $0xc] sm:$0x1]
        %v2627 = vld [vmem:[%s2562 + $0x10] sm:$0xf]
        %v2628 = vld [vmem:[%s2562 + $0x14] sm:$0x1]
        %v2629 = vld [vmem:[%s2562 + $0x18] sm:$0xf]
        %v2630 = vld [vmem:[%s2562 + $0x1c] sm:$0x1]
        %v2631 = vld [vmem:[%s2562 + $0x20] sm:$0xf]
        %v2632 = vld [vmem:[%s2562 + $0x24] sm:$0x1]
        %v2633 = vld [vmem:[%s2562 + $0x28] sm:$0xf]
        %v2634 = vld [vmem:[%s2562 + $0x2c] sm:$0x1]
        %v2635 = vld [vmem:[%s2562 + $0x30] sm:$0xf]
        %v2636 = vld [vmem:[%s2562 + $0x34] sm:$0x1]
        %v2637 = vld [vmem:[%s2562 + $0x38] sm:$0xf]
        %v2638 = vld [vmem:[%s2562 + $0x3c] sm:$0x1]
        %v2639 = vld [vmem:[%s2562 + $0x40] sm:$0xf]
        %v2640 = vld [vmem:[%s2562 + $0x44] sm:$0x1]
        %v2641 = vld [vmem:[%s2562 + $0x48] sm:$0xf]
        %v2642 = vld [vmem:[%s2562 + $0x4c] sm:$0x1]
        %v2644 = vshrl.u32 %v2623, 16
        %v2646 = vrot.slane %v2644, 4
        %v2647 = vshll.u32 %v2623, 16
        %v2649 = vrot.slane %v2647, 5
        %v2650 = vor.u32 %v2646, %v2649
        %v2651 = vrot.slane %v2650, 4
        %v2653 = vshll.u32 %v2624, 16
        %v2655 = vrot.slane %v2653, 5
        %v2656 = vsel %vm2278, %v2651, %v2655
        %v2658 = vshrl.u32 %v2625, 16
        %v2660 = vrot.slane %v2658, 4
        %v2661 = vshll.u32 %v2625, 16
        %v2663 = vrot.slane %v2661, 5
        %v2664 = vor.u32 %v2660, %v2663
        %v2665 = vrot.slane %v2664, 4
        %v2667 = vshll.u32 %v2626, 16
        %v2669 = vrot.slane %v2667, 5
        %v2670 = vsel %vm2278, %v2665, %v2669
        %v2672 = vshrl.u32 %v2627, 16
        %v2674 = vrot.slane %v2672, 4
        %v2675 = vshll.u32 %v2627, 16
        %v2677 = vrot.slane %v2675, 5
        %v2678 = vor.u32 %v2674, %v2677
        %v2679 = vrot.slane %v2678, 4
        %v2681 = vshll.u32 %v2628, 16
        %v2683 = vrot.slane %v2681, 5
        %v2684 = vsel %vm2278, %v2679, %v2683
        %v2686 = vshrl.u32 %v2629, 16
        %v2688 = vrot.slane %v2686, 4
        %v2689 = vshll.u32 %v2629, 16
        %v2691 = vrot.slane %v2689, 5
        %v2692 = vor.u32 %v2688, %v2691
        %v2693 = vrot.slane %v2692, 4
        %v2695 = vshll.u32 %v2630, 16
        %v2697 = vrot.slane %v2695, 5
        %v2698 = vsel %vm2278, %v2693, %v2697
        %v2700 = vshrl.u32 %v2631, 16
        %v2702 = vrot.slane %v2700, 4
        %v2703 = vshll.u32 %v2631, 16
        %v2705 = vrot.slane %v2703, 5
        %v2706 = vor.u32 %v2702, %v2705
        %v2707 = vrot.slane %v2706, 4
        %v2709 = vshll.u32 %v2632, 16
        %v2711 = vrot.slane %v2709, 5
        %v2712 = vsel %vm2278, %v2707, %v2711
        %v2714 = vshrl.u32 %v2633, 16
        %v2716 = vrot.slane %v2714, 4
        %v2717 = vshll.u32 %v2633, 16
        %v2719 = vrot.slane %v2717, 5
        %v2720 = vor.u32 %v2716, %v2719
        %v2721 = vrot.slane %v2720, 4
        %v2723 = vshll.u32 %v2634, 16
        %v2725 = vrot.slane %v2723, 5
        %v2726 = vsel %vm2278, %v2721, %v2725
        %v2728 = vshrl.u32 %v2635, 16
        %v2730 = vrot.slane %v2728, 4
        %v2731 = vshll.u32 %v2635, 16
        %v2733 = vrot.slane %v2731, 5
        %v2734 = vor.u32 %v2730, %v2733
        %v2735 = vrot.slane %v2734, 4
        %v2737 = vshll.u32 %v2636, 16
        %v2739 = vrot.slane %v2737, 5
        %v2740 = vsel %vm2278, %v2735, %v2739
        %v2742 = vshrl.u32 %v2637, 16
        %v2744 = vrot.slane %v2742, 4
        %v2745 = vshll.u32 %v2637, 16
        %v2747 = vrot.slane %v2745, 5
        %v2748 = vor.u32 %v2744, %v2747
        %v2749 = vrot.slane %v2748, 4
        %v2751 = vshll.u32 %v2638, 16
        %v2753 = vrot.slane %v2751, 5
        %v2754 = vsel %vm2278, %v2749, %v2753
        %v2756 = vshrl.u32 %v2639, 16
        %v2758 = vrot.slane %v2756, 4
        %v2759 = vshll.u32 %v2639, 16
        %v2761 = vrot.slane %v2759, 5
        %v2762 = vor.u32 %v2758, %v2761
        %v2763 = vrot.slane %v2762, 4
        %v2765 = vshll.u32 %v2640, 16
        %v2767 = vrot.slane %v2765, 5
        %v2768 = vsel %vm2278, %v2763, %v2767
        %v2770 = vshrl.u32 %v2641, 16
        %v2772 = vrot.slane %v2770, 4
        %v2773 = vshll.u32 %v2641, 16
        %v2775 = vrot.slane %v2773, 5
        %v2776 = vor.u32 %v2772, %v2775
        %v2777 = vrot.slane %v2776, 4
        %v2779 = vshll.u32 %v2642, 16
        %v2781 = vrot.slane %v2779, 5
        %v2782 = vsel %vm2278, %v2777, %v2781
        %2793 = vst.msk [vmem:[#allocation2 + $0x8] sm:$0xf] %vm549, %v2656
        %2794 = vst.msk [vmem:[#allocation2 + $0x1c] sm:$0xf] %vm549, %v2670
        %2795 = vst.msk [vmem:[#allocation2 + $0x30] sm:$0xf] %vm549, %v2684
        %2796 = vst.msk [vmem:[#allocation2 + $0x44] sm:$0xf] %vm549, %v2698
        %2797 = vst.msk [vmem:[#allocation2 + $0x58] sm:$0xf] %vm549, %v2712
        %2798 = vst.msk [vmem:[#allocation2 + $0x6c] sm:$0xf] %vm549, %v2726
        %2799 = vst.msk [vmem:[#allocation2 + $0x80] sm:$0xf] %vm549, %v2740
        %2800 = vst.msk [vmem:[#allocation2 + $0x94] sm:$0xf] %vm549, %v2754
        %2801 = vst.msk [vmem:[#allocation2 + $0xa8] sm:$0xf] %vm549, %v2768
        %2802 = vst.msk [vmem:[#allocation2 + $0xbc] sm:$0xf] %vm549, %v2782
        %v2803 = vld [vmem:[%s2562] sm:$0xe]
        %v2804 = vld [vmem:[%s2562 + $0x4] sm:$0x1]
        %v2805 = vld [vmem:[%s2562 + $0x8] sm:$0xe]
        %v2806 = vld [vmem:[%s2562 + $0xc] sm:$0x1]
        %v2807 = vld [vmem:[%s2562 + $0x10] sm:$0xe]
        %v2808 = vld [vmem:[%s2562 + $0x14] sm:$0x1]
        %v2809 = vld [vmem:[%s2562 + $0x18] sm:$0xe]
        %v2810 = vld [vmem:[%s2562 + $0x1c] sm:$0x1]
        %v2811 = vld [vmem:[%s2562 + $0x20] sm:$0xe]
        %v2812 = vld [vmem:[%s2562 + $0x24] sm:$0x1]
        %v2813 = vld [vmem:[%s2562 + $0x28] sm:$0xe]
        %v2814 = vld [vmem:[%s2562 + $0x2c] sm:$0x1]
        %v2815 = vld [vmem:[%s2562 + $0x30] sm:$0xe]
        %v2816 = vld [vmem:[%s2562 + $0x34] sm:$0x1]
        %v2817 = vld [vmem:[%s2562 + $0x38] sm:$0xe]
        %v2818 = vld [vmem:[%s2562 + $0x3c] sm:$0x1]
        %v2819 = vld [vmem:[%s2562 + $0x40] sm:$0xe]
        %v2820 = vld [vmem:[%s2562 + $0x44] sm:$0x1]
        %v2821 = vld [vmem:[%s2562 + $0x48] sm:$0xe]
        %v2822 = vld [vmem:[%s2562 + $0x4c] sm:$0x1]
        %v2843 = vrot.slane %v2803, 5
        %v2844 = vrot.slane %v2843, 4
        %v2845 = vrot.slane %v2804, 5
        %v2846 = vsel %vm2501, %v2844, %v2845
        %v2847 = vrot.slane %v2805, 5
        %v2848 = vrot.slane %v2847, 4
        %v2849 = vrot.slane %v2806, 5
        %v2850 = vsel %vm2501, %v2848, %v2849
        %v2851 = vrot.slane %v2807, 5
        %v2852 = vrot.slane %v2851, 4
        %v2853 = vrot.slane %v2808, 5
        %v2854 = vsel %vm2501, %v2852, %v2853
        %v2855 = vrot.slane %v2809, 5
        %v2856 = vrot.slane %v2855, 4
        %v2857 = vrot.slane %v2810, 5
        %v2858 = vsel %vm2501, %v2856, %v2857
        %v2859 = vrot.slane %v2811, 5
        %v2860 = vrot.slane %v2859, 4
        %v2861 = vrot.slane %v2812, 5
        %v2862 = vsel %vm2501, %v2860, %v2861
        %v2863 = vrot.slane %v2813, 5
        %v2864 = vrot.slane %v2863, 4
        %v2865 = vrot.slane %v2814, 5
        %v2866 = vsel %vm2501, %v2864, %v2865
        %v2867 = vrot.slane %v2815, 5
        %v2868 = vrot.slane %v2867, 4
        %v2869 = vrot.slane %v2816, 5
        %v2870 = vsel %vm2501, %v2868, %v2869
        %v2871 = vrot.slane %v2817, 5
        %v2872 = vrot.slane %v2871, 4
        %v2873 = vrot.slane %v2818, 5
        %v2874 = vsel %vm2501, %v2872, %v2873
        %v2875 = vrot.slane %v2819, 5
        %v2876 = vrot.slane %v2875, 4
        %v2877 = vrot.slane %v2820, 5
        %v2878 = vsel %vm2501, %v2876, %v2877
        %v2879 = vrot.slane %v2821, 5
        %v2880 = vrot.slane %v2879, 4
        %v2881 = vrot.slane %v2822, 5
        %v2882 = vsel %vm2501, %v2880, %v2881
        %2883 = vrot.lane.b32.xlu0 %v2846, 64
        %v2884 = vpop.permute.xlu0 %2883
        %2885 = vrot.lane.b32.xlu0 %v2850, 64
        %v2886 = vpop.permute.xlu0 %2885
        %2887 = vrot.lane.b32.xlu0 %v2854, 64
        %v2888 = vpop.permute.xlu0 %2887
        %2889 = vrot.lane.b32.xlu0 %v2858, 64
        %v2890 = vpop.permute.xlu0 %2889
        %2891 = vrot.lane.b32.xlu0 %v2862, 64
        %v2892 = vpop.permute.xlu0 %2891
        %2893 = vrot.lane.b32.xlu0 %v2866, 64
        %v2894 = vpop.permute.xlu0 %2893
        %2895 = vrot.lane.b32.xlu0 %v2870, 64
        %v2896 = vpop.permute.xlu0 %2895
        %2897 = vrot.lane.b32.xlu0 %v2874, 64
        %v2898 = vpop.permute.xlu0 %2897
        %2899 = vrot.lane.b32.xlu0 %v2878, 64
        %v2900 = vpop.permute.xlu0 %2899
        %2901 = vrot.lane.b32.xlu0 %v2882, 64
        %v2902 = vpop.permute.xlu0 %2901
        %2913 = vst.msk [vmem:[#allocation2 + $0x8] sm:$0xf] %vm658, %v2884
        %2914 = vst.msk [vmem:[#allocation2 + $0x1c] sm:$0xf] %vm658, %v2886
        %2915 = vst.msk [vmem:[#allocation2 + $0x30] sm:$0xf] %vm658, %v2888
        %2916 = vst.msk [vmem:[#allocation2 + $0x44] sm:$0xf] %vm658, %v2890
        %2917 = vst.msk [vmem:[#allocation2 + $0x58] sm:$0xf] %vm658, %v2892
        %2918 = vst.msk [vmem:[#allocation2 + $0x6c] sm:$0xf] %vm658, %v2894
        %2919 = vst.msk [vmem:[#allocation2 + $0x80] sm:$0xf] %vm658, %v2896
        %2920 = vst.msk [vmem:[#allocation2 + $0x94] sm:$0xf] %vm658, %v2898
        %2921 = vst.msk [vmem:[#allocation2 + $0xa8] sm:$0xf] %vm658, %v2900
        %2922 = vst.msk [vmem:[#allocation2 + $0xbc] sm:$0xf] %vm658, %v2902
        %s2923 = scalar_lea.vmem [#allocation3], 16
        %v2924 = vld [vmem:[%s2923] sm:$0xf]
        %v2925 = vld [vmem:[%s2923 + $0x8] sm:$0xf]
        %v2926 = vld [vmem:[%s2923 + $0x10] sm:$0xf]
        %v2927 = vld [vmem:[%s2923 + $0x18] sm:$0xf]
        %v2928 = vld [vmem:[%s2923 + $0x20] sm:$0xf]
        %v2929 = vld [vmem:[%s2923 + $0x28] sm:$0xf]
        %v2930 = vld [vmem:[%s2923 + $0x30] sm:$0xf]
        %v2931 = vld [vmem:[%s2923 + $0x38] sm:$0xf]
        %v2932 = vld [vmem:[%s2923 + $0x40] sm:$0xf]
        %v2933 = vld [vmem:[%s2923 + $0x48] sm:$0xf]
        %2934 = vst.msk [vmem:[#allocation2 + $0xc] sm:$0xf] %vm549, %v2924
        %2935 = vst.msk [vmem:[#allocation2 + $0x20] sm:$0xf] %vm549, %v2925
        %2936 = vst.msk [vmem:[#allocation2 + $0x34] sm:$0xf] %vm549, %v2926
        %2937 = vst.msk [vmem:[#allocation2 + $0x48] sm:$0xf] %vm549, %v2927
        %2938 = vst.msk [vmem:[#allocation2 + $0x5c] sm:$0xf] %vm549, %v2928
        %2939 = vst.msk [vmem:[#allocation2 + $0x70] sm:$0xf] %vm549, %v2929
        %2940 = vst.msk [vmem:[#allocation2 + $0x84] sm:$0xf] %vm549, %v2930
        %2941 = vst.msk [vmem:[#allocation2 + $0x98] sm:$0xf] %vm549, %v2931
        %2942 = vst.msk [vmem:[#allocation2 + $0xac] sm:$0xf] %vm549, %v2932
        %2943 = vst.msk [vmem:[#allocation2 + $0xc0] sm:$0xf] %vm549, %v2933
        %v2944 = vld [vmem:[%s2923] sm:$0xf]
        %v2945 = vld [vmem:[%s2923 + $0x4] sm:$0x1]
        %v2946 = vld [vmem:[%s2923 + $0x8] sm:$0xf]
        %v2947 = vld [vmem:[%s2923 + $0xc] sm:$0x1]
        %v2948 = vld [vmem:[%s2923 + $0x10] sm:$0xf]
        %v2949 = vld [vmem:[%s2923 + $0x14] sm:$0x1]
        %v2950 = vld [vmem:[%s2923 + $0x18] sm:$0xf]
        %v2951 = vld [vmem:[%s2923 + $0x1c] sm:$0x1]
        %v2952 = vld [vmem:[%s2923 + $0x20] sm:$0xf]
        %v2953 = vld [vmem:[%s2923 + $0x24] sm:$0x1]
        %v2954 = vld [vmem:[%s2923 + $0x28] sm:$0xf]
        %v2955 = vld [vmem:[%s2923 + $0x2c] sm:$0x1]
        %v2956 = vld [vmem:[%s2923 + $0x30] sm:$0xf]
        %v2957 = vld [vmem:[%s2923 + $0x34] sm:$0x1]
        %v2958 = vld [vmem:[%s2923 + $0x38] sm:$0xf]
        %v2959 = vld [vmem:[%s2923 + $0x3c] sm:$0x1]
        %v2960 = vld [vmem:[%s2923 + $0x40] sm:$0xf]
        %v2961 = vld [vmem:[%s2923 + $0x44] sm:$0x1]
        %v2962 = vld [vmem:[%s2923 + $0x48] sm:$0xf]
        %v2963 = vld [vmem:[%s2923 + $0x4c] sm:$0x1]
        %v2965 = vshrl.u32 %v2944, 16
        %v2967 = vrot.slane %v2965, 4
        %v2968 = vshll.u32 %v2944, 16
        %v2970 = vrot.slane %v2968, 5
        %v2971 = vor.u32 %v2967, %v2970
        %v2972 = vrot.slane %v2971, 4
        %v2974 = vshll.u32 %v2945, 16
        %v2976 = vrot.slane %v2974, 5
        %v2977 = vsel %vm2278, %v2972, %v2976
        %v2979 = vshrl.u32 %v2946, 16
        %v2981 = vrot.slane %v2979, 4
        %v2982 = vshll.u32 %v2946, 16
        %v2984 = vrot.slane %v2982, 5
        %v2985 = vor.u32 %v2981, %v2984
        %v2986 = vrot.slane %v2985, 4
        %v2988 = vshll.u32 %v2947, 16
        %v2990 = vrot.slane %v2988, 5
        %v2991 = vsel %vm2278, %v2986, %v2990
        %v2993 = vshrl.u32 %v2948, 16
        %v2995 = vrot.slane %v2993, 4
        %v2996 = vshll.u32 %v2948, 16
        %v2998 = vrot.slane %v2996, 5
        %v2999 = vor.u32 %v2995, %v2998
        %v3000 = vrot.slane %v2999, 4
        %v3002 = vshll.u32 %v2949, 16
        %v3004 = vrot.slane %v3002, 5
        %v3005 = vsel %vm2278, %v3000, %v3004
        %v3007 = vshrl.u32 %v2950, 16
        %v3009 = vrot.slane %v3007, 4
        %v3010 = vshll.u32 %v2950, 16
        %v3012 = vrot.slane %v3010, 5
        %v3013 = vor.u32 %v3009, %v3012
        %v3014 = vrot.slane %v3013, 4
        %v3016 = vshll.u32 %v2951, 16
        %v3018 = vrot.slane %v3016, 5
        %v3019 = vsel %vm2278, %v3014, %v3018
        %v3021 = vshrl.u32 %v2952, 16
        %v3023 = vrot.slane %v3021, 4
        %v3024 = vshll.u32 %v2952, 16
        %v3026 = vrot.slane %v3024, 5
        %v3027 = vor.u32 %v3023, %v3026
        %v3028 = vrot.slane %v3027, 4
        %v3030 = vshll.u32 %v2953, 16
        %v3032 = vrot.slane %v3030, 5
        %v3033 = vsel %vm2278, %v3028, %v3032
        %v3035 = vshrl.u32 %v2954, 16
        %v3037 = vrot.slane %v3035, 4
        %v3038 = vshll.u32 %v2954, 16
        %v3040 = vrot.slane %v3038, 5
        %v3041 = vor.u32 %v3037, %v3040
        %v3042 = vrot.slane %v3041, 4
        %v3044 = vshll.u32 %v2955, 16
        %v3046 = vrot.slane %v3044, 5
        %v3047 = vsel %vm2278, %v3042, %v3046
        %v3049 = vshrl.u32 %v2956, 16
        %v3051 = vrot.slane %v3049, 4
        %v3052 = vshll.u32 %v2956, 16
        %v3054 = vrot.slane %v3052, 5
        %v3055 = vor.u32 %v3051, %v3054
        %v3056 = vrot.slane %v3055, 4
        %v3058 = vshll.u32 %v2957, 16
        %v3060 = vrot.slane %v3058, 5
        %v3061 = vsel %vm2278, %v3056, %v3060
        %v3063 = vshrl.u32 %v2958, 16
        %v3065 = vrot.slane %v3063, 4
        %v3066 = vshll.u32 %v2958, 16
        %v3068 = vrot.slane %v3066, 5
        %v3069 = vor.u32 %v3065, %v3068
        %v3070 = vrot.slane %v3069, 4
        %v3072 = vshll.u32 %v2959, 16
        %v3074 = vrot.slane %v3072, 5
        %v3075 = vsel %vm2278, %v3070, %v3074
        %v3077 = vshrl.u32 %v2960, 16
        %v3079 = vrot.slane %v3077, 4
        %v3080 = vshll.u32 %v2960, 16
        %v3082 = vrot.slane %v3080, 5
        %v3083 = vor.u32 %v3079, %v3082
        %v3084 = vrot.slane %v3083, 4
        %v3086 = vshll.u32 %v2961, 16
        %v3088 = vrot.slane %v3086, 5
        %v3089 = vsel %vm2278, %v3084, %v3088
        %v3091 = vshrl.u32 %v2962, 16
        %v3093 = vrot.slane %v3091, 4
        %v3094 = vshll.u32 %v2962, 16
        %v3096 = vrot.slane %v3094, 5
        %v3097 = vor.u32 %v3093, %v3096
        %v3098 = vrot.slane %v3097, 4
        %v3100 = vshll.u32 %v2963, 16
        %v3102 = vrot.slane %v3100, 5
        %v3103 = vsel %vm2278, %v3098, %v3102
        %3104 = vrot.lane.b32.xlu0 %v2977, 64
        %v3105 = vpop.permute.xlu0 %3104
        %3106 = vrot.lane.b32.xlu0 %v2991, 64
        %v3107 = vpop.permute.xlu0 %3106
        %3108 = vrot.lane.b32.xlu0 %v3005, 64
        %v3109 = vpop.permute.xlu0 %3108
        %3110 = vrot.lane.b32.xlu0 %v3019, 64
        %v3111 = vpop.permute.xlu0 %3110
        %3112 = vrot.lane.b32.xlu0 %v3033, 64
        %v3113 = vpop.permute.xlu0 %3112
        %3114 = vrot.lane.b32.xlu0 %v3047, 64
        %v3115 = vpop.permute.xlu0 %3114
        %3116 = vrot.lane.b32.xlu0 %v3061, 64
        %v3117 = vpop.permute.xlu0 %3116
        %3118 = vrot.lane.b32.xlu0 %v3075, 64
        %v3119 = vpop.permute.xlu0 %3118
        %3120 = vrot.lane.b32.xlu0 %v3089, 64
        %v3121 = vpop.permute.xlu0 %3120
        %3122 = vrot.lane.b32.xlu0 %v3103, 64
        %v3123 = vpop.permute.xlu0 %3122
        %3134 = vst.msk [vmem:[#allocation2 + $0xc] sm:$0xf] %vm658, %v3105
        %3135 = vst.msk [vmem:[#allocation2 + $0x20] sm:$0xf] %vm658, %v3107
        %3136 = vst.msk [vmem:[#allocation2 + $0x34] sm:$0xf] %vm658, %v3109
        %3137 = vst.msk [vmem:[#allocation2 + $0x48] sm:$0xf] %vm658, %v3111
        %3138 = vst.msk [vmem:[#allocation2 + $0x5c] sm:$0xf] %vm658, %v3113
        %3139 = vst.msk [vmem:[#allocation2 + $0x70] sm:$0xf] %vm658, %v3115
        %3140 = vst.msk [vmem:[#allocation2 + $0x84] sm:$0xf] %vm658, %v3117
        %3141 = vst.msk [vmem:[#allocation2 + $0x98] sm:$0xf] %vm658, %v3119
        %3142 = vst.msk [vmem:[#allocation2 + $0xac] sm:$0xf] %vm658, %v3121
        %3143 = vst.msk [vmem:[#allocation2 + $0xc0] sm:$0xf] %vm658, %v3123
        %v3144 = vld [vmem:[%s2923] sm:$0xe]
        %v3145 = vld [vmem:[%s2923 + $0x4] sm:$0x1]
        %v3146 = vld [vmem:[%s2923 + $0x8] sm:$0xe]
        %v3147 = vld [vmem:[%s2923 + $0xc] sm:$0x1]
        %v3148 = vld [vmem:[%s2923 + $0x10] sm:$0xe]
        %v3149 = vld [vmem:[%s2923 + $0x14] sm:$0x1]
        %v3150 = vld [vmem:[%s2923 + $0x18] sm:$0xe]
        %v3151 = vld [vmem:[%s2923 + $0x1c] sm:$0x1]
        %v3152 = vld [vmem:[%s2923 + $0x20] sm:$0xe]
        %v3153 = vld [vmem:[%s2923 + $0x24] sm:$0x1]
        %v3154 = vld [vmem:[%s2923 + $0x28] sm:$0xe]
        %v3155 = vld [vmem:[%s2923 + $0x2c] sm:$0x1]
        %v3156 = vld [vmem:[%s2923 + $0x30] sm:$0xe]
        %v3157 = vld [vmem:[%s2923 + $0x34] sm:$0x1]
        %v3158 = vld [vmem:[%s2923 + $0x38] sm:$0xe]
        %v3159 = vld [vmem:[%s2923 + $0x3c] sm:$0x1]
        %v3160 = vld [vmem:[%s2923 + $0x40] sm:$0xe]
        %v3161 = vld [vmem:[%s2923 + $0x44] sm:$0x1]
        %v3162 = vld [vmem:[%s2923 + $0x48] sm:$0xe]
        %v3163 = vld [vmem:[%s2923 + $0x4c] sm:$0x1]
        %v3184 = vrot.slane %v3144, 5
        %v3185 = vrot.slane %v3184, 4
        %v3186 = vrot.slane %v3145, 5
        %v3187 = vsel %vm2501, %v3185, %v3186
        %v3188 = vrot.slane %v3146, 5
        %v3189 = vrot.slane %v3188, 4
        %v3190 = vrot.slane %v3147, 5
        %v3191 = vsel %vm2501, %v3189, %v3190
        %v3192 = vrot.slane %v3148, 5
        %v3193 = vrot.slane %v3192, 4
        %v3194 = vrot.slane %v3149, 5
        %v3195 = vsel %vm2501, %v3193, %v3194
        %v3196 = vrot.slane %v3150, 5
        %v3197 = vrot.slane %v3196, 4
        %v3198 = vrot.slane %v3151, 5
        %v3199 = vsel %vm2501, %v3197, %v3198
        %v3200 = vrot.slane %v3152, 5
        %v3201 = vrot.slane %v3200, 4
        %v3202 = vrot.slane %v3153, 5
        %v3203 = vsel %vm2501, %v3201, %v3202
        %v3204 = vrot.slane %v3154, 5
        %v3205 = vrot.slane %v3204, 4
        %v3206 = vrot.slane %v3155, 5
        %v3207 = vsel %vm2501, %v3205, %v3206
        %v3208 = vrot.slane %v3156, 5
        %v3209 = vrot.slane %v3208, 4
        %v3210 = vrot.slane %v3157, 5
        %v3211 = vsel %vm2501, %v3209, %v3210
        %v3212 = vrot.slane %v3158, 5
        %v3213 = vrot.slane %v3212, 4
        %v3214 = vrot.slane %v3159, 5
        %v3215 = vsel %vm2501, %v3213, %v3214
        %v3216 = vrot.slane %v3160, 5
        %v3217 = vrot.slane %v3216, 4
        %v3218 = vrot.slane %v3161, 5
        %v3219 = vsel %vm2501, %v3217, %v3218
        %v3220 = vrot.slane %v3162, 5
        %v3221 = vrot.slane %v3220, 4
        %v3222 = vrot.slane %v3163, 5
        %v3223 = vsel %vm2501, %v3221, %v3222
        %3234 = vst.msk [vmem:[#allocation2 + $0x10] sm:$0xf] %vm549, %v3187
        %3235 = vst.msk [vmem:[#allocation2 + $0x24] sm:$0xf] %vm549, %v3191
        %3236 = vst.msk [vmem:[#allocation2 + $0x38] sm:$0xf] %vm549, %v3195
        %3237 = vst.msk [vmem:[#allocation2 + $0x4c] sm:$0xf] %vm549, %v3199
        %3238 = vst.msk [vmem:[#allocation2 + $0x60] sm:$0xf] %vm549, %v3203
        %3239 = vst.msk [vmem:[#allocation2 + $0x74] sm:$0xf] %vm549, %v3207
        %3240 = vst.msk [vmem:[#allocation2 + $0x88] sm:$0xf] %vm549, %v3211
        %3241 = vst.msk [vmem:[#allocation2 + $0x9c] sm:$0xf] %vm549, %v3215
        %3242 = vst.msk [vmem:[#allocation2 + $0xb0] sm:$0xf] %vm549, %v3219
        %3243 = vst.msk [vmem:[#allocation2 + $0xc4] sm:$0xf] %vm549, %v3223
        %v3244 = vld [vmem:[#allocation2] sm:$0xff]
        %v3245 = vld [vmem:[#allocation2 + $0x8] sm:$0xff]
        %v3246 = vld [vmem:[#allocation2 + $0x10] sm:$0xf]
        %v3247 = vld [vmem:[#allocation2 + $0x14] sm:$0xff]
        %v3248 = vld [vmem:[#allocation2 + $0x1c] sm:$0xff]
        %v3249 = vld [vmem:[#allocation2 + $0x24] sm:$0xf]
        %v3250 = vld [vmem:[#allocation2 + $0x28] sm:$0xff]
        %v3251 = vld [vmem:[#allocation2 + $0x30] sm:$0xff]
        %v3252 = vld [vmem:[#allocation2 + $0x38] sm:$0xf]
        %v3253 = vld [vmem:[#allocation2 + $0x3c] sm:$0xff]
        %v3254 = vld [vmem:[#allocation2 + $0x44] sm:$0xff]
        %v3255 = vld [vmem:[#allocation2 + $0x4c] sm:$0xf]
        %v3256 = vld [vmem:[#allocation2 + $0x50] sm:$0xff]
        %v3257 = vld [vmem:[#allocation2 + $0x58] sm:$0xff]
        %v3258 = vld [vmem:[#allocation2 + $0x60] sm:$0xf]
        %v3259 = vld [vmem:[#allocation2 + $0x64] sm:$0xff]
        %v3260 = vld [vmem:[#allocation2 + $0x6c] sm:$0xff]
        %v3261 = vld [vmem:[#allocation2 + $0x74] sm:$0xf]
        %v3262 = vld [vmem:[#allocation2 + $0x78] sm:$0xff]
        %v3263 = vld [vmem:[#allocation2 + $0x80] sm:$0xff]
        %v3264 = vld [vmem:[#allocation2 + $0x88] sm:$0xf]
        %v3265 = vld [vmem:[#allocation2 + $0x8c] sm:$0xff]
        %v3266 = vld [vmem:[#allocation2 + $0x94] sm:$0xff]
        %v3267 = vld [vmem:[#allocation2 + $0x9c] sm:$0xf]
        %v3268 = vld [vmem:[#allocation2 + $0xa0] sm:$0xff]
        %v3269 = vld [vmem:[#allocation2 + $0xa8] sm:$0xff]
        %v3270 = vld [vmem:[#allocation2 + $0xb0] sm:$0xf]
        %v3271 = vld [vmem:[#allocation2 + $0xb4] sm:$0xff]
        %v3272 = vld [vmem:[#allocation2 + $0xbc] sm:$0xff]
        %v3273 = vld [vmem:[#allocation2 + $0xc4] sm:$0xf]
        %v3274 = vld [vmem:[#allocation8] sm:$0xf]
        %v3275 = vld [vmem:[#allocation8 + $0x4] sm:$0xf]
        %v3276 = vld [vmem:[#allocation8 + $0x8] sm:$0xf]
        %v3277 = vld [vmem:[#allocation8 + $0xc] sm:$0xf]
        %v3278 = vld [vmem:[#allocation8 + $0x10] sm:$0xf]
        %v3279 = vld [vmem:[#allocation8 + $0x14] sm:$0xf]
        %v3280 = vld [vmem:[#allocation8 + $0x18] sm:$0xf]
        %v3281 = vld [vmem:[#allocation8 + $0x1c] sm:$0xf]
        %v3282 = vld [vmem:[#allocation8 + $0x20] sm:$0xf]
        %v3283 = vld [vmem:[#allocation8 + $0x24] sm:$0xf]
        %v3284 = vld [vmem:[#allocation8 + $0x28] sm:$0xf]
        %v3285 = vld [vmem:[#allocation8 + $0x2c] sm:$0xf]
        %v3286 = vld [vmem:[#allocation8 + $0x30] sm:$0xf]
        %v3287 = vld [vmem:[#allocation8 + $0x34] sm:$0xf]
        %v3288 = vld [vmem:[#allocation8 + $0x38] sm:$0xf]
        %v3289 = vld [vmem:[#allocation8 + $0x3c] sm:$0xf]
        %v3290 = vld [vmem:[#allocation8 + $0x40] sm:$0xf]
        %v3291 = vld [vmem:[#allocation8 + $0x44] sm:$0xf]
        %v3292 = vld [vmem:[#allocation8 + $0x48] sm:$0xf]
        %v3293 = vld [vmem:[#allocation8 + $0x4c] sm:$0xf]
        %v3294 = vld [vmem:[#allocation8 + $0x50] sm:$0xf]
        %v3295 = vld [vmem:[#allocation8 + $0x54] sm:$0xf]
        %v3296 = vld [vmem:[#allocation8 + $0x58] sm:$0xf]
        %v3297 = vld [vmem:[#allocation8 + $0x5c] sm:$0xf]
        %v3298 = vld [vmem:[#allocation8 + $0x60] sm:$0xf]
        %v3299 = vld [vmem:[#allocation8 + $0x64] sm:$0xf]
        %v3300 = vld [vmem:[#allocation8 + $0x68] sm:$0xf]
        %v3301 = vld [vmem:[#allocation8 + $0x6c] sm:$0xf]
        %v3302 = vld [vmem:[#allocation8 + $0x70] sm:$0xf]
        %v3303 = vld [vmem:[#allocation8 + $0x74] sm:$0xf]
        %v3304 = vld [vmem:[#allocation8 + $0x78] sm:$0xf]
        %v3305 = vld [vmem:[#allocation8 + $0x7c] sm:$0xf]
        %v3306 = vld [vmem:[#allocation8 + $0x80] sm:$0xf]
        %v3307 = vld [vmem:[#allocation8 + $0x84] sm:$0xf]
        %v3308 = vld [vmem:[#allocation8 + $0x88] sm:$0xf]
        %v3309 = vld [vmem:[#allocation8 + $0x8c] sm:$0xf]
        %v3310 = vld [vmem:[#allocation8 + $0x90] sm:$0xf]
        %v3311 = vld [vmem:[#allocation8 + $0x94] sm:$0xf]
        %v3312 = vld [vmem:[#allocation8 + $0x98] sm:$0xf]
        %v3313 = vld [vmem:[#allocation8 + $0x9c] sm:$0xf]
        %v3314 = vld [vmem:[#allocation8 + $0xa0] sm:$0xf]
        %v3315 = vld [vmem:[#allocation8 + $0xa4] sm:$0xf]
        %v3316 = vld [vmem:[#allocation8 + $0xa8] sm:$0xf]
        %v3317 = vld [vmem:[#allocation8 + $0xac] sm:$0xf]
        %v3318 = vld [vmem:[#allocation8 + $0xb0] sm:$0xf]
        %v3319 = vld [vmem:[#allocation8 + $0xb4] sm:$0xf]
        %v3320 = vld [vmem:[#allocation8 + $0xb8] sm:$0xf]
        %v3321 = vld [vmem:[#allocation8 + $0xbc] sm:$0xf]
        %v3322 = vld [vmem:[#allocation8 + $0xc0] sm:$0xf]
        %v3323 = vld [vmem:[#allocation8 + $0xc4] sm:$0xf]
        %v3324 = vld [vmem:[#allocation8 + $0xc8] sm:$0xf]
        %v3325 = vld [vmem:[#allocation8 + $0xcc] sm:$0xf]
        %v3326 = vld [vmem:[#allocation8 + $0xd0] sm:$0xf]
        %v3327 = vld [vmem:[#allocation8 + $0xd4] sm:$0xf]
        %v3328 = vld [vmem:[#allocation8 + $0xd8] sm:$0xf]
        %v3329 = vld [vmem:[#allocation8 + $0xdc] sm:$0xf]
        %v3330 = vld [vmem:[#allocation8 + $0xe0] sm:$0xf]
        %v3331 = vld [vmem:[#allocation8 + $0xe4] sm:$0xf]
        %v3332 = vld [vmem:[#allocation8 + $0xe8] sm:$0xf]
        %v3333 = vld [vmem:[#allocation8 + $0xec] sm:$0xf]
        %v3334 = vld [vmem:[#allocation8 + $0xf0] sm:$0xf]
        %v3335 = vld [vmem:[#allocation8 + $0xf4] sm:$0xf]
        %v3336 = vld [vmem:[#allocation8 + $0xf8] sm:$0xf]
        %v3337 = vld [vmem:[#allocation8 + $0xfc] sm:$0xf]
        %v3338 = vld [vmem:[#allocation8 + $0x100] sm:$0xf]
        %v3339 = vld [vmem:[#allocation8 + $0x104] sm:$0xf]
        %v3340 = vld [vmem:[#allocation8 + $0x108] sm:$0xf]
        %v3341 = vld [vmem:[#allocation8 + $0x10c] sm:$0xf]
        %v3342 = vld [vmem:[#allocation8 + $0x110] sm:$0xf]
        %v3343 = vld [vmem:[#allocation8 + $0x114] sm:$0xf]
        %v3344 = vld [vmem:[#allocation8 + $0x118] sm:$0xf]
        %v3345 = vld [vmem:[#allocation8 + $0x11c] sm:$0xf]
        %v3346 = vld [vmem:[%s5] sm:$0x1]
        %v3348 = vlaneseq
        %v3349 = vshrl.u32 %v3348, 7
        %v3350 = vsub.s32 0, %v3349
        %v3351 = vrot.slane %v3346, %v3350
        %v3383 = vunpack.c.l.b16 %v3244
        %v3384 = vunpack.c.h.b16 %v3244
        %v3385 = vunpack.c.l.b16 %v3245
        %v3386 = vunpack.c.h.b16 %v3245
        %v3387 = vunpack.c.l.b16 %v3246
        %v3388 = vunpack.c.l.b16 %v3247
        %v3389 = vunpack.c.h.b16 %v3247
        %v3390 = vunpack.c.l.b16 %v3248
        %v3391 = vunpack.c.h.b16 %v3248
        %v3392 = vunpack.c.l.b16 %v3249
        %v3393 = vunpack.c.l.b16 %v3250
        %v3394 = vunpack.c.h.b16 %v3250
        %v3395 = vunpack.c.l.b16 %v3251
        %v3396 = vunpack.c.h.b16 %v3251
        %v3397 = vunpack.c.l.b16 %v3252
        %v3398 = vunpack.c.l.b16 %v3253
        %v3399 = vunpack.c.h.b16 %v3253
        %v3400 = vunpack.c.l.b16 %v3254
        %v3401 = vunpack.c.h.b16 %v3254
        %v3402 = vunpack.c.l.b16 %v3255
        %v3403 = vunpack.c.l.b16 %v3256
        %v3404 = vunpack.c.h.b16 %v3256
        %v3405 = vunpack.c.l.b16 %v3257
        %v3406 = vunpack.c.h.b16 %v3257
        %v3407 = vunpack.c.l.b16 %v3258
        %v3408 = vunpack.c.l.b16 %v3259
        %v3409 = vunpack.c.h.b16 %v3259
        %v3410 = vunpack.c.l.b16 %v3260
        %v3411 = vunpack.c.h.b16 %v3260
        %v3412 = vunpack.c.l.b16 %v3261
        %v3413 = vunpack.c.l.b16 %v3262
        %v3414 = vunpack.c.h.b16 %v3262
        %v3415 = vunpack.c.l.b16 %v3263
        %v3416 = vunpack.c.h.b16 %v3263
        %v3417 = vunpack.c.l.b16 %v3264
        %v3418 = vunpack.c.l.b16 %v3265
        %v3419 = vunpack.c.h.b16 %v3265
        %v3420 = vunpack.c.l.b16 %v3266
        %v3421 = vunpack.c.h.b16 %v3266
        %v3422 = vunpack.c.l.b16 %v3267
        %v3423 = vunpack.c.l.b16 %v3268
        %v3424 = vunpack.c.h.b16 %v3268
        %v3425 = vunpack.c.l.b16 %v3269
        %v3426 = vunpack.c.h.b16 %v3269
        %v3427 = vunpack.c.l.b16 %v3270
        %v3428 = vunpack.c.l.b16 %v3271
        %v3429 = vunpack.c.h.b16 %v3271
        %v3430 = vunpack.c.l.b16 %v3272
        %v3431 = vunpack.c.h.b16 %v3272
        %v3432 = vunpack.c.l.b16 %v3273
        %v3433 = vpack.c.b16 %v3388, %v3383
        %v3434 = vpack.c.b16 %v3389, %v3384
        %v3435 = vpack.c.b16 %v3390, %v3385
        %v3436 = vpack.c.b16 %v3391, %v3386
        %v3437 = vpack.c.b16 %v3392, %v3387
        %v3438 = vpack.c.b16 %v3398, %v3393
        %v3439 = vpack.c.b16 %v3399, %v3394
        %v3440 = vpack.c.b16 %v3400, %v3395
        %v3441 = vpack.c.b16 %v3401, %v3396
        %v3442 = vpack.c.b16 %v3402, %v3397
        %v3443 = vpack.c.b16 %v3408, %v3403
        %v3444 = vpack.c.b16 %v3409, %v3404
        %v3445 = vpack.c.b16 %v3410, %v3405
        %v3446 = vpack.c.b16 %v3411, %v3406
        %v3447 = vpack.c.b16 %v3412, %v3407
        %v3448 = vpack.c.b16 %v3418, %v3413
        %v3449 = vpack.c.b16 %v3419, %v3414
        %v3450 = vpack.c.b16 %v3420, %v3415
        %v3451 = vpack.c.b16 %v3421, %v3416
        %v3452 = vpack.c.b16 %v3422, %v3417
        %v3453 = vpack.c.b16 %v3428, %v3423
        %v3454 = vpack.c.b16 %v3429, %v3424
        %v3455 = vpack.c.b16 %v3430, %v3425
        %v3456 = vpack.c.b16 %v3431, %v3426
        %v3457 = vpack.c.b16 %v3432, %v3427
        %v3550 = vunpack.c.l.b16 %v3274
        %v3551 = vunpack.c.l.b16 %v3275
        %v3552 = vunpack.c.l.b16 %v3276
        %v3553 = vunpack.c.l.b16 %v3277
        %v3554 = vunpack.c.l.b16 %v3278
        %v3555 = vunpack.c.l.b16 %v3279
        %v3556 = vunpack.c.l.b16 %v3280
        %v3557 = vunpack.c.l.b16 %v3281
        %v3558 = vunpack.c.l.b16 %v3282
        %v3559 = vunpack.c.l.b16 %v3283
        %v3560 = vunpack.c.l.b16 %v3284
        %v3561 = vunpack.c.l.b16 %v3285
        %v3562 = vunpack.c.l.b16 %v3286
        %v3563 = vunpack.c.l.b16 %v3287
        %v3564 = vunpack.c.l.b16 %v3288
        %v3565 = vunpack.c.l.b16 %v3289
        %v3566 = vunpack.c.l.b16 %v3290
        %v3567 = vunpack.c.l.b16 %v3291
        %v3568 = vunpack.c.l.b16 %v3292
        %v3569 = vunpack.c.l.b16 %v3293
        %v3570 = vunpack.c.l.b16 %v3294
        %v3571 = vunpack.c.l.b16 %v3295
        %v3572 = vunpack.c.l.b16 %v3296
        %v3573 = vunpack.c.l.b16 %v3297
        %v3574 = vunpack.c.l.b16 %v3298
        %v3575 = vunpack.c.l.b16 %v3299
        %v3576 = vunpack.c.l.b16 %v3300
        %v3577 = vunpack.c.l.b16 %v3301
        %v3578 = vunpack.c.l.b16 %v3302
        %v3579 = vunpack.c.l.b16 %v3303
        %v3580 = vunpack.c.l.b16 %v3304
        %v3581 = vunpack.c.l.b16 %v3305
        %v3582 = vunpack.c.l.b16 %v3306
        %v3583 = vunpack.c.l.b16 %v3307
        %v3584 = vunpack.c.l.b16 %v3308
        %v3585 = vunpack.c.l.b16 %v3309
        %v3586 = vunpack.c.l.b16 %v3310
        %v3587 = vunpack.c.l.b16 %v3311
        %v3588 = vunpack.c.l.b16 %v3312
        %v3589 = vunpack.c.l.b16 %v3313
        %v3590 = vunpack.c.l.b16 %v3314
        %v3591 = vunpack.c.l.b16 %v3315
        %v3592 = vunpack.c.l.b16 %v3316
        %v3593 = vunpack.c.l.b16 %v3317
        %v3594 = vunpack.c.l.b16 %v3318
        %v3595 = vunpack.c.l.b16 %v3319
        %v3596 = vunpack.c.l.b16 %v3320
        %v3597 = vunpack.c.l.b16 %v3321
        %v3598 = vunpack.c.l.b16 %v3322
        %v3599 = vunpack.c.l.b16 %v3323
        %v3600 = vunpack.c.l.b16 %v3324
        %v3601 = vunpack.c.l.b16 %v3325
        %v3602 = vunpack.c.l.b16 %v3326
        %v3603 = vunpack.c.l.b16 %v3327
        %v3604 = vunpack.c.l.b16 %v3328
        %v3605 = vunpack.c.l.b16 %v3329
        %v3606 = vunpack.c.l.b16 %v3330
        %v3607 = vunpack.c.l.b16 %v3331
        %v3608 = vunpack.c.l.b16 %v3332
        %v3609 = vunpack.c.l.b16 %v3333
        %v3610 = vunpack.c.l.b16 %v3334
        %v3611 = vunpack.c.l.b16 %v3335
        %v3612 = vunpack.c.l.b16 %v3336
        %v3613 = vunpack.c.l.b16 %v3337
        %v3614 = vunpack.c.l.b16 %v3338
        %v3615 = vunpack.c.l.b16 %v3339
        %v3616 = vunpack.c.l.b16 %v3340
        %v3617 = vunpack.c.l.b16 %v3341
        %v3618 = vunpack.c.l.b16 %v3342
        %v3619 = vunpack.c.l.b16 %v3343
        %v3620 = vunpack.c.l.b16 %v3344
        %v3621 = vunpack.c.l.b16 %v3345
        %v3622 = vpack.c.b16 %v3551, %v3550
        %v3623 = vpack.c.b16 %v3553, %v3552
        %v3624 = vpack.c.b16 %v3555, %v3554
        %v3625 = vpack.c.b16 %v3557, %v3556
        %v3626 = vpack.c.b16 %v3559, %v3558
        %v3627 = vpack.c.b16 %v3561, %v3560
        %v3628 = vpack.c.b16 %v3563, %v3562
        %v3629 = vpack.c.b16 %v3565, %v3564
        %v3630 = vpack.c.b16 %v3567, %v3566
        %v3631 = vpack.c.b16 %v3569, %v3568
        %v3632 = vpack.c.b16 %v3571, %v3570
        %v3633 = vpack.c.b16 %v3573, %v3572
        %v3634 = vpack.c.b16 %v3575, %v3574
        %v3635 = vpack.c.b16 %v3577, %v3576
        %v3636 = vpack.c.b16 %v3579, %v3578
        %v3637 = vpack.c.b16 %v3581, %v3580
        %v3638 = vpack.c.b16 %v3583, %v3582
        %v3639 = vpack.c.b16 %v3585, %v3584
        %v3640 = vpack.c.b16 %v3587, %v3586
        %v3641 = vpack.c.b16 %v3589, %v3588
        %v3642 = vpack.c.b16 %v3591, %v3590
        %v3643 = vpack.c.b16 %v3593, %v3592
        %v3644 = vpack.c.b16 %v3595, %v3594
        %v3645 = vpack.c.b16 %v3597, %v3596
        %v3646 = vpack.c.b16 %v3599, %v3598
        %v3647 = vpack.c.b16 %v3601, %v3600
        %v3648 = vpack.c.b16 %v3603, %v3602
        %v3649 = vpack.c.b16 %v3605, %v3604
        %v3650 = vpack.c.b16 %v3607, %v3606
        %v3651 = vpack.c.b16 %v3609, %v3608
        %v3652 = vpack.c.b16 %v3611, %v3610
        %v3653 = vpack.c.b16 %v3613, %v3612
        %v3654 = vpack.c.b16 %v3615, %v3614
        %v3655 = vpack.c.b16 %v3617, %v3616
        %v3656 = vpack.c.b16 %v3619, %v3618
        %v3657 = vpack.c.b16 %v3621, %v3620
        %v3695 = vsel %vm1626, %v3437, 0
        %v3698 = vsel %vm1626, %v3442, 0
        %v3701 = vsel %vm1626, %v3447, 0
        %v3704 = vsel %vm1626, %v3452, 0
        %v3707 = vsel %vm1626, %v3457, 0
        %3709 = vmatprep.subr.bf16.mxu0 0
        %3710 = vmatpush1.bf16.msra.mxu0 %v3622
        %3711 = vmatprep.subr.bf16.mxu0 0
        %3712 = vmatpush1.bf16.msra.mxu0 %v3623
        %3713 = vmatprep.subr.bf16.mxu0 0
        %3714 = vmatpush1.bf16.msra.mxu0 %v3624
        %3715 = vmatprep.subr.bf16.mxu0 0
        %3716 = vmatpush1.bf16.msra.mxu0 %v3625
        %3717 = vmatprep.subr.bf16.mxu0 0
        %3718 = vmatpush1.bf16.msra.mxu0 %v3626
        %3719 = vmatprep.subr.bf16.mxu0 0
        %3720 = vmatpush1.bf16.msra.mxu0 %v3627
        %3721 = vmatprep.subr.bf16.mxu0 0
        %3722 = vmatpush1.bf16.msra.mxu0 %v3628
        %3723 = vmatprep.subr.bf16.mxu0 0
        %3724 = vmatpush1.bf16.msra.mxu0 %v3629
        %3725 = vmatprep.subr.bf16.mxu0 0
        %3726 = vmatpush1.bf16.msra.mxu0 %v3630
        %3727 = vmatprep.subr.bf16.mxu0 0
        %3728 = vmatpush1.bf16.msra.mxu0 %v3631
        %3729 = vmatprep.subr.bf16.mxu0 0
        %3730 = vmatpush1.bf16.msra.mxu0 %v3632
        %3731 = vmatprep.subr.bf16.mxu0 0
        %3732 = vmatpush1.bf16.msra.mxu0 %v3633
        %3733 = vmatprep.subr.bf16.mxu0 0
        %3734 = vmatpush1.bf16.msra.mxu0 %v3634
        %3735 = vmatprep.subr.bf16.mxu0 0
        %3736 = vmatpush1.bf16.msra.mxu0 %v3635
        %3737 = vmatprep.subr.bf16.mxu0 0
        %3738 = vmatpush1.bf16.msra.mxu0 %v3636
        %3739 = vmatprep.subr.bf16.mxu0 0
        %3740 = vmatpush1.bf16.msra.mxu0 %v3637
        %3741 = vmatprep.mubr.bf16.mxu0 %v3434
        %3742 = vmatmul.mubr.bf16.gmra.mrb[0].mxu0 %v3433
        %v3743 = vpop.f32.mrb[0].mxu0
        %v3744 = vadd.f32 %v3351, %v3743
        %v3745 = vpop.f32.mrb[0].mxu0
        %v3746 = vpop.f32.mrb[0].mxu0
        %v3747 = vadd.f32 %v3351, %v3746
        %v3748 = vpop.f32.mrb[0].mxu0
        %3749 = vmatprep.mubr.bf16.mxu0 %v3439
        %3750 = vmatmul.mubr.bf16.gmra.mrb[0].mxu0 %v3438
        %v3751 = vpop.f32.mrb[0].mxu0
        %v3752 = vadd.f32 %v3351, %v3751
        %v3753 = vpop.f32.mrb[0].mxu0
        %v3754 = vpop.f32.mrb[0].mxu0
        %v3755 = vadd.f32 %v3351, %v3754
        %v3756 = vpop.f32.mrb[0].mxu0
        %3757 = vmatprep.mubr.bf16.mxu0 %v3444
        %3758 = vmatmul.mubr.bf16.gmra.mrb[0].mxu0 %v3443
        %v3759 = vpop.f32.mrb[0].mxu0
        %v3760 = vadd.f32 %v3351, %v3759
        %v3761 = vpop.f32.mrb[0].mxu0
        %v3762 = vpop.f32.mrb[0].mxu0
        %v3763 = vadd.f32 %v3351, %v3762
        %v3764 = vpop.f32.mrb[0].mxu0
        %3765 = vmatprep.mubr.bf16.mxu0 %v3449
        %3766 = vmatmul.mubr.bf16.gmra.mrb[0].mxu0 %v3448
        %v3767 = vpop.f32.mrb[0].mxu0
        %v3768 = vadd.f32 %v3351, %v3767
        %v3769 = vpop.f32.mrb[0].mxu0
        %v3770 = vpop.f32.mrb[0].mxu0
        %v3771 = vadd.f32 %v3351, %v3770
        %v3772 = vpop.f32.mrb[0].mxu0
        %3773 = vmatprep.mubr.bf16.mxu0 %v3454
        %3774 = vmatmul.mubr.bf16.gmra.mrb[0].mxu0 %v3453
        %v3775 = vpop.f32.mrb[0].mxu0
        %v3776 = vadd.f32 %v3351, %v3775
        %v3777 = vpop.f32.mrb[0].mxu0
        %v3778 = vpop.f32.mrb[0].mxu0
        %v3779 = vadd.f32 %v3351, %v3778
        %v3780 = vpop.f32.mrb[0].mxu0
        %3781 = vdwg.mxu0
        %3782 = vmatprep.subr.bf16.mxu0 0
        %3783 = vmatpush1.bf16.msra.mxu0 %v3638
        %3784 = vmatprep.subr.bf16.mxu0 0
        %3785 = vmatpush1.bf16.msra.mxu0 %v3639
        %3786 = vmatprep.subr.bf16.mxu0 0
        %3787 = vmatpush1.bf16.msra.mxu0 %v3640
        %3788 = vmatprep.subr.bf16.mxu0 0
        %3789 = vmatpush1.bf16.msra.mxu0 %v3641
        %3790 = vmatprep.subr.bf16.mxu0 0
        %3791 = vmatpush1.bf16.msra.mxu0 %v3642
        %3792 = vmatprep.subr.bf16.mxu0 0
        %3793 = vmatpush1.bf16.msra.mxu0 %v3643
        %3794 = vmatprep.subr.bf16.mxu0 0
        %3795 = vmatpush1.bf16.msra.mxu0 %v3644
        %3796 = vmatprep.subr.bf16.mxu0 0
        %3797 = vmatpush1.bf16.msra.mxu0 %v3645
        %3798 = vmatprep.subr.bf16.mxu0 0
        %3799 = vmatpush1.bf16.msra.mxu0 %v3646
        %3800 = vmatprep.subr.bf16.mxu0 0
        %3801 = vmatpush1.bf16.msra.mxu0 %v3647
        %3802 = vmatprep.subr.bf16.mxu0 0
        %3803 = vmatpush1.bf16.msra.mxu0 %v3648
        %3804 = vmatprep.subr.bf16.mxu0 0
        %3805 = vmatpush1.bf16.msra.mxu0 %v3649
        %3806 = vmatprep.subr.bf16.mxu0 0
        %3807 = vmatpush1.bf16.msra.mxu0 %v3650
        %3808 = vmatprep.subr.bf16.mxu0 0
        %3809 = vmatpush1.bf16.msra.mxu0 %v3651
        %3810 = vmatprep.subr.bf16.mxu0 0
        %3811 = vmatpush1.bf16.msra.mxu0 %v3652
        %3812 = vmatprep.subr.bf16.mxu0 0
        %3813 = vmatpush1.bf16.msra.mxu0 %v3653
        %3814 = vmatprep.mubr.bf16.mxu0 %v3436
        %3815 = vmatmul.mubr.bf16.gmra.mrb[0].mxu0 %v3435
        %v3816 = vpop.f32.mrb[0].mxu0
        %v3817 = vadd.f32 %v3744, %v3816
        %v3818 = vpop.f32.mrb[0].mxu0
        %v3819 = vpop.f32.mrb[0].mxu0
        %v3820 = vadd.f32 %v3747, %v3819
        %v3821 = vpop.f32.mrb[0].mxu0
        %3822 = vmatprep.mubr.bf16.mxu0 %v3441
        %3823 = vmatmul.mubr.bf16.gmra.mrb[0].mxu0 %v3440
        %v3824 = vpop.f32.mrb[0].mxu0
        %v3825 = vadd.f32 %v3752, %v3824
        %v3826 = vpop.f32.mrb[0].mxu0
        %v3827 = vpop.f32.mrb[0].mxu0
        %v3828 = vadd.f32 %v3755, %v3827
        %v3829 = vpop.f32.mrb[0].mxu0
        %3830 = vmatprep.mubr.bf16.mxu0 %v3446
        %3831 = vmatmul.mubr.bf16.gmra.mrb[0].mxu0 %v3445
        %v3832 = vpop.f32.mrb[0].mxu0
        %v3833 = vadd.f32 %v3760, %v3832
        %v3834 = vpop.f32.mrb[0].mxu0
        %v3835 = vpop.f32.mrb[0].mxu0
        %v3836 = vadd.f32 %v3763, %v3835
        %v3837 = vpop.f32.mrb[0].mxu0
        %3838 = vmatprep.mubr.bf16.mxu0 %v3451
        %3839 = vmatmul.mubr.bf16.gmra.mrb[0].mxu0 %v3450
        %v3840 = vpop.f32.mrb[0].mxu0
        %v3841 = vadd.f32 %v3768, %v3840
        %v3842 = vpop.f32.mrb[0].mxu0
        %v3843 = vpop.f32.mrb[0].mxu0
        %v3844 = vadd.f32 %v3771, %v3843
        %v3845 = vpop.f32.mrb[0].mxu0
        %3846 = vmatprep.mubr.bf16.mxu0 %v3456
        %3847 = vmatmul.mubr.bf16.gmra.mrb[0].mxu0 %v3455
        %v3848 = vpop.f32.mrb[0].mxu0
        %v3849 = vadd.f32 %v3776, %v3848
        %v3850 = vpop.f32.mrb[0].mxu0
        %v3851 = vpop.f32.mrb[0].mxu0
        %v3852 = vadd.f32 %v3779, %v3851
        %v3853 = vpop.f32.mrb[0].mxu0
        %3854 = vdwg.mxu0
        %3855 = vmatprep.subr.bf16.mxu0 0
        %3856 = vmatpush1.bf16.msra.mxu0 %v3654
        %3857 = vmatprep.subr.bf16.mxu0 0
        %3858 = vmatpush1.bf16.msra.mxu0 %v3655
        %3859 = vmatprep.subr.bf16.mxu0 0
        %3860 = vmatpush1.bf16.msra.mxu0 %v3656
        %3861 = vmatprep.subr.bf16.mxu0 0
        %3862 = vmatpush1.bf16.msra.mxu0 %v3657
        %3863 = vmatprep.subr.bf16.mxu0 0
        %3864 = vmatpush1.bf16.msra.mxu0 0
        %3865 = vmatprep.subr.bf16.mxu0 0
        %3866 = vmatpush1.bf16.msra.mxu0 0
        %3867 = vmatprep.subr.bf16.mxu0 0
        %3868 = vmatpush1.bf16.msra.mxu0 0
        %3869 = vmatprep.subr.bf16.mxu0 0
        %3870 = vmatpush1.bf16.msra.mxu0 0
        %3871 = vmatprep.subr.bf16.mxu0 0
        %3872 = vmatpush1.bf16.msra.mxu0 0
        %3873 = vmatprep.subr.bf16.mxu0 0
        %3874 = vmatpush1.bf16.msra.mxu0 0
        %3875 = vmatprep.subr.bf16.mxu0 0
        %3876 = vmatpush1.bf16.msra.mxu0 0
        %3877 = vmatprep.subr.bf16.mxu0 0
        %3878 = vmatpush1.bf16.msra.mxu0 0
        %3879 = vmatprep.subr.bf16.mxu0 0
        %3880 = vmatpush1.bf16.msra.mxu0 0
        %3881 = vmatprep.subr.bf16.mxu0 0
        %3882 = vmatpush1.bf16.msra.mxu0 0
        %3883 = vmatprep.subr.bf16.mxu0 0
        %3884 = vmatpush1.bf16.msra.mxu0 0
        %3885 = vmatprep.subr.bf16.mxu0 0
        %3886 = vmatpush1.bf16.msra.mxu0 0
        %3887 = vmatprep.mubr.bf16.mxu0 0
        %3888 = vmatmul.mubr.bf16.gmra.mrb[0].mxu0 %v3695
        %v3889 = vpop.f32.mrb[0].mxu0
        %v3890 = vadd.f32 %v3817, %v3889
        %v3891 = vpop.f32.mrb[0].mxu0
        %v3892 = vpop.f32.mrb[0].mxu0
        %v3893 = vadd.f32 %v3820, %v3892
        %v3894 = vpop.f32.mrb[0].mxu0
        %3895 = vmatprep.mubr.bf16.mxu0 0
        %3896 = vmatmul.mubr.bf16.gmra.mrb[0].mxu0 %v3698
        %v3897 = vpop.f32.mrb[0].mxu0
        %v3898 = vadd.f32 %v3825, %v3897
        %v3899 = vpop.f32.mrb[0].mxu0
        %v3900 = vpop.f32.mrb[0].mxu0
        %v3901 = vadd.f32 %v3828, %v3900
        %v3902 = vpop.f32.mrb[0].mxu0
        %3903 = vmatprep.mubr.bf16.mxu0 0
        %3904 = vmatmul.mubr.bf16.gmra.mrb[0].mxu0 %v3701
        %v3905 = vpop.f32.mrb[0].mxu0
        %v3906 = vadd.f32 %v3833, %v3905
        %v3907 = vpop.f32.mrb[0].mxu0
        %v3908 = vpop.f32.mrb[0].mxu0
        %v3909 = vadd.f32 %v3836, %v3908
        %v3910 = vpop.f32.mrb[0].mxu0
        %3911 = vmatprep.mubr.bf16.mxu0 0
        %3912 = vmatmul.mubr.bf16.gmra.mrb[0].mxu0 %v3704
        %v3913 = vpop.f32.mrb[0].mxu0
        %v3914 = vadd.f32 %v3841, %v3913
        %v3915 = vpop.f32.mrb[0].mxu0
        %v3916 = vpop.f32.mrb[0].mxu0
        %v3917 = vadd.f32 %v3844, %v3916
        %v3918 = vpop.f32.mrb[0].mxu0
        %3919 = vmatprep.mubr.bf16.mxu0 0
        %3920 = vmatmul.mubr.bf16.gmra.mrb[0].mxu0 %v3707
        %v3921 = vpop.f32.mrb[0].mxu0
        %v3922 = vadd.f32 %v3849, %v3921
        %v3923 = vpop.f32.mrb[0].mxu0
        %v3924 = vpop.f32.mrb[0].mxu0
        %v3925 = vadd.f32 %v3852, %v3924
        %v3926 = vpop.f32.mrb[0].mxu0
        %3927 = vdwg.mxu0
        %v3928 = vld [vmem:[%s964 + $0x1] sm:$0xff]
        %v3929 = vld [vmem:[%s964 + $0x11] sm:$0xff]
        %v3930 = vld [vmem:[%s964 + $0x21] sm:$0xff]
        %v3931 = vld [vmem:[%s964 + $0x31] sm:$0xff]
        %v3932 = vld [vmem:[%s964 + $0x41] sm:$0xff]
        %v3933 = vld [vmem:[%s964 + $0x51] sm:$0xff]
        %v3934 = vld [vmem:[%s964 + $0x61] sm:$0xff]
        %v3935 = vld [vmem:[%s964 + $0x71] sm:$0xff]
        %v3936 = vld [vmem:[%s964 + $0x81] sm:$0xff]
        %v3937 = vld [vmem:[%s964 + $0x91] sm:$0xff]
        %v3938 = vadd.f32 %v3890, %v3928
        %v3939 = vadd.f32 %v3893, %v3929
        %v3940 = vadd.f32 %v3898, %v3930
        %v3941 = vadd.f32 %v3901, %v3931
        %v3942 = vadd.f32 %v3906, %v3932
        %v3943 = vadd.f32 %v3909, %v3933
        %v3944 = vadd.f32 %v3914, %v3934
        %v3945 = vadd.f32 %v3917, %v3935
        %v3946 = vadd.f32 %v3922, %v3936
        %v3947 = vadd.f32 %v3925, %v3937
        %v3948 = vcombine.low %v3939, %v3941
        %v3949 = vcombine.high %v3939, %v3941
        %v3951 = vunpack.c.l.s4 1983009808
        %v3952 = vunpack.c.0.s8 %v3951
        %v3953 = vlaneseq
        %v3954 = vshrl.u32 %v3953, 7
        %v3955 = vsub.s32 %v3952, %v3954
        %v3956 = vrot.slane %v3948, %v3955
        %v3958 = vunpack.c.l.s4 1983009808
        %v3959 = vunpack.c.0.s8 %v3958
        %v3960 = vlaneseq
        %v3961 = vshrl.u32 %v3960, 7
        %v3962 = vsub.s32 %v3959, %v3961
        %v3963 = vrot.slane %v3949, %v3962
        %v3964 = vcombine.low %v3940, %v3942
        %v3965 = vcombine.high %v3940, %v3942
        %v3967 = vunpack.c.l.s4 1983009808
        %v3968 = vunpack.c.0.s8 %v3967
        %v3969 = vlaneseq
        %v3970 = vshrl.u32 %v3969, 7
        %v3971 = vsub.s32 %v3968, %v3970
        %v3972 = vrot.slane %v3964, %v3971
        %v3974 = vunpack.c.l.s4 1983009808
        %v3975 = vunpack.c.0.s8 %v3974
        %v3976 = vlaneseq
        %v3977 = vshrl.u32 %v3976, 7
        %v3978 = vsub.s32 %v3975, %v3977
        %v3979 = vrot.slane %v3965, %v3978
        %v3980 = vcombine.low %v3943, %v3945
        %v3981 = vcombine.high %v3943, %v3945
        %v3983 = vunpack.c.l.s4 1983009808
        %v3984 = vunpack.c.0.s8 %v3983
        %v3985 = vlaneseq
        %v3986 = vshrl.u32 %v3985, 7
        %v3987 = vsub.s32 %v3984, %v3986
        %v3988 = vrot.slane %v3980, %v3987
        %v3990 = vunpack.c.l.s4 1983009808
        %v3991 = vunpack.c.0.s8 %v3990
        %v3992 = vlaneseq
        %v3993 = vshrl.u32 %v3992, 7
        %v3994 = vsub.s32 %v3991, %v3993
        %v3995 = vrot.slane %v3981, %v3994
        %v3996 = vcombine.low %v3944, %v3946
        %v3997 = vcombine.high %v3944, %v3946
        %v3999 = vunpack.c.l.s4 1983009808
        %v4000 = vunpack.c.0.s8 %v3999
        %v4001 = vlaneseq
        %v4002 = vshrl.u32 %v4001, 7
        %v4003 = vsub.s32 %v4000, %v4002
        %v4004 = vrot.slane %v3996, %v4003
        %v4006 = vunpack.c.l.s4 1983009808
        %v4007 = vunpack.c.0.s8 %v4006
        %v4008 = vlaneseq
        %v4009 = vshrl.u32 %v4008, 7
        %v4010 = vsub.s32 %v4007, %v4009
        %v4011 = vrot.slane %v3997, %v4010
        %v4012 = vcombine.low %v3956, %v3972
        %v4013 = vcombine.high %v3956, %v3972
        %v4015 = vunpack.c.l.s4 1934713408
        %v4016 = vunpack.c.0.s8 %v4015
        %v4017 = vlaneseq
        %v4018 = vshrl.u32 %v4017, 7
        %v4019 = vsub.s32 %v4016, %v4018
        %v4020 = vrot.slane %v4012, %v4019
        %v4022 = vunpack.c.l.s4 1934713408
        %v4023 = vunpack.c.0.s8 %v4022
        %v4024 = vlaneseq
        %v4025 = vshrl.u32 %v4024, 7
        %v4026 = vsub.s32 %v4023, %v4025
        %v4027 = vrot.slane %v4013, %v4026
        %v4028 = vcombine.low %v3963, %v3979
        %v4029 = vcombine.high %v3963, %v3979
        %v4031 = vunpack.c.l.s4 1934713408
        %v4032 = vunpack.c.0.s8 %v4031
        %v4033 = vlaneseq
        %v4034 = vshrl.u32 %v4033, 7
        %v4035 = vsub.s32 %v4032, %v4034
        %v4036 = vrot.slane %v4028, %v4035
        %v4038 = vunpack.c.l.s4 1934713408
        %v4039 = vunpack.c.0.s8 %v4038
        %v4040 = vlaneseq
        %v4041 = vshrl.u32 %v4040, 7
        %v4042 = vsub.s32 %v4039, %v4041
        %v4043 = vrot.slane %v4029, %v4042
        %v4044 = vcombine.low %v3988, %v4004
        %v4045 = vcombine.high %v3988, %v4004
        %v4047 = vunpack.c.l.s4 1934713408
        %v4048 = vunpack.c.0.s8 %v4047
        %v4049 = vlaneseq
        %v4050 = vshrl.u32 %v4049, 7
        %v4051 = vsub.s32 %v4048, %v4050
        %v4052 = vrot.slane %v4044, %v4051
        %v4054 = vunpack.c.l.s4 1934713408
        %v4055 = vunpack.c.0.s8 %v4054
        %v4056 = vlaneseq
        %v4057 = vshrl.u32 %v4056, 7
        %v4058 = vsub.s32 %v4055, %v4057
        %v4059 = vrot.slane %v4045, %v4058
        %v4060 = vcombine.low %v3995, %v4011
        %v4061 = vcombine.high %v3995, %v4011
        %v4063 = vunpack.c.l.s4 1934713408
        %v4064 = vunpack.c.0.s8 %v4063
        %v4065 = vlaneseq
        %v4066 = vshrl.u32 %v4065, 7
        %v4067 = vsub.s32 %v4064, %v4066
        %v4068 = vrot.slane %v4060, %v4067
        %v4070 = vunpack.c.l.s4 1934713408
        %v4071 = vunpack.c.0.s8 %v4070
        %v4072 = vlaneseq
        %v4073 = vshrl.u32 %v4072, 7
        %v4074 = vsub.s32 %v4071, %v4073
        %v4075 = vrot.slane %v4061, %v4074
        %v4076 = vcombine.low %v4020, %v4052
        %v4077 = vcombine.high %v4020, %v4052
        %v4078 = vcombine.low %v4027, %v4059
        %v4079 = vcombine.high %v4027, %v4059
        %v4080 = vcombine.low %v4036, %v4068
        %v4081 = vcombine.high %v4036, %v4068
        %v4082 = vcombine.low %v4043, %v4075
        %v4083 = vcombine.high %v4043, %v4075
        %4085 = vrot.lane.b32.xlu0 %v4077, 64
        %v4086 = vpop.permute.xlu0 %4085
        %4089 = vrot.lane.b32.xlu0 %v4079, 64
        %v4090 = vpop.permute.xlu0 %4089
        %4093 = vrot.lane.b32.xlu0 %v4081, 64
        %v4094 = vpop.permute.xlu0 %4093
        %4097 = vrot.lane.b32.xlu0 %v4083, 64
        %v4098 = vpop.permute.xlu0 %4097
        %v4100 = vsel %vm1626, %v4076, %v4086
        %v4101 = vsel %vm1626, %v4078, %v4090
        %v4102 = vsel %vm1626, %v4080, %v4094
        %v4103 = vsel %vm1626, %v4082, %v4098
        %4104 = vst [vmem:[%s517] sm:$0xff] %v4100
        %4105 = vst [vmem:[%s517 + $0x8] sm:$0xff] %v4101
        %4106 = vst [vmem:[%s517 + $0x10] sm:$0xff] %v4102
        %4107 = vst [vmem:[%s517 + $0x18] sm:$0xff] %v4103
        %v4108 = vpack.c.bf16 %v3938, %v3938
        %v4109 = vpack.c.bf16 %v3939, %v3939
        %v4110 = vpack.c.bf16 %v3940, %v3940
        %v4111 = vpack.c.bf16 %v3941, %v3941
        %v4112 = vpack.c.bf16 %v3942, %v3942
        %v4113 = vpack.c.bf16 %v3943, %v3943
        %v4114 = vpack.c.bf16 %v3944, %v3944
        %v4115 = vpack.c.bf16 %v3945, %v3945
        %v4116 = vpack.c.bf16 %v3946, %v3946
        %v4117 = vpack.c.bf16 %v3947, %v3947
        %v4128 = vunpack.c.l.b16 %v4108
        %v4129 = vunpack.c.l.b16 %v4109
        %v4130 = vunpack.c.l.b16 %v4110
        %v4131 = vunpack.c.l.b16 %v4111
        %v4132 = vunpack.c.l.b16 %v4112
        %v4133 = vunpack.c.l.b16 %v4113
        %v4134 = vunpack.c.l.b16 %v4114
        %v4135 = vunpack.c.l.b16 %v4115
        %v4136 = vunpack.c.l.b16 %v4116
        %v4137 = vunpack.c.l.b16 %v4117
        %v4138 = vpack.c.b16 %v4128, %v4128
        %v4139 = vpack.c.b16 %v4129, %v4129
        %v4140 = vpack.c.b16 %v4130, %v4130
        %v4141 = vpack.c.b16 %v4131, %v4131
        %v4142 = vpack.c.b16 %v4132, %v4132
        %v4143 = vpack.c.b16 %v4133, %v4133
        %v4144 = vpack.c.b16 %v4134, %v4134
        %v4145 = vpack.c.b16 %v4135, %v4135
        %v4146 = vpack.c.b16 %v4136, %v4136
        %v4147 = vpack.c.b16 %v4137, %v4137
        %v4149 = vshrl.u32 %v4138, 16
        %v4151 = vrot.slane %v4149, 7
        %v4152 = vshll.u32 %v4138, 16
        %v4154 = vor.u32 %v4151, %v4152
        %v4155 = vrot.slane %v4151, 4
        %v4157 = vshrl.u32 %v4139, 16
        %v4159 = vrot.slane %v4157, 7
        %v4160 = vshll.u32 %v4139, 16
        %v4162 = vor.u32 %v4159, %v4160
        %v4163 = vrot.slane %v4159, 4
        %v4165 = vshrl.u32 %v4140, 16
        %v4167 = vrot.slane %v4165, 7
        %v4168 = vshll.u32 %v4140, 16
        %v4170 = vor.u32 %v4167, %v4168
        %v4171 = vrot.slane %v4167, 4
        %v4173 = vshrl.u32 %v4141, 16
        %v4175 = vrot.slane %v4173, 7
        %v4176 = vshll.u32 %v4141, 16
        %v4178 = vor.u32 %v4175, %v4176
        %v4179 = vrot.slane %v4175, 4
        %v4181 = vshrl.u32 %v4142, 16
        %v4183 = vrot.slane %v4181, 7
        %v4184 = vshll.u32 %v4142, 16
        %v4186 = vor.u32 %v4183, %v4184
        %v4187 = vrot.slane %v4183, 4
        %v4189 = vshrl.u32 %v4143, 16
        %v4191 = vrot.slane %v4189, 7
        %v4192 = vshll.u32 %v4143, 16
        %v4194 = vor.u32 %v4191, %v4192
        %v4195 = vrot.slane %v4191, 4
        %v4197 = vshrl.u32 %v4144, 16
        %v4199 = vrot.slane %v4197, 7
        %v4200 = vshll.u32 %v4144, 16
        %v4202 = vor.u32 %v4199, %v4200
        %v4203 = vrot.slane %v4199, 4
        %v4205 = vshrl.u32 %v4145, 16
        %v4207 = vrot.slane %v4205, 7
        %v4208 = vshll.u32 %v4145, 16
        %v4210 = vor.u32 %v4207, %v4208
        %v4211 = vrot.slane %v4207, 4
        %v4213 = vshrl.u32 %v4146, 16
        %v4215 = vrot.slane %v4213, 7
        %v4216 = vshll.u32 %v4146, 16
        %v4218 = vor.u32 %v4215, %v4216
        %v4219 = vrot.slane %v4215, 4
        %v4221 = vshrl.u32 %v4147, 16
        %v4223 = vrot.slane %v4221, 7
        %v4224 = vshll.u32 %v4147, 16
        %v4226 = vor.u32 %v4223, %v4224
        %v4227 = vrot.slane %v4223, 4
        %v4248 = vld [vmem:[#allocation4] sm:$0xf]
        %v4249 = vsel %vm2070, %v4154, %v4248
        %4250 = vst [vmem:[#allocation4] sm:$0xf] %v4249
        %v4251 = vld [vmem:[#allocation4 + $0x4] sm:$0x1]
        %v4252 = vsel %vm2076, %v4155, %v4251
        %4253 = vst [vmem:[#allocation4 + $0x4] sm:$0x1] %v4252
        %v4254 = vld [vmem:[#allocation4 + $0x8] sm:$0xf]
        %v4255 = vsel %vm2070, %v4162, %v4254
        %4256 = vst [vmem:[#allocation4 + $0x8] sm:$0xf] %v4255
        %v4257 = vld [vmem:[#allocation4 + $0xc] sm:$0x1]
        %v4258 = vsel %vm2076, %v4163, %v4257
        %4259 = vst [vmem:[#allocation4 + $0xc] sm:$0x1] %v4258
        %v4260 = vld [vmem:[#allocation4 + $0x10] sm:$0xf]
        %v4261 = vsel %vm2070, %v4170, %v4260
        %4262 = vst [vmem:[#allocation4 + $0x10] sm:$0xf] %v4261
        %v4263 = vld [vmem:[#allocation4 + $0x14] sm:$0x1]
        %v4264 = vsel %vm2076, %v4171, %v4263
        %4265 = vst [vmem:[#allocation4 + $0x14] sm:$0x1] %v4264
        %v4266 = vld [vmem:[#allocation4 + $0x18] sm:$0xf]
        %v4267 = vsel %vm2070, %v4178, %v4266
        %4268 = vst [vmem:[#allocation4 + $0x18] sm:$0xf] %v4267
        %v4269 = vld [vmem:[#allocation4 + $0x1c] sm:$0x1]
        %v4270 = vsel %vm2076, %v4179, %v4269
        %4271 = vst [vmem:[#allocation4 + $0x1c] sm:$0x1] %v4270
        %v4272 = vld [vmem:[#allocation4 + $0x20] sm:$0xf]
        %v4273 = vsel %vm2070, %v4186, %v4272
        %4274 = vst [vmem:[#allocation4 + $0x20] sm:$0xf] %v4273
        %v4275 = vld [vmem:[#allocation4 + $0x24] sm:$0x1]
        %v4276 = vsel %vm2076, %v4187, %v4275
        %4277 = vst [vmem:[#allocation4 + $0x24] sm:$0x1] %v4276
        %v4278 = vld [vmem:[#allocation4 + $0x28] sm:$0xf]
        %v4279 = vsel %vm2070, %v4194, %v4278
        %4280 = vst [vmem:[#allocation4 + $0x28] sm:$0xf] %v4279
        %v4281 = vld [vmem:[#allocation4 + $0x2c] sm:$0x1]
        %v4282 = vsel %vm2076, %v4195, %v4281
        %4283 = vst [vmem:[#allocation4 + $0x2c] sm:$0x1] %v4282
        %v4284 = vld [vmem:[#allocation4 + $0x30] sm:$0xf]
        %v4285 = vsel %vm2070, %v4202, %v4284
        %4286 = vst [vmem:[#allocation4 + $0x30] sm:$0xf] %v4285
        %v4287 = vld [vmem:[#allocation4 + $0x34] sm:$0x1]
        %v4288 = vsel %vm2076, %v4203, %v4287
        %4289 = vst [vmem:[#allocation4 + $0x34] sm:$0x1] %v4288
        %v4290 = vld [vmem:[#allocation4 + $0x38] sm:$0xf]
        %v4291 = vsel %vm2070, %v4210, %v4290
        %4292 = vst [vmem:[#allocation4 + $0x38] sm:$0xf] %v4291
        %v4293 = vld [vmem:[#allocation4 + $0x3c] sm:$0x1]
        %v4294 = vsel %vm2076, %v4211, %v4293
        %4295 = vst [vmem:[#allocation4 + $0x3c] sm:$0x1] %v4294
        %v4296 = vld [vmem:[#allocation4 + $0x40] sm:$0xf]
        %v4297 = vsel %vm2070, %v4218, %v4296
        %4298 = vst [vmem:[#allocation4 + $0x40] sm:$0xf] %v4297
        %v4299 = vld [vmem:[#allocation4 + $0x44] sm:$0x1]
        %v4300 = vsel %vm2076, %v4219, %v4299
        %4301 = vst [vmem:[#allocation4 + $0x44] sm:$0x1] %v4300
        %v4302 = vld [vmem:[#allocation4 + $0x48] sm:$0xf]
        %v4303 = vsel %vm2070, %v4226, %v4302
        %4304 = vst [vmem:[#allocation4 + $0x48] sm:$0xf] %v4303
        %v4305 = vld [vmem:[#allocation4 + $0x4c] sm:$0x1]
        %v4306 = vsel %vm2076, %v4227, %v4305
        %4307 = vst [vmem:[#allocation4 + $0x4c] sm:$0x1] %v4306
        %v4308 = vld [vmem:[#allocation4] sm:$0x1]
        %v4309 = vsel %vm2076, 0, %v4308
        %4310 = vst [vmem:[#allocation4] sm:$0x1] %v4309
        %v4311 = vld [vmem:[#allocation4 + $0x8] sm:$0x1]
        %v4312 = vsel %vm2076, 0, %v4311
        %4313 = vst [vmem:[#allocation4 + $0x8] sm:$0x1] %v4312
        %v4314 = vld [vmem:[#allocation4 + $0x10] sm:$0x1]
        %v4315 = vsel %vm2076, 0, %v4314
        %4316 = vst [vmem:[#allocation4 + $0x10] sm:$0x1] %v4315
        %v4317 = vld [vmem:[#allocation4 + $0x18] sm:$0x1]
        %v4318 = vsel %vm2076, 0, %v4317
        %4319 = vst [vmem:[#allocation4 + $0x18] sm:$0x1] %v4318
        %v4320 = vld [vmem:[#allocation4 + $0x20] sm:$0x1]
        %v4321 = vsel %vm2076, 0, %v4320
        %4322 = vst [vmem:[#allocation4 + $0x20] sm:$0x1] %v4321
        %v4323 = vld [vmem:[#allocation4 + $0x28] sm:$0x1]
        %v4324 = vsel %vm2076, 0, %v4323
        %4325 = vst [vmem:[#allocation4 + $0x28] sm:$0x1] %v4324
        %v4326 = vld [vmem:[#allocation4 + $0x30] sm:$0x1]
        %v4327 = vsel %vm2076, 0, %v4326
        %4328 = vst [vmem:[#allocation4 + $0x30] sm:$0x1] %v4327
        %v4329 = vld [vmem:[#allocation4 + $0x38] sm:$0x1]
        %v4330 = vsel %vm2076, 0, %v4329
        %4331 = vst [vmem:[#allocation4 + $0x38] sm:$0x1] %v4330
        %v4332 = vld [vmem:[#allocation4 + $0x40] sm:$0x1]
        %v4333 = vsel %vm2076, 0, %v4332
        %4334 = vst [vmem:[#allocation4 + $0x40] sm:$0x1] %v4333
        %v4335 = vld [vmem:[#allocation4 + $0x48] sm:$0x1]
        %v4336 = vsel %vm2076, 0, %v4335
        %4337 = vst [vmem:[#allocation4 + $0x48] sm:$0x1] %v4336
        %v4338 = vld [vmem:[#allocation4 + $0x4] sm:$0x1]
        %v4339 = vsel %vm2182, 0, %v4338
        %4340 = vst [vmem:[#allocation4 + $0x4] sm:$0x1] %v4339
        %v4341 = vld [vmem:[#allocation4 + $0xc] sm:$0x1]
        %v4342 = vsel %vm2182, 0, %v4341
        %4343 = vst [vmem:[#allocation4 + $0xc] sm:$0x1] %v4342
        %v4344 = vld [vmem:[#allocation4 + $0x14] sm:$0x1]
        %v4345 = vsel %vm2182, 0, %v4344
        %4346 = vst [vmem:[#allocation4 + $0x14] sm:$0x1] %v4345
        %v4347 = vld [vmem:[#allocation4 + $0x1c] sm:$0x1]
        %v4348 = vsel %vm2182, 0, %v4347
        %4349 = vst [vmem:[#allocation4 + $0x1c] sm:$0x1] %v4348
        %v4350 = vld [vmem:[#allocation4 + $0x24] sm:$0x1]
        %v4351 = vsel %vm2182, 0, %v4350
        %4352 = vst [vmem:[#allocation4 + $0x24] sm:$0x1] %v4351
        %v4353 = vld [vmem:[#allocation4 + $0x2c] sm:$0x1]
        %v4354 = vsel %vm2182, 0, %v4353
        %4355 = vst [vmem:[#allocation4 + $0x2c] sm:$0x1] %v4354
        %v4356 = vld [vmem:[#allocation4 + $0x34] sm:$0x1]
        %v4357 = vsel %vm2182, 0, %v4356
        %4358 = vst [vmem:[#allocation4 + $0x34] sm:$0x1] %v4357
        %v4359 = vld [vmem:[#allocation4 + $0x3c] sm:$0x1]
        %v4360 = vsel %vm2182, 0, %v4359
        %4361 = vst [vmem:[#allocation4 + $0x3c] sm:$0x1] %v4360
        %v4362 = vld [vmem:[#allocation4 + $0x44] sm:$0x1]
        %v4363 = vsel %vm2182, 0, %v4362
        %4364 = vst [vmem:[#allocation4 + $0x44] sm:$0x1] %v4363
        %v4365 = vld [vmem:[#allocation4 + $0x4c] sm:$0x1]
        %v4366 = vsel %vm2182, 0, %v4365
        %4367 = vst [vmem:[#allocation4 + $0x4c] sm:$0x1] %v4366
        // Predicated region
        $region81: #{_lambda_.1} parent=63 // pred_check
          %p4368 = pneg %p521
        $region82: #{_lambda_.1} parent=63 // pred_check_branch
          %4370 = sbr.rel (%p4368) target = $region84
        $region83: #{_lambda_.1} parent=63 // pred_region
          %4371 = vst.msk [vmem:[#allocation4] sm:$0xf] %vm549, 0
          %vm4372 = vcmask 516096
          %4373 = vst.msk [vmem:[#allocation4 + $0x4] sm:$0x1] %vm4372, 0
        $region84: #{_lambda_.1} parent=63 // pred_fallthru
          _
        // Predicated region
        $region85: #{_lambda_.1} parent=63 // pred_check
          %p4374 = pneg %p522
        $region86: #{_lambda_.1} parent=63 // pred_check_branch
          %4376 = sbr.rel (%p4374) target = $region88
        $region87: #{_lambda_.1} parent=63 // pred_region
          %s4377 = scalar_lea.vmem [#allocation4], 72
          %4378 = vst.msk [vmem:[%s4377] sm:$0xf] %vm549, 0
          %vm4379 = vcmask 516096
          %4380 = vst.msk [vmem:[%s4377 + $0x4] sm:$0x1] %vm4379, 0
        $region88: #{_lambda_.1} parent=63 // pred_fallthru
          _
        %v4381 = vld [vmem:[#allocation4] sm:$0xf]
        %v4382 = vld [vmem:[#allocation4 + $0x8] sm:$0xf]
        %v4383 = vld [vmem:[#allocation4 + $0x10] sm:$0xf]
        %v4384 = vld [vmem:[#allocation4 + $0x18] sm:$0xf]
        %v4385 = vld [vmem:[#allocation4 + $0x20] sm:$0xf]
        %v4386 = vld [vmem:[#allocation4 + $0x28] sm:$0xf]
        %v4387 = vld [vmem:[#allocation4 + $0x30] sm:$0xf]
        %v4388 = vld [vmem:[#allocation4 + $0x38] sm:$0xf]
        %4389 = vst.msk [vmem:[#allocation2] sm:$0xf] %vm549, %v4381
        %4390 = vst.msk [vmem:[#allocation2 + $0x14] sm:$0xf] %vm549, %v4382
        %4391 = vst.msk [vmem:[#allocation2 + $0x28] sm:$0xf] %vm549, %v4383
        %4392 = vst.msk [vmem:[#allocation2 + $0x3c] sm:$0xf] %vm549, %v4384
        %4393 = vst.msk [vmem:[#allocation2 + $0x50] sm:$0xf] %vm549, %v4385
        %4394 = vst.msk [vmem:[#allocation2 + $0x64] sm:$0xf] %vm549, %v4386
        %4395 = vst.msk [vmem:[#allocation2 + $0x78] sm:$0xf] %vm549, %v4387
        %4396 = vst.msk [vmem:[#allocation2 + $0x8c] sm:$0xf] %vm549, %v4388
        %v4397 = vld [vmem:[#allocation4] sm:$0xf]
        %v4398 = vld [vmem:[#allocation4 + $0x4] sm:$0x1]
        %v4399 = vld [vmem:[#allocation4 + $0x8] sm:$0xf]
        %v4400 = vld [vmem:[#allocation4 + $0xc] sm:$0x1]
        %v4401 = vld [vmem:[#allocation4 + $0x10] sm:$0xf]
        %v4402 = vld [vmem:[#allocation4 + $0x14] sm:$0x1]
        %v4403 = vld [vmem:[#allocation4 + $0x18] sm:$0xf]
        %v4404 = vld [vmem:[#allocation4 + $0x1c] sm:$0x1]
        %v4405 = vld [vmem:[#allocation4 + $0x20] sm:$0xf]
        %v4406 = vld [vmem:[#allocation4 + $0x24] sm:$0x1]
        %v4407 = vld [vmem:[#allocation4 + $0x28] sm:$0xf]
        %v4408 = vld [vmem:[#allocation4 + $0x2c] sm:$0x1]
        %v4409 = vld [vmem:[#allocation4 + $0x30] sm:$0xf]
        %v4410 = vld [vmem:[#allocation4 + $0x34] sm:$0x1]
        %v4411 = vld [vmem:[#allocation4 + $0x38] sm:$0xf]
        %v4412 = vld [vmem:[#allocation4 + $0x3c] sm:$0x1]
        %v4414 = vshrl.u32 %v4397, 16
        %v4416 = vrot.slane %v4414, 4
        %v4417 = vshll.u32 %v4397, 16
        %v4419 = vrot.slane %v4417, 5
        %v4420 = vor.u32 %v4416, %v4419
        %v4421 = vrot.slane %v4420, 4
        %v4423 = vshll.u32 %v4398, 16
        %v4425 = vrot.slane %v4423, 5
        %v4426 = vsel %vm2278, %v4421, %v4425
        %v4428 = vshrl.u32 %v4399, 16
        %v4430 = vrot.slane %v4428, 4
        %v4431 = vshll.u32 %v4399, 16
        %v4433 = vrot.slane %v4431, 5
        %v4434 = vor.u32 %v4430, %v4433
        %v4435 = vrot.slane %v4434, 4
        %v4437 = vshll.u32 %v4400, 16
        %v4439 = vrot.slane %v4437, 5
        %v4440 = vsel %vm2278, %v4435, %v4439
        %v4442 = vshrl.u32 %v4401, 16
        %v4444 = vrot.slane %v4442, 4
        %v4445 = vshll.u32 %v4401, 16
        %v4447 = vrot.slane %v4445, 5
        %v4448 = vor.u32 %v4444, %v4447
        %v4449 = vrot.slane %v4448, 4
        %v4451 = vshll.u32 %v4402, 16
        %v4453 = vrot.slane %v4451, 5
        %v4454 = vsel %vm2278, %v4449, %v4453
        %v4456 = vshrl.u32 %v4403, 16
        %v4458 = vrot.slane %v4456, 4
        %v4459 = vshll.u32 %v4403, 16
        %v4461 = vrot.slane %v4459, 5
        %v4462 = vor.u32 %v4458, %v4461
        %v4463 = vrot.slane %v4462, 4
        %v4465 = vshll.u32 %v4404, 16
        %v4467 = vrot.slane %v4465, 5
        %v4468 = vsel %vm2278, %v4463, %v4467
        %v4470 = vshrl.u32 %v4405, 16
        %v4472 = vrot.slane %v4470, 4
        %v4473 = vshll.u32 %v4405, 16
        %v4475 = vrot.slane %v4473, 5
        %v4476 = vor.u32 %v4472, %v4475
        %v4477 = vrot.slane %v4476, 4
        %v4479 = vshll.u32 %v4406, 16
        %v4481 = vrot.slane %v4479, 5
        %v4482 = vsel %vm2278, %v4477, %v4481
        %v4484 = vshrl.u32 %v4407, 16
        %v4486 = vrot.slane %v4484, 4
        %v4487 = vshll.u32 %v4407, 16
        %v4489 = vrot.slane %v4487, 5
        %v4490 = vor.u32 %v4486, %v4489
        %v4491 = vrot.slane %v4490, 4
        %v4493 = vshll.u32 %v4408, 16
        %v4495 = vrot.slane %v4493, 5
        %v4496 = vsel %vm2278, %v4491, %v4495
        %v4498 = vshrl.u32 %v4409, 16
        %v4500 = vrot.slane %v4498, 4
        %v4501 = vshll.u32 %v4409, 16
        %v4503 = vrot.slane %v4501, 5
        %v4504 = vor.u32 %v4500, %v4503
        %v4505 = vrot.slane %v4504, 4
        %v4507 = vshll.u32 %v4410, 16
        %v4509 = vrot.slane %v4507, 5
        %v4510 = vsel %vm2278, %v4505, %v4509
        %v4512 = vshrl.u32 %v4411, 16
        %v4514 = vrot.slane %v4512, 4
        %v4515 = vshll.u32 %v4411, 16
        %v4517 = vrot.slane %v4515, 5
        %v4518 = vor.u32 %v4514, %v4517
        %v4519 = vrot.slane %v4518, 4
        %v4521 = vshll.u32 %v4412, 16
        %v4523 = vrot.slane %v4521, 5
        %v4524 = vsel %vm2278, %v4519, %v4523
        %4525 = vrot.lane.b32.xlu0 %v4426, 64
        %v4526 = vpop.permute.xlu0 %4525
        %4527 = vrot.lane.b32.xlu0 %v4440, 64
        %v4528 = vpop.permute.xlu0 %4527
        %4529 = vrot.lane.b32.xlu0 %v4454, 64
        %v4530 = vpop.permute.xlu0 %4529
        %4531 = vrot.lane.b32.xlu0 %v4468, 64
        %v4532 = vpop.permute.xlu0 %4531
        %4533 = vrot.lane.b32.xlu0 %v4482, 64
        %v4534 = vpop.permute.xlu0 %4533
        %4535 = vrot.lane.b32.xlu0 %v4496, 64
        %v4536 = vpop.permute.xlu0 %4535
        %4537 = vrot.lane.b32.xlu0 %v4510, 64
        %v4538 = vpop.permute.xlu0 %4537
        %4539 = vrot.lane.b32.xlu0 %v4524, 64
        %v4540 = vpop.permute.xlu0 %4539
        %4549 = vst.msk [vmem:[#allocation2] sm:$0xf] %vm658, %v4526
        %4550 = vst.msk [vmem:[#allocation2 + $0x14] sm:$0xf] %vm658, %v4528
        %4551 = vst.msk [vmem:[#allocation2 + $0x28] sm:$0xf] %vm658, %v4530
        %4552 = vst.msk [vmem:[#allocation2 + $0x3c] sm:$0xf] %vm658, %v4532
        %4553 = vst.msk [vmem:[#allocation2 + $0x50] sm:$0xf] %vm658, %v4534
        %4554 = vst.msk [vmem:[#allocation2 + $0x64] sm:$0xf] %vm658, %v4536
        %4555 = vst.msk [vmem:[#allocation2 + $0x78] sm:$0xf] %vm658, %v4538
        %4556 = vst.msk [vmem:[#allocation2 + $0x8c] sm:$0xf] %vm658, %v4540
        %v4557 = vld [vmem:[#allocation4] sm:$0xe]
        %v4558 = vld [vmem:[#allocation4 + $0x4] sm:$0x1]
        %v4559 = vld [vmem:[#allocation4 + $0x8] sm:$0xe]
        %v4560 = vld [vmem:[#allocation4 + $0xc] sm:$0x1]
        %v4561 = vld [vmem:[#allocation4 + $0x10] sm:$0xe]
        %v4562 = vld [vmem:[#allocation4 + $0x14] sm:$0x1]
        %v4563 = vld [vmem:[#allocation4 + $0x18] sm:$0xe]
        %v4564 = vld [vmem:[#allocation4 + $0x1c] sm:$0x1]
        %v4565 = vld [vmem:[#allocation4 + $0x20] sm:$0xe]
        %v4566 = vld [vmem:[#allocation4 + $0x24] sm:$0x1]
        %v4567 = vld [vmem:[#allocation4 + $0x28] sm:$0xe]
        %v4568 = vld [vmem:[#allocation4 + $0x2c] sm:$0x1]
        %v4569 = vld [vmem:[#allocation4 + $0x30] sm:$0xe]
        %v4570 = vld [vmem:[#allocation4 + $0x34] sm:$0x1]
        %v4571 = vld [vmem:[#allocation4 + $0x38] sm:$0xe]
        %v4572 = vld [vmem:[#allocation4 + $0x3c] sm:$0x1]
        %v4589 = vrot.slane %v4557, 5
        %v4590 = vrot.slane %v4589, 4
        %v4591 = vrot.slane %v4558, 5
        %v4592 = vsel %vm2501, %v4590, %v4591
        %v4593 = vrot.slane %v4559, 5
        %v4594 = vrot.slane %v4593, 4
        %v4595 = vrot.slane %v4560, 5
        %v4596 = vsel %vm2501, %v4594, %v4595
        %v4597 = vrot.slane %v4561, 5
        %v4598 = vrot.slane %v4597, 4
        %v4599 = vrot.slane %v4562, 5
        %v4600 = vsel %vm2501, %v4598, %v4599
        %v4601 = vrot.slane %v4563, 5
        %v4602 = vrot.slane %v4601, 4
        %v4603 = vrot.slane %v4564, 5
        %v4604 = vsel %vm2501, %v4602, %v4603
        %v4605 = vrot.slane %v4565, 5
        %v4606 = vrot.slane %v4605, 4
        %v4607 = vrot.slane %v4566, 5
        %v4608 = vsel %vm2501, %v4606, %v4607
        %v4609 = vrot.slane %v4567, 5
        %v4610 = vrot.slane %v4609, 4
        %v4611 = vrot.slane %v4568, 5
        %v4612 = vsel %vm2501, %v4610, %v4611
        %v4613 = vrot.slane %v4569, 5
        %v4614 = vrot.slane %v4613, 4
        %v4615 = vrot.slane %v4570, 5
        %v4616 = vsel %vm2501, %v4614, %v4615
        %v4617 = vrot.slane %v4571, 5
        %v4618 = vrot.slane %v4617, 4
        %v4619 = vrot.slane %v4572, 5
        %v4620 = vsel %vm2501, %v4618, %v4619
        %4629 = vst.msk [vmem:[#allocation2 + $0x4] sm:$0xf] %vm549, %v4592
        %4630 = vst.msk [vmem:[#allocation2 + $0x18] sm:$0xf] %vm549, %v4596
        %4631 = vst.msk [vmem:[#allocation2 + $0x2c] sm:$0xf] %vm549, %v4600
        %4632 = vst.msk [vmem:[#allocation2 + $0x40] sm:$0xf] %vm549, %v4604
        %4633 = vst.msk [vmem:[#allocation2 + $0x54] sm:$0xf] %vm549, %v4608
        %4634 = vst.msk [vmem:[#allocation2 + $0x68] sm:$0xf] %vm549, %v4612
        %4635 = vst.msk [vmem:[#allocation2 + $0x7c] sm:$0xf] %vm549, %v4616
        %4636 = vst.msk [vmem:[#allocation2 + $0x90] sm:$0xf] %vm549, %v4620
        %s4637 = scalar_lea.vmem [#allocation4], 8
        %v4638 = vld [vmem:[%s4637] sm:$0xf]
        %v4639 = vld [vmem:[%s4637 + $0x8] sm:$0xf]
        %v4640 = vld [vmem:[%s4637 + $0x10] sm:$0xf]
        %v4641 = vld [vmem:[%s4637 + $0x18] sm:$0xf]
        %v4642 = vld [vmem:[%s4637 + $0x20] sm:$0xf]
        %v4643 = vld [vmem:[%s4637 + $0x28] sm:$0xf]
        %v4644 = vld [vmem:[%s4637 + $0x30] sm:$0xf]
        %v4645 = vld [vmem:[%s4637 + $0x38] sm:$0xf]
        %4654 = vrot.lane.b32.xlu0 %v4638, 64
        %v4655 = vpop.permute.xlu0 %4654
        %4656 = vrot.lane.b32.xlu0 %v4639, 64
        %v4657 = vpop.permute.xlu0 %4656
        %4658 = vrot.lane.b32.xlu0 %v4640, 64
        %v4659 = vpop.permute.xlu0 %4658
        %4660 = vrot.lane.b32.xlu0 %v4641, 64
        %v4661 = vpop.permute.xlu0 %4660
        %4662 = vrot.lane.b32.xlu0 %v4642, 64
        %v4663 = vpop.permute.xlu0 %4662
        %4664 = vrot.lane.b32.xlu0 %v4643, 64
        %v4665 = vpop.permute.xlu0 %4664
        %4666 = vrot.lane.b32.xlu0 %v4644, 64
        %v4667 = vpop.permute.xlu0 %4666
        %4668 = vrot.lane.b32.xlu0 %v4645, 64
        %v4669 = vpop.permute.xlu0 %4668
        %4678 = vst.msk [vmem:[#allocation2 + $0x4] sm:$0xf] %vm658, %v4655
        %4679 = vst.msk [vmem:[#allocation2 + $0x18] sm:$0xf] %vm658, %v4657
        %4680 = vst.msk [vmem:[#allocation2 + $0x2c] sm:$0xf] %vm658, %v4659
        %4681 = vst.msk [vmem:[#allocation2 + $0x40] sm:$0xf] %vm658, %v4661
        %4682 = vst.msk [vmem:[#allocation2 + $0x54] sm:$0xf] %vm658, %v4663
        %4683 = vst.msk [vmem:[#allocation2 + $0x68] sm:$0xf] %vm658, %v4665
        %4684 = vst.msk [vmem:[#allocation2 + $0x7c] sm:$0xf] %vm658, %v4667
        %4685 = vst.msk [vmem:[#allocation2 + $0x90] sm:$0xf] %vm658, %v4669
        %v4686 = vld [vmem:[%s4637] sm:$0xf]
        %v4687 = vld [vmem:[%s4637 + $0x4] sm:$0x1]
        %v4688 = vld [vmem:[%s4637 + $0x8] sm:$0xf]
        %v4689 = vld [vmem:[%s4637 + $0xc] sm:$0x1]
        %v4690 = vld [vmem:[%s4637 + $0x10] sm:$0xf]
        %v4691 = vld [vmem:[%s4637 + $0x14] sm:$0x1]
        %v4692 = vld [vmem:[%s4637 + $0x18] sm:$0xf]
        %v4693 = vld [vmem:[%s4637 + $0x1c] sm:$0x1]
        %v4694 = vld [vmem:[%s4637 + $0x20] sm:$0xf]
        %v4695 = vld [vmem:[%s4637 + $0x24] sm:$0x1]
        %v4696 = vld [vmem:[%s4637 + $0x28] sm:$0xf]
        %v4697 = vld [vmem:[%s4637 + $0x2c] sm:$0x1]
        %v4698 = vld [vmem:[%s4637 + $0x30] sm:$0xf]
        %v4699 = vld [vmem:[%s4637 + $0x34] sm:$0x1]
        %v4700 = vld [vmem:[%s4637 + $0x38] sm:$0xf]
        %v4701 = vld [vmem:[%s4637 + $0x3c] sm:$0x1]
        %v4703 = vshrl.u32 %v4686, 16
        %v4705 = vrot.slane %v4703, 4
        %v4706 = vshll.u32 %v4686, 16
        %v4708 = vrot.slane %v4706, 5
        %v4709 = vor.u32 %v4705, %v4708
        %v4710 = vrot.slane %v4709, 4
        %v4712 = vshll.u32 %v4687, 16
        %v4714 = vrot.slane %v4712, 5
        %v4715 = vsel %vm2278, %v4710, %v4714
        %v4717 = vshrl.u32 %v4688, 16
        %v4719 = vrot.slane %v4717, 4
        %v4720 = vshll.u32 %v4688, 16
        %v4722 = vrot.slane %v4720, 5
        %v4723 = vor.u32 %v4719, %v4722
        %v4724 = vrot.slane %v4723, 4
        %v4726 = vshll.u32 %v4689, 16
        %v4728 = vrot.slane %v4726, 5
        %v4729 = vsel %vm2278, %v4724, %v4728
        %v4731 = vshrl.u32 %v4690, 16
        %v4733 = vrot.slane %v4731, 4
        %v4734 = vshll.u32 %v4690, 16
        %v4736 = vrot.slane %v4734, 5
        %v4737 = vor.u32 %v4733, %v4736
        %v4738 = vrot.slane %v4737, 4
        %v4740 = vshll.u32 %v4691, 16
        %v4742 = vrot.slane %v4740, 5
        %v4743 = vsel %vm2278, %v4738, %v4742
        %v4745 = vshrl.u32 %v4692, 16
        %v4747 = vrot.slane %v4745, 4
        %v4748 = vshll.u32 %v4692, 16
        %v4750 = vrot.slane %v4748, 5
        %v4751 = vor.u32 %v4747, %v4750
        %v4752 = vrot.slane %v4751, 4
        %v4754 = vshll.u32 %v4693, 16
        %v4756 = vrot.slane %v4754, 5
        %v4757 = vsel %vm2278, %v4752, %v4756
        %v4759 = vshrl.u32 %v4694, 16
        %v4761 = vrot.slane %v4759, 4
        %v4762 = vshll.u32 %v4694, 16
        %v4764 = vrot.slane %v4762, 5
        %v4765 = vor.u32 %v4761, %v4764
        %v4766 = vrot.slane %v4765, 4
        %v4768 = vshll.u32 %v4695, 16
        %v4770 = vrot.slane %v4768, 5
        %v4771 = vsel %vm2278, %v4766, %v4770
        %v4773 = vshrl.u32 %v4696, 16
        %v4775 = vrot.slane %v4773, 4
        %v4776 = vshll.u32 %v4696, 16
        %v4778 = vrot.slane %v4776, 5
        %v4779 = vor.u32 %v4775, %v4778
        %v4780 = vrot.slane %v4779, 4
        %v4782 = vshll.u32 %v4697, 16
        %v4784 = vrot.slane %v4782, 5
        %v4785 = vsel %vm2278, %v4780, %v4784
        %v4787 = vshrl.u32 %v4698, 16
        %v4789 = vrot.slane %v4787, 4
        %v4790 = vshll.u32 %v4698, 16
        %v4792 = vrot.slane %v4790, 5
        %v4793 = vor.u32 %v4789, %v4792
        %v4794 = vrot.slane %v4793, 4
        %v4796 = vshll.u32 %v4699, 16
        %v4798 = vrot.slane %v4796, 5
        %v4799 = vsel %vm2278, %v4794, %v4798
        %v4801 = vshrl.u32 %v4700, 16
        %v4803 = vrot.slane %v4801, 4
        %v4804 = vshll.u32 %v4700, 16
        %v4806 = vrot.slane %v4804, 5
        %v4807 = vor.u32 %v4803, %v4806
        %v4808 = vrot.slane %v4807, 4
        %v4810 = vshll.u32 %v4701, 16
        %v4812 = vrot.slane %v4810, 5
        %v4813 = vsel %vm2278, %v4808, %v4812
        %4822 = vst.msk [vmem:[#allocation2 + $0x8] sm:$0xf] %vm549, %v4715
        %4823 = vst.msk [vmem:[#allocation2 + $0x1c] sm:$0xf] %vm549, %v4729
        %4824 = vst.msk [vmem:[#allocation2 + $0x30] sm:$0xf] %vm549, %v4743
        %4825 = vst.msk [vmem:[#allocation2 + $0x44] sm:$0xf] %vm549, %v4757
        %4826 = vst.msk [vmem:[#allocation2 + $0x58] sm:$0xf] %vm549, %v4771
        %4827 = vst.msk [vmem:[#allocation2 + $0x6c] sm:$0xf] %vm549, %v4785
        %4828 = vst.msk [vmem:[#allocation2 + $0x80] sm:$0xf] %vm549, %v4799
        %4829 = vst.msk [vmem:[#allocation2 + $0x94] sm:$0xf] %vm549, %v4813
        %v4830 = vld [vmem:[%s4637] sm:$0xe]
        %v4831 = vld [vmem:[%s4637 + $0x4] sm:$0x1]
        %v4832 = vld [vmem:[%s4637 + $0x8] sm:$0xe]
        %v4833 = vld [vmem:[%s4637 + $0xc] sm:$0x1]
        %v4834 = vld [vmem:[%s4637 + $0x10] sm:$0xe]
        %v4835 = vld [vmem:[%s4637 + $0x14] sm:$0x1]
        %v4836 = vld [vmem:[%s4637 + $0x18] sm:$0xe]
        %v4837 = vld [vmem:[%s4637 + $0x1c] sm:$0x1]
        %v4838 = vld [vmem:[%s4637 + $0x20] sm:$0xe]
        %v4839 = vld [vmem:[%s4637 + $0x24] sm:$0x1]
        %v4840 = vld [vmem:[%s4637 + $0x28] sm:$0xe]
        %v4841 = vld [vmem:[%s4637 + $0x2c] sm:$0x1]
        %v4842 = vld [vmem:[%s4637 + $0x30] sm:$0xe]
        %v4843 = vld [vmem:[%s4637 + $0x34] sm:$0x1]
        %v4844 = vld [vmem:[%s4637 + $0x38] sm:$0xe]
        %v4845 = vld [vmem:[%s4637 + $0x3c] sm:$0x1]
        %v4862 = vrot.slane %v4830, 5
        %v4863 = vrot.slane %v4862, 4
        %v4864 = vrot.slane %v4831, 5
        %v4865 = vsel %vm2501, %v4863, %v4864
        %v4866 = vrot.slane %v4832, 5
        %v4867 = vrot.slane %v4866, 4
        %v4868 = vrot.slane %v4833, 5
        %v4869 = vsel %vm2501, %v4867, %v4868
        %v4870 = vrot.slane %v4834, 5
        %v4871 = vrot.slane %v4870, 4
        %v4872 = vrot.slane %v4835, 5
        %v4873 = vsel %vm2501, %v4871, %v4872
        %v4874 = vrot.slane %v4836, 5
        %v4875 = vrot.slane %v4874, 4
        %v4876 = vrot.slane %v4837, 5
        %v4877 = vsel %vm2501, %v4875, %v4876
        %v4878 = vrot.slane %v4838, 5
        %v4879 = vrot.slane %v4878, 4
        %v4880 = vrot.slane %v4839, 5
        %v4881 = vsel %vm2501, %v4879, %v4880
        %v4882 = vrot.slane %v4840, 5
        %v4883 = vrot.slane %v4882, 4
        %v4884 = vrot.slane %v4841, 5
        %v4885 = vsel %vm2501, %v4883, %v4884
        %v4886 = vrot.slane %v4842, 5
        %v4887 = vrot.slane %v4886, 4
        %v4888 = vrot.slane %v4843, 5
        %v4889 = vsel %vm2501, %v4887, %v4888
        %v4890 = vrot.slane %v4844, 5
        %v4891 = vrot.slane %v4890, 4
        %v4892 = vrot.slane %v4845, 5
        %v4893 = vsel %vm2501, %v4891, %v4892
        %4894 = vrot.lane.b32.xlu0 %v4865, 64
        %v4895 = vpop.permute.xlu0 %4894
        %4896 = vrot.lane.b32.xlu0 %v4869, 64
        %v4897 = vpop.permute.xlu0 %4896
        %4898 = vrot.lane.b32.xlu0 %v4873, 64
        %v4899 = vpop.permute.xlu0 %4898
        %4900 = vrot.lane.b32.xlu0 %v4877, 64
        %v4901 = vpop.permute.xlu0 %4900
        %4902 = vrot.lane.b32.xlu0 %v4881, 64
        %v4903 = vpop.permute.xlu0 %4902
        %4904 = vrot.lane.b32.xlu0 %v4885, 64
        %v4905 = vpop.permute.xlu0 %4904
        %4906 = vrot.lane.b32.xlu0 %v4889, 64
        %v4907 = vpop.permute.xlu0 %4906
        %4908 = vrot.lane.b32.xlu0 %v4893, 64
        %v4909 = vpop.permute.xlu0 %4908
        %4918 = vst.msk [vmem:[#allocation2 + $0x8] sm:$0xf] %vm658, %v4895
        %4919 = vst.msk [vmem:[#allocation2 + $0x1c] sm:$0xf] %vm658, %v4897
        %4920 = vst.msk [vmem:[#allocation2 + $0x30] sm:$0xf] %vm658, %v4899
        %4921 = vst.msk [vmem:[#allocation2 + $0x44] sm:$0xf] %vm658, %v4901
        %4922 = vst.msk [vmem:[#allocation2 + $0x58] sm:$0xf] %vm658, %v4903
        %4923 = vst.msk [vmem:[#allocation2 + $0x6c] sm:$0xf] %vm658, %v4905
        %4924 = vst.msk [vmem:[#allocation2 + $0x80] sm:$0xf] %vm658, %v4907
        %4925 = vst.msk [vmem:[#allocation2 + $0x94] sm:$0xf] %vm658, %v4909
        %s4926 = scalar_lea.vmem [#allocation4], 16
        %v4927 = vld [vmem:[%s4926] sm:$0xf]
        %v4928 = vld [vmem:[%s4926 + $0x8] sm:$0xf]
        %v4929 = vld [vmem:[%s4926 + $0x10] sm:$0xf]
        %v4930 = vld [vmem:[%s4926 + $0x18] sm:$0xf]
        %v4931 = vld [vmem:[%s4926 + $0x20] sm:$0xf]
        %v4932 = vld [vmem:[%s4926 + $0x28] sm:$0xf]
        %v4933 = vld [vmem:[%s4926 + $0x30] sm:$0xf]
        %v4934 = vld [vmem:[%s4926 + $0x38] sm:$0xf]
        %4935 = vst.msk [vmem:[#allocation2 + $0xc] sm:$0xf] %vm549, %v4927
        %4936 = vst.msk [vmem:[#allocation2 + $0x20] sm:$0xf] %vm549, %v4928
        %4937 = vst.msk [vmem:[#allocation2 + $0x34] sm:$0xf] %vm549, %v4929
        %4938 = vst.msk [vmem:[#allocation2 + $0x48] sm:$0xf] %vm549, %v4930
        %4939 = vst.msk [vmem:[#allocation2 + $0x5c] sm:$0xf] %vm549, %v4931
        %4940 = vst.msk [vmem:[#allocation2 + $0x70] sm:$0xf] %vm549, %v4932
        %4941 = vst.msk [vmem:[#allocation2 + $0x84] sm:$0xf] %vm549, %v4933
        %4942 = vst.msk [vmem:[#allocation2 + $0x98] sm:$0xf] %vm549, %v4934
        %v4943 = vld [vmem:[%s4926] sm:$0xf]
        %v4944 = vld [vmem:[%s4926 + $0x4] sm:$0x1]
        %v4945 = vld [vmem:[%s4926 + $0x8] sm:$0xf]
        %v4946 = vld [vmem:[%s4926 + $0xc] sm:$0x1]
        %v4947 = vld [vmem:[%s4926 + $0x10] sm:$0xf]
        %v4948 = vld [vmem:[%s4926 + $0x14] sm:$0x1]
        %v4949 = vld [vmem:[%s4926 + $0x18] sm:$0xf]
        %v4950 = vld [vmem:[%s4926 + $0x1c] sm:$0x1]
        %v4951 = vld [vmem:[%s4926 + $0x20] sm:$0xf]
        %v4952 = vld [vmem:[%s4926 + $0x24] sm:$0x1]
        %v4953 = vld [vmem:[%s4926 + $0x28] sm:$0xf]
        %v4954 = vld [vmem:[%s4926 + $0x2c] sm:$0x1]
        %v4955 = vld [vmem:[%s4926 + $0x30] sm:$0xf]
        %v4956 = vld [vmem:[%s4926 + $0x34] sm:$0x1]
        %v4957 = vld [vmem:[%s4926 + $0x38] sm:$0xf]
        %v4958 = vld [vmem:[%s4926 + $0x3c] sm:$0x1]
        %v4960 = vshrl.u32 %v4943, 16
        %v4962 = vrot.slane %v4960, 4
        %v4963 = vshll.u32 %v4943, 16
        %v4965 = vrot.slane %v4963, 5
        %v4966 = vor.u32 %v4962, %v4965
        %v4967 = vrot.slane %v4966, 4
        %v4969 = vshll.u32 %v4944, 16
        %v4971 = vrot.slane %v4969, 5
        %v4972 = vsel %vm2278, %v4967, %v4971
        %v4974 = vshrl.u32 %v4945, 16
        %v4976 = vrot.slane %v4974, 4
        %v4977 = vshll.u32 %v4945, 16
        %v4979 = vrot.slane %v4977, 5
        %v4980 = vor.u32 %v4976, %v4979
        %v4981 = vrot.slane %v4980, 4
        %v4983 = vshll.u32 %v4946, 16
        %v4985 = vrot.slane %v4983, 5
        %v4986 = vsel %vm2278, %v4981, %v4985
        %v4988 = vshrl.u32 %v4947, 16
        %v4990 = vrot.slane %v4988, 4
        %v4991 = vshll.u32 %v4947, 16
        %v4993 = vrot.slane %v4991, 5
        %v4994 = vor.u32 %v4990, %v4993
        %v4995 = vrot.slane %v4994, 4
        %v4997 = vshll.u32 %v4948, 16
        %v4999 = vrot.slane %v4997, 5
        %v5000 = vsel %vm2278, %v4995, %v4999
        %v5002 = vshrl.u32 %v4949, 16
        %v5004 = vrot.slane %v5002, 4
        %v5005 = vshll.u32 %v4949, 16
        %v5007 = vrot.slane %v5005, 5
        %v5008 = vor.u32 %v5004, %v5007
        %v5009 = vrot.slane %v5008, 4
        %v5011 = vshll.u32 %v4950, 16
        %v5013 = vrot.slane %v5011, 5
        %v5014 = vsel %vm2278, %v5009, %v5013
        %v5016 = vshrl.u32 %v4951, 16
        %v5018 = vrot.slane %v5016, 4
        %v5019 = vshll.u32 %v4951, 16
        %v5021 = vrot.slane %v5019, 5
        %v5022 = vor.u32 %v5018, %v5021
        %v5023 = vrot.slane %v5022, 4
        %v5025 = vshll.u32 %v4952, 16
        %v5027 = vrot.slane %v5025, 5
        %v5028 = vsel %vm2278, %v5023, %v5027
        %v5030 = vshrl.u32 %v4953, 16
        %v5032 = vrot.slane %v5030, 4
        %v5033 = vshll.u32 %v4953, 16
        %v5035 = vrot.slane %v5033, 5
        %v5036 = vor.u32 %v5032, %v5035
        %v5037 = vrot.slane %v5036, 4
        %v5039 = vshll.u32 %v4954, 16
        %v5041 = vrot.slane %v5039, 5
        %v5042 = vsel %vm2278, %v5037, %v5041
        %v5044 = vshrl.u32 %v4955, 16
        %v5046 = vrot.slane %v5044, 4
        %v5047 = vshll.u32 %v4955, 16
        %v5049 = vrot.slane %v5047, 5
        %v5050 = vor.u32 %v5046, %v5049
        %v5051 = vrot.slane %v5050, 4
        %v5053 = vshll.u32 %v4956, 16
        %v5055 = vrot.slane %v5053, 5
        %v5056 = vsel %vm2278, %v5051, %v5055
        %v5058 = vshrl.u32 %v4957, 16
        %v5060 = vrot.slane %v5058, 4
        %v5061 = vshll.u32 %v4957, 16
        %v5063 = vrot.slane %v5061, 5
        %v5064 = vor.u32 %v5060, %v5063
        %v5065 = vrot.slane %v5064, 4
        %v5067 = vshll.u32 %v4958, 16
        %v5069 = vrot.slane %v5067, 5
        %v5070 = vsel %vm2278, %v5065, %v5069
        %5071 = vrot.lane.b32.xlu0 %v4972, 64
        %v5072 = vpop.permute.xlu0 %5071
        %5073 = vrot.lane.b32.xlu0 %v4986, 64
        %v5074 = vpop.permute.xlu0 %5073
        %5075 = vrot.lane.b32.xlu0 %v5000, 64
        %v5076 = vpop.permute.xlu0 %5075
        %5077 = vrot.lane.b32.xlu0 %v5014, 64
        %v5078 = vpop.permute.xlu0 %5077
        %5079 = vrot.lane.b32.xlu0 %v5028, 64
        %v5080 = vpop.permute.xlu0 %5079
        %5081 = vrot.lane.b32.xlu0 %v5042, 64
        %v5082 = vpop.permute.xlu0 %5081
        %5083 = vrot.lane.b32.xlu0 %v5056, 64
        %v5084 = vpop.permute.xlu0 %5083
        %5085 = vrot.lane.b32.xlu0 %v5070, 64
        %v5086 = vpop.permute.xlu0 %5085
        %5095 = vst.msk [vmem:[#allocation2 + $0xc] sm:$0xf] %vm658, %v5072
        %5096 = vst.msk [vmem:[#allocation2 + $0x20] sm:$0xf] %vm658, %v5074
        %5097 = vst.msk [vmem:[#allocation2 + $0x34] sm:$0xf] %vm658, %v5076
        %5098 = vst.msk [vmem:[#allocation2 + $0x48] sm:$0xf] %vm658, %v5078
        %5099 = vst.msk [vmem:[#allocation2 + $0x5c] sm:$0xf] %vm658, %v5080
        %5100 = vst.msk [vmem:[#allocation2 + $0x70] sm:$0xf] %vm658, %v5082
        %5101 = vst.msk [vmem:[#allocation2 + $0x84] sm:$0xf] %vm658, %v5084
        %5102 = vst.msk [vmem:[#allocation2 + $0x98] sm:$0xf] %vm658, %v5086
        %v5103 = vld [vmem:[%s4926] sm:$0xe]
        %v5104 = vld [vmem:[%s4926 + $0x4] sm:$0x1]
        %v5105 = vld [vmem:[%s4926 + $0x8] sm:$0xe]
        %v5106 = vld [vmem:[%s4926 + $0xc] sm:$0x1]
        %v5107 = vld [vmem:[%s4926 + $0x10] sm:$0xe]
        %v5108 = vld [vmem:[%s4926 + $0x14] sm:$0x1]
        %v5109 = vld [vmem:[%s4926 + $0x18] sm:$0xe]
        %v5110 = vld [vmem:[%s4926 + $0x1c] sm:$0x1]
        %v5111 = vld [vmem:[%s4926 + $0x20] sm:$0xe]
        %v5112 = vld [vmem:[%s4926 + $0x24] sm:$0x1]
        %v5113 = vld [vmem:[%s4926 + $0x28] sm:$0xe]
        %v5114 = vld [vmem:[%s4926 + $0x2c] sm:$0x1]
        %v5115 = vld [vmem:[%s4926 + $0x30] sm:$0xe]
        %v5116 = vld [vmem:[%s4926 + $0x34] sm:$0x1]
        %v5117 = vld [vmem:[%s4926 + $0x38] sm:$0xe]
        %v5118 = vld [vmem:[%s4926 + $0x3c] sm:$0x1]
        %v5135 = vrot.slane %v5103, 5
        %v5136 = vrot.slane %v5135, 4
        %v5137 = vrot.slane %v5104, 5
        %v5138 = vsel %vm2501, %v5136, %v5137
        %v5139 = vrot.slane %v5105, 5
        %v5140 = vrot.slane %v5139, 4
        %v5141 = vrot.slane %v5106, 5
        %v5142 = vsel %vm2501, %v5140, %v5141
        %v5143 = vrot.slane %v5107, 5
        %v5144 = vrot.slane %v5143, 4
        %v5145 = vrot.slane %v5108, 5
        %v5146 = vsel %vm2501, %v5144, %v5145
        %v5147 = vrot.slane %v5109, 5
        %v5148 = vrot.slane %v5147, 4
        %v5149 = vrot.slane %v5110, 5
        %v5150 = vsel %vm2501, %v5148, %v5149
        %v5151 = vrot.slane %v5111, 5
        %v5152 = vrot.slane %v5151, 4
        %v5153 = vrot.slane %v5112, 5
        %v5154 = vsel %vm2501, %v5152, %v5153
        %v5155 = vrot.slane %v5113, 5
        %v5156 = vrot.slane %v5155, 4
        %v5157 = vrot.slane %v5114, 5
        %v5158 = vsel %vm2501, %v5156, %v5157
        %v5159 = vrot.slane %v5115, 5
        %v5160 = vrot.slane %v5159, 4
        %v5161 = vrot.slane %v5116, 5
        %v5162 = vsel %vm2501, %v5160, %v5161
        %v5163 = vrot.slane %v5117, 5
        %v5164 = vrot.slane %v5163, 4
        %v5165 = vrot.slane %v5118, 5
        %v5166 = vsel %vm2501, %v5164, %v5165
        %5175 = vst.msk [vmem:[#allocation2 + $0x10] sm:$0xf] %vm549, %v5138
        %5176 = vst.msk [vmem:[#allocation2 + $0x24] sm:$0xf] %vm549, %v5142
        %5177 = vst.msk [vmem:[#allocation2 + $0x38] sm:$0xf] %vm549, %v5146
        %5178 = vst.msk [vmem:[#allocation2 + $0x4c] sm:$0xf] %vm549, %v5150
        %5179 = vst.msk [vmem:[#allocation2 + $0x60] sm:$0xf] %vm549, %v5154
        %5180 = vst.msk [vmem:[#allocation2 + $0x74] sm:$0xf] %vm549, %v5158
        %5181 = vst.msk [vmem:[#allocation2 + $0x88] sm:$0xf] %vm549, %v5162
        %5182 = vst.msk [vmem:[#allocation2 + $0x9c] sm:$0xf] %vm549, %v5166
        %v5183 = vld [vmem:[#allocation2] sm:$0xff]
        %v5184 = vld [vmem:[#allocation2 + $0x8] sm:$0xff]
        %v5185 = vld [vmem:[#allocation2 + $0x10] sm:$0xf]
        %v5186 = vld [vmem:[#allocation2 + $0x14] sm:$0xff]
        %v5187 = vld [vmem:[#allocation2 + $0x1c] sm:$0xff]
        %v5188 = vld [vmem:[#allocation2 + $0x24] sm:$0xf]
        %v5189 = vld [vmem:[#allocation2 + $0x28] sm:$0xff]
        %v5190 = vld [vmem:[#allocation2 + $0x30] sm:$0xff]
        %v5191 = vld [vmem:[#allocation2 + $0x38] sm:$0xf]
        %v5192 = vld [vmem:[#allocation2 + $0x3c] sm:$0xff]
        %v5193 = vld [vmem:[#allocation2 + $0x44] sm:$0xff]
        %v5194 = vld [vmem:[#allocation2 + $0x4c] sm:$0xf]
        %v5195 = vld [vmem:[#allocation2 + $0x50] sm:$0xff]
        %v5196 = vld [vmem:[#allocation2 + $0x58] sm:$0xff]
        %v5197 = vld [vmem:[#allocation2 + $0x60] sm:$0xf]
        %v5198 = vld [vmem:[#allocation2 + $0x64] sm:$0xff]
        %v5199 = vld [vmem:[#allocation2 + $0x6c] sm:$0xff]
        %v5200 = vld [vmem:[#allocation2 + $0x74] sm:$0xf]
        %v5201 = vld [vmem:[#allocation2 + $0x78] sm:$0xff]
        %v5202 = vld [vmem:[#allocation2 + $0x80] sm:$0xff]
        %v5203 = vld [vmem:[#allocation2 + $0x88] sm:$0xf]
        %v5204 = vld [vmem:[#allocation2 + $0x8c] sm:$0xff]
        %v5205 = vld [vmem:[#allocation2 + $0x94] sm:$0xff]
        %v5206 = vld [vmem:[#allocation2 + $0x9c] sm:$0xf]
        %v5207 = vld [vmem:[%s6] sm:$0xff]
        %v5208 = vld [vmem:[%s6 + $0x8] sm:$0xff]
        %v5209 = vld [vmem:[%s6 + $0x10] sm:$0xff]
        %v5210 = vld [vmem:[%s6 + $0x18] sm:$0xff]
        %v5211 = vld [vmem:[%s6 + $0x20] sm:$0xff]
        %v5212 = vld [vmem:[%s6 + $0x28] sm:$0xff]
        %v5213 = vld [vmem:[%s6 + $0x30] sm:$0xff]
        %v5214 = vld [vmem:[%s6 + $0x38] sm:$0xff]
        %v5215 = vld [vmem:[%s6 + $0x40] sm:$0xff]
        %v5216 = vld [vmem:[%s6 + $0x48] sm:$0xff]
        %v5217 = vld [vmem:[%s6 + $0x50] sm:$0xff]
        %v5218 = vld [vmem:[%s6 + $0x58] sm:$0xff]
        %v5219 = vld [vmem:[%s6 + $0x60] sm:$0xff]
        %v5220 = vld [vmem:[%s6 + $0x68] sm:$0xff]
        %v5221 = vld [vmem:[%s6 + $0x70] sm:$0xff]
        %v5222 = vld [vmem:[%s6 + $0x78] sm:$0xff]
        %v5223 = vld [vmem:[%s6 + $0x80] sm:$0xff]
        %v5224 = vld [vmem:[%s6 + $0x88] sm:$0xff]
        %v5225 = vld [vmem:[%s6 + $0x90] sm:$0xff]
        %v5226 = vld [vmem:[%s6 + $0x98] sm:$0xff]
        %v5227 = vld [vmem:[%s6 + $0xa0] sm:$0xff]
        %v5228 = vld [vmem:[%s6 + $0xa8] sm:$0xff]
        %v5229 = vld [vmem:[%s6 + $0xb0] sm:$0xff]
        %v5230 = vld [vmem:[%s6 + $0xb8] sm:$0xff]
        %v5231 = vld [vmem:[%s6 + $0xc0] sm:$0xff]
        %v5232 = vld [vmem:[%s6 + $0xc8] sm:$0xff]
        %v5233 = vld [vmem:[%s6 + $0xd0] sm:$0xff]
        %v5234 = vld [vmem:[%s6 + $0xd8] sm:$0xff]
        %v5235 = vld [vmem:[%s6 + $0xe0] sm:$0xff]
        %v5236 = vld [vmem:[%s6 + $0xe8] sm:$0xff]
        %v5237 = vld [vmem:[%s6 + $0xf0] sm:$0xff]
        %v5238 = vld [vmem:[%s6 + $0xf8] sm:$0xff]
        %v5239 = vld [vmem:[%s6 + $0x100] sm:$0xff]
        %v5240 = vld [vmem:[%s6 + $0x108] sm:$0xff]
        %v5241 = vld [vmem:[%s6 + $0x110] sm:$0xff]
        %v5242 = vld [vmem:[%s6 + $0x118] sm:$0xff]
        %v5243 = vld [vmem:[%s6 + $0x120] sm:$0xff]
        %v5244 = vld [vmem:[%s6 + $0x128] sm:$0xff]
        %v5245 = vld [vmem:[%s6 + $0x130] sm:$0xff]
        %v5246 = vld [vmem:[%s6 + $0x138] sm:$0xff]
        %v5247 = vld [vmem:[%s6 + $0x140] sm:$0xff]
        %v5248 = vld [vmem:[%s6 + $0x148] sm:$0xff]
        %v5249 = vld [vmem:[%s6 + $0x150] sm:$0xff]
        %v5250 = vld [vmem:[%s6 + $0x158] sm:$0xff]
        %v5251 = vld [vmem:[%s6 + $0x160] sm:$0xff]
        %v5252 = vld [vmem:[%s6 + $0x168] sm:$0xff]
        %v5253 = vld [vmem:[%s6 + $0x170] sm:$0xff]
        %v5254 = vld [vmem:[%s6 + $0x178] sm:$0xff]
        %v5255 = vld [vmem:[%s6 + $0x180] sm:$0xff]
        %v5256 = vld [vmem:[%s6 + $0x188] sm:$0xff]
        %v5257 = vld [vmem:[%s6 + $0x190] sm:$0xff]
        %v5258 = vld [vmem:[%s6 + $0x198] sm:$0xff]
        %v5259 = vld [vmem:[%s6 + $0x1a0] sm:$0xff]
        %v5260 = vld [vmem:[%s6 + $0x1a8] sm:$0xff]
        %v5261 = vld [vmem:[%s6 + $0x1b0] sm:$0xff]
        %v5262 = vld [vmem:[%s6 + $0x1b8] sm:$0xff]
        %v5263 = vld [vmem:[%s6 + $0x1c0] sm:$0xff]
        %v5264 = vld [vmem:[%s6 + $0x1c8] sm:$0xff]
        %v5265 = vld [vmem:[%s6 + $0x1d0] sm:$0xff]
        %v5266 = vld [vmem:[%s6 + $0x1d8] sm:$0xff]
        %v5267 = vld [vmem:[%s6 + $0x1e0] sm:$0xff]
        %v5268 = vld [vmem:[%s6 + $0x1e8] sm:$0xff]
        %v5269 = vld [vmem:[%s6 + $0x1f0] sm:$0xff]
        %v5270 = vld [vmem:[%s6 + $0x1f8] sm:$0xff]
        %v5271 = vld [vmem:[%s6 + $0x200] sm:$0xff]
        %v5272 = vld [vmem:[%s6 + $0x208] sm:$0xff]
        %v5273 = vld [vmem:[%s6 + $0x210] sm:$0xff]
        %v5274 = vld [vmem:[%s6 + $0x218] sm:$0xff]
        %v5275 = vld [vmem:[%s6 + $0x220] sm:$0xff]
        %v5276 = vld [vmem:[%s6 + $0x228] sm:$0xff]
        %v5277 = vld [vmem:[%s6 + $0x230] sm:$0xff]
        %v5278 = vld [vmem:[%s6 + $0x238] sm:$0xff]
        %v5279 = vld [vmem:[%s7] sm:$0x3]
        %v5281 = vlaneseq
        %v5282 = vshrl.u32 %v5281, 7
        %v5283 = vsub.s32 0, %v5282
        %v5284 = vrot.slane %v5279, %v5283
        %v5285 = vlaneseq
        %v5286 = vshrl.u32 %v5285, 7
        %v5287 = vsub.s32 1, %v5286
        %v5288 = vrot.slane %v5279, %v5287
        %v5315 = vunpack.c.l.b16 %v5183
        %v5316 = vunpack.c.h.b16 %v5183
        %v5317 = vunpack.c.l.b16 %v5184
        %v5318 = vunpack.c.h.b16 %v5184
        %v5319 = vunpack.c.l.b16 %v5185
        %v5320 = vunpack.c.l.b16 %v5186
        %v5321 = vunpack.c.h.b16 %v5186
        %v5322 = vunpack.c.l.b16 %v5187
        %v5323 = vunpack.c.h.b16 %v5187
        %v5324 = vunpack.c.l.b16 %v5188
        %v5325 = vunpack.c.l.b16 %v5189
        %v5326 = vunpack.c.h.b16 %v5189
        %v5327 = vunpack.c.l.b16 %v5190
        %v5328 = vunpack.c.h.b16 %v5190
        %v5329 = vunpack.c.l.b16 %v5191
        %v5330 = vunpack.c.l.b16 %v5192
        %v5331 = vunpack.c.h.b16 %v5192
        %v5332 = vunpack.c.l.b16 %v5193
        %v5333 = vunpack.c.h.b16 %v5193
        %v5334 = vunpack.c.l.b16 %v5194
        %v5335 = vunpack.c.l.b16 %v5195
        %v5336 = vunpack.c.h.b16 %v5195
        %v5337 = vunpack.c.l.b16 %v5196
        %v5338 = vunpack.c.h.b16 %v5196
        %v5339 = vunpack.c.l.b16 %v5197
        %v5340 = vunpack.c.l.b16 %v5198
        %v5341 = vunpack.c.h.b16 %v5198
        %v5342 = vunpack.c.l.b16 %v5199
        %v5343 = vunpack.c.h.b16 %v5199
        %v5344 = vunpack.c.l.b16 %v5200
        %v5345 = vunpack.c.l.b16 %v5201
        %v5346 = vunpack.c.h.b16 %v5201
        %v5347 = vunpack.c.l.b16 %v5202
        %v5348 = vunpack.c.h.b16 %v5202
        %v5349 = vunpack.c.l.b16 %v5203
        %v5350 = vunpack.c.l.b16 %v5204
        %v5351 = vunpack.c.h.b16 %v5204
        %v5352 = vunpack.c.l.b16 %v5205
        %v5353 = vunpack.c.h.b16 %v5205
        %v5354 = vunpack.c.l.b16 %v5206
        %v5355 = vpack.c.b16 %v5320, %v5315
        %v5356 = vpack.c.b16 %v5321, %v5316
        %v5357 = vpack.c.b16 %v5322, %v5317
        %v5358 = vpack.c.b16 %v5323, %v5318
        %v5359 = vpack.c.b16 %v5324, %v5319
        %v5360 = vpack.c.b16 %v5330, %v5325
        %v5361 = vpack.c.b16 %v5331, %v5326
        %v5362 = vpack.c.b16 %v5332, %v5327
        %v5363 = vpack.c.b16 %v5333, %v5328
        %v5364 = vpack.c.b16 %v5334, %v5329
        %v5365 = vpack.c.b16 %v5340, %v5335
        %v5366 = vpack.c.b16 %v5341, %v5336
        %v5367 = vpack.c.b16 %v5342, %v5337
        %v5368 = vpack.c.b16 %v5343, %v5338
        %v5369 = vpack.c.b16 %v5344, %v5339
        %v5370 = vpack.c.b16 %v5350, %v5345
        %v5371 = vpack.c.b16 %v5351, %v5346
        %v5372 = vpack.c.b16 %v5352, %v5347
        %v5373 = vpack.c.b16 %v5353, %v5348
        %v5374 = vpack.c.b16 %v5354, %v5349
        %v5463 = vunpack.c.l.b16 %v5207
        %v5464 = vunpack.c.h.b16 %v5207
        %v5465 = vunpack.c.l.b16 %v5208
        %v5466 = vunpack.c.h.b16 %v5208
        %v5467 = vunpack.c.l.b16 %v5209
        %v5468 = vunpack.c.h.b16 %v5209
        %v5469 = vunpack.c.l.b16 %v5210
        %v5470 = vunpack.c.h.b16 %v5210
        %v5471 = vunpack.c.l.b16 %v5211
        %v5472 = vunpack.c.h.b16 %v5211
        %v5473 = vunpack.c.l.b16 %v5212
        %v5474 = vunpack.c.h.b16 %v5212
        %v5475 = vunpack.c.l.b16 %v5213
        %v5476 = vunpack.c.h.b16 %v5213
        %v5477 = vunpack.c.l.b16 %v5214
        %v5478 = vunpack.c.h.b16 %v5214
        %v5479 = vunpack.c.l.b16 %v5215
        %v5480 = vunpack.c.h.b16 %v5215
        %v5481 = vunpack.c.l.b16 %v5216
        %v5482 = vunpack.c.h.b16 %v5216
        %v5483 = vunpack.c.l.b16 %v5217
        %v5484 = vunpack.c.h.b16 %v5217
        %v5485 = vunpack.c.l.b16 %v5218
        %v5486 = vunpack.c.h.b16 %v5218
        %v5487 = vunpack.c.l.b16 %v5219
        %v5488 = vunpack.c.h.b16 %v5219
        %v5489 = vunpack.c.l.b16 %v5220
        %v5490 = vunpack.c.h.b16 %v5220
        %v5491 = vunpack.c.l.b16 %v5221
        %v5492 = vunpack.c.h.b16 %v5221
        %v5493 = vunpack.c.l.b16 %v5222
        %v5494 = vunpack.c.h.b16 %v5222
        %v5495 = vunpack.c.l.b16 %v5223
        %v5496 = vunpack.c.h.b16 %v5223
        %v5497 = vunpack.c.l.b16 %v5224
        %v5498 = vunpack.c.h.b16 %v5224
        %v5499 = vunpack.c.l.b16 %v5225
        %v5500 = vunpack.c.h.b16 %v5225
        %v5501 = vunpack.c.l.b16 %v5226
        %v5502 = vunpack.c.h.b16 %v5226
        %v5503 = vunpack.c.l.b16 %v5227
        %v5504 = vunpack.c.h.b16 %v5227
        %v5505 = vunpack.c.l.b16 %v5228
        %v5506 = vunpack.c.h.b16 %v5228
        %v5507 = vunpack.c.l.b16 %v5229
        %v5508 = vunpack.c.h.b16 %v5229
        %v5509 = vunpack.c.l.b16 %v5230
        %v5510 = vunpack.c.h.b16 %v5230
        %v5511 = vunpack.c.l.b16 %v5231
        %v5512 = vunpack.c.h.b16 %v5231
        %v5513 = vunpack.c.l.b16 %v5232
        %v5514 = vunpack.c.h.b16 %v5232
        %v5515 = vunpack.c.l.b16 %v5233
        %v5516 = vunpack.c.h.b16 %v5233
        %v5517 = vunpack.c.l.b16 %v5234
        %v5518 = vunpack.c.h.b16 %v5234
        %v5519 = vunpack.c.l.b16 %v5235
        %v5520 = vunpack.c.h.b16 %v5235
        %v5521 = vunpack.c.l.b16 %v5236
        %v5522 = vunpack.c.h.b16 %v5236
        %v5523 = vunpack.c.l.b16 %v5237
        %v5524 = vunpack.c.h.b16 %v5237
        %v5525 = vunpack.c.l.b16 %v5238
        %v5526 = vunpack.c.h.b16 %v5238
        %v5527 = vunpack.c.l.b16 %v5239
        %v5528 = vunpack.c.h.b16 %v5239
        %v5529 = vunpack.c.l.b16 %v5240
        %v5530 = vunpack.c.h.b16 %v5240
        %v5531 = vunpack.c.l.b16 %v5241
        %v5532 = vunpack.c.h.b16 %v5241
        %v5533 = vunpack.c.l.b16 %v5242
        %v5534 = vunpack.c.h.b16 %v5242
        %v5535 = vunpack.c.l.b16 %v5243
        %v5536 = vunpack.c.h.b16 %v5243
        %v5537 = vunpack.c.l.b16 %v5244
        %v5538 = vunpack.c.h.b16 %v5244
        %v5539 = vunpack.c.l.b16 %v5245
        %v5540 = vunpack.c.h.b16 %v5245
        %v5541 = vunpack.c.l.b16 %v5246
        %v5542 = vunpack.c.h.b16 %v5246
        %v5543 = vunpack.c.l.b16 %v5247
        %v5544 = vunpack.c.h.b16 %v5247
        %v5545 = vunpack.c.l.b16 %v5248
        %v5546 = vunpack.c.h.b16 %v5248
        %v5547 = vunpack.c.l.b16 %v5249
        %v5548 = vunpack.c.h.b16 %v5249
        %v5549 = vunpack.c.l.b16 %v5250
        %v5550 = vunpack.c.h.b16 %v5250
        %v5551 = vunpack.c.l.b16 %v5251
        %v5552 = vunpack.c.h.b16 %v5251
        %v5553 = vunpack.c.l.b16 %v5252
        %v5554 = vunpack.c.h.b16 %v5252
        %v5555 = vunpack.c.l.b16 %v5253
        %v5556 = vunpack.c.h.b16 %v5253
        %v5557 = vunpack.c.l.b16 %v5254
        %v5558 = vunpack.c.h.b16 %v5254
        %v5559 = vunpack.c.l.b16 %v5255
        %v5560 = vunpack.c.h.b16 %v5255
        %v5561 = vunpack.c.l.b16 %v5256
        %v5562 = vunpack.c.h.b16 %v5256
        %v5563 = vunpack.c.l.b16 %v5257
        %v5564 = vunpack.c.h.b16 %v5257
        %v5565 = vunpack.c.l.b16 %v5258
        %v5566 = vunpack.c.h.b16 %v5258
        %v5567 = vunpack.c.l.b16 %v5259
        %v5568 = vunpack.c.h.b16 %v5259
        %v5569 = vunpack.c.l.b16 %v5260
        %v5570 = vunpack.c.h.b16 %v5260
        %v5571 = vunpack.c.l.b16 %v5261
        %v5572 = vunpack.c.h.b16 %v5261
        %v5573 = vunpack.c.l.b16 %v5262
        %v5574 = vunpack.c.h.b16 %v5262
        %v5575 = vunpack.c.l.b16 %v5263
        %v5576 = vunpack.c.h.b16 %v5263
        %v5577 = vunpack.c.l.b16 %v5264
        %v5578 = vunpack.c.h.b16 %v5264
        %v5579 = vunpack.c.l.b16 %v5265
        %v5580 = vunpack.c.h.b16 %v5265
        %v5581 = vunpack.c.l.b16 %v5266
        %v5582 = vunpack.c.h.b16 %v5266
        %v5583 = vunpack.c.l.b16 %v5267
        %v5584 = vunpack.c.h.b16 %v5267
        %v5585 = vunpack.c.l.b16 %v5268
        %v5586 = vunpack.c.h.b16 %v5268
        %v5587 = vunpack.c.l.b16 %v5269
        %v5588 = vunpack.c.h.b16 %v5269
        %v5589 = vunpack.c.l.b16 %v5270
        %v5590 = vunpack.c.h.b16 %v5270
        %v5591 = vunpack.c.l.b16 %v5271
        %v5592 = vunpack.c.h.b16 %v5271
        %v5593 = vunpack.c.l.b16 %v5272
        %v5594 = vunpack.c.h.b16 %v5272
        %v5595 = vunpack.c.l.b16 %v5273
        %v5596 = vunpack.c.h.b16 %v5273
        %v5597 = vunpack.c.l.b16 %v5274
        %v5598 = vunpack.c.h.b16 %v5274
        %v5599 = vunpack.c.l.b16 %v5275
        %v5600 = vunpack.c.h.b16 %v5275
        %v5601 = vunpack.c.l.b16 %v5276
        %v5602 = vunpack.c.h.b16 %v5276
        %v5603 = vunpack.c.l.b16 %v5277
        %v5604 = vunpack.c.h.b16 %v5277
        %v5605 = vunpack.c.l.b16 %v5278
        %v5606 = vunpack.c.h.b16 %v5278
        %v5607 = vpack.c.b16 %v5465, %v5463
        %v5608 = vpack.c.b16 %v5466, %v5464
        %v5609 = vpack.c.b16 %v5469, %v5467
        %v5610 = vpack.c.b16 %v5470, %v5468
        %v5611 = vpack.c.b16 %v5473, %v5471
        %v5612 = vpack.c.b16 %v5474, %v5472
        %v5613 = vpack.c.b16 %v5477, %v5475
        %v5614 = vpack.c.b16 %v5478, %v5476
        %v5615 = vpack.c.b16 %v5481, %v5479
        %v5616 = vpack.c.b16 %v5482, %v5480
        %v5617 = vpack.c.b16 %v5485, %v5483
        %v5618 = vpack.c.b16 %v5486, %v5484
        %v5619 = vpack.c.b16 %v5489, %v5487
        %v5620 = vpack.c.b16 %v5490, %v5488
        %v5621 = vpack.c.b16 %v5493, %v5491
        %v5622 = vpack.c.b16 %v5494, %v5492
        %v5623 = vpack.c.b16 %v5497, %v5495
        %v5624 = vpack.c.b16 %v5498, %v5496
        %v5625 = vpack.c.b16 %v5501, %v5499
        %v5626 = vpack.c.b16 %v5502, %v5500
        %v5627 = vpack.c.b16 %v5505, %v5503
        %v5628 = vpack.c.b16 %v5506, %v5504
        %v5629 = vpack.c.b16 %v5509, %v5507
        %v5630 = vpack.c.b16 %v5510, %v5508
        %v5631 = vpack.c.b16 %v5513, %v5511
        %v5632 = vpack.c.b16 %v5514, %v5512
        %v5633 = vpack.c.b16 %v5517, %v5515
        %v5634 = vpack.c.b16 %v5518, %v5516
        %v5635 = vpack.c.b16 %v5521, %v5519
        %v5636 = vpack.c.b16 %v5522, %v5520
        %v5637 = vpack.c.b16 %v5525, %v5523
        %v5638 = vpack.c.b16 %v5526, %v5524
        %v5639 = vpack.c.b16 %v5529, %v5527
        %v5640 = vpack.c.b16 %v5530, %v5528
        %v5641 = vpack.c.b16 %v5533, %v5531
        %v5642 = vpack.c.b16 %v5534, %v5532
        %v5643 = vpack.c.b16 %v5537, %v5535
        %v5644 = vpack.c.b16 %v5538, %v5536
        %v5645 = vpack.c.b16 %v5541, %v5539
        %v5646 = vpack.c.b16 %v5542, %v5540
        %v5647 = vpack.c.b16 %v5545, %v5543
        %v5648 = vpack.c.b16 %v5546, %v5544
        %v5649 = vpack.c.b16 %v5549, %v5547
        %v5650 = vpack.c.b16 %v5550, %v5548
        %v5651 = vpack.c.b16 %v5553, %v5551
        %v5652 = vpack.c.b16 %v5554, %v5552
        %v5653 = vpack.c.b16 %v5557, %v5555
        %v5654 = vpack.c.b16 %v5558, %v5556
        %v5655 = vpack.c.b16 %v5561, %v5559
        %v5656 = vpack.c.b16 %v5562, %v5560
        %v5657 = vpack.c.b16 %v5565, %v5563
        %v5658 = vpack.c.b16 %v5566, %v5564
        %v5659 = vpack.c.b16 %v5569, %v5567
        %v5660 = vpack.c.b16 %v5570, %v5568
        %v5661 = vpack.c.b16 %v5573, %v5571
        %v5662 = vpack.c.b16 %v5574, %v5572
        %v5663 = vpack.c.b16 %v5577, %v5575
        %v5664 = vpack.c.b16 %v5578, %v5576
        %v5665 = vpack.c.b16 %v5581, %v5579
        %v5666 = vpack.c.b16 %v5582, %v5580
        %v5667 = vpack.c.b16 %v5585, %v5583
        %v5668 = vpack.c.b16 %v5586, %v5584
        %v5669 = vpack.c.b16 %v5589, %v5587
        %v5670 = vpack.c.b16 %v5590, %v5588
        %v5671 = vpack.c.b16 %v5593, %v5591
        %v5672 = vpack.c.b16 %v5594, %v5592
        %v5673 = vpack.c.b16 %v5597, %v5595
        %v5674 = vpack.c.b16 %v5598, %v5596
        %v5675 = vpack.c.b16 %v5601, %v5599
        %v5676 = vpack.c.b16 %v5602, %v5600
        %v5677 = vpack.c.b16 %v5605, %v5603
        %v5678 = vpack.c.b16 %v5606, %v5604
        %v5752 = vsel %vm1626, %v5359, 0
        %v5755 = vsel %vm1626, %v5364, 0
        %v5758 = vsel %vm1626, %v5369, 0
        %v5761 = vsel %vm1626, %v5374, 0
        %5763 = vmatprep.subr.bf16.mxu0 %v5608
        %5764 = vmatpush1.bf16.msra.mxu0 %v5607
        %5765 = vmatprep.subr.bf16.mxu0 %v5610
        %5766 = vmatpush1.bf16.msra.mxu0 %v5609
        %5767 = vmatprep.subr.bf16.mxu0 %v5612
        %5768 = vmatpush1.bf16.msra.mxu0 %v5611
        %5769 = vmatprep.subr.bf16.mxu0 %v5614
        %5770 = vmatpush1.bf16.msra.mxu0 %v5613
        %5771 = vmatprep.subr.bf16.mxu0 %v5616
        %5772 = vmatpush1.bf16.msra.mxu0 %v5615
        %5773 = vmatprep.subr.bf16.mxu0 %v5618
        %5774 = vmatpush1.bf16.msra.mxu0 %v5617
        %5775 = vmatprep.subr.bf16.mxu0 %v5620
        %5776 = vmatpush1.bf16.msra.mxu0 %v5619
        %5777 = vmatprep.subr.bf16.mxu0 %v5622
        %5778 = vmatpush1.bf16.msra.mxu0 %v5621
        %5779 = vmatprep.subr.bf16.mxu0 %v5624
        %5780 = vmatpush1.bf16.msra.mxu0 %v5623
        %5781 = vmatprep.subr.bf16.mxu0 %v5626
        %5782 = vmatpush1.bf16.msra.mxu0 %v5625
        %5783 = vmatprep.subr.bf16.mxu0 %v5628
        %5784 = vmatpush1.bf16.msra.mxu0 %v5627
        %5785 = vmatprep.subr.bf16.mxu0 %v5630
        %5786 = vmatpush1.bf16.msra.mxu0 %v5629
        %5787 = vmatprep.subr.bf16.mxu0 %v5632
        %5788 = vmatpush1.bf16.msra.mxu0 %v5631
        %5789 = vmatprep.subr.bf16.mxu0 %v5634
        %5790 = vmatpush1.bf16.msra.mxu0 %v5633
        %5791 = vmatprep.subr.bf16.mxu0 %v5636
        %5792 = vmatpush1.bf16.msra.mxu0 %v5635
        %5793 = vmatprep.subr.bf16.mxu0 %v5638
        %5794 = vmatpush1.bf16.msra.mxu0 %v5637
        %5795 = vmatprep.mubr.bf16.mxu0 %v5356
        %5796 = vmatmul.mubr.bf16.gmra.mrb[0].mxu0 %v5355
        %v5797 = vpop.f32.mrb[0].mxu0
        %v5798 = vadd.f32 %v5284, %v5797
        %v5799 = vpop.f32.mrb[0].mxu0
        %v5800 = vadd.f32 %v5288, %v5799
        %v5801 = vpop.f32.mrb[0].mxu0
        %v5802 = vadd.f32 %v5284, %v5801
        %v5803 = vpop.f32.mrb[0].mxu0
        %v5804 = vadd.f32 %v5288, %v5803
        %5805 = vmatprep.mubr.bf16.mxu0 %v5361
        %5806 = vmatmul.mubr.bf16.gmra.mrb[0].mxu0 %v5360
        %v5807 = vpop.f32.mrb[0].mxu0
        %v5808 = vadd.f32 %v5284, %v5807
        %v5809 = vpop.f32.mrb[0].mxu0
        %v5810 = vadd.f32 %v5288, %v5809
        %v5811 = vpop.f32.mrb[0].mxu0
        %v5812 = vadd.f32 %v5284, %v5811
        %v5813 = vpop.f32.mrb[0].mxu0
        %v5814 = vadd.f32 %v5288, %v5813
        %5815 = vmatprep.mubr.bf16.mxu0 %v5366
        %5816 = vmatmul.mubr.bf16.gmra.mrb[0].mxu0 %v5365
        %v5817 = vpop.f32.mrb[0].mxu0
        %v5818 = vadd.f32 %v5284, %v5817
        %v5819 = vpop.f32.mrb[0].mxu0
        %v5820 = vadd.f32 %v5288, %v5819
        %v5821 = vpop.f32.mrb[0].mxu0
        %v5822 = vadd.f32 %v5284, %v5821
        %v5823 = vpop.f32.mrb[0].mxu0
        %v5824 = vadd.f32 %v5288, %v5823
        %5825 = vmatprep.mubr.bf16.mxu0 %v5371
        %5826 = vmatmul.mubr.bf16.gmra.mrb[0].mxu0 %v5370
        %v5827 = vpop.f32.mrb[0].mxu0
        %v5828 = vadd.f32 %v5284, %v5827
        %v5829 = vpop.f32.mrb[0].mxu0
        %v5830 = vadd.f32 %v5288, %v5829
        %v5831 = vpop.f32.mrb[0].mxu0
        %v5832 = vadd.f32 %v5284, %v5831
        %v5833 = vpop.f32.mrb[0].mxu0
        %v5834 = vadd.f32 %v5288, %v5833
        %5835 = vdwg.mxu0
        %5836 = vmatprep.subr.bf16.mxu0 %v5640
        %5837 = vmatpush1.bf16.msra.mxu0 %v5639
        %5838 = vmatprep.subr.bf16.mxu0 %v5642
        %5839 = vmatpush1.bf16.msra.mxu0 %v5641
        %5840 = vmatprep.subr.bf16.mxu0 %v5644
        %5841 = vmatpush1.bf16.msra.mxu0 %v5643
        %5842 = vmatprep.subr.bf16.mxu0 %v5646
        %5843 = vmatpush1.bf16.msra.mxu0 %v5645
        %5844 = vmatprep.subr.bf16.mxu0 %v5648
        %5845 = vmatpush1.bf16.msra.mxu0 %v5647
        %5846 = vmatprep.subr.bf16.mxu0 %v5650
        %5847 = vmatpush1.bf16.msra.mxu0 %v5649
        %5848 = vmatprep.subr.bf16.mxu0 %v5652
        %5849 = vmatpush1.bf16.msra.mxu0 %v5651
        %5850 = vmatprep.subr.bf16.mxu0 %v5654
        %5851 = vmatpush1.bf16.msra.mxu0 %v5653
        %5852 = vmatprep.subr.bf16.mxu0 %v5656
        %5853 = vmatpush1.bf16.msra.mxu0 %v5655
        %5854 = vmatprep.subr.bf16.mxu0 %v5658
        %5855 = vmatpush1.bf16.msra.mxu0 %v5657
        %5856 = vmatprep.subr.bf16.mxu0 %v5660
        %5857 = vmatpush1.bf16.msra.mxu0 %v5659
        %5858 = vmatprep.subr.bf16.mxu0 %v5662
        %5859 = vmatpush1.bf16.msra.mxu0 %v5661
        %5860 = vmatprep.subr.bf16.mxu0 %v5664
        %5861 = vmatpush1.bf16.msra.mxu0 %v5663
        %5862 = vmatprep.subr.bf16.mxu0 %v5666
        %5863 = vmatpush1.bf16.msra.mxu0 %v5665
        %5864 = vmatprep.subr.bf16.mxu0 %v5668
        %5865 = vmatpush1.bf16.msra.mxu0 %v5667
        %5866 = vmatprep.subr.bf16.mxu0 %v5670
        %5867 = vmatpush1.bf16.msra.mxu0 %v5669
        %5868 = vmatprep.mubr.bf16.mxu0 %v5358
        %5869 = vmatmul.mubr.bf16.gmra.mrb[0].mxu0 %v5357
        %v5870 = vpop.f32.mrb[0].mxu0
        %v5871 = vadd.f32 %v5798, %v5870
        %v5872 = vpop.f32.mrb[0].mxu0
        %v5873 = vadd.f32 %v5800, %v5872
        %v5874 = vpop.f32.mrb[0].mxu0
        %v5875 = vadd.f32 %v5802, %v5874
        %v5876 = vpop.f32.mrb[0].mxu0
        %v5877 = vadd.f32 %v5804, %v5876
        %5878 = vmatprep.mubr.bf16.mxu0 %v5363
        %5879 = vmatmul.mubr.bf16.gmra.mrb[0].mxu0 %v5362
        %v5880 = vpop.f32.mrb[0].mxu0
        %v5881 = vadd.f32 %v5808, %v5880
        %v5882 = vpop.f32.mrb[0].mxu0
        %v5883 = vadd.f32 %v5810, %v5882
        %v5884 = vpop.f32.mrb[0].mxu0
        %v5885 = vadd.f32 %v5812, %v5884
        %v5886 = vpop.f32.mrb[0].mxu0
        %v5887 = vadd.f32 %v5814, %v5886
        %5888 = vmatprep.mubr.bf16.mxu0 %v5368
        %5889 = vmatmul.mubr.bf16.gmra.mrb[0].mxu0 %v5367
        %v5890 = vpop.f32.mrb[0].mxu0
        %v5891 = vadd.f32 %v5818, %v5890
        %v5892 = vpop.f32.mrb[0].mxu0
        %v5893 = vadd.f32 %v5820, %v5892
        %v5894 = vpop.f32.mrb[0].mxu0
        %v5895 = vadd.f32 %v5822, %v5894
        %v5896 = vpop.f32.mrb[0].mxu0
        %v5897 = vadd.f32 %v5824, %v5896
        %5898 = vmatprep.mubr.bf16.mxu0 %v5373
        %5899 = vmatmul.mubr.bf16.gmra.mrb[0].mxu0 %v5372
        %v5900 = vpop.f32.mrb[0].mxu0
        %v5901 = vadd.f32 %v5828, %v5900
        %v5902 = vpop.f32.mrb[0].mxu0
        %v5903 = vadd.f32 %v5830, %v5902
        %v5904 = vpop.f32.mrb[0].mxu0
        %v5905 = vadd.f32 %v5832, %v5904
        %v5906 = vpop.f32.mrb[0].mxu0
        %v5907 = vadd.f32 %v5834, %v5906
        %5908 = vdwg.mxu0
        %5909 = vmatprep.subr.bf16.mxu0 %v5672
        %5910 = vmatpush1.bf16.msra.mxu0 %v5671
        %5911 = vmatprep.subr.bf16.mxu0 %v5674
        %5912 = vmatpush1.bf16.msra.mxu0 %v5673
        %5913 = vmatprep.subr.bf16.mxu0 %v5676
        %5914 = vmatpush1.bf16.msra.mxu0 %v5675
        %5915 = vmatprep.subr.bf16.mxu0 %v5678
        %5916 = vmatpush1.bf16.msra.mxu0 %v5677
        %5917 = vmatprep.subr.bf16.mxu0 0
        %5918 = vmatpush1.bf16.msra.mxu0 0
        %5919 = vmatprep.subr.bf16.mxu0 0
        %5920 = vmatpush1.bf16.msra.mxu0 0
        %5921 = vmatprep.subr.bf16.mxu0 0
        %5922 = vmatpush1.bf16.msra.mxu0 0
        %5923 = vmatprep.subr.bf16.mxu0 0
        %5924 = vmatpush1.bf16.msra.mxu0 0
        %5925 = vmatprep.subr.bf16.mxu0 0
        %5926 = vmatpush1.bf16.msra.mxu0 0
        %5927 = vmatprep.subr.bf16.mxu0 0
        %5928 = vmatpush1.bf16.msra.mxu0 0
        %5929 = vmatprep.subr.bf16.mxu0 0
        %5930 = vmatpush1.bf16.msra.mxu0 0
        %5931 = vmatprep.subr.bf16.mxu0 0
        %5932 = vmatpush1.bf16.msra.mxu0 0
        %5933 = vmatprep.subr.bf16.mxu0 0
        %5934 = vmatpush1.bf16.msra.mxu0 0
        %5935 = vmatprep.subr.bf16.mxu0 0
        %5936 = vmatpush1.bf16.msra.mxu0 0
        %5937 = vmatprep.subr.bf16.mxu0 0
        %5938 = vmatpush1.bf16.msra.mxu0 0
        %5939 = vmatprep.subr.bf16.mxu0 0
        %5940 = vmatpush1.bf16.msra.mxu0 0
        %5941 = vmatprep.mubr.bf16.mxu0 0
        %5942 = vmatmul.mubr.bf16.gmra.mrb[0].mxu0 %v5752
        %v5943 = vpop.f32.mrb[0].mxu0
        %v5944 = vadd.f32 %v5871, %v5943
        %v5945 = vpop.f32.mrb[0].mxu0
        %v5946 = vadd.f32 %v5873, %v5945
        %v5947 = vpop.f32.mrb[0].mxu0
        %v5948 = vadd.f32 %v5875, %v5947
        %v5949 = vpop.f32.mrb[0].mxu0
        %v5950 = vadd.f32 %v5877, %v5949
        %5951 = vmatprep.mubr.bf16.mxu0 0
        %5952 = vmatmul.mubr.bf16.gmra.mrb[0].mxu0 %v5755
        %v5953 = vpop.f32.mrb[0].mxu0
        %v5954 = vadd.f32 %v5881, %v5953
        %v5955 = vpop.f32.mrb[0].mxu0
        %v5956 = vadd.f32 %v5883, %v5955
        %v5957 = vpop.f32.mrb[0].mxu0
        %v5958 = vadd.f32 %v5885, %v5957
        %v5959 = vpop.f32.mrb[0].mxu0
        %v5960 = vadd.f32 %v5887, %v5959
        %5961 = vmatprep.mubr.bf16.mxu0 0
        %5962 = vmatmul.mubr.bf16.gmra.mrb[0].mxu0 %v5758
        %v5963 = vpop.f32.mrb[0].mxu0
        %v5964 = vadd.f32 %v5891, %v5963
        %v5965 = vpop.f32.mrb[0].mxu0
        %v5966 = vadd.f32 %v5893, %v5965
        %v5967 = vpop.f32.mrb[0].mxu0
        %v5968 = vadd.f32 %v5895, %v5967
        %v5969 = vpop.f32.mrb[0].mxu0
        %v5970 = vadd.f32 %v5897, %v5969
        %5971 = vmatprep.mubr.bf16.mxu0 0
        %5972 = vmatmul.mubr.bf16.gmra.mrb[0].mxu0 %v5761
        %v5973 = vpop.f32.mrb[0].mxu0
        %v5974 = vadd.f32 %v5901, %v5973
        %v5975 = vpop.f32.mrb[0].mxu0
        %v5976 = vadd.f32 %v5903, %v5975
        %v5977 = vpop.f32.mrb[0].mxu0
        %v5978 = vadd.f32 %v5905, %v5977
        %v5979 = vpop.f32.mrb[0].mxu0
        %v5980 = vadd.f32 %v5907, %v5979
        %5981 = vdwg.mxu0
        %v5982 = vpack.c.bf16 %v5948, %v5944
        %v5983 = vpack.c.bf16 %v5950, %v5946
        %v5984 = vpack.c.bf16 %v5958, %v5954
        %v5985 = vpack.c.bf16 %v5960, %v5956
        %v5986 = vpack.c.bf16 %v5968, %v5964
        %v5987 = vpack.c.bf16 %v5970, %v5966
        %v5988 = vpack.c.bf16 %v5978, %v5974
        %v5989 = vpack.c.bf16 %v5980, %v5976
        %v5998 = vunpack.c.l.b16 %v5982
        %v5999 = vunpack.c.l.b16 %v5983
        %v6000 = vunpack.c.h.b16 %v5982
        %v6001 = vunpack.c.h.b16 %v5983
        %v6002 = vunpack.c.l.b16 %v5984
        %v6003 = vunpack.c.l.b16 %v5985
        %v6004 = vunpack.c.h.b16 %v5984
        %v6005 = vunpack.c.h.b16 %v5985
        %v6006 = vunpack.c.l.b16 %v5986
        %v6007 = vunpack.c.l.b16 %v5987
        %v6008 = vunpack.c.h.b16 %v5986
        %v6009 = vunpack.c.h.b16 %v5987
        %v6010 = vunpack.c.l.b16 %v5988
        %v6011 = vunpack.c.l.b16 %v5989
        %v6012 = vunpack.c.h.b16 %v5988
        %v6013 = vunpack.c.h.b16 %v5989
        %v6014 = vpack.c.b16 %v5999, %v5998
        %v6015 = vpack.c.b16 %v6001, %v6000
        %v6016 = vpack.c.b16 %v6003, %v6002
        %v6017 = vpack.c.b16 %v6005, %v6004
        %v6018 = vpack.c.b16 %v6007, %v6006
        %v6019 = vpack.c.b16 %v6009, %v6008
        %v6020 = vpack.c.b16 %v6011, %v6010
        %v6021 = vpack.c.b16 %v6013, %v6012
        %v6023 = vunpack.c.l.s4 1966171168
        %v6024 = vunpack.c.0.s8 %v6023
        %v6025 = vlaneseq
        %v6026 = vshrl.u32 %v6025, 7
        %v6027 = vsub.s32 %v6024, %v6026
        %v6028 = vrot.slane %v6014, %v6027
        %v6029 = vcombine.high %v6028, %v6028
        %v6031 = vunpack.c.l.s4 1966171168
        %v6032 = vunpack.c.0.s8 %v6031
        %v6033 = vlaneseq
        %v6034 = vshrl.u32 %v6033, 7
        %v6035 = vsub.s32 %v6032, %v6034
        %v6036 = vrot.slane %v6028, %v6035
        %v6038 = vunpack.c.l.s4 1966171168
        %v6039 = vunpack.c.0.s8 %v6038
        %v6040 = vlaneseq
        %v6041 = vshrl.u32 %v6040, 7
        %v6042 = vsub.s32 %v6039, %v6041
        %v6043 = vrot.slane %v6029, %v6042
        %v6044 = vcombine.high %v6036, %v6036
        %v6045 = vcombine.high %v6043, %v6043
        %v6047 = vunpack.c.l.s4 1966171168
        %v6048 = vunpack.c.0.s8 %v6047
        %v6049 = vlaneseq
        %v6050 = vshrl.u32 %v6049, 7
        %v6051 = vsub.s32 %v6048, %v6050
        %v6052 = vrot.slane %v6015, %v6051
        %v6053 = vcombine.high %v6052, %v6052
        %v6055 = vunpack.c.l.s4 1966171168
        %v6056 = vunpack.c.0.s8 %v6055
        %v6057 = vlaneseq
        %v6058 = vshrl.u32 %v6057, 7
        %v6059 = vsub.s32 %v6056, %v6058
        %v6060 = vrot.slane %v6052, %v6059
        %v6062 = vunpack.c.l.s4 1966171168
        %v6063 = vunpack.c.0.s8 %v6062
        %v6064 = vlaneseq
        %v6065 = vshrl.u32 %v6064, 7
        %v6066 = vsub.s32 %v6063, %v6065
        %v6067 = vrot.slane %v6053, %v6066
        %v6068 = vcombine.high %v6060, %v6060
        %v6069 = vcombine.high %v6067, %v6067
        %v6071 = vunpack.c.l.s4 1966171168
        %v6072 = vunpack.c.0.s8 %v6071
        %v6073 = vlaneseq
        %v6074 = vshrl.u32 %v6073, 7
        %v6075 = vsub.s32 %v6072, %v6074
        %v6076 = vrot.slane %v6016, %v6075
        %v6077 = vcombine.high %v6076, %v6076
        %v6079 = vunpack.c.l.s4 1966171168
        %v6080 = vunpack.c.0.s8 %v6079
        %v6081 = vlaneseq
        %v6082 = vshrl.u32 %v6081, 7
        %v6083 = vsub.s32 %v6080, %v6082
        %v6084 = vrot.slane %v6076, %v6083
        %v6086 = vunpack.c.l.s4 1966171168
        %v6087 = vunpack.c.0.s8 %v6086
        %v6088 = vlaneseq
        %v6089 = vshrl.u32 %v6088, 7
        %v6090 = vsub.s32 %v6087, %v6089
        %v6091 = vrot.slane %v6077, %v6090
        %v6092 = vcombine.high %v6084, %v6084
        %v6093 = vcombine.high %v6091, %v6091
        %v6095 = vunpack.c.l.s4 1966171168
        %v6096 = vunpack.c.0.s8 %v6095
        %v6097 = vlaneseq
        %v6098 = vshrl.u32 %v6097, 7
        %v6099 = vsub.s32 %v6096, %v6098
        %v6100 = vrot.slane %v6017, %v6099
        %v6101 = vcombine.high %v6100, %v6100
        %v6103 = vunpack.c.l.s4 1966171168
        %v6104 = vunpack.c.0.s8 %v6103
        %v6105 = vlaneseq
        %v6106 = vshrl.u32 %v6105, 7
        %v6107 = vsub.s32 %v6104, %v6106
        %v6108 = vrot.slane %v6100, %v6107
        %v6110 = vunpack.c.l.s4 1966171168
        %v6111 = vunpack.c.0.s8 %v6110
        %v6112 = vlaneseq
        %v6113 = vshrl.u32 %v6112, 7
        %v6114 = vsub.s32 %v6111, %v6113
        %v6115 = vrot.slane %v6101, %v6114
        %v6116 = vcombine.high %v6108, %v6108
        %v6117 = vcombine.high %v6115, %v6115
        %v6119 = vunpack.c.l.s4 1966171168
        %v6120 = vunpack.c.0.s8 %v6119
        %v6121 = vlaneseq
        %v6122 = vshrl.u32 %v6121, 7
        %v6123 = vsub.s32 %v6120, %v6122
        %v6124 = vrot.slane %v6018, %v6123
        %v6125 = vcombine.high %v6124, %v6124
        %v6127 = vunpack.c.l.s4 1966171168
        %v6128 = vunpack.c.0.s8 %v6127
        %v6129 = vlaneseq
        %v6130 = vshrl.u32 %v6129, 7
        %v6131 = vsub.s32 %v6128, %v6130
        %v6132 = vrot.slane %v6124, %v6131
        %v6134 = vunpack.c.l.s4 1966171168
        %v6135 = vunpack.c.0.s8 %v6134
        %v6136 = vlaneseq
        %v6137 = vshrl.u32 %v6136, 7
        %v6138 = vsub.s32 %v6135, %v6137
        %v6139 = vrot.slane %v6125, %v6138
        %v6140 = vcombine.high %v6132, %v6132
        %v6141 = vcombine.high %v6139, %v6139
        %v6143 = vunpack.c.l.s4 1966171168
        %v6144 = vunpack.c.0.s8 %v6143
        %v6145 = vlaneseq
        %v6146 = vshrl.u32 %v6145, 7
        %v6147 = vsub.s32 %v6144, %v6146
        %v6148 = vrot.slane %v6019, %v6147
        %v6149 = vcombine.high %v6148, %v6148
        %v6151 = vunpack.c.l.s4 1966171168
        %v6152 = vunpack.c.0.s8 %v6151
        %v6153 = vlaneseq
        %v6154 = vshrl.u32 %v6153, 7
        %v6155 = vsub.s32 %v6152, %v6154
        %v6156 = vrot.slane %v6148, %v6155
        %v6158 = vunpack.c.l.s4 1966171168
        %v6159 = vunpack.c.0.s8 %v6158
        %v6160 = vlaneseq
        %v6161 = vshrl.u32 %v6160, 7
        %v6162 = vsub.s32 %v6159, %v6161
        %v6163 = vrot.slane %v6149, %v6162
        %v6164 = vcombine.high %v6156, %v6156
        %v6165 = vcombine.high %v6163, %v6163
        %v6167 = vunpack.c.l.s4 1966171168
        %v6168 = vunpack.c.0.s8 %v6167
        %v6169 = vlaneseq
        %v6170 = vshrl.u32 %v6169, 7
        %v6171 = vsub.s32 %v6168, %v6170
        %v6172 = vrot.slane %v6020, %v6171
        %v6173 = vcombine.high %v6172, %v6172
        %v6175 = vunpack.c.l.s4 1966171168
        %v6176 = vunpack.c.0.s8 %v6175
        %v6177 = vlaneseq
        %v6178 = vshrl.u32 %v6177, 7
        %v6179 = vsub.s32 %v6176, %v6178
        %v6180 = vrot.slane %v6172, %v6179
        %v6182 = vunpack.c.l.s4 1966171168
        %v6183 = vunpack.c.0.s8 %v6182
        %v6184 = vlaneseq
        %v6185 = vshrl.u32 %v6184, 7
        %v6186 = vsub.s32 %v6183, %v6185
        %v6187 = vrot.slane %v6173, %v6186
        %v6188 = vcombine.high %v6180, %v6180
        %v6189 = vcombine.high %v6187, %v6187
        %v6191 = vunpack.c.l.s4 1966171168
        %v6192 = vunpack.c.0.s8 %v6191
        %v6193 = vlaneseq
        %v6194 = vshrl.u32 %v6193, 7
        %v6195 = vsub.s32 %v6192, %v6194
        %v6196 = vrot.slane %v6021, %v6195
        %v6197 = vcombine.high %v6196, %v6196
        %v6199 = vunpack.c.l.s4 1966171168
        %v6200 = vunpack.c.0.s8 %v6199
        %v6201 = vlaneseq
        %v6202 = vshrl.u32 %v6201, 7
        %v6203 = vsub.s32 %v6200, %v6202
        %v6204 = vrot.slane %v6196, %v6203
        %v6206 = vunpack.c.l.s4 1966171168
        %v6207 = vunpack.c.0.s8 %v6206
        %v6208 = vlaneseq
        %v6209 = vshrl.u32 %v6208, 7
        %v6210 = vsub.s32 %v6207, %v6209
        %v6211 = vrot.slane %v6197, %v6210
        %v6212 = vcombine.high %v6204, %v6204
        %v6213 = vcombine.high %v6211, %v6211
        %v6214 = vunpack.i.l.s16 %v6036
        %v6215 = vunpack.i.h.s16 %v6036
        %v6216 = vunpack.i.l.s16 %v6043
        %v6217 = vunpack.i.h.s16 %v6043
        %v6218 = vunpack.i.l.s16 %v6044
        %v6219 = vunpack.i.h.s16 %v6044
        %v6220 = vunpack.i.l.s16 %v6045
        %v6221 = vunpack.i.h.s16 %v6045
        %v6222 = vunpack.i.l.s16 %v6060
        %v6223 = vunpack.i.h.s16 %v6060
        %v6224 = vunpack.i.l.s16 %v6067
        %v6225 = vunpack.i.h.s16 %v6067
        %v6226 = vunpack.i.l.s16 %v6068
        %v6227 = vunpack.i.h.s16 %v6068
        %v6228 = vunpack.i.l.s16 %v6069
        %v6229 = vunpack.i.h.s16 %v6069
        %v6230 = vunpack.i.l.s16 %v6084
        %v6231 = vunpack.i.h.s16 %v6084
        %v6232 = vunpack.i.l.s16 %v6091
        %v6233 = vunpack.i.h.s16 %v6091
        %v6234 = vunpack.i.l.s16 %v6092
        %v6235 = vunpack.i.h.s16 %v6092
        %v6236 = vunpack.i.l.s16 %v6093
        %v6237 = vunpack.i.h.s16 %v6093
        %v6238 = vunpack.i.l.s16 %v6108
        %v6239 = vunpack.i.h.s16 %v6108
        %v6240 = vunpack.i.l.s16 %v6115
        %v6241 = vunpack.i.h.s16 %v6115
        %v6242 = vunpack.i.l.s16 %v6116
        %v6243 = vunpack.i.h.s16 %v6116
        %v6244 = vunpack.i.l.s16 %v6117
        %v6245 = vunpack.i.h.s16 %v6117
        %v6246 = vunpack.i.l.s16 %v6132
        %v6247 = vunpack.i.h.s16 %v6132
        %v6248 = vunpack.i.l.s16 %v6139
        %v6249 = vunpack.i.h.s16 %v6139
        %v6250 = vunpack.i.l.s16 %v6140
        %v6251 = vunpack.i.h.s16 %v6140
        %v6252 = vunpack.i.l.s16 %v6141
        %v6253 = vunpack.i.h.s16 %v6141
        %v6254 = vunpack.i.l.s16 %v6156
        %v6255 = vunpack.i.h.s16 %v6156
        %v6256 = vunpack.i.l.s16 %v6163
        %v6257 = vunpack.i.h.s16 %v6163
        %v6258 = vunpack.i.l.s16 %v6164
        %v6259 = vunpack.i.h.s16 %v6164
        %v6260 = vunpack.i.l.s16 %v6165
        %v6261 = vunpack.i.h.s16 %v6165
        %v6262 = vunpack.i.l.s16 %v6180
        %v6263 = vunpack.i.h.s16 %v6180
        %v6264 = vunpack.i.l.s16 %v6187
        %v6265 = vunpack.i.h.s16 %v6187
        %v6266 = vunpack.i.l.s16 %v6188
        %v6267 = vunpack.i.h.s16 %v6188
        %v6268 = vunpack.i.l.s16 %v6189
        %v6269 = vunpack.i.h.s16 %v6189
        %v6270 = vunpack.i.l.s16 %v6204
        %v6271 = vunpack.i.h.s16 %v6204
        %v6272 = vunpack.i.l.s16 %v6211
        %v6273 = vunpack.i.h.s16 %v6211
        %v6274 = vunpack.i.l.s16 %v6212
        %v6275 = vunpack.i.h.s16 %v6212
        %v6276 = vunpack.i.l.s16 %v6213
        %v6277 = vunpack.i.h.s16 %v6213
        %v6278 = vpack.i.b16 %v6214, %v6214
        %v6279 = vpack.i.b16 %v6215, %v6215
        %v6280 = vpack.i.b16 %v6216, %v6216
        %v6281 = vpack.i.b16 %v6217, %v6217
        %v6282 = vpack.i.b16 %v6218, %v6218
        %v6283 = vpack.i.b16 %v6219, %v6219
        %v6284 = vpack.i.b16 %v6220, %v6220
        %v6285 = vpack.i.b16 %v6221, %v6221
        %v6286 = vpack.i.b16 %v6222, %v6222
        %v6287 = vpack.i.b16 %v6223, %v6223
        %v6288 = vpack.i.b16 %v6224, %v6224
        %v6289 = vpack.i.b16 %v6225, %v6225
        %v6290 = vpack.i.b16 %v6226, %v6226
        %v6291 = vpack.i.b16 %v6227, %v6227
        %v6292 = vpack.i.b16 %v6228, %v6228
        %v6293 = vpack.i.b16 %v6229, %v6229
        %v6294 = vpack.i.b16 %v6230, %v6230
        %v6295 = vpack.i.b16 %v6231, %v6231
        %v6296 = vpack.i.b16 %v6232, %v6232
        %v6297 = vpack.i.b16 %v6233, %v6233
        %v6298 = vpack.i.b16 %v6234, %v6234
        %v6299 = vpack.i.b16 %v6235, %v6235
        %v6300 = vpack.i.b16 %v6236, %v6236
        %v6301 = vpack.i.b16 %v6237, %v6237
        %v6302 = vpack.i.b16 %v6238, %v6238
        %v6303 = vpack.i.b16 %v6239, %v6239
        %v6304 = vpack.i.b16 %v6240, %v6240
        %v6305 = vpack.i.b16 %v6241, %v6241
        %v6306 = vpack.i.b16 %v6242, %v6242
        %v6307 = vpack.i.b16 %v6243, %v6243
        %v6308 = vpack.i.b16 %v6244, %v6244
        %v6309 = vpack.i.b16 %v6245, %v6245
        %v6310 = vpack.i.b16 %v6246, %v6246
        %v6311 = vpack.i.b16 %v6247, %v6247
        %v6312 = vpack.i.b16 %v6248, %v6248
        %v6313 = vpack.i.b16 %v6249, %v6249
        %v6314 = vpack.i.b16 %v6250, %v6250
        %v6315 = vpack.i.b16 %v6251, %v6251
        %v6316 = vpack.i.b16 %v6252, %v6252
        %v6317 = vpack.i.b16 %v6253, %v6253
        %v6318 = vpack.i.b16 %v6254, %v6254
        %v6319 = vpack.i.b16 %v6255, %v6255
        %v6320 = vpack.i.b16 %v6256, %v6256
        %v6321 = vpack.i.b16 %v6257, %v6257
        %v6322 = vpack.i.b16 %v6258, %v6258
        %v6323 = vpack.i.b16 %v6259, %v6259
        %v6324 = vpack.i.b16 %v6260, %v6260
        %v6325 = vpack.i.b16 %v6261, %v6261
        %v6326 = vpack.i.b16 %v6262, %v6262
        %v6327 = vpack.i.b16 %v6263, %v6263
        %v6328 = vpack.i.b16 %v6264, %v6264
        %v6329 = vpack.i.b16 %v6265, %v6265
        %v6330 = vpack.i.b16 %v6266, %v6266
        %v6331 = vpack.i.b16 %v6267, %v6267
        %v6332 = vpack.i.b16 %v6268, %v6268
        %v6333 = vpack.i.b16 %v6269, %v6269
        %v6334 = vpack.i.b16 %v6270, %v6270
        %v6335 = vpack.i.b16 %v6271, %v6271
        %v6336 = vpack.i.b16 %v6272, %v6272
        %v6337 = vpack.i.b16 %v6273, %v6273
        %v6338 = vpack.i.b16 %v6274, %v6274
        %v6339 = vpack.i.b16 %v6275, %v6275
        %v6340 = vpack.i.b16 %v6276, %v6276
        %v6341 = vpack.i.b16 %v6277, %v6277
        %v6342 = vlaneseq
        %v6343 = vshrl.u32 %v6342, 7
        %v6344 = vsub.s32 0, %v6343
        %v6345 = vrot.slane %v6278, %v6344
        %v6346 = vlaneseq
        %v6347 = vshrl.u32 %v6346, 7
        %v6348 = vsub.s32 0, %v6347
        %v6349 = vrot.slane %v6279, %v6348
        %v6350 = vlaneseq
        %v6351 = vshrl.u32 %v6350, 7
        %v6352 = vsub.s32 0, %v6351
        %v6353 = vrot.slane %v6280, %v6352
        %v6354 = vlaneseq
        %v6355 = vshrl.u32 %v6354, 7
        %v6356 = vsub.s32 0, %v6355
        %v6357 = vrot.slane %v6281, %v6356
        %v6358 = vlaneseq
        %v6359 = vshrl.u32 %v6358, 7
        %v6360 = vsub.s32 0, %v6359
        %v6361 = vrot.slane %v6282, %v6360
        %v6362 = vlaneseq
        %v6363 = vshrl.u32 %v6362, 7
        %v6364 = vsub.s32 0, %v6363
        %v6365 = vrot.slane %v6283, %v6364
        %v6366 = vlaneseq
        %v6367 = vshrl.u32 %v6366, 7
        %v6368 = vsub.s32 0, %v6367
        %v6369 = vrot.slane %v6284, %v6368
        %v6370 = vlaneseq
        %v6371 = vshrl.u32 %v6370, 7
        %v6372 = vsub.s32 0, %v6371
        %v6373 = vrot.slane %v6285, %v6372
        %v6374 = vlaneseq
        %v6375 = vshrl.u32 %v6374, 7
        %v6376 = vsub.s32 0, %v6375
        %v6377 = vrot.slane %v6286, %v6376
        %v6378 = vlaneseq
        %v6379 = vshrl.u32 %v6378, 7
        %v6380 = vsub.s32 0, %v6379
        %v6381 = vrot.slane %v6287, %v6380
        %v6382 = vlaneseq
        %v6383 = vshrl.u32 %v6382, 7
        %v6384 = vsub.s32 0, %v6383
        %v6385 = vrot.slane %v6288, %v6384
        %v6386 = vlaneseq
        %v6387 = vshrl.u32 %v6386, 7
        %v6388 = vsub.s32 0, %v6387
        %v6389 = vrot.slane %v6289, %v6388
        %v6390 = vlaneseq
        %v6391 = vshrl.u32 %v6390, 7
        %v6392 = vsub.s32 0, %v6391
        %v6393 = vrot.slane %v6290, %v6392
        %v6394 = vlaneseq
        %v6395 = vshrl.u32 %v6394, 7
        %v6396 = vsub.s32 0, %v6395
        %v6397 = vrot.slane %v6291, %v6396
        %v6398 = vlaneseq
        %v6399 = vshrl.u32 %v6398, 7
        %v6400 = vsub.s32 0, %v6399
        %v6401 = vrot.slane %v6292, %v6400
        %v6402 = vlaneseq
        %v6403 = vshrl.u32 %v6402, 7
        %v6404 = vsub.s32 0, %v6403
        %v6405 = vrot.slane %v6293, %v6404
        %v6406 = vlaneseq
        %v6407 = vshrl.u32 %v6406, 7
        %v6408 = vsub.s32 0, %v6407
        %v6409 = vrot.slane %v6294, %v6408
        %v6410 = vlaneseq
        %v6411 = vshrl.u32 %v6410, 7
        %v6412 = vsub.s32 0, %v6411
        %v6413 = vrot.slane %v6295, %v6412
        %v6414 = vlaneseq
        %v6415 = vshrl.u32 %v6414, 7
        %v6416 = vsub.s32 0, %v6415
        %v6417 = vrot.slane %v6296, %v6416
        %v6418 = vlaneseq
        %v6419 = vshrl.u32 %v6418, 7
        %v6420 = vsub.s32 0, %v6419
        %v6421 = vrot.slane %v6297, %v6420
        %v6422 = vlaneseq
        %v6423 = vshrl.u32 %v6422, 7
        %v6424 = vsub.s32 0, %v6423
        %v6425 = vrot.slane %v6298, %v6424
        %v6426 = vlaneseq
        %v6427 = vshrl.u32 %v6426, 7
        %v6428 = vsub.s32 0, %v6427
        %v6429 = vrot.slane %v6299, %v6428
        %v6430 = vlaneseq
        %v6431 = vshrl.u32 %v6430, 7
        %v6432 = vsub.s32 0, %v6431
        %v6433 = vrot.slane %v6300, %v6432
        %v6434 = vlaneseq
        %v6435 = vshrl.u32 %v6434, 7
        %v6436 = vsub.s32 0, %v6435
        %v6437 = vrot.slane %v6301, %v6436
        %v6438 = vlaneseq
        %v6439 = vshrl.u32 %v6438, 7
        %v6440 = vsub.s32 0, %v6439
        %v6441 = vrot.slane %v6302, %v6440
        %v6442 = vlaneseq
        %v6443 = vshrl.u32 %v6442, 7
        %v6444 = vsub.s32 0, %v6443
        %v6445 = vrot.slane %v6303, %v6444
        %v6446 = vlaneseq
        %v6447 = vshrl.u32 %v6446, 7
        %v6448 = vsub.s32 0, %v6447
        %v6449 = vrot.slane %v6304, %v6448
        %v6450 = vlaneseq
        %v6451 = vshrl.u32 %v6450, 7
        %v6452 = vsub.s32 0, %v6451
        %v6453 = vrot.slane %v6305, %v6452
        %v6454 = vlaneseq
        %v6455 = vshrl.u32 %v6454, 7
        %v6456 = vsub.s32 0, %v6455
        %v6457 = vrot.slane %v6306, %v6456
        %v6458 = vlaneseq
        %v6459 = vshrl.u32 %v6458, 7
        %v6460 = vsub.s32 0, %v6459
        %v6461 = vrot.slane %v6307, %v6460
        %v6462 = vlaneseq
        %v6463 = vshrl.u32 %v6462, 7
        %v6464 = vsub.s32 0, %v6463
        %v6465 = vrot.slane %v6308, %v6464
        %v6466 = vlaneseq
        %v6467 = vshrl.u32 %v6466, 7
        %v6468 = vsub.s32 0, %v6467
        %v6469 = vrot.slane %v6309, %v6468
        %v6470 = vlaneseq
        %v6471 = vshrl.u32 %v6470, 7
        %v6472 = vsub.s32 0, %v6471
        %v6473 = vrot.slane %v6310, %v6472
        %v6474 = vlaneseq
        %v6475 = vshrl.u32 %v6474, 7
        %v6476 = vsub.s32 0, %v6475
        %v6477 = vrot.slane %v6311, %v6476
        %v6478 = vlaneseq
        %v6479 = vshrl.u32 %v6478, 7
        %v6480 = vsub.s32 0, %v6479
        %v6481 = vrot.slane %v6312, %v6480
        %v6482 = vlaneseq
        %v6483 = vshrl.u32 %v6482, 7
        %v6484 = vsub.s32 0, %v6483
        %v6485 = vrot.slane %v6313, %v6484
        %v6486 = vlaneseq
        %v6487 = vshrl.u32 %v6486, 7
        %v6488 = vsub.s32 0, %v6487
        %v6489 = vrot.slane %v6314, %v6488
        %v6490 = vlaneseq
        %v6491 = vshrl.u32 %v6490, 7
        %v6492 = vsub.s32 0, %v6491
        %v6493 = vrot.slane %v6315, %v6492
        %v6494 = vlaneseq
        %v6495 = vshrl.u32 %v6494, 7
        %v6496 = vsub.s32 0, %v6495
        %v6497 = vrot.slane %v6316, %v6496
        %v6498 = vlaneseq
        %v6499 = vshrl.u32 %v6498, 7
        %v6500 = vsub.s32 0, %v6499
        %v6501 = vrot.slane %v6317, %v6500
        %v6502 = vlaneseq
        %v6503 = vshrl.u32 %v6502, 7
        %v6504 = vsub.s32 0, %v6503
        %v6505 = vrot.slane %v6318, %v6504
        %v6506 = vlaneseq
        %v6507 = vshrl.u32 %v6506, 7
        %v6508 = vsub.s32 0, %v6507
        %v6509 = vrot.slane %v6319, %v6508
        %v6510 = vlaneseq
        %v6511 = vshrl.u32 %v6510, 7
        %v6512 = vsub.s32 0, %v6511
        %v6513 = vrot.slane %v6320, %v6512
        %v6514 = vlaneseq
        %v6515 = vshrl.u32 %v6514, 7
        %v6516 = vsub.s32 0, %v6515
        %v6517 = vrot.slane %v6321, %v6516
        %v6518 = vlaneseq
        %v6519 = vshrl.u32 %v6518, 7
        %v6520 = vsub.s32 0, %v6519
        %v6521 = vrot.slane %v6322, %v6520
        %v6522 = vlaneseq
        %v6523 = vshrl.u32 %v6522, 7
        %v6524 = vsub.s32 0, %v6523
        %v6525 = vrot.slane %v6323, %v6524
        %v6526 = vlaneseq
        %v6527 = vshrl.u32 %v6526, 7
        %v6528 = vsub.s32 0, %v6527
        %v6529 = vrot.slane %v6324, %v6528
        %v6530 = vlaneseq
        %v6531 = vshrl.u32 %v6530, 7
        %v6532 = vsub.s32 0, %v6531
        %v6533 = vrot.slane %v6325, %v6532
        %v6534 = vlaneseq
        %v6535 = vshrl.u32 %v6534, 7
        %v6536 = vsub.s32 0, %v6535
        %v6537 = vrot.slane %v6326, %v6536
        %v6538 = vlaneseq
        %v6539 = vshrl.u32 %v6538, 7
        %v6540 = vsub.s32 0, %v6539
        %v6541 = vrot.slane %v6327, %v6540
        %v6542 = vlaneseq
        %v6543 = vshrl.u32 %v6542, 7
        %v6544 = vsub.s32 0, %v6543
        %v6545 = vrot.slane %v6328, %v6544
        %v6546 = vlaneseq
        %v6547 = vshrl.u32 %v6546, 7
        %v6548 = vsub.s32 0, %v6547
        %v6549 = vrot.slane %v6329, %v6548
        %v6550 = vlaneseq
        %v6551 = vshrl.u32 %v6550, 7
        %v6552 = vsub.s32 0, %v6551
        %v6553 = vrot.slane %v6330, %v6552
        %v6554 = vlaneseq
        %v6555 = vshrl.u32 %v6554, 7
        %v6556 = vsub.s32 0, %v6555
        %v6557 = vrot.slane %v6331, %v6556
        %v6558 = vlaneseq
        %v6559 = vshrl.u32 %v6558, 7
        %v6560 = vsub.s32 0, %v6559
        %v6561 = vrot.slane %v6332, %v6560
        %v6562 = vlaneseq
        %v6563 = vshrl.u32 %v6562, 7
        %v6564 = vsub.s32 0, %v6563
        %v6565 = vrot.slane %v6333, %v6564
        %v6566 = vlaneseq
        %v6567 = vshrl.u32 %v6566, 7
        %v6568 = vsub.s32 0, %v6567
        %v6569 = vrot.slane %v6334, %v6568
        %v6570 = vlaneseq
        %v6571 = vshrl.u32 %v6570, 7
        %v6572 = vsub.s32 0, %v6571
        %v6573 = vrot.slane %v6335, %v6572
        %v6574 = vlaneseq
        %v6575 = vshrl.u32 %v6574, 7
        %v6576 = vsub.s32 0, %v6575
        %v6577 = vrot.slane %v6336, %v6576
        %v6578 = vlaneseq
        %v6579 = vshrl.u32 %v6578, 7
        %v6580 = vsub.s32 0, %v6579
        %v6581 = vrot.slane %v6337, %v6580
        %v6582 = vlaneseq
        %v6583 = vshrl.u32 %v6582, 7
        %v6584 = vsub.s32 0, %v6583
        %v6585 = vrot.slane %v6338, %v6584
        %v6586 = vlaneseq
        %v6587 = vshrl.u32 %v6586, 7
        %v6588 = vsub.s32 0, %v6587
        %v6589 = vrot.slane %v6339, %v6588
        %v6590 = vlaneseq
        %v6591 = vshrl.u32 %v6590, 7
        %v6592 = vsub.s32 0, %v6591
        %v6593 = vrot.slane %v6340, %v6592
        %v6594 = vlaneseq
        %v6595 = vshrl.u32 %v6594, 7
        %v6596 = vsub.s32 0, %v6595
        %v6597 = vrot.slane %v6341, %v6596
        %6662 = vrot.lane.b32.xlu0 %v6345, 64
        %v6663 = vpop.permute.xlu0 %6662
        %6664 = vrot.lane.b32.xlu0 %v6349, 64
        %v6665 = vpop.permute.xlu0 %6664
        %6666 = vrot.lane.b32.xlu0 %v6353, 64
        %v6667 = vpop.permute.xlu0 %6666
        %6668 = vrot.lane.b32.xlu0 %v6357, 64
        %v6669 = vpop.permute.xlu0 %6668
        %6670 = vrot.lane.b32.xlu0 %v6361, 64
        %v6671 = vpop.permute.xlu0 %6670
        %6672 = vrot.lane.b32.xlu0 %v6365, 64
        %v6673 = vpop.permute.xlu0 %6672
        %6674 = vrot.lane.b32.xlu0 %v6369, 64
        %v6675 = vpop.permute.xlu0 %6674
        %6676 = vrot.lane.b32.xlu0 %v6373, 64
        %v6677 = vpop.permute.xlu0 %6676
        %6678 = vrot.lane.b32.xlu0 %v6377, 64
        %v6679 = vpop.permute.xlu0 %6678
        %6680 = vrot.lane.b32.xlu0 %v6381, 64
        %v6681 = vpop.permute.xlu0 %6680
        %6682 = vrot.lane.b32.xlu0 %v6385, 64
        %v6683 = vpop.permute.xlu0 %6682
        %6684 = vrot.lane.b32.xlu0 %v6389, 64
        %v6685 = vpop.permute.xlu0 %6684
        %6686 = vrot.lane.b32.xlu0 %v6393, 64
        %v6687 = vpop.permute.xlu0 %6686
        %6688 = vrot.lane.b32.xlu0 %v6397, 64
        %v6689 = vpop.permute.xlu0 %6688
        %6690 = vrot.lane.b32.xlu0 %v6401, 64
        %v6691 = vpop.permute.xlu0 %6690
        %6692 = vrot.lane.b32.xlu0 %v6405, 64
        %v6693 = vpop.permute.xlu0 %6692
        %6694 = vrot.lane.b32.xlu0 %v6409, 64
        %v6695 = vpop.permute.xlu0 %6694
        %6696 = vrot.lane.b32.xlu0 %v6413, 64
        %v6697 = vpop.permute.xlu0 %6696
        %6698 = vrot.lane.b32.xlu0 %v6417, 64
        %v6699 = vpop.permute.xlu0 %6698
        %6700 = vrot.lane.b32.xlu0 %v6421, 64
        %v6701 = vpop.permute.xlu0 %6700
        %6702 = vrot.lane.b32.xlu0 %v6425, 64
        %v6703 = vpop.permute.xlu0 %6702
        %6704 = vrot.lane.b32.xlu0 %v6429, 64
        %v6705 = vpop.permute.xlu0 %6704
        %6706 = vrot.lane.b32.xlu0 %v6433, 64
        %v6707 = vpop.permute.xlu0 %6706
        %6708 = vrot.lane.b32.xlu0 %v6437, 64
        %v6709 = vpop.permute.xlu0 %6708
        %6710 = vrot.lane.b32.xlu0 %v6441, 64
        %v6711 = vpop.permute.xlu0 %6710
        %6712 = vrot.lane.b32.xlu0 %v6445, 64
        %v6713 = vpop.permute.xlu0 %6712
        %6714 = vrot.lane.b32.xlu0 %v6449, 64
        %v6715 = vpop.permute.xlu0 %6714
        %6716 = vrot.lane.b32.xlu0 %v6453, 64
        %v6717 = vpop.permute.xlu0 %6716
        %6718 = vrot.lane.b32.xlu0 %v6457, 64
        %v6719 = vpop.permute.xlu0 %6718
        %6720 = vrot.lane.b32.xlu0 %v6461, 64
        %v6721 = vpop.permute.xlu0 %6720
        %6722 = vrot.lane.b32.xlu0 %v6465, 64
        %v6723 = vpop.permute.xlu0 %6722
        %6724 = vrot.lane.b32.xlu0 %v6469, 64
        %v6725 = vpop.permute.xlu0 %6724
        %6726 = vrot.lane.b32.xlu0 %v6473, 64
        %v6727 = vpop.permute.xlu0 %6726
        %6728 = vrot.lane.b32.xlu0 %v6477, 64
        %v6729 = vpop.permute.xlu0 %6728
        %6730 = vrot.lane.b32.xlu0 %v6481, 64
        %v6731 = vpop.permute.xlu0 %6730
        %6732 = vrot.lane.b32.xlu0 %v6485, 64
        %v6733 = vpop.permute.xlu0 %6732
        %6734 = vrot.lane.b32.xlu0 %v6489, 64
        %v6735 = vpop.permute.xlu0 %6734
        %6736 = vrot.lane.b32.xlu0 %v6493, 64
        %v6737 = vpop.permute.xlu0 %6736
        %6738 = vrot.lane.b32.xlu0 %v6497, 64
        %v6739 = vpop.permute.xlu0 %6738
        %6740 = vrot.lane.b32.xlu0 %v6501, 64
        %v6741 = vpop.permute.xlu0 %6740
        %6742 = vrot.lane.b32.xlu0 %v6505, 64
        %v6743 = vpop.permute.xlu0 %6742
        %6744 = vrot.lane.b32.xlu0 %v6509, 64
        %v6745 = vpop.permute.xlu0 %6744
        %6746 = vrot.lane.b32.xlu0 %v6513, 64
        %v6747 = vpop.permute.xlu0 %6746
        %6748 = vrot.lane.b32.xlu0 %v6517, 64
        %v6749 = vpop.permute.xlu0 %6748
        %6750 = vrot.lane.b32.xlu0 %v6521, 64
        %v6751 = vpop.permute.xlu0 %6750
        %6752 = vrot.lane.b32.xlu0 %v6525, 64
        %v6753 = vpop.permute.xlu0 %6752
        %6754 = vrot.lane.b32.xlu0 %v6529, 64
        %v6755 = vpop.permute.xlu0 %6754
        %6756 = vrot.lane.b32.xlu0 %v6533, 64
        %v6757 = vpop.permute.xlu0 %6756
        %6758 = vrot.lane.b32.xlu0 %v6537, 64
        %v6759 = vpop.permute.xlu0 %6758
        %6760 = vrot.lane.b32.xlu0 %v6541, 64
        %v6761 = vpop.permute.xlu0 %6760
        %6762 = vrot.lane.b32.xlu0 %v6545, 64
        %v6763 = vpop.permute.xlu0 %6762
        %6764 = vrot.lane.b32.xlu0 %v6549, 64
        %v6765 = vpop.permute.xlu0 %6764
        %6766 = vrot.lane.b32.xlu0 %v6553, 64
        %v6767 = vpop.permute.xlu0 %6766
        %6768 = vrot.lane.b32.xlu0 %v6557, 64
        %v6769 = vpop.permute.xlu0 %6768
        %6770 = vrot.lane.b32.xlu0 %v6561, 64
        %v6771 = vpop.permute.xlu0 %6770
        %6772 = vrot.lane.b32.xlu0 %v6565, 64
        %v6773 = vpop.permute.xlu0 %6772
        %6774 = vrot.lane.b32.xlu0 %v6569, 64
        %v6775 = vpop.permute.xlu0 %6774
        %6776 = vrot.lane.b32.xlu0 %v6573, 64
        %v6777 = vpop.permute.xlu0 %6776
        %6778 = vrot.lane.b32.xlu0 %v6577, 64
        %v6779 = vpop.permute.xlu0 %6778
        %6780 = vrot.lane.b32.xlu0 %v6581, 64
        %v6781 = vpop.permute.xlu0 %6780
        %6782 = vrot.lane.b32.xlu0 %v6585, 64
        %v6783 = vpop.permute.xlu0 %6782
        %6784 = vrot.lane.b32.xlu0 %v6589, 64
        %v6785 = vpop.permute.xlu0 %6784
        %6786 = vrot.lane.b32.xlu0 %v6593, 64
        %v6787 = vpop.permute.xlu0 %6786
        %6788 = vrot.lane.b32.xlu0 %v6597, 64
        %v6789 = vpop.permute.xlu0 %6788
        %vm6854 = vcmask 1040384
        %vm6855 = vmand %vm6854, %vm2075
        %v6856 = vsel %vm6855, %v6345, %v6663
        %v6857 = vsel %vm6855, %v6349, %v6665
        %v6858 = vsel %vm6855, %v6353, %v6667
        %v6859 = vsel %vm6855, %v6357, %v6669
        %v6860 = vsel %vm6855, %v6361, %v6671
        %v6861 = vsel %vm6855, %v6365, %v6673
        %v6862 = vsel %vm6855, %v6369, %v6675
        %v6863 = vsel %vm6855, %v6373, %v6677
        %v6864 = vsel %vm6855, %v6377, %v6679
        %v6865 = vsel %vm6855, %v6381, %v6681
        %v6866 = vsel %vm6855, %v6385, %v6683
        %v6867 = vsel %vm6855, %v6389, %v6685
        %v6868 = vsel %vm6855, %v6393, %v6687
        %v6869 = vsel %vm6855, %v6397, %v6689
        %v6870 = vsel %vm6855, %v6401, %v6691
        %v6871 = vsel %vm6855, %v6405, %v6693
        %v6872 = vsel %vm6855, %v6409, %v6695
        %v6873 = vsel %vm6855, %v6413, %v6697
        %v6874 = vsel %vm6855, %v6417, %v6699
        %v6875 = vsel %vm6855, %v6421, %v6701
        %v6876 = vsel %vm6855, %v6425, %v6703
        %v6877 = vsel %vm6855, %v6429, %v6705
        %v6878 = vsel %vm6855, %v6433, %v6707
        %v6879 = vsel %vm6855, %v6437, %v6709
        %v6880 = vsel %vm6855, %v6441, %v6711
        %v6881 = vsel %vm6855, %v6445, %v6713
        %v6882 = vsel %vm6855, %v6449, %v6715
        %v6883 = vsel %vm6855, %v6453, %v6717
        %v6884 = vsel %vm6855, %v6457, %v6719
        %v6885 = vsel %vm6855, %v6461, %v6721
        %v6886 = vsel %vm6855, %v6465, %v6723
        %v6887 = vsel %vm6855, %v6469, %v6725
        %v6888 = vsel %vm6855, %v6473, %v6727
        %v6889 = vsel %vm6855, %v6477, %v6729
        %v6890 = vsel %vm6855, %v6481, %v6731
        %v6891 = vsel %vm6855, %v6485, %v6733
        %v6892 = vsel %vm6855, %v6489, %v6735
        %v6893 = vsel %vm6855, %v6493, %v6737
        %v6894 = vsel %vm6855, %v6497, %v6739
        %v6895 = vsel %vm6855, %v6501, %v6741
        %v6896 = vsel %vm6855, %v6505, %v6743
        %v6897 = vsel %vm6855, %v6509, %v6745
        %v6898 = vsel %vm6855, %v6513, %v6747
        %v6899 = vsel %vm6855, %v6517, %v6749
        %v6900 = vsel %vm6855, %v6521, %v6751
        %v6901 = vsel %vm6855, %v6525, %v6753
        %v6902 = vsel %vm6855, %v6529, %v6755
        %v6903 = vsel %vm6855, %v6533, %v6757
        %v6904 = vsel %vm6855, %v6537, %v6759
        %v6905 = vsel %vm6855, %v6541, %v6761
        %v6906 = vsel %vm6855, %v6545, %v6763
        %v6907 = vsel %vm6855, %v6549, %v6765
        %v6908 = vsel %vm6855, %v6553, %v6767
        %v6909 = vsel %vm6855, %v6557, %v6769
        %v6910 = vsel %vm6855, %v6561, %v6771
        %v6911 = vsel %vm6855, %v6565, %v6773
        %v6912 = vsel %vm6855, %v6569, %v6775
        %v6913 = vsel %vm6855, %v6573, %v6777
        %v6914 = vsel %vm6855, %v6577, %v6779
        %v6915 = vsel %vm6855, %v6581, %v6781
        %v6916 = vsel %vm6855, %v6585, %v6783
        %v6917 = vsel %vm6855, %v6589, %v6785
        %v6918 = vsel %vm6855, %v6593, %v6787
        %v6919 = vsel %vm6855, %v6597, %v6789
        %v6920 = vpack.i.b16 %v6215, %v6214
        %v6921 = vpack.i.b16 %v6217, %v6216
        %v6922 = vpack.i.b16 %v6219, %v6218
        %v6923 = vpack.i.b16 %v6221, %v6220
        %v6924 = vpack.i.b16 %v6223, %v6222
        %v6925 = vpack.i.b16 %v6225, %v6224
        %v6926 = vpack.i.b16 %v6227, %v6226
        %v6927 = vpack.i.b16 %v6229, %v6228
        %v6928 = vpack.i.b16 %v6231, %v6230
        %v6929 = vpack.i.b16 %v6233, %v6232
        %v6930 = vpack.i.b16 %v6235, %v6234
        %v6931 = vpack.i.b16 %v6237, %v6236
        %v6932 = vpack.i.b16 %v6239, %v6238
        %v6933 = vpack.i.b16 %v6241, %v6240
        %v6934 = vpack.i.b16 %v6243, %v6242
        %v6935 = vpack.i.b16 %v6245, %v6244
        %v6936 = vpack.i.b16 %v6247, %v6246
        %v6937 = vpack.i.b16 %v6249, %v6248
        %v6938 = vpack.i.b16 %v6251, %v6250
        %v6939 = vpack.i.b16 %v6253, %v6252
        %v6940 = vpack.i.b16 %v6255, %v6254
        %v6941 = vpack.i.b16 %v6257, %v6256
        %v6942 = vpack.i.b16 %v6259, %v6258
        %v6943 = vpack.i.b16 %v6261, %v6260
        %v6944 = vpack.i.b16 %v6263, %v6262
        %v6945 = vpack.i.b16 %v6265, %v6264
        %v6946 = vpack.i.b16 %v6267, %v6266
        %v6947 = vpack.i.b16 %v6269, %v6268
        %v6948 = vpack.i.b16 %v6271, %v6270
        %v6949 = vpack.i.b16 %v6273, %v6272
        %v6950 = vpack.i.b16 %v6275, %v6274
        %v6951 = vpack.i.b16 %v6277, %v6276
        %v6952 = vrot.slane %v6920, 1
        %v6953 = vrot.slane %v6921, 1
        %v6954 = vrot.slane %v6922, 1
        %v6955 = vrot.slane %v6923, 1
        %v6956 = vrot.slane %v6924, 1
        %v6957 = vrot.slane %v6925, 1
        %v6958 = vrot.slane %v6926, 1
        %v6959 = vrot.slane %v6927, 1
        %v6960 = vrot.slane %v6928, 1
        %v6961 = vrot.slane %v6929, 1
        %v6962 = vrot.slane %v6930, 1
        %v6963 = vrot.slane %v6931, 1
        %v6964 = vrot.slane %v6932, 1
        %v6965 = vrot.slane %v6933, 1
        %v6966 = vrot.slane %v6934, 1
        %v6967 = vrot.slane %v6935, 1
        %v6968 = vrot.slane %v6936, 1
        %v6969 = vrot.slane %v6937, 1
        %v6970 = vrot.slane %v6938, 1
        %v6971 = vrot.slane %v6939, 1
        %v6972 = vrot.slane %v6940, 1
        %v6973 = vrot.slane %v6941, 1
        %v6974 = vrot.slane %v6942, 1
        %v6975 = vrot.slane %v6943, 1
        %v6976 = vrot.slane %v6944, 1
        %v6977 = vrot.slane %v6945, 1
        %v6978 = vrot.slane %v6946, 1
        %v6979 = vrot.slane %v6947, 1
        %v6980 = vrot.slane %v6948, 1
        %v6981 = vrot.slane %v6949, 1
        %v6982 = vrot.slane %v6950, 1
        %v6983 = vrot.slane %v6951, 1
        %v6984 = vunpack.i.l.s16 %v6952
        %v6985 = vunpack.i.h.s16 %v6952
        %v6986 = vunpack.i.l.s16 %v6953
        %v6987 = vunpack.i.h.s16 %v6953
        %v6988 = vunpack.i.l.s16 %v6954
        %v6989 = vunpack.i.h.s16 %v6954
        %v6990 = vunpack.i.l.s16 %v6955
        %v6991 = vunpack.i.h.s16 %v6955
        %v6992 = vunpack.i.l.s16 %v6956
        %v6993 = vunpack.i.h.s16 %v6956
        %v6994 = vunpack.i.l.s16 %v6957
        %v6995 = vunpack.i.h.s16 %v6957
        %v6996 = vunpack.i.l.s16 %v6958
        %v6997 = vunpack.i.h.s16 %v6958
        %v6998 = vunpack.i.l.s16 %v6959
        %v6999 = vunpack.i.h.s16 %v6959
        %v7000 = vunpack.i.l.s16 %v6960
        %v7001 = vunpack.i.h.s16 %v6960
        %v7002 = vunpack.i.l.s16 %v6961
        %v7003 = vunpack.i.h.s16 %v6961
        %v7004 = vunpack.i.l.s16 %v6962
        %v7005 = vunpack.i.h.s16 %v6962
        %v7006 = vunpack.i.l.s16 %v6963
        %v7007 = vunpack.i.h.s16 %v6963
        %v7008 = vunpack.i.l.s16 %v6964
        %v7009 = vunpack.i.h.s16 %v6964
        %v7010 = vunpack.i.l.s16 %v6965
        %v7011 = vunpack.i.h.s16 %v6965
        %v7012 = vunpack.i.l.s16 %v6966
        %v7013 = vunpack.i.h.s16 %v6966
        %v7014 = vunpack.i.l.s16 %v6967
        %v7015 = vunpack.i.h.s16 %v6967
        %v7016 = vunpack.i.l.s16 %v6968
        %v7017 = vunpack.i.h.s16 %v6968
        %v7018 = vunpack.i.l.s16 %v6969
        %v7019 = vunpack.i.h.s16 %v6969
        %v7020 = vunpack.i.l.s16 %v6970
        %v7021 = vunpack.i.h.s16 %v6970
        %v7022 = vunpack.i.l.s16 %v6971
        %v7023 = vunpack.i.h.s16 %v6971
        %v7024 = vunpack.i.l.s16 %v6972
        %v7025 = vunpack.i.h.s16 %v6972
        %v7026 = vunpack.i.l.s16 %v6973
        %v7027 = vunpack.i.h.s16 %v6973
        %v7028 = vunpack.i.l.s16 %v6974
        %v7029 = vunpack.i.h.s16 %v6974
        %v7030 = vunpack.i.l.s16 %v6975
        %v7031 = vunpack.i.h.s16 %v6975
        %v7032 = vunpack.i.l.s16 %v6976
        %v7033 = vunpack.i.h.s16 %v6976
        %v7034 = vunpack.i.l.s16 %v6977
        %v7035 = vunpack.i.h.s16 %v6977
        %v7036 = vunpack.i.l.s16 %v6978
        %v7037 = vunpack.i.h.s16 %v6978
        %v7038 = vunpack.i.l.s16 %v6979
        %v7039 = vunpack.i.h.s16 %v6979
        %v7040 = vunpack.i.l.s16 %v6980
        %v7041 = vunpack.i.h.s16 %v6980
        %v7042 = vunpack.i.l.s16 %v6981
        %v7043 = vunpack.i.h.s16 %v6981
        %v7044 = vunpack.i.l.s16 %v6982
        %v7045 = vunpack.i.h.s16 %v6982
        %v7046 = vunpack.i.l.s16 %v6983
        %v7047 = vunpack.i.h.s16 %v6983
        %7048 = vrot.lane.b32.xlu0 %v6920, 64
        %v7049 = vpop.permute.xlu0 %7048
        %7050 = vrot.lane.b32.xlu0 %v6921, 64
        %v7051 = vpop.permute.xlu0 %7050
        %7052 = vrot.lane.b32.xlu0 %v6922, 64
        %v7053 = vpop.permute.xlu0 %7052
        %7054 = vrot.lane.b32.xlu0 %v6923, 64
        %v7055 = vpop.permute.xlu0 %7054
        %7056 = vrot.lane.b32.xlu0 %v6924, 64
        %v7057 = vpop.permute.xlu0 %7056
        %7058 = vrot.lane.b32.xlu0 %v6925, 64
        %v7059 = vpop.permute.xlu0 %7058
        %7060 = vrot.lane.b32.xlu0 %v6926, 64
        %v7061 = vpop.permute.xlu0 %7060
        %7062 = vrot.lane.b32.xlu0 %v6927, 64
        %v7063 = vpop.permute.xlu0 %7062
        %7064 = vrot.lane.b32.xlu0 %v6928, 64
        %v7065 = vpop.permute.xlu0 %7064
        %7066 = vrot.lane.b32.xlu0 %v6929, 64
        %v7067 = vpop.permute.xlu0 %7066
        %7068 = vrot.lane.b32.xlu0 %v6930, 64
        %v7069 = vpop.permute.xlu0 %7068
        %7070 = vrot.lane.b32.xlu0 %v6931, 64
        %v7071 = vpop.permute.xlu0 %7070
        %7072 = vrot.lane.b32.xlu0 %v6932, 64
        %v7073 = vpop.permute.xlu0 %7072
        %7074 = vrot.lane.b32.xlu0 %v6933, 64
        %v7075 = vpop.permute.xlu0 %7074
        %7076 = vrot.lane.b32.xlu0 %v6934, 64
        %v7077 = vpop.permute.xlu0 %7076
        %7078 = vrot.lane.b32.xlu0 %v6935, 64
        %v7079 = vpop.permute.xlu0 %7078
        %7080 = vrot.lane.b32.xlu0 %v6936, 64
        %v7081 = vpop.permute.xlu0 %7080
        %7082 = vrot.lane.b32.xlu0 %v6937, 64
        %v7083 = vpop.permute.xlu0 %7082
        %7084 = vrot.lane.b32.xlu0 %v6938, 64
        %v7085 = vpop.permute.xlu0 %7084
        %7086 = vrot.lane.b32.xlu0 %v6939, 64
        %v7087 = vpop.permute.xlu0 %7086
        %7088 = vrot.lane.b32.xlu0 %v6940, 64
        %v7089 = vpop.permute.xlu0 %7088
        %7090 = vrot.lane.b32.xlu0 %v6941, 64
        %v7091 = vpop.permute.xlu0 %7090
        %7092 = vrot.lane.b32.xlu0 %v6942, 64
        %v7093 = vpop.permute.xlu0 %7092
        %7094 = vrot.lane.b32.xlu0 %v6943, 64
        %v7095 = vpop.permute.xlu0 %7094
        %7096 = vrot.lane.b32.xlu0 %v6944, 64
        %v7097 = vpop.permute.xlu0 %7096
        %7098 = vrot.lane.b32.xlu0 %v6945, 64
        %v7099 = vpop.permute.xlu0 %7098
        %7100 = vrot.lane.b32.xlu0 %v6946, 64
        %v7101 = vpop.permute.xlu0 %7100
        %7102 = vrot.lane.b32.xlu0 %v6947, 64
        %v7103 = vpop.permute.xlu0 %7102
        %7104 = vrot.lane.b32.xlu0 %v6948, 64
        %v7105 = vpop.permute.xlu0 %7104
        %7106 = vrot.lane.b32.xlu0 %v6949, 64
        %v7107 = vpop.permute.xlu0 %7106
        %7108 = vrot.lane.b32.xlu0 %v6950, 64
        %v7109 = vpop.permute.xlu0 %7108
        %7110 = vrot.lane.b32.xlu0 %v6951, 64
        %v7111 = vpop.permute.xlu0 %7110
        %v7112 = vrot.slane %v7049, 1
        %v7113 = vrot.slane %v7051, 1
        %v7114 = vrot.slane %v7053, 1
        %v7115 = vrot.slane %v7055, 1
        %v7116 = vrot.slane %v7057, 1
        %v7117 = vrot.slane %v7059, 1
        %v7118 = vrot.slane %v7061, 1
        %v7119 = vrot.slane %v7063, 1
        %v7120 = vrot.slane %v7065, 1
        %v7121 = vrot.slane %v7067, 1
        %v7122 = vrot.slane %v7069, 1
        %v7123 = vrot.slane %v7071, 1
        %v7124 = vrot.slane %v7073, 1
        %v7125 = vrot.slane %v7075, 1
        %v7126 = vrot.slane %v7077, 1
        %v7127 = vrot.slane %v7079, 1
        %v7128 = vrot.slane %v7081, 1
        %v7129 = vrot.slane %v7083, 1
        %v7130 = vrot.slane %v7085, 1
        %v7131 = vrot.slane %v7087, 1
        %v7132 = vrot.slane %v7089, 1
        %v7133 = vrot.slane %v7091, 1
        %v7134 = vrot.slane %v7093, 1
        %v7135 = vrot.slane %v7095, 1
        %v7136 = vrot.slane %v7097, 1
        %v7137 = vrot.slane %v7099, 1
        %v7138 = vrot.slane %v7101, 1
        %v7139 = vrot.slane %v7103, 1
        %v7140 = vrot.slane %v7105, 1
        %v7141 = vrot.slane %v7107, 1
        %v7142 = vrot.slane %v7109, 1
        %v7143 = vrot.slane %v7111, 1
        %v7144 = vunpack.i.l.s16 %v7112
        %v7145 = vunpack.i.h.s16 %v7112
        %v7146 = vunpack.i.l.s16 %v7113
        %v7147 = vunpack.i.h.s16 %v7113
        %v7148 = vunpack.i.l.s16 %v7114
        %v7149 = vunpack.i.h.s16 %v7114
        %v7150 = vunpack.i.l.s16 %v7115
        %v7151 = vunpack.i.h.s16 %v7115
        %v7152 = vunpack.i.l.s16 %v7116
        %v7153 = vunpack.i.h.s16 %v7116
        %v7154 = vunpack.i.l.s16 %v7117
        %v7155 = vunpack.i.h.s16 %v7117
        %v7156 = vunpack.i.l.s16 %v7118
        %v7157 = vunpack.i.h.s16 %v7118
        %v7158 = vunpack.i.l.s16 %v7119
        %v7159 = vunpack.i.h.s16 %v7119
        %v7160 = vunpack.i.l.s16 %v7120
        %v7161 = vunpack.i.h.s16 %v7120
        %v7162 = vunpack.i.l.s16 %v7121
        %v7163 = vunpack.i.h.s16 %v7121
        %v7164 = vunpack.i.l.s16 %v7122
        %v7165 = vunpack.i.h.s16 %v7122
        %v7166 = vunpack.i.l.s16 %v7123
        %v7167 = vunpack.i.h.s16 %v7123
        %v7168 = vunpack.i.l.s16 %v7124
        %v7169 = vunpack.i.h.s16 %v7124
        %v7170 = vunpack.i.l.s16 %v7125
        %v7171 = vunpack.i.h.s16 %v7125
        %v7172 = vunpack.i.l.s16 %v7126
        %v7173 = vunpack.i.h.s16 %v7126
        %v7174 = vunpack.i.l.s16 %v7127
        %v7175 = vunpack.i.h.s16 %v7127
        %v7176 = vunpack.i.l.s16 %v7128
        %v7177 = vunpack.i.h.s16 %v7128
        %v7178 = vunpack.i.l.s16 %v7129
        %v7179 = vunpack.i.h.s16 %v7129
        %v7180 = vunpack.i.l.s16 %v7130
        %v7181 = vunpack.i.h.s16 %v7130
        %v7182 = vunpack.i.l.s16 %v7131
        %v7183 = vunpack.i.h.s16 %v7131
        %v7184 = vunpack.i.l.s16 %v7132
        %v7185 = vunpack.i.h.s16 %v7132
        %v7186 = vunpack.i.l.s16 %v7133
        %v7187 = vunpack.i.h.s16 %v7133
        %v7188 = vunpack.i.l.s16 %v7134
        %v7189 = vunpack.i.h.s16 %v7134
        %v7190 = vunpack.i.l.s16 %v7135
        %v7191 = vunpack.i.h.s16 %v7135
        %v7192 = vunpack.i.l.s16 %v7136
        %v7193 = vunpack.i.h.s16 %v7136
        %v7194 = vunpack.i.l.s16 %v7137
        %v7195 = vunpack.i.h.s16 %v7137
        %v7196 = vunpack.i.l.s16 %v7138
        %v7197 = vunpack.i.h.s16 %v7138
        %v7198 = vunpack.i.l.s16 %v7139
        %v7199 = vunpack.i.h.s16 %v7139
        %v7200 = vunpack.i.l.s16 %v7140
        %v7201 = vunpack.i.h.s16 %v7140
        %v7202 = vunpack.i.l.s16 %v7141
        %v7203 = vunpack.i.h.s16 %v7141
        %v7204 = vunpack.i.l.s16 %v7142
        %v7205 = vunpack.i.h.s16 %v7142
        %v7206 = vunpack.i.l.s16 %v7143
        %v7207 = vunpack.i.h.s16 %v7143
        %v7208 = vpack.i.b16 %v6984, %v6984
        %v7209 = vpack.i.b16 %v6985, %v6985
        %v7210 = vpack.i.b16 %v6986, %v6986
        %v7211 = vpack.i.b16 %v6987, %v6987
        %v7212 = vpack.i.b16 %v6988, %v6988
        %v7213 = vpack.i.b16 %v6989, %v6989
        %v7214 = vpack.i.b16 %v6990, %v6990
        %v7215 = vpack.i.b16 %v6991, %v6991
        %v7216 = vpack.i.b16 %v6992, %v6992
        %v7217 = vpack.i.b16 %v6993, %v6993
        %v7218 = vpack.i.b16 %v6994, %v6994
        %v7219 = vpack.i.b16 %v6995, %v6995
        %v7220 = vpack.i.b16 %v6996, %v6996
        %v7221 = vpack.i.b16 %v6997, %v6997
        %v7222 = vpack.i.b16 %v6998, %v6998
        %v7223 = vpack.i.b16 %v6999, %v6999
        %v7224 = vpack.i.b16 %v7000, %v7000
        %v7225 = vpack.i.b16 %v7001, %v7001
        %v7226 = vpack.i.b16 %v7002, %v7002
        %v7227 = vpack.i.b16 %v7003, %v7003
        %v7228 = vpack.i.b16 %v7004, %v7004
        %v7229 = vpack.i.b16 %v7005, %v7005
        %v7230 = vpack.i.b16 %v7006, %v7006
        %v7231 = vpack.i.b16 %v7007, %v7007
        %v7232 = vpack.i.b16 %v7008, %v7008
        %v7233 = vpack.i.b16 %v7009, %v7009
        %v7234 = vpack.i.b16 %v7010, %v7010
        %v7235 = vpack.i.b16 %v7011, %v7011
        %v7236 = vpack.i.b16 %v7012, %v7012
        %v7237 = vpack.i.b16 %v7013, %v7013
        %v7238 = vpack.i.b16 %v7014, %v7014
        %v7239 = vpack.i.b16 %v7015, %v7015
        %v7240 = vpack.i.b16 %v7016, %v7016
        %v7241 = vpack.i.b16 %v7017, %v7017
        %v7242 = vpack.i.b16 %v7018, %v7018
        %v7243 = vpack.i.b16 %v7019, %v7019
        %v7244 = vpack.i.b16 %v7020, %v7020
        %v7245 = vpack.i.b16 %v7021, %v7021
        %v7246 = vpack.i.b16 %v7022, %v7022
        %v7247 = vpack.i.b16 %v7023, %v7023
        %v7248 = vpack.i.b16 %v7024, %v7024
        %v7249 = vpack.i.b16 %v7025, %v7025
        %v7250 = vpack.i.b16 %v7026, %v7026
        %v7251 = vpack.i.b16 %v7027, %v7027
        %v7252 = vpack.i.b16 %v7028, %v7028
        %v7253 = vpack.i.b16 %v7029, %v7029
        %v7254 = vpack.i.b16 %v7030, %v7030
        %v7255 = vpack.i.b16 %v7031, %v7031
        %v7256 = vpack.i.b16 %v7032, %v7032
        %v7257 = vpack.i.b16 %v7033, %v7033
        %v7258 = vpack.i.b16 %v7034, %v7034
        %v7259 = vpack.i.b16 %v7035, %v7035
        %v7260 = vpack.i.b16 %v7036, %v7036
        %v7261 = vpack.i.b16 %v7037, %v7037
        %v7262 = vpack.i.b16 %v7038, %v7038
        %v7263 = vpack.i.b16 %v7039, %v7039
        %v7264 = vpack.i.b16 %v7040, %v7040
        %v7265 = vpack.i.b16 %v7041, %v7041
        %v7266 = vpack.i.b16 %v7042, %v7042
        %v7267 = vpack.i.b16 %v7043, %v7043
        %v7268 = vpack.i.b16 %v7044, %v7044
        %v7269 = vpack.i.b16 %v7045, %v7045
        %v7270 = vpack.i.b16 %v7046, %v7046
        %v7271 = vpack.i.b16 %v7047, %v7047
        %v7272 = vlaneseq
        %v7273 = vshrl.u32 %v7272, 7
        %v7274 = vsub.s32 0, %v7273
        %v7275 = vrot.slane %v7208, %v7274
        %v7276 = vlaneseq
        %v7277 = vshrl.u32 %v7276, 7
        %v7278 = vsub.s32 0, %v7277
        %v7279 = vrot.slane %v7209, %v7278
        %v7280 = vlaneseq
        %v7281 = vshrl.u32 %v7280, 7
        %v7282 = vsub.s32 0, %v7281
        %v7283 = vrot.slane %v7210, %v7282
        %v7284 = vlaneseq
        %v7285 = vshrl.u32 %v7284, 7
        %v7286 = vsub.s32 0, %v7285
        %v7287 = vrot.slane %v7211, %v7286
        %v7288 = vlaneseq
        %v7289 = vshrl.u32 %v7288, 7
        %v7290 = vsub.s32 0, %v7289
        %v7291 = vrot.slane %v7212, %v7290
        %v7292 = vlaneseq
        %v7293 = vshrl.u32 %v7292, 7
        %v7294 = vsub.s32 0, %v7293
        %v7295 = vrot.slane %v7213, %v7294
        %v7296 = vlaneseq
        %v7297 = vshrl.u32 %v7296, 7
        %v7298 = vsub.s32 0, %v7297
        %v7299 = vrot.slane %v7214, %v7298
        %v7300 = vlaneseq
        %v7301 = vshrl.u32 %v7300, 7
        %v7302 = vsub.s32 0, %v7301
        %v7303 = vrot.slane %v7215, %v7302
        %v7304 = vlaneseq
        %v7305 = vshrl.u32 %v7304, 7
        %v7306 = vsub.s32 0, %v7305
        %v7307 = vrot.slane %v7216, %v7306
        %v7308 = vlaneseq
        %v7309 = vshrl.u32 %v7308, 7
        %v7310 = vsub.s32 0, %v7309
        %v7311 = vrot.slane %v7217, %v7310
        %v7312 = vlaneseq
        %v7313 = vshrl.u32 %v7312, 7
        %v7314 = vsub.s32 0, %v7313
        %v7315 = vrot.slane %v7218, %v7314
        %v7316 = vlaneseq
        %v7317 = vshrl.u32 %v7316, 7
        %v7318 = vsub.s32 0, %v7317
        %v7319 = vrot.slane %v7219, %v7318
        %v7320 = vlaneseq
        %v7321 = vshrl.u32 %v7320, 7
        %v7322 = vsub.s32 0, %v7321
        %v7323 = vrot.slane %v7220, %v7322
        %v7324 = vlaneseq
        %v7325 = vshrl.u32 %v7324, 7
        %v7326 = vsub.s32 0, %v7325
        %v7327 = vrot.slane %v7221, %v7326
        %v7328 = vlaneseq
        %v7329 = vshrl.u32 %v7328, 7
        %v7330 = vsub.s32 0, %v7329
        %v7331 = vrot.slane %v7222, %v7330
        %v7332 = vlaneseq
        %v7333 = vshrl.u32 %v7332, 7
        %v7334 = vsub.s32 0, %v7333
        %v7335 = vrot.slane %v7223, %v7334
        %v7336 = vlaneseq
        %v7337 = vshrl.u32 %v7336, 7
        %v7338 = vsub.s32 0, %v7337
        %v7339 = vrot.slane %v7224, %v7338
        %v7340 = vlaneseq
        %v7341 = vshrl.u32 %v7340, 7
        %v7342 = vsub.s32 0, %v7341
        %v7343 = vrot.slane %v7225, %v7342
        %v7344 = vlaneseq
        %v7345 = vshrl.u32 %v7344, 7
        %v7346 = vsub.s32 0, %v7345
        %v7347 = vrot.slane %v7226, %v7346
        %v7348 = vlaneseq
        %v7349 = vshrl.u32 %v7348, 7
        %v7350 = vsub.s32 0, %v7349
        %v7351 = vrot.slane %v7227, %v7350
        %v7352 = vlaneseq
        %v7353 = vshrl.u32 %v7352, 7
        %v7354 = vsub.s32 0, %v7353
        %v7355 = vrot.slane %v7228, %v7354
        %v7356 = vlaneseq
        %v7357 = vshrl.u32 %v7356, 7
        %v7358 = vsub.s32 0, %v7357
        %v7359 = vrot.slane %v7229, %v7358
        %v7360 = vlaneseq
        %v7361 = vshrl.u32 %v7360, 7
        %v7362 = vsub.s32 0, %v7361
        %v7363 = vrot.slane %v7230, %v7362
        %v7364 = vlaneseq
        %v7365 = vshrl.u32 %v7364, 7
        %v7366 = vsub.s32 0, %v7365
        %v7367 = vrot.slane %v7231, %v7366
        %v7368 = vlaneseq
        %v7369 = vshrl.u32 %v7368, 7
        %v7370 = vsub.s32 0, %v7369
        %v7371 = vrot.slane %v7232, %v7370
        %v7372 = vlaneseq
        %v7373 = vshrl.u32 %v7372, 7
        %v7374 = vsub.s32 0, %v7373
        %v7375 = vrot.slane %v7233, %v7374
        %v7376 = vlaneseq
        %v7377 = vshrl.u32 %v7376, 7
        %v7378 = vsub.s32 0, %v7377
        %v7379 = vrot.slane %v7234, %v7378
        %v7380 = vlaneseq
        %v7381 = vshrl.u32 %v7380, 7
        %v7382 = vsub.s32 0, %v7381
        %v7383 = vrot.slane %v7235, %v7382
        %v7384 = vlaneseq
        %v7385 = vshrl.u32 %v7384, 7
        %v7386 = vsub.s32 0, %v7385
        %v7387 = vrot.slane %v7236, %v7386
        %v7388 = vlaneseq
        %v7389 = vshrl.u32 %v7388, 7
        %v7390 = vsub.s32 0, %v7389
        %v7391 = vrot.slane %v7237, %v7390
        %v7392 = vlaneseq
        %v7393 = vshrl.u32 %v7392, 7
        %v7394 = vsub.s32 0, %v7393
        %v7395 = vrot.slane %v7238, %v7394
        %v7396 = vlaneseq
        %v7397 = vshrl.u32 %v7396, 7
        %v7398 = vsub.s32 0, %v7397
        %v7399 = vrot.slane %v7239, %v7398
        %v7400 = vlaneseq
        %v7401 = vshrl.u32 %v7400, 7
        %v7402 = vsub.s32 0, %v7401
        %v7403 = vrot.slane %v7240, %v7402
        %v7404 = vlaneseq
        %v7405 = vshrl.u32 %v7404, 7
        %v7406 = vsub.s32 0, %v7405
        %v7407 = vrot.slane %v7241, %v7406
        %v7408 = vlaneseq
        %v7409 = vshrl.u32 %v7408, 7
        %v7410 = vsub.s32 0, %v7409
        %v7411 = vrot.slane %v7242, %v7410
        %v7412 = vlaneseq
        %v7413 = vshrl.u32 %v7412, 7
        %v7414 = vsub.s32 0, %v7413
        %v7415 = vrot.slane %v7243, %v7414
        %v7416 = vlaneseq
        %v7417 = vshrl.u32 %v7416, 7
        %v7418 = vsub.s32 0, %v7417
        %v7419 = vrot.slane %v7244, %v7418
        %v7420 = vlaneseq
        %v7421 = vshrl.u32 %v7420, 7
        %v7422 = vsub.s32 0, %v7421
        %v7423 = vrot.slane %v7245, %v7422
        %v7424 = vlaneseq
        %v7425 = vshrl.u32 %v7424, 7
        %v7426 = vsub.s32 0, %v7425
        %v7427 = vrot.slane %v7246, %v7426
        %v7428 = vlaneseq
        %v7429 = vshrl.u32 %v7428, 7
        %v7430 = vsub.s32 0, %v7429
        %v7431 = vrot.slane %v7247, %v7430
        %v7432 = vlaneseq
        %v7433 = vshrl.u32 %v7432, 7
        %v7434 = vsub.s32 0, %v7433
        %v7435 = vrot.slane %v7248, %v7434
        %v7436 = vlaneseq
        %v7437 = vshrl.u32 %v7436, 7
        %v7438 = vsub.s32 0, %v7437
        %v7439 = vrot.slane %v7249, %v7438
        %v7440 = vlaneseq
        %v7441 = vshrl.u32 %v7440, 7
        %v7442 = vsub.s32 0, %v7441
        %v7443 = vrot.slane %v7250, %v7442
        %v7444 = vlaneseq
        %v7445 = vshrl.u32 %v7444, 7
        %v7446 = vsub.s32 0, %v7445
        %v7447 = vrot.slane %v7251, %v7446
        %v7448 = vlaneseq
        %v7449 = vshrl.u32 %v7448, 7
        %v7450 = vsub.s32 0, %v7449
        %v7451 = vrot.slane %v7252, %v7450
        %v7452 = vlaneseq
        %v7453 = vshrl.u32 %v7452, 7
        %v7454 = vsub.s32 0, %v7453
        %v7455 = vrot.slane %v7253, %v7454
        %v7456 = vlaneseq
        %v7457 = vshrl.u32 %v7456, 7
        %v7458 = vsub.s32 0, %v7457
        %v7459 = vrot.slane %v7254, %v7458
        %v7460 = vlaneseq
        %v7461 = vshrl.u32 %v7460, 7
        %v7462 = vsub.s32 0, %v7461
        %v7463 = vrot.slane %v7255, %v7462
        %v7464 = vlaneseq
        %v7465 = vshrl.u32 %v7464, 7
        %v7466 = vsub.s32 0, %v7465
        %v7467 = vrot.slane %v7256, %v7466
        %v7468 = vlaneseq
        %v7469 = vshrl.u32 %v7468, 7
        %v7470 = vsub.s32 0, %v7469
        %v7471 = vrot.slane %v7257, %v7470
        %v7472 = vlaneseq
        %v7473 = vshrl.u32 %v7472, 7
        %v7474 = vsub.s32 0, %v7473
        %v7475 = vrot.slane %v7258, %v7474
        %v7476 = vlaneseq
        %v7477 = vshrl.u32 %v7476, 7
        %v7478 = vsub.s32 0, %v7477
        %v7479 = vrot.slane %v7259, %v7478
        %v7480 = vlaneseq
        %v7481 = vshrl.u32 %v7480, 7
        %v7482 = vsub.s32 0, %v7481
        %v7483 = vrot.slane %v7260, %v7482
        %v7484 = vlaneseq
        %v7485 = vshrl.u32 %v7484, 7
        %v7486 = vsub.s32 0, %v7485
        %v7487 = vrot.slane %v7261, %v7486
        %v7488 = vlaneseq
        %v7489 = vshrl.u32 %v7488, 7
        %v7490 = vsub.s32 0, %v7489
        %v7491 = vrot.slane %v7262, %v7490
        %v7492 = vlaneseq
        %v7493 = vshrl.u32 %v7492, 7
        %v7494 = vsub.s32 0, %v7493
        %v7495 = vrot.slane %v7263, %v7494
        %v7496 = vlaneseq
        %v7497 = vshrl.u32 %v7496, 7
        %v7498 = vsub.s32 0, %v7497
        %v7499 = vrot.slane %v7264, %v7498
        %v7500 = vlaneseq
        %v7501 = vshrl.u32 %v7500, 7
        %v7502 = vsub.s32 0, %v7501
        %v7503 = vrot.slane %v7265, %v7502
        %v7504 = vlaneseq
        %v7505 = vshrl.u32 %v7504, 7
        %v7506 = vsub.s32 0, %v7505
        %v7507 = vrot.slane %v7266, %v7506
        %v7508 = vlaneseq
        %v7509 = vshrl.u32 %v7508, 7
        %v7510 = vsub.s32 0, %v7509
        %v7511 = vrot.slane %v7267, %v7510
        %v7512 = vlaneseq
        %v7513 = vshrl.u32 %v7512, 7
        %v7514 = vsub.s32 0, %v7513
        %v7515 = vrot.slane %v7268, %v7514
        %v7516 = vlaneseq
        %v7517 = vshrl.u32 %v7516, 7
        %v7518 = vsub.s32 0, %v7517
        %v7519 = vrot.slane %v7269, %v7518
        %v7520 = vlaneseq
        %v7521 = vshrl.u32 %v7520, 7
        %v7522 = vsub.s32 0, %v7521
        %v7523 = vrot.slane %v7270, %v7522
        %v7524 = vlaneseq
        %v7525 = vshrl.u32 %v7524, 7
        %v7526 = vsub.s32 0, %v7525
        %v7527 = vrot.slane %v7271, %v7526
        %v7592 = vpack.i.b16 %v7144, %v7144
        %v7593 = vpack.i.b16 %v7145, %v7145
        %v7594 = vpack.i.b16 %v7146, %v7146
        %v7595 = vpack.i.b16 %v7147, %v7147
        %v7596 = vpack.i.b16 %v7148, %v7148
        %v7597 = vpack.i.b16 %v7149, %v7149
        %v7598 = vpack.i.b16 %v7150, %v7150
        %v7599 = vpack.i.b16 %v7151, %v7151
        %v7600 = vpack.i.b16 %v7152, %v7152
        %v7601 = vpack.i.b16 %v7153, %v7153
        %v7602 = vpack.i.b16 %v7154, %v7154
        %v7603 = vpack.i.b16 %v7155, %v7155
        %v7604 = vpack.i.b16 %v7156, %v7156
        %v7605 = vpack.i.b16 %v7157, %v7157
        %v7606 = vpack.i.b16 %v7158, %v7158
        %v7607 = vpack.i.b16 %v7159, %v7159
        %v7608 = vpack.i.b16 %v7160, %v7160
        %v7609 = vpack.i.b16 %v7161, %v7161
        %v7610 = vpack.i.b16 %v7162, %v7162
        %v7611 = vpack.i.b16 %v7163, %v7163
        %v7612 = vpack.i.b16 %v7164, %v7164
        %v7613 = vpack.i.b16 %v7165, %v7165
        %v7614 = vpack.i.b16 %v7166, %v7166
        %v7615 = vpack.i.b16 %v7167, %v7167
        %v7616 = vpack.i.b16 %v7168, %v7168
        %v7617 = vpack.i.b16 %v7169, %v7169
        %v7618 = vpack.i.b16 %v7170, %v7170
        %v7619 = vpack.i.b16 %v7171, %v7171
        %v7620 = vpack.i.b16 %v7172, %v7172
        %v7621 = vpack.i.b16 %v7173, %v7173
        %v7622 = vpack.i.b16 %v7174, %v7174
        %v7623 = vpack.i.b16 %v7175, %v7175
        %v7624 = vpack.i.b16 %v7176, %v7176
        %v7625 = vpack.i.b16 %v7177, %v7177
        %v7626 = vpack.i.b16 %v7178, %v7178
        %v7627 = vpack.i.b16 %v7179, %v7179
        %v7628 = vpack.i.b16 %v7180, %v7180
        %v7629 = vpack.i.b16 %v7181, %v7181
        %v7630 = vpack.i.b16 %v7182, %v7182
        %v7631 = vpack.i.b16 %v7183, %v7183
        %v7632 = vpack.i.b16 %v7184, %v7184
        %v7633 = vpack.i.b16 %v7185, %v7185
        %v7634 = vpack.i.b16 %v7186, %v7186
        %v7635 = vpack.i.b16 %v7187, %v7187
        %v7636 = vpack.i.b16 %v7188, %v7188
        %v7637 = vpack.i.b16 %v7189, %v7189
        %v7638 = vpack.i.b16 %v7190, %v7190
        %v7639 = vpack.i.b16 %v7191, %v7191
        %v7640 = vpack.i.b16 %v7192, %v7192
        %v7641 = vpack.i.b16 %v7193, %v7193
        %v7642 = vpack.i.b16 %v7194, %v7194
        %v7643 = vpack.i.b16 %v7195, %v7195
        %v7644 = vpack.i.b16 %v7196, %v7196
        %v7645 = vpack.i.b16 %v7197, %v7197
        %v7646 = vpack.i.b16 %v7198, %v7198
        %v7647 = vpack.i.b16 %v7199, %v7199
        %v7648 = vpack.i.b16 %v7200, %v7200
        %v7649 = vpack.i.b16 %v7201, %v7201
        %v7650 = vpack.i.b16 %v7202, %v7202
        %v7651 = vpack.i.b16 %v7203, %v7203
        %v7652 = vpack.i.b16 %v7204, %v7204
        %v7653 = vpack.i.b16 %v7205, %v7205
        %v7654 = vpack.i.b16 %v7206, %v7206
        %v7655 = vpack.i.b16 %v7207, %v7207
        %v7656 = vlaneseq
        %v7657 = vshrl.u32 %v7656, 7
        %v7658 = vsub.s32 0, %v7657
        %v7659 = vrot.slane %v7592, %v7658
        %v7660 = vlaneseq
        %v7661 = vshrl.u32 %v7660, 7
        %v7662 = vsub.s32 0, %v7661
        %v7663 = vrot.slane %v7593, %v7662
        %v7664 = vlaneseq
        %v7665 = vshrl.u32 %v7664, 7
        %v7666 = vsub.s32 0, %v7665
        %v7667 = vrot.slane %v7594, %v7666
        %v7668 = vlaneseq
        %v7669 = vshrl.u32 %v7668, 7
        %v7670 = vsub.s32 0, %v7669
        %v7671 = vrot.slane %v7595, %v7670
        %v7672 = vlaneseq
        %v7673 = vshrl.u32 %v7672, 7
        %v7674 = vsub.s32 0, %v7673
        %v7675 = vrot.slane %v7596, %v7674
        %v7676 = vlaneseq
        %v7677 = vshrl.u32 %v7676, 7
        %v7678 = vsub.s32 0, %v7677
        %v7679 = vrot.slane %v7597, %v7678
        %v7680 = vlaneseq
        %v7681 = vshrl.u32 %v7680, 7
        %v7682 = vsub.s32 0, %v7681
        %v7683 = vrot.slane %v7598, %v7682
        %v7684 = vlaneseq
        %v7685 = vshrl.u32 %v7684, 7
        %v7686 = vsub.s32 0, %v7685
        %v7687 = vrot.slane %v7599, %v7686
        %v7688 = vlaneseq
        %v7689 = vshrl.u32 %v7688, 7
        %v7690 = vsub.s32 0, %v7689
        %v7691 = vrot.slane %v7600, %v7690
        %v7692 = vlaneseq
        %v7693 = vshrl.u32 %v7692, 7
        %v7694 = vsub.s32 0, %v7693
        %v7695 = vrot.slane %v7601, %v7694
        %v7696 = vlaneseq
        %v7697 = vshrl.u32 %v7696, 7
        %v7698 = vsub.s32 0, %v7697
        %v7699 = vrot.slane %v7602, %v7698
        %v7700 = vlaneseq
        %v7701 = vshrl.u32 %v7700, 7
        %v7702 = vsub.s32 0, %v7701
        %v7703 = vrot.slane %v7603, %v7702
        %v7704 = vlaneseq
        %v7705 = vshrl.u32 %v7704, 7
        %v7706 = vsub.s32 0, %v7705
        %v7707 = vrot.slane %v7604, %v7706
        %v7708 = vlaneseq
        %v7709 = vshrl.u32 %v7708, 7
        %v7710 = vsub.s32 0, %v7709
        %v7711 = vrot.slane %v7605, %v7710
        %v7712 = vlaneseq
        %v7713 = vshrl.u32 %v7712, 7
        %v7714 = vsub.s32 0, %v7713
        %v7715 = vrot.slane %v7606, %v7714
        %v7716 = vlaneseq
        %v7717 = vshrl.u32 %v7716, 7
        %v7718 = vsub.s32 0, %v7717
        %v7719 = vrot.slane %v7607, %v7718
        %v7720 = vlaneseq
        %v7721 = vshrl.u32 %v7720, 7
        %v7722 = vsub.s32 0, %v7721
        %v7723 = vrot.slane %v7608, %v7722
        %v7724 = vlaneseq
        %v7725 = vshrl.u32 %v7724, 7
        %v7726 = vsub.s32 0, %v7725
        %v7727 = vrot.slane %v7609, %v7726
        %v7728 = vlaneseq
        %v7729 = vshrl.u32 %v7728, 7
        %v7730 = vsub.s32 0, %v7729
        %v7731 = vrot.slane %v7610, %v7730
        %v7732 = vlaneseq
        %v7733 = vshrl.u32 %v7732, 7
        %v7734 = vsub.s32 0, %v7733
        %v7735 = vrot.slane %v7611, %v7734
        %v7736 = vlaneseq
        %v7737 = vshrl.u32 %v7736, 7
        %v7738 = vsub.s32 0, %v7737
        %v7739 = vrot.slane %v7612, %v7738
        %v7740 = vlaneseq
        %v7741 = vshrl.u32 %v7740, 7
        %v7742 = vsub.s32 0, %v7741
        %v7743 = vrot.slane %v7613, %v7742
        %v7744 = vlaneseq
        %v7745 = vshrl.u32 %v7744, 7
        %v7746 = vsub.s32 0, %v7745
        %v7747 = vrot.slane %v7614, %v7746
        %v7748 = vlaneseq
        %v7749 = vshrl.u32 %v7748, 7
        %v7750 = vsub.s32 0, %v7749
        %v7751 = vrot.slane %v7615, %v7750
        %v7752 = vlaneseq
        %v7753 = vshrl.u32 %v7752, 7
        %v7754 = vsub.s32 0, %v7753
        %v7755 = vrot.slane %v7616, %v7754
        %v7756 = vlaneseq
        %v7757 = vshrl.u32 %v7756, 7
        %v7758 = vsub.s32 0, %v7757
        %v7759 = vrot.slane %v7617, %v7758
        %v7760 = vlaneseq
        %v7761 = vshrl.u32 %v7760, 7
        %v7762 = vsub.s32 0, %v7761
        %v7763 = vrot.slane %v7618, %v7762
        %v7764 = vlaneseq
        %v7765 = vshrl.u32 %v7764, 7
        %v7766 = vsub.s32 0, %v7765
        %v7767 = vrot.slane %v7619, %v7766
        %v7768 = vlaneseq
        %v7769 = vshrl.u32 %v7768, 7
        %v7770 = vsub.s32 0, %v7769
        %v7771 = vrot.slane %v7620, %v7770
        %v7772 = vlaneseq
        %v7773 = vshrl.u32 %v7772, 7
        %v7774 = vsub.s32 0, %v7773
        %v7775 = vrot.slane %v7621, %v7774
        %v7776 = vlaneseq
        %v7777 = vshrl.u32 %v7776, 7
        %v7778 = vsub.s32 0, %v7777
        %v7779 = vrot.slane %v7622, %v7778
        %v7780 = vlaneseq
        %v7781 = vshrl.u32 %v7780, 7
        %v7782 = vsub.s32 0, %v7781
        %v7783 = vrot.slane %v7623, %v7782
        %v7784 = vlaneseq
        %v7785 = vshrl.u32 %v7784, 7
        %v7786 = vsub.s32 0, %v7785
        %v7787 = vrot.slane %v7624, %v7786
        %v7788 = vlaneseq
        %v7789 = vshrl.u32 %v7788, 7
        %v7790 = vsub.s32 0, %v7789
        %v7791 = vrot.slane %v7625, %v7790
        %v7792 = vlaneseq
        %v7793 = vshrl.u32 %v7792, 7
        %v7794 = vsub.s32 0, %v7793
        %v7795 = vrot.slane %v7626, %v7794
        %v7796 = vlaneseq
        %v7797 = vshrl.u32 %v7796, 7
        %v7798 = vsub.s32 0, %v7797
        %v7799 = vrot.slane %v7627, %v7798
        %v7800 = vlaneseq
        %v7801 = vshrl.u32 %v7800, 7
        %v7802 = vsub.s32 0, %v7801
        %v7803 = vrot.slane %v7628, %v7802
        %v7804 = vlaneseq
        %v7805 = vshrl.u32 %v7804, 7
        %v7806 = vsub.s32 0, %v7805
        %v7807 = vrot.slane %v7629, %v7806
        %v7808 = vlaneseq
        %v7809 = vshrl.u32 %v7808, 7
        %v7810 = vsub.s32 0, %v7809
        %v7811 = vrot.slane %v7630, %v7810
        %v7812 = vlaneseq
        %v7813 = vshrl.u32 %v7812, 7
        %v7814 = vsub.s32 0, %v7813
        %v7815 = vrot.slane %v7631, %v7814
        %v7816 = vlaneseq
        %v7817 = vshrl.u32 %v7816, 7
        %v7818 = vsub.s32 0, %v7817
        %v7819 = vrot.slane %v7632, %v7818
        %v7820 = vlaneseq
        %v7821 = vshrl.u32 %v7820, 7
        %v7822 = vsub.s32 0, %v7821
        %v7823 = vrot.slane %v7633, %v7822
        %v7824 = vlaneseq
        %v7825 = vshrl.u32 %v7824, 7
        %v7826 = vsub.s32 0, %v7825
        %v7827 = vrot.slane %v7634, %v7826
        %v7828 = vlaneseq
        %v7829 = vshrl.u32 %v7828, 7
        %v7830 = vsub.s32 0, %v7829
        %v7831 = vrot.slane %v7635, %v7830
        %v7832 = vlaneseq
        %v7833 = vshrl.u32 %v7832, 7
        %v7834 = vsub.s32 0, %v7833
        %v7835 = vrot.slane %v7636, %v7834
        %v7836 = vlaneseq
        %v7837 = vshrl.u32 %v7836, 7
        %v7838 = vsub.s32 0, %v7837
        %v7839 = vrot.slane %v7637, %v7838
        %v7840 = vlaneseq
        %v7841 = vshrl.u32 %v7840, 7
        %v7842 = vsub.s32 0, %v7841
        %v7843 = vrot.slane %v7638, %v7842
        %v7844 = vlaneseq
        %v7845 = vshrl.u32 %v7844, 7
        %v7846 = vsub.s32 0, %v7845
        %v7847 = vrot.slane %v7639, %v7846
        %v7848 = vlaneseq
        %v7849 = vshrl.u32 %v7848, 7
        %v7850 = vsub.s32 0, %v7849
        %v7851 = vrot.slane %v7640, %v7850
        %v7852 = vlaneseq
        %v7853 = vshrl.u32 %v7852, 7
        %v7854 = vsub.s32 0, %v7853
        %v7855 = vrot.slane %v7641, %v7854
        %v7856 = vlaneseq
        %v7857 = vshrl.u32 %v7856, 7
        %v7858 = vsub.s32 0, %v7857
        %v7859 = vrot.slane %v7642, %v7858
        %v7860 = vlaneseq
        %v7861 = vshrl.u32 %v7860, 7
        %v7862 = vsub.s32 0, %v7861
        %v7863 = vrot.slane %v7643, %v7862
        %v7864 = vlaneseq
        %v7865 = vshrl.u32 %v7864, 7
        %v7866 = vsub.s32 0, %v7865
        %v7867 = vrot.slane %v7644, %v7866
        %v7868 = vlaneseq
        %v7869 = vshrl.u32 %v7868, 7
        %v7870 = vsub.s32 0, %v7869
        %v7871 = vrot.slane %v7645, %v7870
        %v7872 = vlaneseq
        %v7873 = vshrl.u32 %v7872, 7
        %v7874 = vsub.s32 0, %v7873
        %v7875 = vrot.slane %v7646, %v7874
        %v7876 = vlaneseq
        %v7877 = vshrl.u32 %v7876, 7
        %v7878 = vsub.s32 0, %v7877
        %v7879 = vrot.slane %v7647, %v7878
        %v7880 = vlaneseq
        %v7881 = vshrl.u32 %v7880, 7
        %v7882 = vsub.s32 0, %v7881
        %v7883 = vrot.slane %v7648, %v7882
        %v7884 = vlaneseq
        %v7885 = vshrl.u32 %v7884, 7
        %v7886 = vsub.s32 0, %v7885
        %v7887 = vrot.slane %v7649, %v7886
        %v7888 = vlaneseq
        %v7889 = vshrl.u32 %v7888, 7
        %v7890 = vsub.s32 0, %v7889
        %v7891 = vrot.slane %v7650, %v7890
        %v7892 = vlaneseq
        %v7893 = vshrl.u32 %v7892, 7
        %v7894 = vsub.s32 0, %v7893
        %v7895 = vrot.slane %v7651, %v7894
        %v7896 = vlaneseq
        %v7897 = vshrl.u32 %v7896, 7
        %v7898 = vsub.s32 0, %v7897
        %v7899 = vrot.slane %v7652, %v7898
        %v7900 = vlaneseq
        %v7901 = vshrl.u32 %v7900, 7
        %v7902 = vsub.s32 0, %v7901
        %v7903 = vrot.slane %v7653, %v7902
        %v7904 = vlaneseq
        %v7905 = vshrl.u32 %v7904, 7
        %v7906 = vsub.s32 0, %v7905
        %v7907 = vrot.slane %v7654, %v7906
        %v7908 = vlaneseq
        %v7909 = vshrl.u32 %v7908, 7
        %v7910 = vsub.s32 0, %v7909
        %v7911 = vrot.slane %v7655, %v7910
        %v7976 = vsel %vm6855, %v7275, %v7659
        %v7977 = vsel %vm6855, %v7279, %v7663
        %v7978 = vsel %vm6855, %v7283, %v7667
        %v7979 = vsel %vm6855, %v7287, %v7671
        %v7980 = vsel %vm6855, %v7291, %v7675
        %v7981 = vsel %vm6855, %v7295, %v7679
        %v7982 = vsel %vm6855, %v7299, %v7683
        %v7983 = vsel %vm6855, %v7303, %v7687
        %v7984 = vsel %vm6855, %v7307, %v7691
        %v7985 = vsel %vm6855, %v7311, %v7695
        %v7986 = vsel %vm6855, %v7315, %v7699
        %v7987 = vsel %vm6855, %v7319, %v7703
        %v7988 = vsel %vm6855, %v7323, %v7707
        %v7989 = vsel %vm6855, %v7327, %v7711
        %v7990 = vsel %vm6855, %v7331, %v7715
        %v7991 = vsel %vm6855, %v7335, %v7719
        %v7992 = vsel %vm6855, %v7339, %v7723
        %v7993 = vsel %vm6855, %v7343, %v7727
        %v7994 = vsel %vm6855, %v7347, %v7731
        %v7995 = vsel %vm6855, %v7351, %v7735
        %v7996 = vsel %vm6855, %v7355, %v7739
        %v7997 = vsel %vm6855, %v7359, %v7743
        %v7998 = vsel %vm6855, %v7363, %v7747
        %v7999 = vsel %vm6855, %v7367, %v7751
        %v8000 = vsel %vm6855, %v7371, %v7755
        %v8001 = vsel %vm6855, %v7375, %v7759
        %v8002 = vsel %vm6855, %v7379, %v7763
        %v8003 = vsel %vm6855, %v7383, %v7767
        %v8004 = vsel %vm6855, %v7387, %v7771
        %v8005 = vsel %vm6855, %v7391, %v7775
        %v8006 = vsel %vm6855, %v7395, %v7779
        %v8007 = vsel %vm6855, %v7399, %v7783
        %v8008 = vsel %vm6855, %v7403, %v7787
        %v8009 = vsel %vm6855, %v7407, %v7791
        %v8010 = vsel %vm6855, %v7411, %v7795
        %v8011 = vsel %vm6855, %v7415, %v7799
        %v8012 = vsel %vm6855, %v7419, %v7803
        %v8013 = vsel %vm6855, %v7423, %v7807
        %v8014 = vsel %vm6855, %v7427, %v7811
        %v8015 = vsel %vm6855, %v7431, %v7815
        %v8016 = vsel %vm6855, %v7435, %v7819
        %v8017 = vsel %vm6855, %v7439, %v7823
        %v8018 = vsel %vm6855, %v7443, %v7827
        %v8019 = vsel %vm6855, %v7447, %v7831
        %v8020 = vsel %vm6855, %v7451, %v7835
        %v8021 = vsel %vm6855, %v7455, %v7839
        %v8022 = vsel %vm6855, %v7459, %v7843
        %v8023 = vsel %vm6855, %v7463, %v7847
        %v8024 = vsel %vm6855, %v7467, %v7851
        %v8025 = vsel %vm6855, %v7471, %v7855
        %v8026 = vsel %vm6855, %v7475, %v7859
        %v8027 = vsel %vm6855, %v7479, %v7863
        %v8028 = vsel %vm6855, %v7483, %v7867
        %v8029 = vsel %vm6855, %v7487, %v7871
        %v8030 = vsel %vm6855, %v7491, %v7875
        %v8031 = vsel %vm6855, %v7495, %v7879
        %v8032 = vsel %vm6855, %v7499, %v7883
        %v8033 = vsel %vm6855, %v7503, %v7887
        %v8034 = vsel %vm6855, %v7507, %v7891
        %v8035 = vsel %vm6855, %v7511, %v7895
        %v8036 = vsel %vm6855, %v7515, %v7899
        %v8037 = vsel %vm6855, %v7519, %v7903
        %v8038 = vsel %vm6855, %v7523, %v7907
        %v8039 = vsel %vm6855, %v7527, %v7911
        %v8040 = vld [vmem:[%s507] sm:$0xff]
        %v8041 = vld [vmem:[%s507 + $0x8] sm:$0xff]
        %v8042 = vld [vmem:[%s507 + $0x10] sm:$0xff]
        %v8043 = vld [vmem:[%s507 + $0x18] sm:$0xff]
        %v8044 = vld [vmem:[%s507 + $0x20] sm:$0xff]
        %v8045 = vld [vmem:[%s507 + $0x28] sm:$0xff]
        %v8046 = vld [vmem:[%s507 + $0x30] sm:$0xff]
        %v8047 = vld [vmem:[%s507 + $0x38] sm:$0xff]
        %v8048 = vld [vmem:[%s507 + $0x40] sm:$0xff]
        %v8049 = vld [vmem:[%s507 + $0x48] sm:$0xff]
        %v8050 = vld [vmem:[%s507 + $0x50] sm:$0xff]
        %v8051 = vld [vmem:[%s507 + $0x58] sm:$0xff]
        %v8052 = vld [vmem:[%s507 + $0x60] sm:$0xff]
        %v8053 = vld [vmem:[%s507 + $0x68] sm:$0xff]
        %v8054 = vld [vmem:[%s507 + $0x70] sm:$0xff]
        %v8055 = vld [vmem:[%s507 + $0x78] sm:$0xff]
        %v8056 = vld [vmem:[%s507 + $0x80] sm:$0xff]
        %v8057 = vld [vmem:[%s507 + $0x88] sm:$0xff]
        %v8058 = vld [vmem:[%s507 + $0x90] sm:$0xff]
        %v8059 = vld [vmem:[%s507 + $0x98] sm:$0xff]
        %v8060 = vld [vmem:[%s507 + $0xa0] sm:$0xff]
        %v8061 = vld [vmem:[%s507 + $0xa8] sm:$0xff]
        %v8062 = vld [vmem:[%s507 + $0xb0] sm:$0xff]
        %v8063 = vld [vmem:[%s507 + $0xb8] sm:$0xff]
        %v8064 = vld [vmem:[%s507 + $0xc0] sm:$0xff]
        %v8065 = vld [vmem:[%s507 + $0xc8] sm:$0xff]
        %v8066 = vld [vmem:[%s507 + $0xd0] sm:$0xff]
        %v8067 = vld [vmem:[%s507 + $0xd8] sm:$0xff]
        %v8068 = vld [vmem:[%s507 + $0xe0] sm:$0xff]
        %v8069 = vld [vmem:[%s507 + $0xe8] sm:$0xff]
        %v8070 = vld [vmem:[%s507 + $0xf0] sm:$0xff]
        %v8071 = vld [vmem:[%s507 + $0xf8] sm:$0xff]
        %v8072 = vld [vmem:[%s507 + $0x100] sm:$0xff]
        %v8073 = vld [vmem:[%s507 + $0x108] sm:$0xff]
        %v8074 = vld [vmem:[%s507 + $0x110] sm:$0xff]
        %v8075 = vld [vmem:[%s507 + $0x118] sm:$0xff]
        %v8076 = vld [vmem:[%s507 + $0x120] sm:$0xff]
        %v8077 = vld [vmem:[%s507 + $0x128] sm:$0xff]
        %v8078 = vld [vmem:[%s507 + $0x130] sm:$0xff]
        %v8079 = vld [vmem:[%s507 + $0x138] sm:$0xff]
        %v8080 = vld [vmem:[%s507 + $0x140] sm:$0xff]
        %v8081 = vld [vmem:[%s507 + $0x148] sm:$0xff]
        %v8082 = vld [vmem:[%s507 + $0x150] sm:$0xff]
        %v8083 = vld [vmem:[%s507 + $0x158] sm:$0xff]
        %v8084 = vld [vmem:[%s507 + $0x160] sm:$0xff]
        %v8085 = vld [vmem:[%s507 + $0x168] sm:$0xff]
        %v8086 = vld [vmem:[%s507 + $0x170] sm:$0xff]
        %v8087 = vld [vmem:[%s507 + $0x178] sm:$0xff]
        %v8088 = vld [vmem:[%s507 + $0x180] sm:$0xff]
        %v8089 = vld [vmem:[%s507 + $0x188] sm:$0xff]
        %v8090 = vld [vmem:[%s507 + $0x190] sm:$0xff]
        %v8091 = vld [vmem:[%s507 + $0x198] sm:$0xff]
        %v8092 = vld [vmem:[%s507 + $0x1a0] sm:$0xff]
        %v8093 = vld [vmem:[%s507 + $0x1a8] sm:$0xff]
        %v8094 = vld [vmem:[%s507 + $0x1b0] sm:$0xff]
        %v8095 = vld [vmem:[%s507 + $0x1b8] sm:$0xff]
        %v8096 = vld [vmem:[%s507 + $0x1c0] sm:$0xff]
        %v8097 = vld [vmem:[%s507 + $0x1c8] sm:$0xff]
        %v8098 = vld [vmem:[%s507 + $0x1d0] sm:$0xff]
        %v8099 = vld [vmem:[%s507 + $0x1d8] sm:$0xff]
        %v8100 = vld [vmem:[%s507 + $0x1e0] sm:$0xff]
        %v8101 = vld [vmem:[%s507 + $0x1e8] sm:$0xff]
        %v8102 = vld [vmem:[%s507 + $0x1f0] sm:$0xff]
        %v8103 = vld [vmem:[%s507 + $0x1f8] sm:$0xff]
        %v8104 = vpack.c.bf16 %v8042, %v8040
        %v8105 = vpack.c.bf16 %v8043, %v8041
        %v8106 = vpack.c.bf16 %v8046, %v8044
        %v8107 = vpack.c.bf16 %v8047, %v8045
        %v8108 = vpack.c.bf16 %v8050, %v8048
        %v8109 = vpack.c.bf16 %v8051, %v8049
        %v8110 = vpack.c.bf16 %v8054, %v8052
        %v8111 = vpack.c.bf16 %v8055, %v8053
        %v8112 = vpack.c.bf16 %v8058, %v8056
        %v8113 = vpack.c.bf16 %v8059, %v8057
        %v8114 = vpack.c.bf16 %v8062, %v8060
        %v8115 = vpack.c.bf16 %v8063, %v8061
        %v8116 = vpack.c.bf16 %v8066, %v8064
        %v8117 = vpack.c.bf16 %v8067, %v8065
        %v8118 = vpack.c.bf16 %v8070, %v8068
        %v8119 = vpack.c.bf16 %v8071, %v8069
        %v8120 = vpack.c.bf16 %v8074, %v8072
        %v8121 = vpack.c.bf16 %v8075, %v8073
        %v8122 = vpack.c.bf16 %v8078, %v8076
        %v8123 = vpack.c.bf16 %v8079, %v8077
        %v8124 = vpack.c.bf16 %v8082, %v8080
        %v8125 = vpack.c.bf16 %v8083, %v8081
        %v8126 = vpack.c.bf16 %v8086, %v8084
        %v8127 = vpack.c.bf16 %v8087, %v8085
        %v8128 = vpack.c.bf16 %v8090, %v8088
        %v8129 = vpack.c.bf16 %v8091, %v8089
        %v8130 = vpack.c.bf16 %v8094, %v8092
        %v8131 = vpack.c.bf16 %v8095, %v8093
        %v8132 = vpack.c.bf16 %v8098, %v8096
        %v8133 = vpack.c.bf16 %v8099, %v8097
        %v8134 = vpack.c.bf16 %v8102, %v8100
        %v8135 = vpack.c.bf16 %v8103, %v8101
        %v8136 = vld [vmem:[%s8] sm:$0xff]
        %v8137 = vld [vmem:[%s8 + $0x8] sm:$0xff]
        %v8138 = vld [vmem:[%s8 + $0x10] sm:$0xff]
        %v8139 = vld [vmem:[%s8 + $0x18] sm:$0xff]
        %v8140 = vld [vmem:[%s8 + $0x20] sm:$0xff]
        %v8141 = vld [vmem:[%s8 + $0x28] sm:$0xff]
        %v8142 = vld [vmem:[%s8 + $0x30] sm:$0xff]
        %v8143 = vld [vmem:[%s8 + $0x38] sm:$0xff]
        %v8144 = vld [vmem:[%s8 + $0x40] sm:$0xff]
        %v8145 = vld [vmem:[%s8 + $0x48] sm:$0xff]
        %v8146 = vld [vmem:[%s8 + $0x50] sm:$0xff]
        %v8147 = vld [vmem:[%s8 + $0x58] sm:$0xff]
        %v8148 = vld [vmem:[%s8 + $0x60] sm:$0xff]
        %v8149 = vld [vmem:[%s8 + $0x68] sm:$0xff]
        %v8150 = vld [vmem:[%s8 + $0x70] sm:$0xff]
        %v8151 = vld [vmem:[%s8 + $0x78] sm:$0xff]
        %v8152 = vld [vmem:[%s8 + $0x80] sm:$0xff]
        %v8153 = vld [vmem:[%s8 + $0x88] sm:$0xff]
        %v8154 = vld [vmem:[%s8 + $0x90] sm:$0xff]
        %v8155 = vld [vmem:[%s8 + $0x98] sm:$0xff]
        %v8156 = vld [vmem:[%s8 + $0xa0] sm:$0xff]
        %v8157 = vld [vmem:[%s8 + $0xa8] sm:$0xff]
        %v8158 = vld [vmem:[%s8 + $0xb0] sm:$0xff]
        %v8159 = vld [vmem:[%s8 + $0xb8] sm:$0xff]
        %v8160 = vld [vmem:[%s8 + $0xc0] sm:$0xff]
        %v8161 = vld [vmem:[%s8 + $0xc8] sm:$0xff]
        %v8162 = vld [vmem:[%s8 + $0xd0] sm:$0xff]
        %v8163 = vld [vmem:[%s8 + $0xd8] sm:$0xff]
        %v8164 = vld [vmem:[%s8 + $0xe0] sm:$0xff]
        %v8165 = vld [vmem:[%s8 + $0xe8] sm:$0xff]
        %v8166 = vld [vmem:[%s8 + $0xf0] sm:$0xff]
        %v8167 = vld [vmem:[%s8 + $0xf8] sm:$0xff]
        %v8168 = vld [vmem:[%s9] sm:$0xff]
        %v8169 = vld [vmem:[%s9 + $0x8] sm:$0xff]
        %v8170 = vld [vmem:[%s9 + $0x10] sm:$0xff]
        %v8171 = vld [vmem:[%s9 + $0x18] sm:$0xff]
        %v8172 = vld [vmem:[%s9 + $0x20] sm:$0xff]
        %v8173 = vld [vmem:[%s9 + $0x28] sm:$0xff]
        %v8174 = vld [vmem:[%s9 + $0x30] sm:$0xff]
        %v8175 = vld [vmem:[%s9 + $0x38] sm:$0xff]
        %v8304 = vcombine.low %v6856, %v6857
        %v8305 = vcombine.low %v6858, %v6859
        %v8306 = vcombine.low %v6860, %v6861
        %v8307 = vcombine.low %v6862, %v6863
        %v8309 = vunpack.c.l.s4 1966171168
        %v8310 = vunpack.c.0.s8 %v8309
        %v8311 = vlaneseq
        %v8312 = vshrl.u32 %v8311, 7
        %v8313 = vsub.s32 %v8310, %v8312
        %v8314 = vrot.slane %v8304, %v8313
        %v8316 = vunpack.c.l.s4 1966171168
        %v8317 = vunpack.c.0.s8 %v8316
        %v8318 = vlaneseq
        %v8319 = vshrl.u32 %v8318, 7
        %v8320 = vsub.s32 %v8317, %v8319
        %v8321 = vrot.slane %v8305, %v8320
        %v8323 = vunpack.c.l.s4 1966171168
        %v8324 = vunpack.c.0.s8 %v8323
        %v8325 = vlaneseq
        %v8326 = vshrl.u32 %v8325, 7
        %v8327 = vsub.s32 %v8324, %v8326
        %v8328 = vrot.slane %v8306, %v8327
        %v8330 = vunpack.c.l.s4 1966171168
        %v8331 = vunpack.c.0.s8 %v8330
        %v8332 = vlaneseq
        %v8333 = vshrl.u32 %v8332, 7
        %v8334 = vsub.s32 %v8331, %v8333
        %v8335 = vrot.slane %v8307, %v8334
        %v8336 = vcombine.low %v8314, %v8321
        %v8337 = vcombine.low %v8328, %v8335
        %v8339 = vunpack.c.l.s4 1966171168
        %v8340 = vunpack.c.0.s8 %v8339
        %v8341 = vlaneseq
        %v8342 = vshrl.u32 %v8341, 7
        %v8343 = vsub.s32 %v8340, %v8342
        %v8344 = vrot.slane %v8336, %v8343
        %v8346 = vunpack.c.l.s4 1966171168
        %v8347 = vunpack.c.0.s8 %v8346
        %v8348 = vlaneseq
        %v8349 = vshrl.u32 %v8348, 7
        %v8350 = vsub.s32 %v8347, %v8349
        %v8351 = vrot.slane %v8337, %v8350
        %v8352 = vcombine.low %v8344, %v8351
        %v8353 = vcombine.low %v7976, %v7977
        %v8354 = vcombine.low %v7978, %v7979
        %v8355 = vcombine.low %v7980, %v7981
        %v8356 = vcombine.low %v7982, %v7983
        %v8358 = vunpack.c.l.s4 1966171168
        %v8359 = vunpack.c.0.s8 %v8358
        %v8360 = vlaneseq
        %v8361 = vshrl.u32 %v8360, 7
        %v8362 = vsub.s32 %v8359, %v8361
        %v8363 = vrot.slane %v8353, %v8362
        %v8365 = vunpack.c.l.s4 1966171168
        %v8366 = vunpack.c.0.s8 %v8365
        %v8367 = vlaneseq
        %v8368 = vshrl.u32 %v8367, 7
        %v8369 = vsub.s32 %v8366, %v8368
        %v8370 = vrot.slane %v8354, %v8369
        %v8372 = vunpack.c.l.s4 1966171168
        %v8373 = vunpack.c.0.s8 %v8372
        %v8374 = vlaneseq
        %v8375 = vshrl.u32 %v8374, 7
        %v8376 = vsub.s32 %v8373, %v8375
        %v8377 = vrot.slane %v8355, %v8376
        %v8379 = vunpack.c.l.s4 1966171168
        %v8380 = vunpack.c.0.s8 %v8379
        %v8381 = vlaneseq
        %v8382 = vshrl.u32 %v8381, 7
        %v8383 = vsub.s32 %v8380, %v8382
        %v8384 = vrot.slane %v8356, %v8383
        %v8385 = vcombine.low %v8363, %v8370
        %v8386 = vcombine.low %v8377, %v8384
        %v8388 = vunpack.c.l.s4 1966171168
        %v8389 = vunpack.c.0.s8 %v8388
        %v8390 = vlaneseq
        %v8391 = vshrl.u32 %v8390, 7
        %v8392 = vsub.s32 %v8389, %v8391
        %v8393 = vrot.slane %v8385, %v8392
        %v8395 = vunpack.c.l.s4 1966171168
        %v8396 = vunpack.c.0.s8 %v8395
        %v8397 = vlaneseq
        %v8398 = vshrl.u32 %v8397, 7
        %v8399 = vsub.s32 %v8396, %v8398
        %v8400 = vrot.slane %v8386, %v8399
        %v8401 = vcombine.low %v8393, %v8400
        %v8402 = vcombine.low %v6864, %v6865
        %v8403 = vcombine.low %v6866, %v6867
        %v8404 = vcombine.low %v6868, %v6869
        %v8405 = vcombine.low %v6870, %v6871
        %v8407 = vunpack.c.l.s4 1966171168
        %v8408 = vunpack.c.0.s8 %v8407
        %v8409 = vlaneseq
        %v8410 = vshrl.u32 %v8409, 7
        %v8411 = vsub.s32 %v8408, %v8410
        %v8412 = vrot.slane %v8402, %v8411
        %v8414 = vunpack.c.l.s4 1966171168
        %v8415 = vunpack.c.0.s8 %v8414
        %v8416 = vlaneseq
        %v8417 = vshrl.u32 %v8416, 7
        %v8418 = vsub.s32 %v8415, %v8417
        %v8419 = vrot.slane %v8403, %v8418
        %v8421 = vunpack.c.l.s4 1966171168
        %v8422 = vunpack.c.0.s8 %v8421
        %v8423 = vlaneseq
        %v8424 = vshrl.u32 %v8423, 7
        %v8425 = vsub.s32 %v8422, %v8424
        %v8426 = vrot.slane %v8404, %v8425
        %v8428 = vunpack.c.l.s4 1966171168
        %v8429 = vunpack.c.0.s8 %v8428
        %v8430 = vlaneseq
        %v8431 = vshrl.u32 %v8430, 7
        %v8432 = vsub.s32 %v8429, %v8431
        %v8433 = vrot.slane %v8405, %v8432
        %v8434 = vcombine.low %v8412, %v8419
        %v8435 = vcombine.low %v8426, %v8433
        %v8437 = vunpack.c.l.s4 1966171168
        %v8438 = vunpack.c.0.s8 %v8437
        %v8439 = vlaneseq
        %v8440 = vshrl.u32 %v8439, 7
        %v8441 = vsub.s32 %v8438, %v8440
        %v8442 = vrot.slane %v8434, %v8441
        %v8444 = vunpack.c.l.s4 1966171168
        %v8445 = vunpack.c.0.s8 %v8444
        %v8446 = vlaneseq
        %v8447 = vshrl.u32 %v8446, 7
        %v8448 = vsub.s32 %v8445, %v8447
        %v8449 = vrot.slane %v8435, %v8448
        %v8450 = vcombine.low %v8442, %v8449
        %v8451 = vcombine.low %v7984, %v7985
        %v8452 = vcombine.low %v7986, %v7987
        %v8453 = vcombine.low %v7988, %v7989
        %v8454 = vcombine.low %v7990, %v7991
        %v8456 = vunpack.c.l.s4 1966171168
        %v8457 = vunpack.c.0.s8 %v8456
        %v8458 = vlaneseq
        %v8459 = vshrl.u32 %v8458, 7
        %v8460 = vsub.s32 %v8457, %v8459
        %v8461 = vrot.slane %v8451, %v8460
        %v8463 = vunpack.c.l.s4 1966171168
        %v8464 = vunpack.c.0.s8 %v8463
        %v8465 = vlaneseq
        %v8466 = vshrl.u32 %v8465, 7
        %v8467 = vsub.s32 %v8464, %v8466
        %v8468 = vrot.slane %v8452, %v8467
        %v8470 = vunpack.c.l.s4 1966171168
        %v8471 = vunpack.c.0.s8 %v8470
        %v8472 = vlaneseq
        %v8473 = vshrl.u32 %v8472, 7
        %v8474 = vsub.s32 %v8471, %v8473
        %v8475 = vrot.slane %v8453, %v8474
        %v8477 = vunpack.c.l.s4 1966171168
        %v8478 = vunpack.c.0.s8 %v8477
        %v8479 = vlaneseq
        %v8480 = vshrl.u32 %v8479, 7
        %v8481 = vsub.s32 %v8478, %v8480
        %v8482 = vrot.slane %v8454, %v8481
        %v8483 = vcombine.low %v8461, %v8468
        %v8484 = vcombine.low %v8475, %v8482
        %v8486 = vunpack.c.l.s4 1966171168
        %v8487 = vunpack.c.0.s8 %v8486
        %v8488 = vlaneseq
        %v8489 = vshrl.u32 %v8488, 7
        %v8490 = vsub.s32 %v8487, %v8489
        %v8491 = vrot.slane %v8483, %v8490
        %v8493 = vunpack.c.l.s4 1966171168
        %v8494 = vunpack.c.0.s8 %v8493
        %v8495 = vlaneseq
        %v8496 = vshrl.u32 %v8495, 7
        %v8497 = vsub.s32 %v8494, %v8496
        %v8498 = vrot.slane %v8484, %v8497
        %v8499 = vcombine.low %v8491, %v8498
        %v8500 = vcombine.low %v6872, %v6873
        %v8501 = vcombine.low %v6874, %v6875
        %v8502 = vcombine.low %v6876, %v6877
        %v8503 = vcombine.low %v6878, %v6879
        %v8505 = vunpack.c.l.s4 1966171168
        %v8506 = vunpack.c.0.s8 %v8505
        %v8507 = vlaneseq
        %v8508 = vshrl.u32 %v8507, 7
        %v8509 = vsub.s32 %v8506, %v8508
        %v8510 = vrot.slane %v8500, %v8509
        %v8512 = vunpack.c.l.s4 1966171168
        %v8513 = vunpack.c.0.s8 %v8512
        %v8514 = vlaneseq
        %v8515 = vshrl.u32 %v8514, 7
        %v8516 = vsub.s32 %v8513, %v8515
        %v8517 = vrot.slane %v8501, %v8516
        %v8519 = vunpack.c.l.s4 1966171168
        %v8520 = vunpack.c.0.s8 %v8519
        %v8521 = vlaneseq
        %v8522 = vshrl.u32 %v8521, 7
        %v8523 = vsub.s32 %v8520, %v8522
        %v8524 = vrot.slane %v8502, %v8523
        %v8526 = vunpack.c.l.s4 1966171168
        %v8527 = vunpack.c.0.s8 %v8526
        %v8528 = vlaneseq
        %v8529 = vshrl.u32 %v8528, 7
        %v8530 = vsub.s32 %v8527, %v8529
        %v8531 = vrot.slane %v8503, %v8530
        %v8532 = vcombine.low %v8510, %v8517
        %v8533 = vcombine.low %v8524, %v8531
        %v8535 = vunpack.c.l.s4 1966171168
        %v8536 = vunpack.c.0.s8 %v8535
        %v8537 = vlaneseq
        %v8538 = vshrl.u32 %v8537, 7
        %v8539 = vsub.s32 %v8536, %v8538
        %v8540 = vrot.slane %v8532, %v8539
        %v8542 = vunpack.c.l.s4 1966171168
        %v8543 = vunpack.c.0.s8 %v8542
        %v8544 = vlaneseq
        %v8545 = vshrl.u32 %v8544, 7
        %v8546 = vsub.s32 %v8543, %v8545
        %v8547 = vrot.slane %v8533, %v8546
        %v8548 = vcombine.low %v8540, %v8547
        %v8549 = vcombine.low %v7992, %v7993
        %v8550 = vcombine.low %v7994, %v7995
        %v8551 = vcombine.low %v7996, %v7997
        %v8552 = vcombine.low %v7998, %v7999
        %v8554 = vunpack.c.l.s4 1966171168
        %v8555 = vunpack.c.0.s8 %v8554
        %v8556 = vlaneseq
        %v8557 = vshrl.u32 %v8556, 7
        %v8558 = vsub.s32 %v8555, %v8557
        %v8559 = vrot.slane %v8549, %v8558
        %v8561 = vunpack.c.l.s4 1966171168
        %v8562 = vunpack.c.0.s8 %v8561
        %v8563 = vlaneseq
        %v8564 = vshrl.u32 %v8563, 7
        %v8565 = vsub.s32 %v8562, %v8564
        %v8566 = vrot.slane %v8550, %v8565
        %v8568 = vunpack.c.l.s4 1966171168
        %v8569 = vunpack.c.0.s8 %v8568
        %v8570 = vlaneseq
        %v8571 = vshrl.u32 %v8570, 7
        %v8572 = vsub.s32 %v8569, %v8571
        %v8573 = vrot.slane %v8551, %v8572
        %v8575 = vunpack.c.l.s4 1966171168
        %v8576 = vunpack.c.0.s8 %v8575
        %v8577 = vlaneseq
        %v8578 = vshrl.u32 %v8577, 7
        %v8579 = vsub.s32 %v8576, %v8578
        %v8580 = vrot.slane %v8552, %v8579
        %v8581 = vcombine.low %v8559, %v8566
        %v8582 = vcombine.low %v8573, %v8580
        %v8584 = vunpack.c.l.s4 1966171168
        %v8585 = vunpack.c.0.s8 %v8584
        %v8586 = vlaneseq
        %v8587 = vshrl.u32 %v8586, 7
        %v8588 = vsub.s32 %v8585, %v8587
        %v8589 = vrot.slane %v8581, %v8588
        %v8591 = vunpack.c.l.s4 1966171168
        %v8592 = vunpack.c.0.s8 %v8591
        %v8593 = vlaneseq
        %v8594 = vshrl.u32 %v8593, 7
        %v8595 = vsub.s32 %v8592, %v8594
        %v8596 = vrot.slane %v8582, %v8595
        %v8597 = vcombine.low %v8589, %v8596
        %v8598 = vcombine.low %v6880, %v6881
        %v8599 = vcombine.low %v6882, %v6883
        %v8600 = vcombine.low %v6884, %v6885
        %v8601 = vcombine.low %v6886, %v6887
        %v8603 = vunpack.c.l.s4 1966171168
        %v8604 = vunpack.c.0.s8 %v8603
        %v8605 = vlaneseq
        %v8606 = vshrl.u32 %v8605, 7
        %v8607 = vsub.s32 %v8604, %v8606
        %v8608 = vrot.slane %v8598, %v8607
        %v8610 = vunpack.c.l.s4 1966171168
        %v8611 = vunpack.c.0.s8 %v8610
        %v8612 = vlaneseq
        %v8613 = vshrl.u32 %v8612, 7
        %v8614 = vsub.s32 %v8611, %v8613
        %v8615 = vrot.slane %v8599, %v8614
        %v8617 = vunpack.c.l.s4 1966171168
        %v8618 = vunpack.c.0.s8 %v8617
        %v8619 = vlaneseq
        %v8620 = vshrl.u32 %v8619, 7
        %v8621 = vsub.s32 %v8618, %v8620
        %v8622 = vrot.slane %v8600, %v8621
        %v8624 = vunpack.c.l.s4 1966171168
        %v8625 = vunpack.c.0.s8 %v8624
        %v8626 = vlaneseq
        %v8627 = vshrl.u32 %v8626, 7
        %v8628 = vsub.s32 %v8625, %v8627
        %v8629 = vrot.slane %v8601, %v8628
        %v8630 = vcombine.low %v8608, %v8615
        %v8631 = vcombine.low %v8622, %v8629
        %v8633 = vunpack.c.l.s4 1966171168
        %v8634 = vunpack.c.0.s8 %v8633
        %v8635 = vlaneseq
        %v8636 = vshrl.u32 %v8635, 7
        %v8637 = vsub.s32 %v8634, %v8636
        %v8638 = vrot.slane %v8630, %v8637
        %v8640 = vunpack.c.l.s4 1966171168
        %v8641 = vunpack.c.0.s8 %v8640
        %v8642 = vlaneseq
        %v8643 = vshrl.u32 %v8642, 7
        %v8644 = vsub.s32 %v8641, %v8643
        %v8645 = vrot.slane %v8631, %v8644
        %v8646 = vcombine.low %v8638, %v8645
        %v8647 = vcombine.low %v8000, %v8001
        %v8648 = vcombine.low %v8002, %v8003
        %v8649 = vcombine.low %v8004, %v8005
        %v8650 = vcombine.low %v8006, %v8007
        %v8652 = vunpack.c.l.s4 1966171168
        %v8653 = vunpack.c.0.s8 %v8652
        %v8654 = vlaneseq
        %v8655 = vshrl.u32 %v8654, 7
        %v8656 = vsub.s32 %v8653, %v8655
        %v8657 = vrot.slane %v8647, %v8656
        %v8659 = vunpack.c.l.s4 1966171168
        %v8660 = vunpack.c.0.s8 %v8659
        %v8661 = vlaneseq
        %v8662 = vshrl.u32 %v8661, 7
        %v8663 = vsub.s32 %v8660, %v8662
        %v8664 = vrot.slane %v8648, %v8663
        %v8666 = vunpack.c.l.s4 1966171168
        %v8667 = vunpack.c.0.s8 %v8666
        %v8668 = vlaneseq
        %v8669 = vshrl.u32 %v8668, 7
        %v8670 = vsub.s32 %v8667, %v8669
        %v8671 = vrot.slane %v8649, %v8670
        %v8673 = vunpack.c.l.s4 1966171168
        %v8674 = vunpack.c.0.s8 %v8673
        %v8675 = vlaneseq
        %v8676 = vshrl.u32 %v8675, 7
        %v8677 = vsub.s32 %v8674, %v8676
        %v8678 = vrot.slane %v8650, %v8677
        %v8679 = vcombine.low %v8657, %v8664
        %v8680 = vcombine.low %v8671, %v8678
        %v8682 = vunpack.c.l.s4 1966171168
        %v8683 = vunpack.c.0.s8 %v8682
        %v8684 = vlaneseq
        %v8685 = vshrl.u32 %v8684, 7
        %v8686 = vsub.s32 %v8683, %v8685
        %v8687 = vrot.slane %v8679, %v8686
        %v8689 = vunpack.c.l.s4 1966171168
        %v8690 = vunpack.c.0.s8 %v8689
        %v8691 = vlaneseq
        %v8692 = vshrl.u32 %v8691, 7
        %v8693 = vsub.s32 %v8690, %v8692
        %v8694 = vrot.slane %v8680, %v8693
        %v8695 = vcombine.low %v8687, %v8694
        %v8696 = vcombine.low %v6888, %v6889
        %v8697 = vcombine.low %v6890, %v6891
        %v8698 = vcombine.low %v6892, %v6893
        %v8699 = vcombine.low %v6894, %v6895
        %v8701 = vunpack.c.l.s4 1966171168
        %v8702 = vunpack.c.0.s8 %v8701
        %v8703 = vlaneseq
        %v8704 = vshrl.u32 %v8703, 7
        %v8705 = vsub.s32 %v8702, %v8704
        %v8706 = vrot.slane %v8696, %v8705
        %v8708 = vunpack.c.l.s4 1966171168
        %v8709 = vunpack.c.0.s8 %v8708
        %v8710 = vlaneseq
        %v8711 = vshrl.u32 %v8710, 7
        %v8712 = vsub.s32 %v8709, %v8711
        %v8713 = vrot.slane %v8697, %v8712
        %v8715 = vunpack.c.l.s4 1966171168
        %v8716 = vunpack.c.0.s8 %v8715
        %v8717 = vlaneseq
        %v8718 = vshrl.u32 %v8717, 7
        %v8719 = vsub.s32 %v8716, %v8718
        %v8720 = vrot.slane %v8698, %v8719
        %v8722 = vunpack.c.l.s4 1966171168
        %v8723 = vunpack.c.0.s8 %v8722
        %v8724 = vlaneseq
        %v8725 = vshrl.u32 %v8724, 7
        %v8726 = vsub.s32 %v8723, %v8725
        %v8727 = vrot.slane %v8699, %v8726
        %v8728 = vcombine.low %v8706, %v8713
        %v8729 = vcombine.low %v8720, %v8727
        %v8731 = vunpack.c.l.s4 1966171168
        %v8732 = vunpack.c.0.s8 %v8731
        %v8733 = vlaneseq
        %v8734 = vshrl.u32 %v8733, 7
        %v8735 = vsub.s32 %v8732, %v8734
        %v8736 = vrot.slane %v8728, %v8735
        %v8738 = vunpack.c.l.s4 1966171168
        %v8739 = vunpack.c.0.s8 %v8738
        %v8740 = vlaneseq
        %v8741 = vshrl.u32 %v8740, 7
        %v8742 = vsub.s32 %v8739, %v8741
        %v8743 = vrot.slane %v8729, %v8742
        %v8744 = vcombine.low %v8736, %v8743
        %v8745 = vcombine.low %v8008, %v8009
        %v8746 = vcombine.low %v8010, %v8011
        %v8747 = vcombine.low %v8012, %v8013
        %v8748 = vcombine.low %v8014, %v8015
        %v8750 = vunpack.c.l.s4 1966171168
        %v8751 = vunpack.c.0.s8 %v8750
        %v8752 = vlaneseq
        %v8753 = vshrl.u32 %v8752, 7
        %v8754 = vsub.s32 %v8751, %v8753
        %v8755 = vrot.slane %v8745, %v8754
        %v8757 = vunpack.c.l.s4 1966171168
        %v8758 = vunpack.c.0.s8 %v8757
        %v8759 = vlaneseq
        %v8760 = vshrl.u32 %v8759, 7
        %v8761 = vsub.s32 %v8758, %v8760
        %v8762 = vrot.slane %v8746, %v8761
        %v8764 = vunpack.c.l.s4 1966171168
        %v8765 = vunpack.c.0.s8 %v8764
        %v8766 = vlaneseq
        %v8767 = vshrl.u32 %v8766, 7
        %v8768 = vsub.s32 %v8765, %v8767
        %v8769 = vrot.slane %v8747, %v8768
        %v8771 = vunpack.c.l.s4 1966171168
        %v8772 = vunpack.c.0.s8 %v8771
        %v8773 = vlaneseq
        %v8774 = vshrl.u32 %v8773, 7
        %v8775 = vsub.s32 %v8772, %v8774
        %v8776 = vrot.slane %v8748, %v8775
        %v8777 = vcombine.low %v8755, %v8762
        %v8778 = vcombine.low %v8769, %v8776
        %v8780 = vunpack.c.l.s4 1966171168
        %v8781 = vunpack.c.0.s8 %v8780
        %v8782 = vlaneseq
        %v8783 = vshrl.u32 %v8782, 7
        %v8784 = vsub.s32 %v8781, %v8783
        %v8785 = vrot.slane %v8777, %v8784
        %v8787 = vunpack.c.l.s4 1966171168
        %v8788 = vunpack.c.0.s8 %v8787
        %v8789 = vlaneseq
        %v8790 = vshrl.u32 %v8789, 7
        %v8791 = vsub.s32 %v8788, %v8790
        %v8792 = vrot.slane %v8778, %v8791
        %v8793 = vcombine.low %v8785, %v8792
        %v8794 = vcombine.low %v6896, %v6897
        %v8795 = vcombine.low %v6898, %v6899
        %v8796 = vcombine.low %v6900, %v6901
        %v8797 = vcombine.low %v6902, %v6903
        %v8799 = vunpack.c.l.s4 1966171168
        %v8800 = vunpack.c.0.s8 %v8799
        %v8801 = vlaneseq
        %v8802 = vshrl.u32 %v8801, 7
        %v8803 = vsub.s32 %v8800, %v8802
        %v8804 = vrot.slane %v8794, %v8803
        %v8806 = vunpack.c.l.s4 1966171168
        %v8807 = vunpack.c.0.s8 %v8806
        %v8808 = vlaneseq
        %v8809 = vshrl.u32 %v8808, 7
        %v8810 = vsub.s32 %v8807, %v8809
        %v8811 = vrot.slane %v8795, %v8810
        %v8813 = vunpack.c.l.s4 1966171168
        %v8814 = vunpack.c.0.s8 %v8813
        %v8815 = vlaneseq
        %v8816 = vshrl.u32 %v8815, 7
        %v8817 = vsub.s32 %v8814, %v8816
        %v8818 = vrot.slane %v8796, %v8817
        %v8820 = vunpack.c.l.s4 1966171168
        %v8821 = vunpack.c.0.s8 %v8820
        %v8822 = vlaneseq
        %v8823 = vshrl.u32 %v8822, 7
        %v8824 = vsub.s32 %v8821, %v8823
        %v8825 = vrot.slane %v8797, %v8824
        %v8826 = vcombine.low %v8804, %v8811
        %v8827 = vcombine.low %v8818, %v8825
        %v8829 = vunpack.c.l.s4 1966171168
        %v8830 = vunpack.c.0.s8 %v8829
        %v8831 = vlaneseq
        %v8832 = vshrl.u32 %v8831, 7
        %v8833 = vsub.s32 %v8830, %v8832
        %v8834 = vrot.slane %v8826, %v8833
        %v8836 = vunpack.c.l.s4 1966171168
        %v8837 = vunpack.c.0.s8 %v8836
        %v8838 = vlaneseq
        %v8839 = vshrl.u32 %v8838, 7
        %v8840 = vsub.s32 %v8837, %v8839
        %v8841 = vrot.slane %v8827, %v8840
        %v8842 = vcombine.low %v8834, %v8841
        %v8843 = vcombine.low %v8016, %v8017
        %v8844 = vcombine.low %v8018, %v8019
        %v8845 = vcombine.low %v8020, %v8021
        %v8846 = vcombine.low %v8022, %v8023
        %v8848 = vunpack.c.l.s4 1966171168
        %v8849 = vunpack.c.0.s8 %v8848
        %v8850 = vlaneseq
        %v8851 = vshrl.u32 %v8850, 7
        %v8852 = vsub.s32 %v8849, %v8851
        %v8853 = vrot.slane %v8843, %v8852
        %v8855 = vunpack.c.l.s4 1966171168
        %v8856 = vunpack.c.0.s8 %v8855
        %v8857 = vlaneseq
        %v8858 = vshrl.u32 %v8857, 7
        %v8859 = vsub.s32 %v8856, %v8858
        %v8860 = vrot.slane %v8844, %v8859
        %v8862 = vunpack.c.l.s4 1966171168
        %v8863 = vunpack.c.0.s8 %v8862
        %v8864 = vlaneseq
        %v8865 = vshrl.u32 %v8864, 7
        %v8866 = vsub.s32 %v8863, %v8865
        %v8867 = vrot.slane %v8845, %v8866
        %v8869 = vunpack.c.l.s4 1966171168
        %v8870 = vunpack.c.0.s8 %v8869
        %v8871 = vlaneseq
        %v8872 = vshrl.u32 %v8871, 7
        %v8873 = vsub.s32 %v8870, %v8872
        %v8874 = vrot.slane %v8846, %v8873
        %v8875 = vcombine.low %v8853, %v8860
        %v8876 = vcombine.low %v8867, %v8874
        %v8878 = vunpack.c.l.s4 1966171168
        %v8879 = vunpack.c.0.s8 %v8878
        %v8880 = vlaneseq
        %v8881 = vshrl.u32 %v8880, 7
        %v8882 = vsub.s32 %v8879, %v8881
        %v8883 = vrot.slane %v8875, %v8882
        %v8885 = vunpack.c.l.s4 1966171168
        %v8886 = vunpack.c.0.s8 %v8885
        %v8887 = vlaneseq
        %v8888 = vshrl.u32 %v8887, 7
        %v8889 = vsub.s32 %v8886, %v8888
        %v8890 = vrot.slane %v8876, %v8889
        %v8891 = vcombine.low %v8883, %v8890
        %v8892 = vcombine.low %v6904, %v6905
        %v8893 = vcombine.low %v6906, %v6907
        %v8894 = vcombine.low %v6908, %v6909
        %v8895 = vcombine.low %v6910, %v6911
        %v8897 = vunpack.c.l.s4 1966171168
        %v8898 = vunpack.c.0.s8 %v8897
        %v8899 = vlaneseq
        %v8900 = vshrl.u32 %v8899, 7
        %v8901 = vsub.s32 %v8898, %v8900
        %v8902 = vrot.slane %v8892, %v8901
        %v8904 = vunpack.c.l.s4 1966171168
        %v8905 = vunpack.c.0.s8 %v8904
        %v8906 = vlaneseq
        %v8907 = vshrl.u32 %v8906, 7
        %v8908 = vsub.s32 %v8905, %v8907
        %v8909 = vrot.slane %v8893, %v8908
        %v8911 = vunpack.c.l.s4 1966171168
        %v8912 = vunpack.c.0.s8 %v8911
        %v8913 = vlaneseq
        %v8914 = vshrl.u32 %v8913, 7
        %v8915 = vsub.s32 %v8912, %v8914
        %v8916 = vrot.slane %v8894, %v8915
        %v8918 = vunpack.c.l.s4 1966171168
        %v8919 = vunpack.c.0.s8 %v8918
        %v8920 = vlaneseq
        %v8921 = vshrl.u32 %v8920, 7
        %v8922 = vsub.s32 %v8919, %v8921
        %v8923 = vrot.slane %v8895, %v8922
        %v8924 = vcombine.low %v8902, %v8909
        %v8925 = vcombine.low %v8916, %v8923
        %v8927 = vunpack.c.l.s4 1966171168
        %v8928 = vunpack.c.0.s8 %v8927
        %v8929 = vlaneseq
        %v8930 = vshrl.u32 %v8929, 7
        %v8931 = vsub.s32 %v8928, %v8930
        %v8932 = vrot.slane %v8924, %v8931
        %v8934 = vunpack.c.l.s4 1966171168
        %v8935 = vunpack.c.0.s8 %v8934
        %v8936 = vlaneseq
        %v8937 = vshrl.u32 %v8936, 7
        %v8938 = vsub.s32 %v8935, %v8937
        %v8939 = vrot.slane %v8925, %v8938
        %v8940 = vcombine.low %v8932, %v8939
        %v8941 = vcombine.low %v8024, %v8025
        %v8942 = vcombine.low %v8026, %v8027
        %v8943 = vcombine.low %v8028, %v8029
        %v8944 = vcombine.low %v8030, %v8031
        %v8946 = vunpack.c.l.s4 1966171168
        %v8947 = vunpack.c.0.s8 %v8946
        %v8948 = vlaneseq
        %v8949 = vshrl.u32 %v8948, 7
        %v8950 = vsub.s32 %v8947, %v8949
        %v8951 = vrot.slane %v8941, %v8950
        %v8953 = vunpack.c.l.s4 1966171168
        %v8954 = vunpack.c.0.s8 %v8953
        %v8955 = vlaneseq
        %v8956 = vshrl.u32 %v8955, 7
        %v8957 = vsub.s32 %v8954, %v8956
        %v8958 = vrot.slane %v8942, %v8957
        %v8960 = vunpack.c.l.s4 1966171168
        %v8961 = vunpack.c.0.s8 %v8960
        %v8962 = vlaneseq
        %v8963 = vshrl.u32 %v8962, 7
        %v8964 = vsub.s32 %v8961, %v8963
        %v8965 = vrot.slane %v8943, %v8964
        %v8967 = vunpack.c.l.s4 1966171168
        %v8968 = vunpack.c.0.s8 %v8967
        %v8969 = vlaneseq
        %v8970 = vshrl.u32 %v8969, 7
        %v8971 = vsub.s32 %v8968, %v8970
        %v8972 = vrot.slane %v8944, %v8971
        %v8973 = vcombine.low %v8951, %v8958
        %v8974 = vcombine.low %v8965, %v8972
        %v8976 = vunpack.c.l.s4 1966171168
        %v8977 = vunpack.c.0.s8 %v8976
        %v8978 = vlaneseq
        %v8979 = vshrl.u32 %v8978, 7
        %v8980 = vsub.s32 %v8977, %v8979
        %v8981 = vrot.slane %v8973, %v8980
        %v8983 = vunpack.c.l.s4 1966171168
        %v8984 = vunpack.c.0.s8 %v8983
        %v8985 = vlaneseq
        %v8986 = vshrl.u32 %v8985, 7
        %v8987 = vsub.s32 %v8984, %v8986
        %v8988 = vrot.slane %v8974, %v8987
        %v8989 = vcombine.low %v8981, %v8988
        %v8990 = vcombine.low %v6912, %v6913
        %v8991 = vcombine.low %v6914, %v6915
        %v8992 = vcombine.low %v6916, %v6917
        %v8993 = vcombine.low %v6918, %v6919
        %v8995 = vunpack.c.l.s4 1966171168
        %v8996 = vunpack.c.0.s8 %v8995
        %v8997 = vlaneseq
        %v8998 = vshrl.u32 %v8997, 7
        %v8999 = vsub.s32 %v8996, %v8998
        %v9000 = vrot.slane %v8990, %v8999
        %v9002 = vunpack.c.l.s4 1966171168
        %v9003 = vunpack.c.0.s8 %v9002
        %v9004 = vlaneseq
        %v9005 = vshrl.u32 %v9004, 7
        %v9006 = vsub.s32 %v9003, %v9005
        %v9007 = vrot.slane %v8991, %v9006
        %v9009 = vunpack.c.l.s4 1966171168
        %v9010 = vunpack.c.0.s8 %v9009
        %v9011 = vlaneseq
        %v9012 = vshrl.u32 %v9011, 7
        %v9013 = vsub.s32 %v9010, %v9012
        %v9014 = vrot.slane %v8992, %v9013
        %v9016 = vunpack.c.l.s4 1966171168
        %v9017 = vunpack.c.0.s8 %v9016
        %v9018 = vlaneseq
        %v9019 = vshrl.u32 %v9018, 7
        %v9020 = vsub.s32 %v9017, %v9019
        %v9021 = vrot.slane %v8993, %v9020
        %v9022 = vcombine.low %v9000, %v9007
        %v9023 = vcombine.low %v9014, %v9021
        %v9025 = vunpack.c.l.s4 1966171168
        %v9026 = vunpack.c.0.s8 %v9025
        %v9027 = vlaneseq
        %v9028 = vshrl.u32 %v9027, 7
        %v9029 = vsub.s32 %v9026, %v9028
        %v9030 = vrot.slane %v9022, %v9029
        %v9032 = vunpack.c.l.s4 1966171168
        %v9033 = vunpack.c.0.s8 %v9032
        %v9034 = vlaneseq
        %v9035 = vshrl.u32 %v9034, 7
        %v9036 = vsub.s32 %v9033, %v9035
        %v9037 = vrot.slane %v9023, %v9036
        %v9038 = vcombine.low %v9030, %v9037
        %v9039 = vcombine.low %v8032, %v8033
        %v9040 = vcombine.low %v8034, %v8035
        %v9041 = vcombine.low %v8036, %v8037
        %v9042 = vcombine.low %v8038, %v8039
        %v9044 = vunpack.c.l.s4 1966171168
        %v9045 = vunpack.c.0.s8 %v9044
        %v9046 = vlaneseq
        %v9047 = vshrl.u32 %v9046, 7
        %v9048 = vsub.s32 %v9045, %v9047
        %v9049 = vrot.slane %v9039, %v9048
        %v9051 = vunpack.c.l.s4 1966171168
        %v9052 = vunpack.c.0.s8 %v9051
        %v9053 = vlaneseq
        %v9054 = vshrl.u32 %v9053, 7
        %v9055 = vsub.s32 %v9052, %v9054
        %v9056 = vrot.slane %v9040, %v9055
        %v9058 = vunpack.c.l.s4 1966171168
        %v9059 = vunpack.c.0.s8 %v9058
        %v9060 = vlaneseq
        %v9061 = vshrl.u32 %v9060, 7
        %v9062 = vsub.s32 %v9059, %v9061
        %v9063 = vrot.slane %v9041, %v9062
        %v9065 = vunpack.c.l.s4 1966171168
        %v9066 = vunpack.c.0.s8 %v9065
        %v9067 = vlaneseq
        %v9068 = vshrl.u32 %v9067, 7
        %v9069 = vsub.s32 %v9066, %v9068
        %v9070 = vrot.slane %v9042, %v9069
        %v9071 = vcombine.low %v9049, %v9056
        %v9072 = vcombine.low %v9063, %v9070
        %v9074 = vunpack.c.l.s4 1966171168
        %v9075 = vunpack.c.0.s8 %v9074
        %v9076 = vlaneseq
        %v9077 = vshrl.u32 %v9076, 7
        %v9078 = vsub.s32 %v9075, %v9077
        %v9079 = vrot.slane %v9071, %v9078
        %v9081 = vunpack.c.l.s4 1966171168
        %v9082 = vunpack.c.0.s8 %v9081
        %v9083 = vlaneseq
        %v9084 = vshrl.u32 %v9083, 7
        %v9085 = vsub.s32 %v9082, %v9084
        %v9086 = vrot.slane %v9072, %v9085
        %v9087 = vcombine.low %v9079, %v9086
        %v9096 = vunpack.c.l.b16 %v8168
        %v9097 = vunpack.c.h.b16 %v8168
        %v9098 = vunpack.c.l.b16 %v8169
        %v9099 = vunpack.c.h.b16 %v8169
        %v9100 = vunpack.c.l.b16 %v8170
        %v9101 = vunpack.c.h.b16 %v8170
        %v9102 = vunpack.c.l.b16 %v8171
        %v9103 = vunpack.c.h.b16 %v8171
        %v9104 = vunpack.c.l.b16 %v8172
        %v9105 = vunpack.c.h.b16 %v8172
        %v9106 = vunpack.c.l.b16 %v8173
        %v9107 = vunpack.c.h.b16 %v8173
        %v9108 = vunpack.c.l.b16 %v8174
        %v9109 = vunpack.c.h.b16 %v8174
        %v9110 = vunpack.c.l.b16 %v8175
        %v9111 = vunpack.c.h.b16 %v8175
        %v9112 = vpack.c.b16 %v9098, %v9096
        %v9113 = vpack.c.b16 %v9099, %v9097
        %v9114 = vpack.c.b16 %v9102, %v9100
        %v9115 = vpack.c.b16 %v9103, %v9101
        %v9116 = vpack.c.b16 %v9106, %v9104
        %v9117 = vpack.c.b16 %v9107, %v9105
        %v9118 = vpack.c.b16 %v9110, %v9108
        %v9119 = vpack.c.b16 %v9111, %v9109
        %v9129 = vsel %vm1626, %v8352, 0
        %v9132 = vsel %vm1626, %v8401, 0
        %v9135 = vsel %vm1626, %v8450, 0
        %v9138 = vsel %vm1626, %v8499, 0
        %v9141 = vsel %vm1626, %v8548, 0
        %v9144 = vsel %vm1626, %v8597, 0
        %v9147 = vsel %vm1626, %v8646, 0
        %v9150 = vsel %vm1626, %v8695, 0
        %v9153 = vsel %vm1626, %v8744, 0
        %v9156 = vsel %vm1626, %v8793, 0
        %v9159 = vsel %vm1626, %v8842, 0
        %v9162 = vsel %vm1626, %v8891, 0
        %v9165 = vsel %vm1626, %v8940, 0
        %v9168 = vsel %vm1626, %v8989, 0
        %v9171 = vsel %vm1626, %v9038, 0
        %v9174 = vsel %vm1626, %v9087, 0
        %9176 = vmatprep.subr.bf16.mxu0 %v9113
        %9177 = vmatpush1.bf16.msra.mxu0 %v9112
        %9178 = vmatprep.subr.bf16.mxu0 %v9115
        %9179 = vmatpush1.bf16.msra.mxu0 %v9114
        %9180 = vmatprep.subr.bf16.mxu0 %v9117
        %9181 = vmatpush1.bf16.msra.mxu0 %v9116
        %9182 = vmatprep.subr.bf16.mxu0 %v9119
        %9183 = vmatpush1.bf16.msra.mxu0 %v9118
        %9184 = vmatprep.subr.bf16.mxu0 0
        %9185 = vmatpush1.bf16.msra.mxu0 0
        %9186 = vmatprep.subr.bf16.mxu0 0
        %9187 = vmatpush1.bf16.msra.mxu0 0
        %9188 = vmatprep.subr.bf16.mxu0 0
        %9189 = vmatpush1.bf16.msra.mxu0 0
        %9190 = vmatprep.subr.bf16.mxu0 0
        %9191 = vmatpush1.bf16.msra.mxu0 0
        %9192 = vmatprep.subr.bf16.mxu0 0
        %9193 = vmatpush1.bf16.msra.mxu0 0
        %9194 = vmatprep.subr.bf16.mxu0 0
        %9195 = vmatpush1.bf16.msra.mxu0 0
        %9196 = vmatprep.subr.bf16.mxu0 0
        %9197 = vmatpush1.bf16.msra.mxu0 0
        %9198 = vmatprep.subr.bf16.mxu0 0
        %9199 = vmatpush1.bf16.msra.mxu0 0
        %9200 = vmatprep.subr.bf16.mxu0 0
        %9201 = vmatpush1.bf16.msra.mxu0 0
        %9202 = vmatprep.subr.bf16.mxu0 0
        %9203 = vmatpush1.bf16.msra.mxu0 0
        %9204 = vmatprep.subr.bf16.mxu0 0
        %9205 = vmatpush1.bf16.msra.mxu0 0
        %9206 = vmatprep.subr.bf16.mxu0 0
        %9207 = vmatpush1.bf16.msra.mxu0 0
        %9208 = vmatprep.mubr.bf16.mxu0 0
        %9209 = vmatmul.mubr.bf16.gmra.mrb[0].mxu0 %v9129
        %v9210 = vpop.f32.mrb[0].mxu0
        %v9211 = vadd.f32 0.0, %v9210
        %v9212 = vpop.f32.mrb[0].mxu0
        %v9213 = vadd.f32 0.0, %v9212
        %v9214 = vpop.f32.mrb[0].mxu0
        %v9215 = vadd.f32 0.0, %v9214
        %v9216 = vpop.f32.mrb[0].mxu0
        %v9217 = vadd.f32 0.0, %v9216
        %9218 = vmatprep.mubr.bf16.mxu0 0
        %9219 = vmatmul.mubr.bf16.gmra.mrb[0].mxu0 %v9132
        %v9220 = vpop.f32.mrb[0].mxu0
        %v9221 = vadd.f32 0.0, %v9220
        %v9222 = vpop.f32.mrb[0].mxu0
        %v9223 = vadd.f32 0.0, %v9222
        %v9224 = vpop.f32.mrb[0].mxu0
        %v9225 = vadd.f32 0.0, %v9224
        %v9226 = vpop.f32.mrb[0].mxu0
        %v9227 = vadd.f32 0.0, %v9226
        %9228 = vmatprep.mubr.bf16.mxu0 0
        %9229 = vmatmul.mubr.bf16.gmra.mrb[0].mxu0 %v9135
        %v9230 = vpop.f32.mrb[0].mxu0
        %v9231 = vadd.f32 0.0, %v9230
        %v9232 = vpop.f32.mrb[0].mxu0
        %v9233 = vadd.f32 0.0, %v9232
        %v9234 = vpop.f32.mrb[0].mxu0
        %v9235 = vadd.f32 0.0, %v9234
        %v9236 = vpop.f32.mrb[0].mxu0
        %v9237 = vadd.f32 0.0, %v9236
        %9238 = vmatprep.mubr.bf16.mxu0 0
        %9239 = vmatmul.mubr.bf16.gmra.mrb[0].mxu0 %v9138
        %v9240 = vpop.f32.mrb[0].mxu0
        %v9241 = vadd.f32 0.0, %v9240
        %v9242 = vpop.f32.mrb[0].mxu0
        %v9243 = vadd.f32 0.0, %v9242
        %v9244 = vpop.f32.mrb[0].mxu0
        %v9245 = vadd.f32 0.0, %v9244
        %v9246 = vpop.f32.mrb[0].mxu0
        %v9247 = vadd.f32 0.0, %v9246
        %9248 = vmatprep.mubr.bf16.mxu0 0
        %9249 = vmatmul.mubr.bf16.gmra.mrb[0].mxu0 %v9141
        %v9250 = vpop.f32.mrb[0].mxu0
        %v9251 = vadd.f32 0.0, %v9250
        %v9252 = vpop.f32.mrb[0].mxu0
        %v9253 = vadd.f32 0.0, %v9252
        %v9254 = vpop.f32.mrb[0].mxu0
        %v9255 = vadd.f32 0.0, %v9254
        %v9256 = vpop.f32.mrb[0].mxu0
        %v9257 = vadd.f32 0.0, %v9256
        %9258 = vmatprep.mubr.bf16.mxu0 0
        %9259 = vmatmul.mubr.bf16.gmra.mrb[0].mxu0 %v9144
        %v9260 = vpop.f32.mrb[0].mxu0
        %v9261 = vadd.f32 0.0, %v9260
        %v9262 = vpop.f32.mrb[0].mxu0
        %v9263 = vadd.f32 0.0, %v9262
        %v9264 = vpop.f32.mrb[0].mxu0
        %v9265 = vadd.f32 0.0, %v9264
        %v9266 = vpop.f32.mrb[0].mxu0
        %v9267 = vadd.f32 0.0, %v9266
        %9268 = vmatprep.mubr.bf16.mxu0 0
        %9269 = vmatmul.mubr.bf16.gmra.mrb[0].mxu0 %v9147
        %v9270 = vpop.f32.mrb[0].mxu0
        %v9271 = vadd.f32 0.0, %v9270
        %v9272 = vpop.f32.mrb[0].mxu0
        %v9273 = vadd.f32 0.0, %v9272
        %v9274 = vpop.f32.mrb[0].mxu0
        %v9275 = vadd.f32 0.0, %v9274
        %v9276 = vpop.f32.mrb[0].mxu0
        %v9277 = vadd.f32 0.0, %v9276
        %9278 = vmatprep.mubr.bf16.mxu0 0
        %9279 = vmatmul.mubr.bf16.gmra.mrb[0].mxu0 %v9150
        %v9280 = vpop.f32.mrb[0].mxu0
        %v9281 = vadd.f32 0.0, %v9280
        %v9282 = vpop.f32.mrb[0].mxu0
        %v9283 = vadd.f32 0.0, %v9282
        %v9284 = vpop.f32.mrb[0].mxu0
        %v9285 = vadd.f32 0.0, %v9284
        %v9286 = vpop.f32.mrb[0].mxu0
        %v9287 = vadd.f32 0.0, %v9286
        %9288 = vmatprep.mubr.bf16.mxu0 0
        %9289 = vmatmul.mubr.bf16.gmra.mrb[0].mxu0 %v9153
        %v9290 = vpop.f32.mrb[0].mxu0
        %v9291 = vadd.f32 0.0, %v9290
        %v9292 = vpop.f32.mrb[0].mxu0
        %v9293 = vadd.f32 0.0, %v9292
        %v9294 = vpop.f32.mrb[0].mxu0
        %v9295 = vadd.f32 0.0, %v9294
        %v9296 = vpop.f32.mrb[0].mxu0
        %v9297 = vadd.f32 0.0, %v9296
        %9298 = vmatprep.mubr.bf16.mxu0 0
        %9299 = vmatmul.mubr.bf16.gmra.mrb[0].mxu0 %v9156
        %v9300 = vpop.f32.mrb[0].mxu0
        %v9301 = vadd.f32 0.0, %v9300
        %v9302 = vpop.f32.mrb[0].mxu0
        %v9303 = vadd.f32 0.0, %v9302
        %v9304 = vpop.f32.mrb[0].mxu0
        %v9305 = vadd.f32 0.0, %v9304
        %v9306 = vpop.f32.mrb[0].mxu0
        %v9307 = vadd.f32 0.0, %v9306
        %9308 = vmatprep.mubr.bf16.mxu0 0
        %9309 = vmatmul.mubr.bf16.gmra.mrb[0].mxu0 %v9159
        %v9310 = vpop.f32.mrb[0].mxu0
        %v9311 = vadd.f32 0.0, %v9310
        %v9312 = vpop.f32.mrb[0].mxu0
        %v9313 = vadd.f32 0.0, %v9312
        %v9314 = vpop.f32.mrb[0].mxu0
        %v9315 = vadd.f32 0.0, %v9314
        %v9316 = vpop.f32.mrb[0].mxu0
        %v9317 = vadd.f32 0.0, %v9316
        %9318 = vmatprep.mubr.bf16.mxu0 0
        %9319 = vmatmul.mubr.bf16.gmra.mrb[0].mxu0 %v9162
        %v9320 = vpop.f32.mrb[0].mxu0
        %v9321 = vadd.f32 0.0, %v9320
        %v9322 = vpop.f32.mrb[0].mxu0
        %v9323 = vadd.f32 0.0, %v9322
        %v9324 = vpop.f32.mrb[0].mxu0
        %v9325 = vadd.f32 0.0, %v9324
        %v9326 = vpop.f32.mrb[0].mxu0
        %v9327 = vadd.f32 0.0, %v9326
        %9328 = vmatprep.mubr.bf16.mxu0 0
        %9329 = vmatmul.mubr.bf16.gmra.mrb[0].mxu0 %v9165
        %v9330 = vpop.f32.mrb[0].mxu0
        %v9331 = vadd.f32 0.0, %v9330
        %v9332 = vpop.f32.mrb[0].mxu0
        %v9333 = vadd.f32 0.0, %v9332
        %v9334 = vpop.f32.mrb[0].mxu0
        %v9335 = vadd.f32 0.0, %v9334
        %v9336 = vpop.f32.mrb[0].mxu0
        %v9337 = vadd.f32 0.0, %v9336
        %9338 = vmatprep.mubr.bf16.mxu0 0
        %9339 = vmatmul.mubr.bf16.gmra.mrb[0].mxu0 %v9168
        %v9340 = vpop.f32.mrb[0].mxu0
        %v9341 = vadd.f32 0.0, %v9340
        %v9342 = vpop.f32.mrb[0].mxu0
        %v9343 = vadd.f32 0.0, %v9342
        %v9344 = vpop.f32.mrb[0].mxu0
        %v9345 = vadd.f32 0.0, %v9344
        %v9346 = vpop.f32.mrb[0].mxu0
        %v9347 = vadd.f32 0.0, %v9346
        %9348 = vmatprep.mubr.bf16.mxu0 0
        %9349 = vmatmul.mubr.bf16.gmra.mrb[0].mxu0 %v9171
        %v9350 = vpop.f32.mrb[0].mxu0
        %v9351 = vadd.f32 0.0, %v9350
        %v9352 = vpop.f32.mrb[0].mxu0
        %v9353 = vadd.f32 0.0, %v9352
        %v9354 = vpop.f32.mrb[0].mxu0
        %v9355 = vadd.f32 0.0, %v9354
        %v9356 = vpop.f32.mrb[0].mxu0
        %v9357 = vadd.f32 0.0, %v9356
        %9358 = vmatprep.mubr.bf16.mxu0 0
        %9359 = vmatmul.mubr.bf16.gmra.mrb[0].mxu0 %v9174
        %v9360 = vpop.f32.mrb[0].mxu0
        %v9361 = vadd.f32 0.0, %v9360
        %v9362 = vpop.f32.mrb[0].mxu0
        %v9363 = vadd.f32 0.0, %v9362
        %v9364 = vpop.f32.mrb[0].mxu0
        %v9365 = vadd.f32 0.0, %v9364
        %v9366 = vpop.f32.mrb[0].mxu0
        %v9367 = vadd.f32 0.0, %v9366
        %9368 = vdwg.mxu0
        %v9401 = vunpack.c.l.b16 %v8136
        %v9402 = vunpack.c.h.b16 %v8136
        %v9403 = vunpack.c.l.b16 %v8137
        %v9404 = vunpack.c.h.b16 %v8137
        %v9405 = vunpack.c.l.b16 %v8138
        %v9406 = vunpack.c.h.b16 %v8138
        %v9407 = vunpack.c.l.b16 %v8139
        %v9408 = vunpack.c.h.b16 %v8139
        %v9409 = vunpack.c.l.b16 %v8140
        %v9410 = vunpack.c.h.b16 %v8140
        %v9411 = vunpack.c.l.b16 %v8141
        %v9412 = vunpack.c.h.b16 %v8141
        %v9413 = vunpack.c.l.b16 %v8142
        %v9414 = vunpack.c.h.b16 %v8142
        %v9415 = vunpack.c.l.b16 %v8143
        %v9416 = vunpack.c.h.b16 %v8143
        %v9417 = vunpack.c.l.b16 %v8144
        %v9418 = vunpack.c.h.b16 %v8144
        %v9419 = vunpack.c.l.b16 %v8145
        %v9420 = vunpack.c.h.b16 %v8145
        %v9421 = vunpack.c.l.b16 %v8146
        %v9422 = vunpack.c.h.b16 %v8146
        %v9423 = vunpack.c.l.b16 %v8147
        %v9424 = vunpack.c.h.b16 %v8147
        %v9425 = vunpack.c.l.b16 %v8148
        %v9426 = vunpack.c.h.b16 %v8148
        %v9427 = vunpack.c.l.b16 %v8149
        %v9428 = vunpack.c.h.b16 %v8149
        %v9429 = vunpack.c.l.b16 %v8150
        %v9430 = vunpack.c.h.b16 %v8150
        %v9431 = vunpack.c.l.b16 %v8151
        %v9432 = vunpack.c.h.b16 %v8151
        %v9433 = vunpack.c.l.b16 %v8152
        %v9434 = vunpack.c.h.b16 %v8152
        %v9435 = vunpack.c.l.b16 %v8153
        %v9436 = vunpack.c.h.b16 %v8153
        %v9437 = vunpack.c.l.b16 %v8154
        %v9438 = vunpack.c.h.b16 %v8154
        %v9439 = vunpack.c.l.b16 %v8155
        %v9440 = vunpack.c.h.b16 %v8155
        %v9441 = vunpack.c.l.b16 %v8156
        %v9442 = vunpack.c.h.b16 %v8156
        %v9443 = vunpack.c.l.b16 %v8157
        %v9444 = vunpack.c.h.b16 %v8157
        %v9445 = vunpack.c.l.b16 %v8158
        %v9446 = vunpack.c.h.b16 %v8158
        %v9447 = vunpack.c.l.b16 %v8159
        %v9448 = vunpack.c.h.b16 %v8159
        %v9449 = vunpack.c.l.b16 %v8160
        %v9450 = vunpack.c.h.b16 %v8160
        %v9451 = vunpack.c.l.b16 %v8161
        %v9452 = vunpack.c.h.b16 %v8161
        %v9453 = vunpack.c.l.b16 %v8162
        %v9454 = vunpack.c.h.b16 %v8162
        %v9455 = vunpack.c.l.b16 %v8163
        %v9456 = vunpack.c.h.b16 %v8163
        %v9457 = vunpack.c.l.b16 %v8164
        %v9458 = vunpack.c.h.b16 %v8164
        %v9459 = vunpack.c.l.b16 %v8165
        %v9460 = vunpack.c.h.b16 %v8165
        %v9461 = vunpack.c.l.b16 %v8166
        %v9462 = vunpack.c.h.b16 %v8166
        %v9463 = vunpack.c.l.b16 %v8167
        %v9464 = vunpack.c.h.b16 %v8167
        %v9465 = vpack.c.b16 %v9403, %v9401
        %v9466 = vpack.c.b16 %v9404, %v9402
        %v9467 = vpack.c.b16 %v9407, %v9405
        %v9468 = vpack.c.b16 %v9408, %v9406
        %v9469 = vpack.c.b16 %v9411, %v9409
        %v9470 = vpack.c.b16 %v9412, %v9410
        %v9471 = vpack.c.b16 %v9415, %v9413
        %v9472 = vpack.c.b16 %v9416, %v9414
        %v9473 = vpack.c.b16 %v9419, %v9417
        %v9474 = vpack.c.b16 %v9420, %v9418
        %v9475 = vpack.c.b16 %v9423, %v9421
        %v9476 = vpack.c.b16 %v9424, %v9422
        %v9477 = vpack.c.b16 %v9427, %v9425
        %v9478 = vpack.c.b16 %v9428, %v9426
        %v9479 = vpack.c.b16 %v9431, %v9429
        %v9480 = vpack.c.b16 %v9432, %v9430
        %v9481 = vpack.c.b16 %v9435, %v9433
        %v9482 = vpack.c.b16 %v9436, %v9434
        %v9483 = vpack.c.b16 %v9439, %v9437
        %v9484 = vpack.c.b16 %v9440, %v9438
        %v9485 = vpack.c.b16 %v9443, %v9441
        %v9486 = vpack.c.b16 %v9444, %v9442
        %v9487 = vpack.c.b16 %v9447, %v9445
        %v9488 = vpack.c.b16 %v9448, %v9446
        %v9489 = vpack.c.b16 %v9451, %v9449
        %v9490 = vpack.c.b16 %v9452, %v9450
        %v9491 = vpack.c.b16 %v9455, %v9453
        %v9492 = vpack.c.b16 %v9456, %v9454
        %v9493 = vpack.c.b16 %v9459, %v9457
        %v9494 = vpack.c.b16 %v9460, %v9458
        %v9495 = vpack.c.b16 %v9463, %v9461
        %v9496 = vpack.c.b16 %v9464, %v9462
        %9529 = vmatprep.subr.bf16.mxu0 %v9466
        %9530 = vmatpush1.bf16.msra.mxu0 %v9465
        %9531 = vmatprep.subr.bf16.mxu0 %v9468
        %9532 = vmatpush1.bf16.msra.mxu0 %v9467
        %9533 = vmatprep.subr.bf16.mxu0 %v9470
        %9534 = vmatpush1.bf16.msra.mxu0 %v9469
        %9535 = vmatprep.subr.bf16.mxu0 %v9472
        %9536 = vmatpush1.bf16.msra.mxu0 %v9471
        %9537 = vmatprep.subr.bf16.mxu0 %v9474
        %9538 = vmatpush1.bf16.msra.mxu0 %v9473
        %9539 = vmatprep.subr.bf16.mxu0 %v9476
        %9540 = vmatpush1.bf16.msra.mxu0 %v9475
        %9541 = vmatprep.subr.bf16.mxu0 %v9478
        %9542 = vmatpush1.bf16.msra.mxu0 %v9477
        %9543 = vmatprep.subr.bf16.mxu0 %v9480
        %9544 = vmatpush1.bf16.msra.mxu0 %v9479
        %9545 = vmatprep.subr.bf16.mxu0 %v9482
        %9546 = vmatpush1.bf16.msra.mxu0 %v9481
        %9547 = vmatprep.subr.bf16.mxu0 %v9484
        %9548 = vmatpush1.bf16.msra.mxu0 %v9483
        %9549 = vmatprep.subr.bf16.mxu0 %v9486
        %9550 = vmatpush1.bf16.msra.mxu0 %v9485
        %9551 = vmatprep.subr.bf16.mxu0 %v9488
        %9552 = vmatpush1.bf16.msra.mxu0 %v9487
        %9553 = vmatprep.subr.bf16.mxu0 %v9490
        %9554 = vmatpush1.bf16.msra.mxu0 %v9489
        %9555 = vmatprep.subr.bf16.mxu0 %v9492
        %9556 = vmatpush1.bf16.msra.mxu0 %v9491
        %9557 = vmatprep.subr.bf16.mxu0 %v9494
        %9558 = vmatpush1.bf16.msra.mxu0 %v9493
        %9559 = vmatprep.subr.bf16.mxu0 %v9496
        %9560 = vmatpush1.bf16.msra.mxu0 %v9495
        %9561 = vmatprep.mubr.bf16.mxu0 %v8105
        %9562 = vmatmul.mubr.bf16.gmra.mrb[0].mxu0 %v8104
        %v9563 = vpop.f32.mrb[0].mxu0
        %v9564 = vadd.f32 %v9211, %v9563
        %v9565 = vpop.f32.mrb[0].mxu0
        %v9566 = vadd.f32 %v9213, %v9565
        %v9567 = vpop.f32.mrb[0].mxu0
        %v9568 = vadd.f32 %v9215, %v9567
        %v9569 = vpop.f32.mrb[0].mxu0
        %v9570 = vadd.f32 %v9217, %v9569
        %9571 = vmatprep.mubr.bf16.mxu0 %v8107
        %9572 = vmatmul.mubr.bf16.gmra.mrb[0].mxu0 %v8106
        %v9573 = vpop.f32.mrb[0].mxu0
        %v9574 = vadd.f32 %v9221, %v9573
        %v9575 = vpop.f32.mrb[0].mxu0
        %v9576 = vadd.f32 %v9223, %v9575
        %v9577 = vpop.f32.mrb[0].mxu0
        %v9578 = vadd.f32 %v9225, %v9577
        %v9579 = vpop.f32.mrb[0].mxu0
        %v9580 = vadd.f32 %v9227, %v9579
        %9581 = vmatprep.mubr.bf16.mxu0 %v8109
        %9582 = vmatmul.mubr.bf16.gmra.mrb[0].mxu0 %v8108
        %v9583 = vpop.f32.mrb[0].mxu0
        %v9584 = vadd.f32 %v9231, %v9583
        %v9585 = vpop.f32.mrb[0].mxu0
        %v9586 = vadd.f32 %v9233, %v9585
        %v9587 = vpop.f32.mrb[0].mxu0
        %v9588 = vadd.f32 %v9235, %v9587
        %v9589 = vpop.f32.mrb[0].mxu0
        %v9590 = vadd.f32 %v9237, %v9589
        %9591 = vmatprep.mubr.bf16.mxu0 %v8111
        %9592 = vmatmul.mubr.bf16.gmra.mrb[0].mxu0 %v8110
        %v9593 = vpop.f32.mrb[0].mxu0
        %v9594 = vadd.f32 %v9241, %v9593
        %v9595 = vpop.f32.mrb[0].mxu0
        %v9596 = vadd.f32 %v9243, %v9595
        %v9597 = vpop.f32.mrb[0].mxu0
        %v9598 = vadd.f32 %v9245, %v9597
        %v9599 = vpop.f32.mrb[0].mxu0
        %v9600 = vadd.f32 %v9247, %v9599
        %9601 = vmatprep.mubr.bf16.mxu0 %v8113
        %9602 = vmatmul.mubr.bf16.gmra.mrb[0].mxu0 %v8112
        %v9603 = vpop.f32.mrb[0].mxu0
        %v9604 = vadd.f32 %v9251, %v9603
        %v9605 = vpop.f32.mrb[0].mxu0
        %v9606 = vadd.f32 %v9253, %v9605
        %v9607 = vpop.f32.mrb[0].mxu0
        %v9608 = vadd.f32 %v9255, %v9607
        %v9609 = vpop.f32.mrb[0].mxu0
        %v9610 = vadd.f32 %v9257, %v9609
        %9611 = vmatprep.mubr.bf16.mxu0 %v8115
        %9612 = vmatmul.mubr.bf16.gmra.mrb[0].mxu0 %v8114
        %v9613 = vpop.f32.mrb[0].mxu0
        %v9614 = vadd.f32 %v9261, %v9613
        %v9615 = vpop.f32.mrb[0].mxu0
        %v9616 = vadd.f32 %v9263, %v9615
        %v9617 = vpop.f32.mrb[0].mxu0
        %v9618 = vadd.f32 %v9265, %v9617
        %v9619 = vpop.f32.mrb[0].mxu0
        %v9620 = vadd.f32 %v9267, %v9619
        %9621 = vmatprep.mubr.bf16.mxu0 %v8117
        %9622 = vmatmul.mubr.bf16.gmra.mrb[0].mxu0 %v8116
        %v9623 = vpop.f32.mrb[0].mxu0
        %v9624 = vadd.f32 %v9271, %v9623
        %v9625 = vpop.f32.mrb[0].mxu0
        %v9626 = vadd.f32 %v9273, %v9625
        %v9627 = vpop.f32.mrb[0].mxu0
        %v9628 = vadd.f32 %v9275, %v9627
        %v9629 = vpop.f32.mrb[0].mxu0
        %v9630 = vadd.f32 %v9277, %v9629
        %9631 = vmatprep.mubr.bf16.mxu0 %v8119
        %9632 = vmatmul.mubr.bf16.gmra.mrb[0].mxu0 %v8118
        %v9633 = vpop.f32.mrb[0].mxu0
        %v9634 = vadd.f32 %v9281, %v9633
        %v9635 = vpop.f32.mrb[0].mxu0
        %v9636 = vadd.f32 %v9283, %v9635
        %v9637 = vpop.f32.mrb[0].mxu0
        %v9638 = vadd.f32 %v9285, %v9637
        %v9639 = vpop.f32.mrb[0].mxu0
        %v9640 = vadd.f32 %v9287, %v9639
        %9641 = vmatprep.mubr.bf16.mxu0 %v8121
        %9642 = vmatmul.mubr.bf16.gmra.mrb[0].mxu0 %v8120
        %v9643 = vpop.f32.mrb[0].mxu0
        %v9644 = vadd.f32 %v9291, %v9643
        %v9645 = vpop.f32.mrb[0].mxu0
        %v9646 = vadd.f32 %v9293, %v9645
        %v9647 = vpop.f32.mrb[0].mxu0
        %v9648 = vadd.f32 %v9295, %v9647
        %v9649 = vpop.f32.mrb[0].mxu0
        %v9650 = vadd.f32 %v9297, %v9649
        %9651 = vmatprep.mubr.bf16.mxu0 %v8123
        %9652 = vmatmul.mubr.bf16.gmra.mrb[0].mxu0 %v8122
        %v9653 = vpop.f32.mrb[0].mxu0
        %v9654 = vadd.f32 %v9301, %v9653
        %v9655 = vpop.f32.mrb[0].mxu0
        %v9656 = vadd.f32 %v9303, %v9655
        %v9657 = vpop.f32.mrb[0].mxu0
        %v9658 = vadd.f32 %v9305, %v9657
        %v9659 = vpop.f32.mrb[0].mxu0
        %v9660 = vadd.f32 %v9307, %v9659
        %9661 = vmatprep.mubr.bf16.mxu0 %v8125
        %9662 = vmatmul.mubr.bf16.gmra.mrb[0].mxu0 %v8124
        %v9663 = vpop.f32.mrb[0].mxu0
        %v9664 = vadd.f32 %v9311, %v9663
        %v9665 = vpop.f32.mrb[0].mxu0
        %v9666 = vadd.f32 %v9313, %v9665
        %v9667 = vpop.f32.mrb[0].mxu0
        %v9668 = vadd.f32 %v9315, %v9667
        %v9669 = vpop.f32.mrb[0].mxu0
        %v9670 = vadd.f32 %v9317, %v9669
        %9671 = vmatprep.mubr.bf16.mxu0 %v8127
        %9672 = vmatmul.mubr.bf16.gmra.mrb[0].mxu0 %v8126
        %v9673 = vpop.f32.mrb[0].mxu0
        %v9674 = vadd.f32 %v9321, %v9673
        %v9675 = vpop.f32.mrb[0].mxu0
        %v9676 = vadd.f32 %v9323, %v9675
        %v9677 = vpop.f32.mrb[0].mxu0
        %v9678 = vadd.f32 %v9325, %v9677
        %v9679 = vpop.f32.mrb[0].mxu0
        %v9680 = vadd.f32 %v9327, %v9679
        %9681 = vmatprep.mubr.bf16.mxu0 %v8129
        %9682 = vmatmul.mubr.bf16.gmra.mrb[0].mxu0 %v8128
        %v9683 = vpop.f32.mrb[0].mxu0
        %v9684 = vadd.f32 %v9331, %v9683
        %v9685 = vpop.f32.mrb[0].mxu0
        %v9686 = vadd.f32 %v9333, %v9685
        %v9687 = vpop.f32.mrb[0].mxu0
        %v9688 = vadd.f32 %v9335, %v9687
        %v9689 = vpop.f32.mrb[0].mxu0
        %v9690 = vadd.f32 %v9337, %v9689
        %9691 = vmatprep.mubr.bf16.mxu0 %v8131
        %9692 = vmatmul.mubr.bf16.gmra.mrb[0].mxu0 %v8130
        %v9693 = vpop.f32.mrb[0].mxu0
        %v9694 = vadd.f32 %v9341, %v9693
        %v9695 = vpop.f32.mrb[0].mxu0
        %v9696 = vadd.f32 %v9343, %v9695
        %v9697 = vpop.f32.mrb[0].mxu0
        %v9698 = vadd.f32 %v9345, %v9697
        %v9699 = vpop.f32.mrb[0].mxu0
        %v9700 = vadd.f32 %v9347, %v9699
        %9701 = vmatprep.mubr.bf16.mxu0 %v8133
        %9702 = vmatmul.mubr.bf16.gmra.mrb[0].mxu0 %v8132
        %v9703 = vpop.f32.mrb[0].mxu0
        %v9704 = vadd.f32 %v9351, %v9703
        %v9705 = vpop.f32.mrb[0].mxu0
        %v9706 = vadd.f32 %v9353, %v9705
        %v9707 = vpop.f32.mrb[0].mxu0
        %v9708 = vadd.f32 %v9355, %v9707
        %v9709 = vpop.f32.mrb[0].mxu0
        %v9710 = vadd.f32 %v9357, %v9709
        %9711 = vmatprep.mubr.bf16.mxu0 %v8135
        %9712 = vmatmul.mubr.bf16.gmra.mrb[0].mxu0 %v8134
        %v9713 = vpop.f32.mrb[0].mxu0
        %v9714 = vadd.f32 %v9361, %v9713
        %v9715 = vpop.f32.mrb[0].mxu0
        %v9716 = vadd.f32 %v9363, %v9715
        %v9717 = vpop.f32.mrb[0].mxu0
        %v9718 = vadd.f32 %v9365, %v9717
        %v9719 = vpop.f32.mrb[0].mxu0
        %v9720 = vadd.f32 %v9367, %v9719
        %9721 = vdwg.mxu0
        %v9722 = vld [vmem:[%s10] sm:$0x3]
        %v9724 = vlaneseq
        %v9725 = vshrl.u32 %v9724, 7
        %v9726 = vsub.s32 0, %v9725
        %v9727 = vrot.slane %v9722, %v9726
        %v9728 = vlaneseq
        %v9729 = vshrl.u32 %v9728, 7
        %v9730 = vsub.s32 1, %v9729
        %v9731 = vrot.slane %v9722, %v9730
        %v9734 = vadd.f32 %v9564, %v9727
        %v9735 = vadd.f32 %v9566, %v9731
        %v9736 = vadd.f32 %v9568, %v9727
        %v9737 = vadd.f32 %v9570, %v9731
        %v9738 = vadd.f32 %v9574, %v9727
        %v9739 = vadd.f32 %v9576, %v9731
        %v9740 = vadd.f32 %v9578, %v9727
        %v9741 = vadd.f32 %v9580, %v9731
        %v9742 = vadd.f32 %v9584, %v9727
        %v9743 = vadd.f32 %v9586, %v9731
        %v9744 = vadd.f32 %v9588, %v9727
        %v9745 = vadd.f32 %v9590, %v9731
        %v9746 = vadd.f32 %v9594, %v9727
        %v9747 = vadd.f32 %v9596, %v9731
        %v9748 = vadd.f32 %v9598, %v9727
        %v9749 = vadd.f32 %v9600, %v9731
        %v9750 = vadd.f32 %v9604, %v9727
        %v9751 = vadd.f32 %v9606, %v9731
        %v9752 = vadd.f32 %v9608, %v9727
        %v9753 = vadd.f32 %v9610, %v9731
        %v9754 = vadd.f32 %v9614, %v9727
        %v9755 = vadd.f32 %v9616, %v9731
        %v9756 = vadd.f32 %v9618, %v9727
        %v9757 = vadd.f32 %v9620, %v9731
        %v9758 = vadd.f32 %v9624, %v9727
        %v9759 = vadd.f32 %v9626, %v9731
        %v9760 = vadd.f32 %v9628, %v9727
        %v9761 = vadd.f32 %v9630, %v9731
        %v9762 = vadd.f32 %v9634, %v9727
        %v9763 = vadd.f32 %v9636, %v9731
        %v9764 = vadd.f32 %v9638, %v9727
        %v9765 = vadd.f32 %v9640, %v9731
        %v9766 = vadd.f32 %v9644, %v9727
        %v9767 = vadd.f32 %v9646, %v9731
        %v9768 = vadd.f32 %v9648, %v9727
        %v9769 = vadd.f32 %v9650, %v9731
        %v9770 = vadd.f32 %v9654, %v9727
        %v9771 = vadd.f32 %v9656, %v9731
        %v9772 = vadd.f32 %v9658, %v9727
        %v9773 = vadd.f32 %v9660, %v9731
        %v9774 = vadd.f32 %v9664, %v9727
        %v9775 = vadd.f32 %v9666, %v9731
        %v9776 = vadd.f32 %v9668, %v9727
        %v9777 = vadd.f32 %v9670, %v9731
        %v9778 = vadd.f32 %v9674, %v9727
        %v9779 = vadd.f32 %v9676, %v9731
        %v9780 = vadd.f32 %v9678, %v9727
        %v9781 = vadd.f32 %v9680, %v9731
        %v9782 = vadd.f32 %v9684, %v9727
        %v9783 = vadd.f32 %v9686, %v9731
        %v9784 = vadd.f32 %v9688, %v9727
        %v9785 = vadd.f32 %v9690, %v9731
        %v9786 = vadd.f32 %v9694, %v9727
        %v9787 = vadd.f32 %v9696, %v9731
        %v9788 = vadd.f32 %v9698, %v9727
        %v9789 = vadd.f32 %v9700, %v9731
        %v9790 = vadd.f32 %v9704, %v9727
        %v9791 = vadd.f32 %v9706, %v9731
        %v9792 = vadd.f32 %v9708, %v9727
        %v9793 = vadd.f32 %v9710, %v9731
        %v9794 = vadd.f32 %v9714, %v9727
        %v9795 = vadd.f32 %v9716, %v9731
        %v9796 = vadd.f32 %v9718, %v9727
        %v9797 = vadd.f32 %v9720, %v9731
        %9798 = vst [vmem:[%s492] sm:$0xff] %v9734
        %9799 = vst [vmem:[%s492 + $0x8] sm:$0xff] %v9735
        %9800 = vst [vmem:[%s492 + $0x10] sm:$0xff] %v9736
        %9801 = vst [vmem:[%s492 + $0x18] sm:$0xff] %v9737
        %9802 = vst [vmem:[%s492 + $0x20] sm:$0xff] %v9738
        %9803 = vst [vmem:[%s492 + $0x28] sm:$0xff] %v9739
        %9804 = vst [vmem:[%s492 + $0x30] sm:$0xff] %v9740
        %9805 = vst [vmem:[%s492 + $0x38] sm:$0xff] %v9741
        %9806 = vst [vmem:[%s492 + $0x40] sm:$0xff] %v9742
        %9807 = vst [vmem:[%s492 + $0x48] sm:$0xff] %v9743
        %9808 = vst [vmem:[%s492 + $0x50] sm:$0xff] %v9744
        %9809 = vst [vmem:[%s492 + $0x58] sm:$0xff] %v9745
        %9810 = vst [vmem:[%s492 + $0x60] sm:$0xff] %v9746
        %9811 = vst [vmem:[%s492 + $0x68] sm:$0xff] %v9747
        %9812 = vst [vmem:[%s492 + $0x70] sm:$0xff] %v9748
        %9813 = vst [vmem:[%s492 + $0x78] sm:$0xff] %v9749
        %9814 = vst [vmem:[%s492 + $0x80] sm:$0xff] %v9750
        %9815 = vst [vmem:[%s492 + $0x88] sm:$0xff] %v9751
        %9816 = vst [vmem:[%s492 + $0x90] sm:$0xff] %v9752
        %9817 = vst [vmem:[%s492 + $0x98] sm:$0xff] %v9753
        %9818 = vst [vmem:[%s492 + $0xa0] sm:$0xff] %v9754
        %9819 = vst [vmem:[%s492 + $0xa8] sm:$0xff] %v9755
        %9820 = vst [vmem:[%s492 + $0xb0] sm:$0xff] %v9756
        %9821 = vst [vmem:[%s492 + $0xb8] sm:$0xff] %v9757
        %9822 = vst [vmem:[%s492 + $0xc0] sm:$0xff] %v9758
        %9823 = vst [vmem:[%s492 + $0xc8] sm:$0xff] %v9759
        %9824 = vst [vmem:[%s492 + $0xd0] sm:$0xff] %v9760
        %9825 = vst [vmem:[%s492 + $0xd8] sm:$0xff] %v9761
        %9826 = vst [vmem:[%s492 + $0xe0] sm:$0xff] %v9762
        %9827 = vst [vmem:[%s492 + $0xe8] sm:$0xff] %v9763
        %9828 = vst [vmem:[%s492 + $0xf0] sm:$0xff] %v9764
        %9829 = vst [vmem:[%s492 + $0xf8] sm:$0xff] %v9765
        %9830 = vst [vmem:[%s492 + $0x100] sm:$0xff] %v9766
        %9831 = vst [vmem:[%s492 + $0x108] sm:$0xff] %v9767
        %9832 = vst [vmem:[%s492 + $0x110] sm:$0xff] %v9768
        %9833 = vst [vmem:[%s492 + $0x118] sm:$0xff] %v9769
        %9834 = vst [vmem:[%s492 + $0x120] sm:$0xff] %v9770
        %9835 = vst [vmem:[%s492 + $0x128] sm:$0xff] %v9771
        %9836 = vst [vmem:[%s492 + $0x130] sm:$0xff] %v9772
        %9837 = vst [vmem:[%s492 + $0x138] sm:$0xff] %v9773
        %9838 = vst [vmem:[%s492 + $0x140] sm:$0xff] %v9774
        %9839 = vst [vmem:[%s492 + $0x148] sm:$0xff] %v9775
        %9840 = vst [vmem:[%s492 + $0x150] sm:$0xff] %v9776
        %9841 = vst [vmem:[%s492 + $0x158] sm:$0xff] %v9777
        %9842 = vst [vmem:[%s492 + $0x160] sm:$0xff] %v9778
        %9843 = vst [vmem:[%s492 + $0x168] sm:$0xff] %v9779
        %9844 = vst [vmem:[%s492 + $0x170] sm:$0xff] %v9780
        %9845 = vst [vmem:[%s492 + $0x178] sm:$0xff] %v9781
        %9846 = vst [vmem:[%s492 + $0x180] sm:$0xff] %v9782
        %9847 = vst [vmem:[%s492 + $0x188] sm:$0xff] %v9783
        %9848 = vst [vmem:[%s492 + $0x190] sm:$0xff] %v9784
        %9849 = vst [vmem:[%s492 + $0x198] sm:$0xff] %v9785
        %9850 = vst [vmem:[%s492 + $0x1a0] sm:$0xff] %v9786
        %9851 = vst [vmem:[%s492 + $0x1a8] sm:$0xff] %v9787
        %9852 = vst [vmem:[%s492 + $0x1b0] sm:$0xff] %v9788
        %9853 = vst [vmem:[%s492 + $0x1b8] sm:$0xff] %v9789
        %9854 = vst [vmem:[%s492 + $0x1c0] sm:$0xff] %v9790
        %9855 = vst [vmem:[%s492 + $0x1c8] sm:$0xff] %v9791
        %9856 = vst [vmem:[%s492 + $0x1d0] sm:$0xff] %v9792
        %9857 = vst [vmem:[%s492 + $0x1d8] sm:$0xff] %v9793
        %9858 = vst [vmem:[%s492 + $0x1e0] sm:$0xff] %v9794
        %9859 = vst [vmem:[%s492 + $0x1e8] sm:$0xff] %v9795
        %9860 = vst [vmem:[%s492 + $0x1f0] sm:$0xff] %v9796
        %9861 = vst [vmem:[%s492 + $0x1f8] sm:$0xff] %v9797
        %p9862 = scmp.lt.s32.totalorder %s33, 1
        %s9863 = scalar_select %p9862, %s33, 1
        %p9864 = scmp.lt.s32.totalorder %s34, 2
        %s9865 = scalar_select %p9864, %s34, 2
        %s9866 = smul.addr %s9865, 4
        %s9867 = smul.addr %s9863, 12
        %s9868 = sadd.s32 %s9866, %s9867
        %s9869 = smul.addr %s9868, 8
        %s9870 = scalar_lea.vmem %s11, %s9869
        %s9871 = sand.u32 %s322, 1
        %s9872 = scalar_lea.sflag [#allocation7], %s9871
        %s9873 = sand.u32 %s322, 1
        %s9874 = smul.addr %s9873, 512
        %s9875 = scalar_lea.vmem [#allocation10], %s9874
        // Predicated region
        $region89: #{_lambda_.1} parent=63 // pred_check
          %p9876 = pneg %p304
        $region90: #{_lambda_.1} parent=63 // pred_check_branch
          %9878 = sbr.rel (%p9876) target = $region92
        $region91: #{_lambda_.1} parent=63 // pred_region
          _
        $region92: #{_lambda_.1} parent=63 // pred_fallthru
          _
        // Predicated region
        $region93: #{_lambda_.1} parent=63 // pred_check
          %p9879 = pneg %p332
        $region94: #{_lambda_.1} parent=63 // pred_check_branch
          %9881 = sbr.rel (%p9879) target = $region96
        $region95: #{_lambda_.1} parent=63 // pred_region
          %s9882 = smul.u32 16, %s34
          %s9884 = ssub.s32 8192, 8192
          %9885 = vsyncadd %s9872, %s9884
          %s9886 = smul.addr %s9882, 4
          %s9887 = smul.addr %s33, 192
          %s9888 = sadd.s32 %s9886, %s9887
          %s9889 = smul.addr %s9888, 128
          %s9890 = scalar_lea.hbm %s12, %s9889
          %s9891 = sshll.u32 %s9875, 4
          %s9892 = int_to_ptr.vmem [resolvable:$true] %s9891
          %9897 = dma.vmem_to_hbm [thread:$0]  %s9892, 8192, %s9890, %s9872, 256, 256, 16
        $region96: #{_lambda_.1} parent=63 // pred_fallthru
          _
      $region64: #{_lambda_.1} parent=5 // pred_fallthru
        _
      %p9898 = scmp.le.s32.totalorder 2, %s24
      // Predicated region
      $region97: #{_lambda_.1} parent=5 // pred_check
        %p9899 = pneg %p9898
      $region98: #{_lambda_.1} parent=5 // pred_check_branch
        %9901 = sbr.rel (%p9899) target = $region100
      $region99: #{_lambda_.1} parent=5 // pred_region
        %s9902 = ssub.s32 %s24, 2
        // Predicated region
        $region101: #{_lambda_.1} parent=99 // pred_check
          %p9903 = pneg %p310
        $region102: #{_lambda_.1} parent=99 // pred_check_branch
          %9905 = sbr.rel (%p9903) target = $region104
        $region103: #{_lambda_.1} parent=99 // pred_region
          %p9906 = scmp.lt.s32.totalorder %s35, 1
          %s9907 = scalar_select %p9906, %s35, 1
          %p9908 = scmp.lt.s32.totalorder %s36, 2
          %s9909 = scalar_select %p9908, %s36, 2
          %s9910 = smul.addr %s9909, 4
          %s9911 = smul.addr %s9907, 12
          %s9912 = sadd.s32 %s9910, %s9911
          %s9913 = smul.addr %s9912, 8
          %s9914 = scalar_lea.vmem %s11, %s9913
        $region104: #{_lambda_.1} parent=99 // pred_fallthru
          _
        // Predicated region
        $region105: #{_lambda_.1} parent=99 // pred_check
          %p9915 = pneg %p338
        $region106: #{_lambda_.1} parent=99 // pred_check_branch
          %9917 = sbr.rel (%p9915) target = $region108
        $region107: #{_lambda_.1} parent=99 // pred_region
          %s9918 = sand.u32 %s323, 1
          %s9919 = scalar_lea.sflag [#allocation7], %s9918
          %s9920 = sand.u32 %s323, 1
          %s9921 = smul.addr %s9920, 512
          %s9922 = scalar_lea.vmem [#allocation10], %s9921
          %9923 = dma.done %s9919, 8192
        $region108: #{_lambda_.1} parent=99 // pred_fallthru
          _
      $region100: #{_lambda_.1} parent=5 // pred_fallthru
        _
    $region6: #{_lambda_.1} parent=1 // loop_footer
      %s28 = sadd.s32 1, %s24
    $region7: #{_lambda_.1} parent=1 // loop_footer_branch
      %23 = sbr.rel target = $region3
    $region8: #{_lambda_.1} parent=1 // loop_exit
      _
    %9924 = vsyncpa [#allocation6], 1
    %s9925 = scalar_lea.sflag [#allocation6], 1
    %9926 = vsyncpa %s9925, 1
    %9927 = vsyncpa [#allocation9], 1
    %9928 = vsyncpa [#allocation7], 1
    %s9929 = scalar_lea.sflag [#allocation7], 1
    %9930 = vsyncpa %s9929, 1

</llo_original>
